<compile_context>
chip_gen: v7x
topology: tpu7x:2x2x1
jax: 0.10.0
libtpu: 0.0.40
codegen_flags: <defaults>
</compile_context>

<pallas_src>
import jax
import jax.numpy as jnp
from jax.experimental import pallas as pl
from jax.experimental.pallas import tpu as pltpu


_DILATIONS = (1, 3, 5)
_P = max(_DILATIONS)          # spatial halo = max dilation
_BN_EPS = 1e-5


def _round_up(x, m):
    return ((x + m - 1) // m) * m


def _pick_h_tile(N, H, W):
    """H-tile: divides H, gives a matmul M-tile (th*W) >= 128 when possible, and keeps
    the total grid small-ish while still providing several steps for pipelining."""
    divisors = [d for d in range(1, H + 1) if H % d == 0]
    cands = [d for d in divisors if d * W >= 128] or divisors
    for d in cands:
        if N * (H // d) <= 64:
            return d
    return cands[-1]


# -----------------------------------------------------------------------------
# Fused kernel: grouped dilated 3x3 convs (+BN+ReLU) -> 1x1 matmul -> epilogue
# -----------------------------------------------------------------------------
def _sem_fused_call(xe_p, xo_p, we, wo, sh, w1, shift, *, H, W, th):
    N, Hp, Wp, rcp = xe_p.shape
    nb = we.shape[0]
    Cout = w1.shape[-1]                       # 2 * rcp (even | odd output channels)
    P = _P
    halo = th + 2 * P
    tm = th * W
    n_h = H // th

    def kernel(xe_ref, xo_ref, we_ref, wo_ref, sh_ref, w1_ref, shift_ref,
               o_ref, mm_ref):
        h0 = pl.multiple_of(pl.program_id(1) * th, th)   # tile start (unpadded coords)

        for b in range(nb):
            d = _DILATIONS[b]
            off = P - d
            we_b = we_ref[b]                              # (9, rcp) f32
            wo_b = wo_ref[b]                              # (9, rcp) f32
            # conv bias + BN(eval) folded into per-channel shift; start acc there.
            acc = jnp.broadcast_to(sh_ref[b:b + 1, :], (1, th, W, rcp))
            for dj in range(3):
                ws = off + dj * d
                # one unaligned sublane (W) slice per (plane, branch, dj); di taps
                # below only slice the major H axis (free offset).
                xe_w = xe_ref[:, pl.ds(h0, halo), ws:ws + W, :]       # bf16
                for di in range(3):
                    t = di * 3 + dj
                    hs = off + di * d
                    acc = acc + xe_w[:, hs:hs + th].astype(jnp.float32) * we_b[t:t + 1, :]
                xo_w = xo_ref[:, pl.ds(h0, halo), ws:ws + W, :]       # bf16
                for di in range(3):
                    t = di * 3 + dj
                    hs = off + di * d
                    acc = acc + xo_w[:, hs:hs + th].astype(jnp.float32) * wo_b[t:t + 1, :]
            # ReLU, cast to bf16 and feed the MXU immediately (gamma already folded
            # into w1); accumulate the three branches in a VMEM scratch.
            h_b = jnp.maximum(acc, 0.0).astype(jnp.bfloat16).reshape(tm, rcp)
            contrib = jnp.dot(h_b, w1_ref[b], preferred_element_type=jnp.float32)
            if b == 0:
                mm_ref[...] = contrib
            else:
                mm_ref[...] += contrib

        # Residual = the already-resident even/odd planes at the tile interior.
        res_e = xe_ref[:, pl.ds(h0 + P, th), P:P + W, :].reshape(tm, rcp)
        res_o = xo_ref[:, pl.ds(h0 + P, th), P:P + W, :].reshape(tm, rcp)
        res = jnp.concatenate([res_e, res_o], axis=-1).astype(jnp.float32)
        out = mm_ref[...] + shift_ref[...] + res
        o_ref[...] = out.reshape(1, th, W, Cout)

    flops = (4 * N * H * W * rcp * nb * 9            # grouped-conv FMAs (2 in-ch)
             + 2 * N * H * W * nb * rcp * Cout)      # 1x1 matmuls
    bytes_accessed = (2 * (xe_p.size + xo_p.size) + 2 * w1.size
                      + 4 * (we.size + wo.size + sh.size + shift.size)
                      + 4 * N * H * W * Cout)

    return pl.pallas_call(
        kernel,
        out_shape=jax.ShapeDtypeStruct((N, H, W, Cout), jnp.float32),
        grid_spec=pltpu.PrefetchScalarGridSpec(
            num_scalar_prefetch=0,
            grid=(N, n_h),
            in_specs=[
                pl.BlockSpec((1, Hp, Wp, rcp), lambda n, h: (n, 0, 0, 0)),
                pl.BlockSpec((1, Hp, Wp, rcp), lambda n, h: (n, 0, 0, 0)),
                pl.BlockSpec((nb, 9, rcp), lambda n, h: (0, 0, 0)),
                pl.BlockSpec((nb, 9, rcp), lambda n, h: (0, 0, 0)),
                pl.BlockSpec((nb, rcp), lambda n, h: (0, 0)),
                pl.BlockSpec((nb, rcp, Cout), lambda n, h: (0, 0, 0)),
                pl.BlockSpec((1, Cout), lambda n, h: (0, 0)),
            ],
            out_specs=pl.BlockSpec((1, th, W, Cout), lambda n, h: (n, h, 0, 0)),
            scratch_shapes=[pltpu.VMEM((tm, Cout), jnp.float32)]),
        compiler_params=pltpu.CompilerParams(
            dimension_semantics=("parallel", "parallel")),
        cost_estimate=pl.CostEstimate(
            flops=int(flops), transcendentals=0,
            bytes_accessed=int(bytes_accessed)),
    )(xe_p, xo_p, we, wo, sh, w1, shift)


# -----------------------------------------------------------------------------
# SEM forward (eval mode: BatchNorm uses running statistics)
# -----------------------------------------------------------------------------
def sem_forward(params, x):
    """x: [N, C, H, W] f32  ->  [N, C, H, W] f32."""
    N, C, H, W = x.shape
    assert C % 2 == 0
    rc = C // 2
    rcp = _round_up(rc, 128)
    P = _P
    gamma = params["gamma"].reshape(()).astype(jnp.float32)

    # One NCHW->NHWC transpose; even/odd channel planes for the groups=C/2 convs.
    # Planes are stored bf16 (input rounding is well within the 5% tolerance; the
    # tap accumulation below stays f32).
    x_nhwc = jnp.transpose(x, (0, 2, 3, 1)).astype(jnp.float32)       # [N,H,W,C]
    xe = x_nhwc[..., 0::2].astype(jnp.bfloat16)                       # [N,H,W,rc]
    xo = x_nhwc[..., 1::2].astype(jnp.bfloat16)
    pad = ((0, 0), (P, P), (P, P), (0, rcp - rc))
    xe_p = jnp.pad(xe, pad)
    xo_p = jnp.pad(xo, pad)

    # Fold conv bias + BatchNorm(eval) into per-channel tap weights / shift; fold
    # gamma into the 1x1 weights and permute their output columns to even/odd order.
    we_l, wo_l, sh_l, w1_l = [], [], [], []
    b1_sum = jnp.zeros((C,), jnp.float32)
    for b in range(3):
        p = params[f"branch{b + 1}"]
        s = p["bn_gamma"] / jnp.sqrt(p["bn_var"] + _BN_EPS)           # [rc]
        fw = p["w3"].astype(jnp.float32) * s[:, None, None, None]     # [rc,2,3,3]
        fb = s * p["b3"].astype(jnp.float32) + (p["bn_beta"] - p["bn_mean"] * s)
        we_l.append(jnp.pad(fw[:, 0].reshape(rc, 9).T, ((0, 0), (0, rcp - rc))))
        wo_l.append(jnp.pad(fw[:, 1].reshape(rc, 9).T, ((0, 0), (0, rcp - rc))))
        sh_l.append(jnp.pad(fb, (0, rcp - rc)))
        w1 = p["w1"].reshape(C, rc).astype(jnp.float32)               # [out=C, in=rc]
        w1_e = (gamma * w1[0::2, :]).T                                # [rc, rc]
        w1_o = (gamma * w1[1::2, :]).T
        w1_l.append(jnp.concatenate(
            [jnp.pad(w1_e, ((0, rcp - rc), (0, rcp - rc))),
             jnp.pad(w1_o, ((0, rcp - rc), (0, rcp - rc)))], axis=1))  # [rcp, 2*rcp]
        b1_sum = b1_sum + p["b1"].astype(jnp.float32)

    we = jnp.stack(we_l).astype(jnp.float32)                 # [3, 9, rcp]
    wo = jnp.stack(wo_l).astype(jnp.float32)
    sh = jnp.stack(sh_l).astype(jnp.float32)                 # [3, rcp]
    w1 = jnp.stack(w1_l).astype(jnp.bfloat16)                # [3, rcp, 2*rcp]
    shift = (gamma * jnp.concatenate(
        [jnp.pad(b1_sum[0::2], (0, rcp - rc)),
         jnp.pad(b1_sum[1::2], (0, rcp - rc))])).reshape(1, 2 * rcp).astype(jnp.float32)

    th = _pick_h_tile(N, H, W)
    out_eo = _sem_fused_call(xe_p, xo_p, we, wo, sh, w1, shift, H=H, W=W, th=th)

    # Re-interleave even/odd output channels and go back to NCHW.
    out_e = out_eo[..., :rc]
    out_o = out_eo[..., rcp:rcp + rc]
    out_nhwc = jnp.stack([out_e, out_o], axis=-1).reshape(N, H, W, C)
    return jnp.transpose(out_nhwc, (0, 3, 1, 2))


# -----------------------------------------------------------------------------
# Pure-JAX reference (for validation only)
# -----------------------------------------------------------------------------
def _sem_reference(params, x):
    N, C, H, W = x.shape
    rc = C // 2
    gamma = params["gamma"].astype(jnp.float32)
    sa = jnp.zeros_like(x)
    for b, d in zip(range(3), _DILATIONS):
        p = params[f"branch{b + 1}"]
        z = jax.lax.conv_general_dilated(
            x, p["w3"], window_strides=(1, 1), padding=((d, d), (d, d)),
            rhs_dilation=(d, d), dimension_numbers=("NCHW", "OIHW", "NCHW"),
            feature_group_count=rc)
        z = z + p["b3"][None, :, None, None]
        s = p["bn_gamma"] / jnp.sqrt(p["bn_var"] + _BN_EPS)
        z = s[None, :, None, None] * (z - p["bn_mean"][None, :, None, None]) \
            + p["bn_beta"][None, :, None, None]
        z = jnp.maximum(z, 0.0)
        z = jax.lax.conv_general_dilated(
            z, p["w1"], (1, 1), "VALID",
            dimension_numbers=("NCHW", "OIHW", "NCHW"))
        sa = sa + z + p["b1"][None, :, None, None]
    return gamma.reshape(1, 1, 1, 1) * sa + x


# -----------------------------------------------------------------------------
# Deterministic parameter construction
# -----------------------------------------------------------------------------
def init_sem_params(key, C):
    rc = C // 2
    keys = iter(jax.random.split(key, 32))
    nk = lambda: next(keys)
    # PyTorch initializes gamma to 0 (output == x); use 0.5 here so the test
    # exercises the full compute path.  Forward semantics are unchanged.
    params = {"gamma": jnp.array([0.5], jnp.float32)}
    for b in range(3):
        params[f"branch{b + 1}"] = {
            "w3": jax.random.normal(nk(), (rc, 2, 3, 3), jnp.float32) * (2.0 / 18.0) ** 0.5,
            "b3": 0.05 * jax.random.normal(nk(), (rc,), jnp.float32),
            "bn_gamma": 1.0 + 0.1 * jax.random.normal(nk(), (rc,), jnp.float32),
            "bn_beta": 0.1 * jax.random.normal(nk(), (rc,), jnp.float32),
            "bn_mean": 0.1 * jax.random.normal(nk(), (rc,), jnp.float32),
            "bn_var": 1.0 + 0.2 * jax.random.uniform(nk(), (rc,), jnp.float32),
            "w1": jax.random.normal(nk(), (C, rc, 1, 1), jnp.float32) * (2.0 / rc) ** 0.5,
            "b1": 0.05 * jax.random.normal(nk(), (C,), jnp.float32),
        }
    return params


# -----------------------------------------------------------------------------
if __name__ == "__main__":
    key = jax.random.PRNGKey(0)
    kx, kp = jax.random.split(key)
    # SEM in LSNet is instantiated with 160 channels; small spatial / batch here.
    N, C, H, W = 2, 160, 16, 16
    x = jax.random.normal(kx, (N, C, H, W), jnp.float32)
    params = init_sem_params(kp, C)

    fwd = jax.jit(sem_forward)
    out = fwd(params, x)
    jax.block_until_ready(out)

    assert out.shape == (N, C, H, W), out.shape
    assert bool(jnp.all(jnp.isfinite(out)))

    ref = _sem_reference(params, x)
    rel_err = float(jnp.max(jnp.abs(out - ref)) / (jnp.max(jnp.abs(ref)) + 1e-6))
    assert rel_err < 0.05, f"mismatch vs reference: rel err {rel_err}"

    print("KERNEL_OK")
</pallas_src>

<mosaic_0001>
module attributes {stable_mosaic.version = 11 : i64} {
  func.func @kernel(%arg0: i32, %arg1: i32, %arg2: memref<1x26x26x128xbf16, #tpu.memory_space<vmem>>, %arg3: memref<1x26x26x128xbf16, #tpu.memory_space<vmem>>, %arg4: memref<3x9x128xf32, #tpu.memory_space<vmem>>, %arg5: memref<3x9x128xf32, #tpu.memory_space<vmem>>, %arg6: memref<3x128xf32, #tpu.memory_space<vmem>>, %arg7: memref<3x128x256xbf16, #tpu.memory_space<vmem>>, %arg8: memref<1x256xf32, #tpu.memory_space<vmem>>, %arg9: memref<1x8x16x256xf32, #tpu.memory_space<vmem>>, %arg10: memref<128x256xf32, #tpu.memory_space<vmem>>) attributes {dimension_semantics = [#tpu.dimension_semantics<parallel>, #tpu.dimension_semantics<parallel>], iteration_bounds = array<i64: 2, 2>, scalar_prefetch = 0 : i64, scratch_operands = 1 : i64, tpu.core_type = #tpu.core_type<tc>, window_params = [{transform_indices = @transform_0, window_bounds = array<i64: 1, 26, 26, 128>}, {transform_indices = @transform_1, window_bounds = array<i64: 1, 26, 26, 128>}, {pipeline_mode = #tpu.pipeline_mode<synchronous>, transform_indices = @transform_2, window_bounds = array<i64: 3, 9, 128>}, {pipeline_mode = #tpu.pipeline_mode<synchronous>, transform_indices = @transform_3, window_bounds = array<i64: 3, 9, 128>}, {pipeline_mode = #tpu.pipeline_mode<synchronous>, transform_indices = @transform_4, window_bounds = array<i64: 3, 128>}, {pipeline_mode = #tpu.pipeline_mode<synchronous>, transform_indices = @transform_5, window_bounds = array<i64: 3, 128, 256>}, {pipeline_mode = #tpu.pipeline_mode<synchronous>, transform_indices = @transform_6, window_bounds = array<i64: 1, 256>}, {transform_indices = @transform_7, window_bounds = array<i64: 1, 8, 16, 256>}]} {
    %c8_i32 = arith.constant 8 : i32
    %0 = arith.muli %arg1, %c8_i32 : i32
    %1 = tpu.assume_multiple %0, 8 : i32
    %c0 = arith.constant 0 : index
    %c0_0 = arith.constant 0 : index
    %c0_1 = arith.constant 0 : index
    %2 = vector.load %arg4[%c0, %c0_0, %c0_1] : memref<3x9x128xf32, #tpu.memory_space<vmem>>, vector<1x9x128xf32>
    %3 = vector.shape_cast %2 : vector<1x9x128xf32> to vector<9x128xf32>
    %c0_2 = arith.constant 0 : index
    %c0_3 = arith.constant 0 : index
    %c0_4 = arith.constant 0 : index
    %4 = vector.load %arg5[%c0_2, %c0_3, %c0_4] : memref<3x9x128xf32, #tpu.memory_space<vmem>>, vector<1x9x128xf32>
    %5 = vector.shape_cast %4 : vector<1x9x128xf32> to vector<9x128xf32>
    %c0_5 = arith.constant 0 : index
    %c0_6 = arith.constant 0 : index
    %6 = vector.load %arg6[%c0_5, %c0_6] : memref<3x128xf32, #tpu.memory_space<vmem>>, vector<1x128xf32>
    %7 = vector.shape_cast %6 : vector<1x128xf32> to vector<1x1x1x128xf32>
    %8 = vector.broadcast %7 : vector<1x1x1x128xf32> to vector<1x8x16x128xf32>
    %c0_7 = arith.constant 0 : index
    %9 = arith.index_cast %1 : i32 to index
    %c4 = arith.constant 4 : index
    %c0_8 = arith.constant 0 : index
    %10 = vector.load %arg2[%c0_7, %9, %c4, %c0_8] : memref<1x26x26x128xbf16, #tpu.memory_space<vmem>>, vector<1x18x16x128xbf16>
    %11 = vector.extract_strided_slice %10 {offsets = [0, 4, 0, 0], sizes = [1, 8, 16, 128], strides = [1, 1, 1, 1]} : vector<1x18x16x128xbf16> to vector<1x8x16x128xbf16>
    %12 = arith.extf %11 : vector<1x8x16x128xbf16> to vector<1x8x16x128xf32>
    %13 = vector.extract_strided_slice %3 {offsets = [0, 0], sizes = [1, 128], strides = [1, 1]} : vector<9x128xf32> to vector<1x128xf32>
    %14 = vector.shape_cast %13 : vector<1x128xf32> to vector<1x1x1x128xf32>
    %15 = vector.broadcast %14 : vector<1x1x1x128xf32> to vector<1x8x16x128xf32>
    %16 = arith.mulf %12, %15 : vector<1x8x16x128xf32>
    %17 = arith.addf %8, %16 : vector<1x8x16x128xf32>
    %18 = vector.extract_strided_slice %10 {offsets = [0, 5, 0, 0], sizes = [1, 8, 16, 128], strides = [1, 1, 1, 1]} : vector<1x18x16x128xbf16> to vector<1x8x16x128xbf16>
    %19 = arith.extf %18 : vector<1x8x16x128xbf16> to vector<1x8x16x128xf32>
    %20 = vector.extract_strided_slice %3 {offsets = [3, 0], sizes = [1, 128], strides = [1, 1]} : vector<9x128xf32> to vector<1x128xf32>
    %21 = vector.shape_cast %20 : vector<1x128xf32> to vector<1x1x1x128xf32>
    %22 = vector.broadcast %21 : vector<1x1x1x128xf32> to vector<1x8x16x128xf32>
    %23 = arith.mulf %19, %22 : vector<1x8x16x128xf32>
    %24 = arith.addf %17, %23 : vector<1x8x16x128xf32>
    %25 = vector.extract_strided_slice %10 {offsets = [0, 6, 0, 0], sizes = [1, 8, 16, 128], strides = [1, 1, 1, 1]} : vector<1x18x16x128xbf16> to vector<1x8x16x128xbf16>
    %26 = arith.extf %25 : vector<1x8x16x128xbf16> to vector<1x8x16x128xf32>
    %27 = vector.extract_strided_slice %3 {offsets = [6, 0], sizes = [1, 128], strides = [1, 1]} : vector<9x128xf32> to vector<1x128xf32>
    %28 = vector.shape_cast %27 : vector<1x128xf32> to vector<1x1x1x128xf32>
    %29 = vector.broadcast %28 : vector<1x1x1x128xf32> to vector<1x8x16x128xf32>
    %30 = arith.mulf %26, %29 : vector<1x8x16x128xf32>
    %31 = arith.addf %24, %30 : vector<1x8x16x128xf32>
    %c0_9 = arith.constant 0 : index
    %32 = arith.index_cast %1 : i32 to index
    %c4_10 = arith.constant 4 : index
    %c0_11 = arith.constant 0 : index
    %33 = vector.load %arg3[%c0_9, %32, %c4_10, %c0_11] : memref<1x26x26x128xbf16, #tpu.memory_space<vmem>>, vector<1x18x16x128xbf16>
    %34 = vector.extract_strided_slice %33 {offsets = [0, 4, 0, 0], sizes = [1, 8, 16, 128], strides = [1, 1, 1, 1]} : vector<1x18x16x128xbf16> to vector<1x8x16x128xbf16>
    %35 = arith.extf %34 : vector<1x8x16x128xbf16> to vector<1x8x16x128xf32>
    %36 = vector.extract_strided_slice %5 {offsets = [0, 0], sizes = [1, 128], strides = [1, 1]} : vector<9x128xf32> to vector<1x128xf32>
    %37 = vector.shape_cast %36 : vector<1x128xf32> to vector<1x1x1x128xf32>
    %38 = vector.broadcast %37 : vector<1x1x1x128xf32> to vector<1x8x16x128xf32>
    %39 = arith.mulf %35, %38 : vector<1x8x16x128xf32>
    %40 = arith.addf %31, %39 : vector<1x8x16x128xf32>
    %41 = vector.extract_strided_slice %33 {offsets = [0, 5, 0, 0], sizes = [1, 8, 16, 128], strides = [1, 1, 1, 1]} : vector<1x18x16x128xbf16> to vector<1x8x16x128xbf16>
    %42 = arith.extf %41 : vector<1x8x16x128xbf16> to vector<1x8x16x128xf32>
    %43 = vector.extract_strided_slice %5 {offsets = [3, 0], sizes = [1, 128], strides = [1, 1]} : vector<9x128xf32> to vector<1x128xf32>
    %44 = vector.shape_cast %43 : vector<1x128xf32> to vector<1x1x1x128xf32>
    %45 = vector.broadcast %44 : vector<1x1x1x128xf32> to vector<1x8x16x128xf32>
    %46 = arith.mulf %42, %45 : vector<1x8x16x128xf32>
    %47 = arith.addf %40, %46 : vector<1x8x16x128xf32>
    %48 = vector.extract_strided_slice %33 {offsets = [0, 6, 0, 0], sizes = [1, 8, 16, 128], strides = [1, 1, 1, 1]} : vector<1x18x16x128xbf16> to vector<1x8x16x128xbf16>
    %49 = arith.extf %48 : vector<1x8x16x128xbf16> to vector<1x8x16x128xf32>
    %50 = vector.extract_strided_slice %5 {offsets = [6, 0], sizes = [1, 128], strides = [1, 1]} : vector<9x128xf32> to vector<1x128xf32>
    %51 = vector.shape_cast %50 : vector<1x128xf32> to vector<1x1x1x128xf32>
    %52 = vector.broadcast %51 : vector<1x1x1x128xf32> to vector<1x8x16x128xf32>
    %53 = arith.mulf %49, %52 : vector<1x8x16x128xf32>
    %54 = arith.addf %47, %53 : vector<1x8x16x128xf32>
    %c0_12 = arith.constant 0 : index
    %55 = arith.index_cast %1 : i32 to index
    %c5 = arith.constant 5 : index
    %c0_13 = arith.constant 0 : index
    %56 = vector.load %arg2[%c0_12, %55, %c5, %c0_13] : memref<1x26x26x128xbf16, #tpu.memory_space<vmem>>, vector<1x18x16x128xbf16>
    %57 = vector.extract_strided_slice %56 {offsets = [0, 4, 0, 0], sizes = [1, 8, 16, 128], strides = [1, 1, 1, 1]} : vector<1x18x16x128xbf16> to vector<1x8x16x128xbf16>
    %58 = arith.extf %57 : vector<1x8x16x128xbf16> to vector<1x8x16x128xf32>
    %59 = vector.extract_strided_slice %3 {offsets = [1, 0], sizes = [1, 128], strides = [1, 1]} : vector<9x128xf32> to vector<1x128xf32>
    %60 = vector.shape_cast %59 : vector<1x128xf32> to vector<1x1x1x128xf32>
    %61 = vector.broadcast %60 : vector<1x1x1x128xf32> to vector<1x8x16x128xf32>
    %62 = arith.mulf %58, %61 : vector<1x8x16x128xf32>
    %63 = arith.addf %54, %62 : vector<1x8x16x128xf32>
    %64 = vector.extract_strided_slice %56 {offsets = [0, 5, 0, 0], sizes = [1, 8, 16, 128], strides = [1, 1, 1, 1]} : vector<1x18x16x128xbf16> to vector<1x8x16x128xbf16>
    %65 = arith.extf %64 : vector<1x8x16x128xbf16> to vector<1x8x16x128xf32>
    %66 = vector.extract_strided_slice %3 {offsets = [4, 0], sizes = [1, 128], strides = [1, 1]} : vector<9x128xf32> to vector<1x128xf32>
    %67 = vector.shape_cast %66 : vector<1x128xf32> to vector<1x1x1x128xf32>
    %68 = vector.broadcast %67 : vector<1x1x1x128xf32> to vector<1x8x16x128xf32>
    %69 = arith.mulf %65, %68 : vector<1x8x16x128xf32>
    %70 = arith.addf %63, %69 : vector<1x8x16x128xf32>
    %71 = vector.extract_strided_slice %56 {offsets = [0, 6, 0, 0], sizes = [1, 8, 16, 128], strides = [1, 1, 1, 1]} : vector<1x18x16x128xbf16> to vector<1x8x16x128xbf16>
    %72 = arith.extf %71 : vector<1x8x16x128xbf16> to vector<1x8x16x128xf32>
    %73 = vector.extract_strided_slice %3 {offsets = [7, 0], sizes = [1, 128], strides = [1, 1]} : vector<9x128xf32> to vector<1x128xf32>
    %74 = vector.shape_cast %73 : vector<1x128xf32> to vector<1x1x1x128xf32>
    %75 = vector.broadcast %74 : vector<1x1x1x128xf32> to vector<1x8x16x128xf32>
    %76 = arith.mulf %72, %75 : vector<1x8x16x128xf32>
    %77 = arith.addf %70, %76 : vector<1x8x16x128xf32>
    %c0_14 = arith.constant 0 : index
    %78 = arith.index_cast %1 : i32 to index
    %c5_15 = arith.constant 5 : index
    %c0_16 = arith.constant 0 : index
    %79 = vector.load %arg3[%c0_14, %78, %c5_15, %c0_16] : memref<1x26x26x128xbf16, #tpu.memory_space<vmem>>, vector<1x18x16x128xbf16>
    %80 = vector.extract_strided_slice %79 {offsets = [0, 4, 0, 0], sizes = [1, 8, 16, 128], strides = [1, 1, 1, 1]} : vector<1x18x16x128xbf16> to vector<1x8x16x128xbf16>
    %81 = arith.extf %80 : vector<1x8x16x128xbf16> to vector<1x8x16x128xf32>
    %82 = vector.extract_strided_slice %5 {offsets = [1, 0], sizes = [1, 128], strides = [1, 1]} : vector<9x128xf32> to vector<1x128xf32>
    %83 = vector.shape_cast %82 : vector<1x128xf32> to vector<1x1x1x128xf32>
    %84 = vector.broadcast %83 : vector<1x1x1x128xf32> to vector<1x8x16x128xf32>
    %85 = arith.mulf %81, %84 : vector<1x8x16x128xf32>
    %86 = arith.addf %77, %85 : vector<1x8x16x128xf32>
    %87 = vector.extract_strided_slice %79 {offsets = [0, 5, 0, 0], sizes = [1, 8, 16, 128], strides = [1, 1, 1, 1]} : vector<1x18x16x128xbf16> to vector<1x8x16x128xbf16>
    %88 = arith.extf %87 : vector<1x8x16x128xbf16> to vector<1x8x16x128xf32>
    %89 = vector.extract_strided_slice %5 {offsets = [4, 0], sizes = [1, 128], strides = [1, 1]} : vector<9x128xf32> to vector<1x128xf32>
    %90 = vector.shape_cast %89 : vector<1x128xf32> to vector<1x1x1x128xf32>
    %91 = vector.broadcast %90 : vector<1x1x1x128xf32> to vector<1x8x16x128xf32>
    %92 = arith.mulf %88, %91 : vector<1x8x16x128xf32>
    %93 = arith.addf %86, %92 : vector<1x8x16x128xf32>
    %94 = vector.extract_strided_slice %79 {offsets = [0, 6, 0, 0], sizes = [1, 8, 16, 128], strides = [1, 1, 1, 1]} : vector<1x18x16x128xbf16> to vector<1x8x16x128xbf16>
    %95 = arith.extf %94 : vector<1x8x16x128xbf16> to vector<1x8x16x128xf32>
    %96 = vector.extract_strided_slice %5 {offsets = [7, 0], sizes = [1, 128], strides = [1, 1]} : vector<9x128xf32> to vector<1x128xf32>
    %97 = vector.shape_cast %96 : vector<1x128xf32> to vector<1x1x1x128xf32>
    %98 = vector.broadcast %97 : vector<1x1x1x128xf32> to vector<1x8x16x128xf32>
    %99 = arith.mulf %95, %98 : vector<1x8x16x128xf32>
    %100 = arith.addf %93, %99 : vector<1x8x16x128xf32>
    %c0_17 = arith.constant 0 : index
    %101 = arith.index_cast %1 : i32 to index
    %c6 = arith.constant 6 : index
    %c0_18 = arith.constant 0 : index
    %102 = vector.load %arg2[%c0_17, %101, %c6, %c0_18] : memref<1x26x26x128xbf16, #tpu.memory_space<vmem>>, vector<1x18x16x128xbf16>
    %103 = vector.extract_strided_slice %102 {offsets = [0, 4, 0, 0], sizes = [1, 8, 16, 128], strides = [1, 1, 1, 1]} : vector<1x18x16x128xbf16> to vector<1x8x16x128xbf16>
    %104 = arith.extf %103 : vector<1x8x16x128xbf16> to vector<1x8x16x128xf32>
    %105 = vector.extract_strided_slice %3 {offsets = [2, 0], sizes = [1, 128], strides = [1, 1]} : vector<9x128xf32> to vector<1x128xf32>
    %106 = vector.shape_cast %105 : vector<1x128xf32> to vector<1x1x1x128xf32>
    %107 = vector.broadcast %106 : vector<1x1x1x128xf32> to vector<1x8x16x128xf32>
    %108 = arith.mulf %104, %107 : vector<1x8x16x128xf32>
    %109 = arith.addf %100, %108 : vector<1x8x16x128xf32>
    %110 = vector.extract_strided_slice %102 {offsets = [0, 5, 0, 0], sizes = [1, 8, 16, 128], strides = [1, 1, 1, 1]} : vector<1x18x16x128xbf16> to vector<1x8x16x128xbf16>
    %111 = arith.extf %110 : vector<1x8x16x128xbf16> to vector<1x8x16x128xf32>
    %112 = vector.extract_strided_slice %3 {offsets = [5, 0], sizes = [1, 128], strides = [1, 1]} : vector<9x128xf32> to vector<1x128xf32>
    %113 = vector.shape_cast %112 : vector<1x128xf32> to vector<1x1x1x128xf32>
    %114 = vector.broadcast %113 : vector<1x1x1x128xf32> to vector<1x8x16x128xf32>
    %115 = arith.mulf %111, %114 : vector<1x8x16x128xf32>
    %116 = arith.addf %109, %115 : vector<1x8x16x128xf32>
    %117 = vector.extract_strided_slice %102 {offsets = [0, 6, 0, 0], sizes = [1, 8, 16, 128], strides = [1, 1, 1, 1]} : vector<1x18x16x128xbf16> to vector<1x8x16x128xbf16>
    %118 = arith.extf %117 : vector<1x8x16x128xbf16> to vector<1x8x16x128xf32>
    %119 = vector.extract_strided_slice %3 {offsets = [8, 0], sizes = [1, 128], strides = [1, 1]} : vector<9x128xf32> to vector<1x128xf32>
    %120 = vector.shape_cast %119 : vector<1x128xf32> to vector<1x1x1x128xf32>
    %121 = vector.broadcast %120 : vector<1x1x1x128xf32> to vector<1x8x16x128xf32>
    %122 = arith.mulf %118, %121 : vector<1x8x16x128xf32>
    %123 = arith.addf %116, %122 : vector<1x8x16x128xf32>
    %c0_19 = arith.constant 0 : index
    %124 = arith.index_cast %1 : i32 to index
    %c6_20 = arith.constant 6 : index
    %c0_21 = arith.constant 0 : index
    %125 = vector.load %arg3[%c0_19, %124, %c6_20, %c0_21] : memref<1x26x26x128xbf16, #tpu.memory_space<vmem>>, vector<1x18x16x128xbf16>
    %126 = vector.extract_strided_slice %125 {offsets = [0, 4, 0, 0], sizes = [1, 8, 16, 128], strides = [1, 1, 1, 1]} : vector<1x18x16x128xbf16> to vector<1x8x16x128xbf16>
    %127 = arith.extf %126 : vector<1x8x16x128xbf16> to vector<1x8x16x128xf32>
    %128 = vector.extract_strided_slice %5 {offsets = [2, 0], sizes = [1, 128], strides = [1, 1]} : vector<9x128xf32> to vector<1x128xf32>
    %129 = vector.shape_cast %128 : vector<1x128xf32> to vector<1x1x1x128xf32>
    %130 = vector.broadcast %129 : vector<1x1x1x128xf32> to vector<1x8x16x128xf32>
    %131 = arith.mulf %127, %130 : vector<1x8x16x128xf32>
    %132 = arith.addf %123, %131 : vector<1x8x16x128xf32>
    %133 = vector.extract_strided_slice %125 {offsets = [0, 5, 0, 0], sizes = [1, 8, 16, 128], strides = [1, 1, 1, 1]} : vector<1x18x16x128xbf16> to vector<1x8x16x128xbf16>
    %134 = arith.extf %133 : vector<1x8x16x128xbf16> to vector<1x8x16x128xf32>
    %135 = vector.extract_strided_slice %5 {offsets = [5, 0], sizes = [1, 128], strides = [1, 1]} : vector<9x128xf32> to vector<1x128xf32>
    %136 = vector.shape_cast %135 : vector<1x128xf32> to vector<1x1x1x128xf32>
    %137 = vector.broadcast %136 : vector<1x1x1x128xf32> to vector<1x8x16x128xf32>
    %138 = arith.mulf %134, %137 : vector<1x8x16x128xf32>
    %139 = arith.addf %132, %138 : vector<1x8x16x128xf32>
    %140 = vector.extract_strided_slice %125 {offsets = [0, 6, 0, 0], sizes = [1, 8, 16, 128], strides = [1, 1, 1, 1]} : vector<1x18x16x128xbf16> to vector<1x8x16x128xbf16>
    %141 = arith.extf %140 : vector<1x8x16x128xbf16> to vector<1x8x16x128xf32>
    %142 = vector.extract_strided_slice %5 {offsets = [8, 0], sizes = [1, 128], strides = [1, 1]} : vector<9x128xf32> to vector<1x128xf32>
    %143 = vector.shape_cast %142 : vector<1x128xf32> to vector<1x1x1x128xf32>
    %144 = vector.broadcast %143 : vector<1x1x1x128xf32> to vector<1x8x16x128xf32>
    %145 = arith.mulf %141, %144 : vector<1x8x16x128xf32>
    %146 = arith.addf %139, %145 : vector<1x8x16x128xf32>
    %cst = arith.constant 0.000000e+00 : f32
    %147 = vector.broadcast %cst : f32 to vector<1x8x16x128xf32>
    %148 = arith.maximumf %146, %147 : vector<1x8x16x128xf32>
    %149 = arith.truncf %148 : vector<1x8x16x128xf32> to vector<1x8x16x128xbf16>
    %150 = vector.shape_cast %149 : vector<1x8x16x128xbf16> to vector<128x128xbf16>
    %c0_22 = arith.constant 0 : index
    %c0_23 = arith.constant 0 : index
    %c0_24 = arith.constant 0 : index
    %151 = vector.load %arg7[%c0_22, %c0_23, %c0_24] : memref<3x128x256xbf16, #tpu.memory_space<vmem>>, vector<1x128x256xbf16>
    %152 = vector.shape_cast %151 : vector<1x128x256xbf16> to vector<128x256xbf16>
    %cst_25 = arith.constant dense<0.000000e+00> : vector<128x256xf32>
    %153 = tpu.matmul %150, %152, %cst_25 {dimension_numbers = #tpu.dot_dimension_numbers<[1], [0], [0], [1], [0, 0, 1, 1], [], []>} : vector<128x128xbf16>, vector<128x256xbf16>, vector<128x256xf32> -> vector<128x256xf32>
    %c0_26 = arith.constant 0 : index
    %c0_27 = arith.constant 0 : index
    %154 = vector.load %arg10[%c0_26, %c0_27] : memref<128x256xf32, #tpu.memory_space<vmem>>, vector<128x256xf32>
    tpu.vector_store %arg10[%c0_26, %c0_27], %153 {strides = array<i32>} : memref<128x256xf32, #tpu.memory_space<vmem>>, vector<128x256xf32>,
    %c1 = arith.constant 1 : index
    %c0_28 = arith.constant 0 : index
    %c0_29 = arith.constant 0 : index
    %155 = vector.load %arg4[%c1, %c0_28, %c0_29] : memref<3x9x128xf32, #tpu.memory_space<vmem>>, vector<1x9x128xf32>
    %156 = vector.shape_cast %155 : vector<1x9x128xf32> to vector<9x128xf32>
    %c1_30 = arith.constant 1 : index
    %c0_31 = arith.constant 0 : index
    %c0_32 = arith.constant 0 : index
    %157 = vector.load %arg5[%c1_30, %c0_31, %c0_32] : memref<3x9x128xf32, #tpu.memory_space<vmem>>, vector<1x9x128xf32>
    %158 = vector.shape_cast %157 : vector<1x9x128xf32> to vector<9x128xf32>
    %c1_33 = arith.constant 1 : index
    %c0_34 = arith.constant 0 : index
    %159 = vector.load %arg6[%c1_33, %c0_34] : memref<3x128xf32, #tpu.memory_space<vmem>>, vector<1x128xf32>
    %160 = vector.shape_cast %159 : vector<1x128xf32> to vector<1x1x1x128xf32>
    %161 = vector.broadcast %160 : vector<1x1x1x128xf32> to vector<1x8x16x128xf32>
    %c0_35 = arith.constant 0 : index
    %162 = arith.index_cast %1 : i32 to index
    %c2 = arith.constant 2 : index
    %c0_36 = arith.constant 0 : index
    %163 = vector.load %arg2[%c0_35, %162, %c2, %c0_36] : memref<1x26x26x128xbf16, #tpu.memory_space<vmem>>, vector<1x18x16x128xbf16>
    %164 = vector.extract_strided_slice %163 {offsets = [0, 2, 0, 0], sizes = [1, 8, 16, 128], strides = [1, 1, 1, 1]} : vector<1x18x16x128xbf16> to vector<1x8x16x128xbf16>
    %165 = arith.extf %164 : vector<1x8x16x128xbf16> to vector<1x8x16x128xf32>
    %166 = vector.extract_strided_slice %156 {offsets = [0, 0], sizes = [1, 128], strides = [1, 1]} : vector<9x128xf32> to vector<1x128xf32>
    %167 = vector.shape_cast %166 : vector<1x128xf32> to vector<1x1x1x128xf32>
    %168 = vector.broadcast %167 : vector<1x1x1x128xf32> to vector<1x8x16x128xf32>
    %169 = arith.mulf %165, %168 : vector<1x8x16x128xf32>
    %170 = arith.addf %161, %169 : vector<1x8x16x128xf32>
    %171 = vector.extract_strided_slice %163 {offsets = [0, 5, 0, 0], sizes = [1, 8, 16, 128], strides = [1, 1, 1, 1]} : vector<1x18x16x128xbf16> to vector<1x8x16x128xbf16>
    %172 = arith.extf %171 : vector<1x8x16x128xbf16> to vector<1x8x16x128xf32>
    %173 = vector.extract_strided_slice %156 {offsets = [3, 0], sizes = [1, 128], strides = [1, 1]} : vector<9x128xf32> to vector<1x128xf32>
    %174 = vector.shape_cast %173 : vector<1x128xf32> to vector<1x1x1x128xf32>
    %175 = vector.broadcast %174 : vector<1x1x1x128xf32> to vector<1x8x16x128xf32>
    %176 = arith.mulf %172, %175 : vector<1x8x16x128xf32>
    %177 = arith.addf %170, %176 : vector<1x8x16x128xf32>
    %178 = vector.extract_strided_slice %163 {offsets = [0, 8, 0, 0], sizes = [1, 8, 16, 128], strides = [1, 1, 1, 1]} : vector<1x18x16x128xbf16> to vector<1x8x16x128xbf16>
    %179 = arith.extf %178 : vector<1x8x16x128xbf16> to vector<1x8x16x128xf32>
    %180 = vector.extract_strided_slice %156 {offsets = [6, 0], sizes = [1, 128], strides = [1, 1]} : vector<9x128xf32> to vector<1x128xf32>
    %181 = vector.shape_cast %180 : vector<1x128xf32> to vector<1x1x1x128xf32>
    %182 = vector.broadcast %181 : vector<1x1x1x128xf32> to vector<1x8x16x128xf32>
    %183 = arith.mulf %179, %182 : vector<1x8x16x128xf32>
    %184 = arith.addf %177, %183 : vector<1x8x16x128xf32>
    %c0_37 = arith.constant 0 : index
    %185 = arith.index_cast %1 : i32 to index
    %c2_38 = arith.constant 2 : index
    %c0_39 = arith.constant 0 : index
    %186 = vector.load %arg3[%c0_37, %185, %c2_38, %c0_39] : memref<1x26x26x128xbf16, #tpu.memory_space<vmem>>, vector<1x18x16x128xbf16>
    %187 = vector.extract_strided_slice %186 {offsets = [0, 2, 0, 0], sizes = [1, 8, 16, 128], strides = [1, 1, 1, 1]} : vector<1x18x16x128xbf16> to vector<1x8x16x128xbf16>
    %188 = arith.extf %187 : vector<1x8x16x128xbf16> to vector<1x8x16x128xf32>
    %189 = vector.extract_strided_slice %158 {offsets = [0, 0], sizes = [1, 128], strides = [1, 1]} : vector<9x128xf32> to vector<1x128xf32>
    %190 = vector.shape_cast %189 : vector<1x128xf32> to vector<1x1x1x128xf32>
    %191 = vector.broadcast %190 : vector<1x1x1x128xf32> to vector<1x8x16x128xf32>
    %192 = arith.mulf %188, %191 : vector<1x8x16x128xf32>
    %193 = arith.addf %184, %192 : vector<1x8x16x128xf32>
    %194 = vector.extract_strided_slice %186 {offsets = [0, 5, 0, 0], sizes = [1, 8, 16, 128], strides = [1, 1, 1, 1]} : vector<1x18x16x128xbf16> to vector<1x8x16x128xbf16>
    %195 = arith.extf %194 : vector<1x8x16x128xbf16> to vector<1x8x16x128xf32>
    %196 = vector.extract_strided_slice %158 {offsets = [3, 0], sizes = [1, 128], strides = [1, 1]} : vector<9x128xf32> to vector<1x128xf32>
    %197 = vector.shape_cast %196 : vector<1x128xf32> to vector<1x1x1x128xf32>
    %198 = vector.broadcast %197 : vector<1x1x1x128xf32> to vector<1x8x16x128xf32>
    %199 = arith.mulf %195, %198 : vector<1x8x16x128xf32>
    %200 = arith.addf %193, %199 : vector<1x8x16x128xf32>
    %201 = vector.extract_strided_slice %186 {offsets = [0, 8, 0, 0], sizes = [1, 8, 16, 128], strides = [1, 1, 1, 1]} : vector<1x18x16x128xbf16> to vector<1x8x16x128xbf16>
    %202 = arith.extf %201 : vector<1x8x16x128xbf16> to vector<1x8x16x128xf32>
    %203 = vector.extract_strided_slice %158 {offsets = [6, 0], sizes = [1, 128], strides = [1, 1]} : vector<9x128xf32> to vector<1x128xf32>
    %204 = vector.shape_cast %203 : vector<1x128xf32> to vector<1x1x1x128xf32>
    %205 = vector.broadcast %204 : vector<1x1x1x128xf32> to vector<1x8x16x128xf32>
    %206 = arith.mulf %202, %205 : vector<1x8x16x128xf32>
    %207 = arith.addf %200, %206 : vector<1x8x16x128xf32>
    %c0_40 = arith.constant 0 : index
    %208 = arith.index_cast %1 : i32 to index
    %c5_41 = arith.constant 5 : index
    %c0_42 = arith.constant 0 : index
    %209 = vector.load %arg2[%c0_40, %208, %c5_41, %c0_42] : memref<1x26x26x128xbf16, #tpu.memory_space<vmem>>, vector<1x18x16x128xbf16>
    %210 = vector.extract_strided_slice %209 {offsets = [0, 2, 0, 0], sizes = [1, 8, 16, 128], strides = [1, 1, 1, 1]} : vector<1x18x16x128xbf16> to vector<1x8x16x128xbf16>
    %211 = arith.extf %210 : vector<1x8x16x128xbf16> to vector<1x8x16x128xf32>
    %212 = vector.extract_strided_slice %156 {offsets = [1, 0], sizes = [1, 128], strides = [1, 1]} : vector<9x128xf32> to vector<1x128xf32>
    %213 = vector.shape_cast %212 : vector<1x128xf32> to vector<1x1x1x128xf32>
    %214 = vector.broadcast %213 : vector<1x1x1x128xf32> to vector<1x8x16x128xf32>
    %215 = arith.mulf %211, %214 : vector<1x8x16x128xf32>
    %216 = arith.addf %207, %215 : vector<1x8x16x128xf32>
    %217 = vector.extract_strided_slice %209 {offsets = [0, 5, 0, 0], sizes = [1, 8, 16, 128], strides = [1, 1, 1, 1]} : vector<1x18x16x128xbf16> to vector<1x8x16x128xbf16>
    %218 = arith.extf %217 : vector<1x8x16x128xbf16> to vector<1x8x16x128xf32>
    %219 = vector.extract_strided_slice %156 {offsets = [4, 0], sizes = [1, 128], strides = [1, 1]} : vector<9x128xf32> to vector<1x128xf32>
    %220 = vector.shape_cast %219 : vector<1x128xf32> to vector<1x1x1x128xf32>
    %221 = vector.broadcast %220 : vector<1x1x1x128xf32> to vector<1x8x16x128xf32>
    %222 = arith.mulf %218, %221 : vector<1x8x16x128xf32>
    %223 = arith.addf %216, %222 : vector<1x8x16x128xf32>
    %224 = vector.extract_strided_slice %209 {offsets = [0, 8, 0, 0], sizes = [1, 8, 16, 128], strides = [1, 1, 1, 1]} : vector<1x18x16x128xbf16> to vector<1x8x16x128xbf16>
    %225 = arith.extf %224 : vector<1x8x16x128xbf16> to vector<1x8x16x128xf32>
    %226 = vector.extract_strided_slice %156 {offsets = [7, 0], sizes = [1, 128], strides = [1, 1]} : vector<9x128xf32> to vector<1x128xf32>
    %227 = vector.shape_cast %226 : vector<1x128xf32> to vector<1x1x1x128xf32>
    %228 = vector.broadcast %227 : vector<1x1x1x128xf32> to vector<1x8x16x128xf32>
    %229 = arith.mulf %225, %228 : vector<1x8x16x128xf32>
    %230 = arith.addf %223, %229 : vector<1x8x16x128xf32>
    %c0_43 = arith.constant 0 : index
    %231 = arith.index_cast %1 : i32 to index
    %c5_44 = arith.constant 5 : index
    %c0_45 = arith.constant 0 : index
    %232 = vector.load %arg3[%c0_43, %231, %c5_44, %c0_45] : memref<1x26x26x128xbf16, #tpu.memory_space<vmem>>, vector<1x18x16x128xbf16>
    %233 = vector.extract_strided_slice %232 {offsets = [0, 2, 0, 0], sizes = [1, 8, 16, 128], strides = [1, 1, 1, 1]} : vector<1x18x16x128xbf16> to vector<1x8x16x128xbf16>
    %234 = arith.extf %233 : vector<1x8x16x128xbf16> to vector<1x8x16x128xf32>
    %235 = vector.extract_strided_slice %158 {offsets = [1, 0], sizes = [1, 128], strides = [1, 1]} : vector<9x128xf32> to vector<1x128xf32>
    %236 = vector.shape_cast %235 : vector<1x128xf32> to vector<1x1x1x128xf32>
    %237 = vector.broadcast %236 : vector<1x1x1x128xf32> to vector<1x8x16x128xf32>
    %238 = arith.mulf %234, %237 : vector<1x8x16x128xf32>
    %239 = arith.addf %230, %238 : vector<1x8x16x128xf32>
    %240 = vector.extract_strided_slice %232 {offsets = [0, 5, 0, 0], sizes = [1, 8, 16, 128], strides = [1, 1, 1, 1]} : vector<1x18x16x128xbf16> to vector<1x8x16x128xbf16>
    %241 = arith.extf %240 : vector<1x8x16x128xbf16> to vector<1x8x16x128xf32>
    %242 = vector.extract_strided_slice %158 {offsets = [4, 0], sizes = [1, 128], strides = [1, 1]} : vector<9x128xf32> to vector<1x128xf32>
    %243 = vector.shape_cast %242 : vector<1x128xf32> to vector<1x1x1x128xf32>
    %244 = vector.broadcast %243 : vector<1x1x1x128xf32> to vector<1x8x16x128xf32>
    %245 = arith.mulf %241, %244 : vector<1x8x16x128xf32>
    %246 = arith.addf %239, %245 : vector<1x8x16x128xf32>
    %247 = vector.extract_strided_slice %232 {offsets = [0, 8, 0, 0], sizes = [1, 8, 16, 128], strides = [1, 1, 1, 1]} : vector<1x18x16x128xbf16> to vector<1x8x16x128xbf16>
    %248 = arith.extf %247 : vector<1x8x16x128xbf16> to vector<1x8x16x128xf32>
    %249 = vector.extract_strided_slice %158 {offsets = [7, 0], sizes = [1, 128], strides = [1, 1]} : vector<9x128xf32> to vector<1x128xf32>
    %250 = vector.shape_cast %249 : vector<1x128xf32> to vector<1x1x1x128xf32>
    %251 = vector.broadcast %250 : vector<1x1x1x128xf32> to vector<1x8x16x128xf32>
    %252 = arith.mulf %248, %251 : vector<1x8x16x128xf32>
    %253 = arith.addf %246, %252 : vector<1x8x16x128xf32>
    %c0_46 = arith.constant 0 : index
    %254 = arith.index_cast %1 : i32 to index
    %c8 = arith.constant 8 : index
    %c0_47 = arith.constant 0 : index
    %255 = vector.load %arg2[%c0_46, %254, %c8, %c0_47] : memref<1x26x26x128xbf16, #tpu.memory_space<vmem>>, vector<1x18x16x128xbf16>
    %256 = vector.extract_strided_slice %255 {offsets = [0, 2, 0, 0], sizes = [1, 8, 16, 128], strides = [1, 1, 1, 1]} : vector<1x18x16x128xbf16> to vector<1x8x16x128xbf16>
    %257 = arith.extf %256 : vector<1x8x16x128xbf16> to vector<1x8x16x128xf32>
    %258 = vector.extract_strided_slice %156 {offsets = [2, 0], sizes = [1, 128], strides = [1, 1]} : vector<9x128xf32> to vector<1x128xf32>
    %259 = vector.shape_cast %258 : vector<1x128xf32> to vector<1x1x1x128xf32>
    %260 = vector.broadcast %259 : vector<1x1x1x128xf32> to vector<1x8x16x128xf32>
    %261 = arith.mulf %257, %260 : vector<1x8x16x128xf32>
    %262 = arith.addf %253, %261 : vector<1x8x16x128xf32>
    %263 = vector.extract_strided_slice %255 {offsets = [0, 5, 0, 0], sizes = [1, 8, 16, 128], strides = [1, 1, 1, 1]} : vector<1x18x16x128xbf16> to vector<1x8x16x128xbf16>
    %264 = arith.extf %263 : vector<1x8x16x128xbf16> to vector<1x8x16x128xf32>
    %265 = vector.extract_strided_slice %156 {offsets = [5, 0], sizes = [1, 128], strides = [1, 1]} : vector<9x128xf32> to vector<1x128xf32>
    %266 = vector.shape_cast %265 : vector<1x128xf32> to vector<1x1x1x128xf32>
    %267 = vector.broadcast %266 : vector<1x1x1x128xf32> to vector<1x8x16x128xf32>
    %268 = arith.mulf %264, %267 : vector<1x8x16x128xf32>
    %269 = arith.addf %262, %268 : vector<1x8x16x128xf32>
    %270 = vector.extract_strided_slice %255 {offsets = [0, 8, 0, 0], sizes = [1, 8, 16, 128], strides = [1, 1, 1, 1]} : vector<1x18x16x128xbf16> to vector<1x8x16x128xbf16>
    %271 = arith.extf %270 : vector<1x8x16x128xbf16> to vector<1x8x16x128xf32>
    %272 = vector.extract_strided_slice %156 {offsets = [8, 0], sizes = [1, 128], strides = [1, 1]} : vector<9x128xf32> to vector<1x128xf32>
    %273 = vector.shape_cast %272 : vector<1x128xf32> to vector<1x1x1x128xf32>
    %274 = vector.broadcast %273 : vector<1x1x1x128xf32> to vector<1x8x16x128xf32>
    %275 = arith.mulf %271, %274 : vector<1x8x16x128xf32>
    %276 = arith.addf %269, %275 : vector<1x8x16x128xf32>
    %c0_48 = arith.constant 0 : index
    %277 = arith.index_cast %1 : i32 to index
    %c8_49 = arith.constant 8 : index
    %c0_50 = arith.constant 0 : index
    %278 = vector.load %arg3[%c0_48, %277, %c8_49, %c0_50] : memref<1x26x26x128xbf16, #tpu.memory_space<vmem>>, vector<1x18x16x128xbf16>
    %279 = vector.extract_strided_slice %278 {offsets = [0, 2, 0, 0], sizes = [1, 8, 16, 128], strides = [1, 1, 1, 1]} : vector<1x18x16x128xbf16> to vector<1x8x16x128xbf16>
    %280 = arith.extf %279 : vector<1x8x16x128xbf16> to vector<1x8x16x128xf32>
    %281 = vector.extract_strided_slice %158 {offsets = [2, 0], sizes = [1, 128], strides = [1, 1]} : vector<9x128xf32> to vector<1x128xf32>
    %282 = vector.shape_cast %281 : vector<1x128xf32> to vector<1x1x1x128xf32>
    %283 = vector.broadcast %282 : vector<1x1x1x128xf32> to vector<1x8x16x128xf32>
    %284 = arith.mulf %280, %283 : vector<1x8x16x128xf32>
    %285 = arith.addf %276, %284 : vector<1x8x16x128xf32>
    %286 = vector.extract_strided_slice %278 {offsets = [0, 5, 0, 0], sizes = [1, 8, 16, 128], strides = [1, 1, 1, 1]} : vector<1x18x16x128xbf16> to vector<1x8x16x128xbf16>
    %287 = arith.extf %286 : vector<1x8x16x128xbf16> to vector<1x8x16x128xf32>
    %288 = vector.extract_strided_slice %158 {offsets = [5, 0], sizes = [1, 128], strides = [1, 1]} : vector<9x128xf32> to vector<1x128xf32>
    %289 = vector.shape_cast %288 : vector<1x128xf32> to vector<1x1x1x128xf32>
    %290 = vector.broadcast %289 : vector<1x1x1x128xf32> to vector<1x8x16x128xf32>
    %291 = arith.mulf %287, %290 : vector<1x8x16x128xf32>
    %292 = arith.addf %285, %291 : vector<1x8x16x128xf32>
    %293 = vector.extract_strided_slice %278 {offsets = [0, 8, 0, 0], sizes = [1, 8, 16, 128], strides = [1, 1, 1, 1]} : vector<1x18x16x128xbf16> to vector<1x8x16x128xbf16>
    %294 = arith.extf %293 : vector<1x8x16x128xbf16> to vector<1x8x16x128xf32>
    %295 = vector.extract_strided_slice %158 {offsets = [8, 0], sizes = [1, 128], strides = [1, 1]} : vector<9x128xf32> to vector<1x128xf32>
    %296 = vector.shape_cast %295 : vector<1x128xf32> to vector<1x1x1x128xf32>
    %297 = vector.broadcast %296 : vector<1x1x1x128xf32> to vector<1x8x16x128xf32>
    %298 = arith.mulf %294, %297 : vector<1x8x16x128xf32>
    %299 = arith.addf %292, %298 : vector<1x8x16x128xf32>
    %cst_51 = arith.constant 0.000000e+00 : f32
    %300 = vector.broadcast %cst_51 : f32 to vector<1x8x16x128xf32>
    %301 = arith.maximumf %299, %300 : vector<1x8x16x128xf32>
    %302 = arith.truncf %301 : vector<1x8x16x128xf32> to vector<1x8x16x128xbf16>
    %303 = vector.shape_cast %302 : vector<1x8x16x128xbf16> to vector<128x128xbf16>
    %c1_52 = arith.constant 1 : index
    %c0_53 = arith.constant 0 : index
    %c0_54 = arith.constant 0 : index
    %304 = vector.load %arg7[%c1_52, %c0_53, %c0_54] : memref<3x128x256xbf16, #tpu.memory_space<vmem>>, vector<1x128x256xbf16>
    %305 = vector.shape_cast %304 : vector<1x128x256xbf16> to vector<128x256xbf16>
    %cst_55 = arith.constant dense<0.000000e+00> : vector<128x256xf32>
    %306 = tpu.matmul %303, %305, %cst_55 {dimension_numbers = #tpu.dot_dimension_numbers<[1], [0], [0], [1], [0, 0, 1, 1], [], []>} : vector<128x128xbf16>, vector<128x256xbf16>, vector<128x256xf32> -> vector<128x256xf32>
    %c0_56 = arith.constant 0 : index
    %c0_57 = arith.constant 0 : index
    %307 = vector.load %arg10[%c0_56, %c0_57] : memref<128x256xf32, #tpu.memory_space<vmem>>, vector<128x256xf32>
    %308 = arith.addf %307, %306 : vector<128x256xf32>
    %c0_58 = arith.constant 0 : index
    %c0_59 = arith.constant 0 : index
    %309 = vector.load %arg10[%c0_58, %c0_59] : memref<128x256xf32, #tpu.memory_space<vmem>>, vector<128x256xf32>
    tpu.vector_store %arg10[%c0_58, %c0_59], %308 {strides = array<i32>} : memref<128x256xf32, #tpu.memory_space<vmem>>, vector<128x256xf32>,
    %c2_60 = arith.constant 2 : index
    %c0_61 = arith.constant 0 : index
    %c0_62 = arith.constant 0 : index
    %310 = vector.load %arg4[%c2_60, %c0_61, %c0_62] : memref<3x9x128xf32, #tpu.memory_space<vmem>>, vector<1x9x128xf32>
    %311 = vector.shape_cast %310 : vector<1x9x128xf32> to vector<9x128xf32>
    %c2_63 = arith.constant 2 : index
    %c0_64 = arith.constant 0 : index
    %c0_65 = arith.constant 0 : index
    %312 = vector.load %arg5[%c2_63, %c0_64, %c0_65] : memref<3x9x128xf32, #tpu.memory_space<vmem>>, vector<1x9x128xf32>
    %313 = vector.shape_cast %312 : vector<1x9x128xf32> to vector<9x128xf32>
    %c2_66 = arith.constant 2 : index
    %c0_67 = arith.constant 0 : index
    %314 = vector.load %arg6[%c2_66, %c0_67] : memref<3x128xf32, #tpu.memory_space<vmem>>, vector<1x128xf32>
    %315 = vector.shape_cast %314 : vector<1x128xf32> to vector<1x1x1x128xf32>
    %316 = vector.broadcast %315 : vector<1x1x1x128xf32> to vector<1x8x16x128xf32>
    %c0_68 = arith.constant 0 : index
    %317 = arith.index_cast %1 : i32 to index
    %c0_69 = arith.constant 0 : index
    %c0_70 = arith.constant 0 : index
    %318 = vector.load %arg2[%c0_68, %317, %c0_69, %c0_70] : memref<1x26x26x128xbf16, #tpu.memory_space<vmem>>, vector<1x18x16x128xbf16>
    %319 = vector.extract_strided_slice %318 {offsets = [0, 0, 0, 0], sizes = [1, 8, 16, 128], strides = [1, 1, 1, 1]} : vector<1x18x16x128xbf16> to vector<1x8x16x128xbf16>
    %320 = arith.extf %319 : vector<1x8x16x128xbf16> to vector<1x8x16x128xf32>
    %321 = vector.extract_strided_slice %311 {offsets = [0, 0], sizes = [1, 128], strides = [1, 1]} : vector<9x128xf32> to vector<1x128xf32>
    %322 = vector.shape_cast %321 : vector<1x128xf32> to vector<1x1x1x128xf32>
    %323 = vector.broadcast %322 : vector<1x1x1x128xf32> to vector<1x8x16x128xf32>
    %324 = arith.mulf %320, %323 : vector<1x8x16x128xf32>
    %325 = arith.addf %316, %324 : vector<1x8x16x128xf32>
    %326 = vector.extract_strided_slice %318 {offsets = [0, 5, 0, 0], sizes = [1, 8, 16, 128], strides = [1, 1, 1, 1]} : vector<1x18x16x128xbf16> to vector<1x8x16x128xbf16>
    %327 = arith.extf %326 : vector<1x8x16x128xbf16> to vector<1x8x16x128xf32>
    %328 = vector.extract_strided_slice %311 {offsets = [3, 0], sizes = [1, 128], strides = [1, 1]} : vector<9x128xf32> to vector<1x128xf32>
    %329 = vector.shape_cast %328 : vector<1x128xf32> to vector<1x1x1x128xf32>
    %330 = vector.broadcast %329 : vector<1x1x1x128xf32> to vector<1x8x16x128xf32>
    %331 = arith.mulf %327, %330 : vector<1x8x16x128xf32>
    %332 = arith.addf %325, %331 : vector<1x8x16x128xf32>
    %333 = vector.extract_strided_slice %318 {offsets = [0, 10, 0, 0], sizes = [1, 8, 16, 128], strides = [1, 1, 1, 1]} : vector<1x18x16x128xbf16> to vector<1x8x16x128xbf16>
    %334 = arith.extf %333 : vector<1x8x16x128xbf16> to vector<1x8x16x128xf32>
    %335 = vector.extract_strided_slice %311 {offsets = [6, 0], sizes = [1, 128], strides = [1, 1]} : vector<9x128xf32> to vector<1x128xf32>
    %336 = vector.shape_cast %335 : vector<1x128xf32> to vector<1x1x1x128xf32>
    %337 = vector.broadcast %336 : vector<1x1x1x128xf32> to vector<1x8x16x128xf32>
    %338 = arith.mulf %334, %337 : vector<1x8x16x128xf32>
    %339 = arith.addf %332, %338 : vector<1x8x16x128xf32>
    %c0_71 = arith.constant 0 : index
    %340 = arith.index_cast %1 : i32 to index
    %c0_72 = arith.constant 0 : index
    %c0_73 = arith.constant 0 : index
    %341 = vector.load %arg3[%c0_71, %340, %c0_72, %c0_73] : memref<1x26x26x128xbf16, #tpu.memory_space<vmem>>, vector<1x18x16x128xbf16>
    %342 = vector.extract_strided_slice %341 {offsets = [0, 0, 0, 0], sizes = [1, 8, 16, 128], strides = [1, 1, 1, 1]} : vector<1x18x16x128xbf16> to vector<1x8x16x128xbf16>
    %343 = arith.extf %342 : vector<1x8x16x128xbf16> to vector<1x8x16x128xf32>
    %344 = vector.extract_strided_slice %313 {offsets = [0, 0], sizes = [1, 128], strides = [1, 1]} : vector<9x128xf32> to vector<1x128xf32>
    %345 = vector.shape_cast %344 : vector<1x128xf32> to vector<1x1x1x128xf32>
    %346 = vector.broadcast %345 : vector<1x1x1x128xf32> to vector<1x8x16x128xf32>
    %347 = arith.mulf %343, %346 : vector<1x8x16x128xf32>
    %348 = arith.addf %339, %347 : vector<1x8x16x128xf32>
    %349 = vector.extract_strided_slice %341 {offsets = [0, 5, 0, 0], sizes = [1, 8, 16, 128], strides = [1, 1, 1, 1]} : vector<1x18x16x128xbf16> to vector<1x8x16x128xbf16>
    %350 = arith.extf %349 : vector<1x8x16x128xbf16> to vector<1x8x16x128xf32>
    %351 = vector.extract_strided_slice %313 {offsets = [3, 0], sizes = [1, 128], strides = [1, 1]} : vector<9x128xf32> to vector<1x128xf32>
    %352 = vector.shape_cast %351 : vector<1x128xf32> to vector<1x1x1x128xf32>
    %353 = vector.broadcast %352 : vector<1x1x1x128xf32> to vector<1x8x16x128xf32>
    %354 = arith.mulf %350, %353 : vector<1x8x16x128xf32>
    %355 = arith.addf %348, %354 : vector<1x8x16x128xf32>
    %356 = vector.extract_strided_slice %341 {offsets = [0, 10, 0, 0], sizes = [1, 8, 16, 128], strides = [1, 1, 1, 1]} : vector<1x18x16x128xbf16> to vector<1x8x16x128xbf16>
    %357 = arith.extf %356 : vector<1x8x16x128xbf16> to vector<1x8x16x128xf32>
    %358 = vector.extract_strided_slice %313 {offsets = [6, 0], sizes = [1, 128], strides = [1, 1]} : vector<9x128xf32> to vector<1x128xf32>
    %359 = vector.shape_cast %358 : vector<1x128xf32> to vector<1x1x1x128xf32>
    %360 = vector.broadcast %359 : vector<1x1x1x128xf32> to vector<1x8x16x128xf32>
    %361 = arith.mulf %357, %360 : vector<1x8x16x128xf32>
    %362 = arith.addf %355, %361 : vector<1x8x16x128xf32>
    %c0_74 = arith.constant 0 : index
    %363 = arith.index_cast %1 : i32 to index
    %c5_75 = arith.constant 5 : index
    %c0_76 = arith.constant 0 : index
    %364 = vector.load %arg2[%c0_74, %363, %c5_75, %c0_76] : memref<1x26x26x128xbf16, #tpu.memory_space<vmem>>, vector<1x18x16x128xbf16>
    %365 = vector.extract_strided_slice %364 {offsets = [0, 0, 0, 0], sizes = [1, 8, 16, 128], strides = [1, 1, 1, 1]} : vector<1x18x16x128xbf16> to vector<1x8x16x128xbf16>
    %366 = arith.extf %365 : vector<1x8x16x128xbf16> to vector<1x8x16x128xf32>
    %367 = vector.extract_strided_slice %311 {offsets = [1, 0], sizes = [1, 128], strides = [1, 1]} : vector<9x128xf32> to vector<1x128xf32>
    %368 = vector.shape_cast %367 : vector<1x128xf32> to vector<1x1x1x128xf32>
    %369 = vector.broadcast %368 : vector<1x1x1x128xf32> to vector<1x8x16x128xf32>
    %370 = arith.mulf %366, %369 : vector<1x8x16x128xf32>
    %371 = arith.addf %362, %370 : vector<1x8x16x128xf32>
    %372 = vector.extract_strided_slice %364 {offsets = [0, 5, 0, 0], sizes = [1, 8, 16, 128], strides = [1, 1, 1, 1]} : vector<1x18x16x128xbf16> to vector<1x8x16x128xbf16>
    %373 = arith.extf %372 : vector<1x8x16x128xbf16> to vector<1x8x16x128xf32>
    %374 = vector.extract_strided_slice %311 {offsets = [4, 0], sizes = [1, 128], strides = [1, 1]} : vector<9x128xf32> to vector<1x128xf32>
    %375 = vector.shape_cast %374 : vector<1x128xf32> to vector<1x1x1x128xf32>
    %376 = vector.broadcast %375 : vector<1x1x1x128xf32> to vector<1x8x16x128xf32>
    %377 = arith.mulf %373, %376 : vector<1x8x16x128xf32>
    %378 = arith.addf %371, %377 : vector<1x8x16x128xf32>
    %379 = vector.extract_strided_slice %364 {offsets = [0, 10, 0, 0], sizes = [1, 8, 16, 128], strides = [1, 1, 1, 1]} : vector<1x18x16x128xbf16> to vector<1x8x16x128xbf16>
    %380 = arith.extf %379 : vector<1x8x16x128xbf16> to vector<1x8x16x128xf32>
    %381 = vector.extract_strided_slice %311 {offsets = [7, 0], sizes = [1, 128], strides = [1, 1]} : vector<9x128xf32> to vector<1x128xf32>
    %382 = vector.shape_cast %381 : vector<1x128xf32> to vector<1x1x1x128xf32>
    %383 = vector.broadcast %382 : vector<1x1x1x128xf32> to vector<1x8x16x128xf32>
    %384 = arith.mulf %380, %383 : vector<1x8x16x128xf32>
    %385 = arith.addf %378, %384 : vector<1x8x16x128xf32>
    %c0_77 = arith.constant 0 : index
    %386 = arith.index_cast %1 : i32 to index
    %c5_78 = arith.constant 5 : index
    %c0_79 = arith.constant 0 : index
    %387 = vector.load %arg3[%c0_77, %386, %c5_78, %c0_79] : memref<1x26x26x128xbf16, #tpu.memory_space<vmem>>, vector<1x18x16x128xbf16>
    %388 = vector.extract_strided_slice %387 {offsets = [0, 0, 0, 0], sizes = [1, 8, 16, 128], strides = [1, 1, 1, 1]} : vector<1x18x16x128xbf16> to vector<1x8x16x128xbf16>
    %389 = arith.extf %388 : vector<1x8x16x128xbf16> to vector<1x8x16x128xf32>
    %390 = vector.extract_strided_slice %313 {offsets = [1, 0], sizes = [1, 128], strides = [1, 1]} : vector<9x128xf32> to vector<1x128xf32>
    %391 = vector.shape_cast %390 : vector<1x128xf32> to vector<1x1x1x128xf32>
    %392 = vector.broadcast %391 : vector<1x1x1x128xf32> to vector<1x8x16x128xf32>
    %393 = arith.mulf %389, %392 : vector<1x8x16x128xf32>
    %394 = arith.addf %385, %393 : vector<1x8x16x128xf32>
    %395 = vector.extract_strided_slice %387 {offsets = [0, 5, 0, 0], sizes = [1, 8, 16, 128], strides = [1, 1, 1, 1]} : vector<1x18x16x128xbf16> to vector<1x8x16x128xbf16>
    %396 = arith.extf %395 : vector<1x8x16x128xbf16> to vector<1x8x16x128xf32>
    %397 = vector.extract_strided_slice %313 {offsets = [4, 0], sizes = [1, 128], strides = [1, 1]} : vector<9x128xf32> to vector<1x128xf32>
    %398 = vector.shape_cast %397 : vector<1x128xf32> to vector<1x1x1x128xf32>
    %399 = vector.broadcast %398 : vector<1x1x1x128xf32> to vector<1x8x16x128xf32>
    %400 = arith.mulf %396, %399 : vector<1x8x16x128xf32>
    %401 = arith.addf %394, %400 : vector<1x8x16x128xf32>
    %402 = vector.extract_strided_slice %387 {offsets = [0, 10, 0, 0], sizes = [1, 8, 16, 128], strides = [1, 1, 1, 1]} : vector<1x18x16x128xbf16> to vector<1x8x16x128xbf16>
    %403 = arith.extf %402 : vector<1x8x16x128xbf16> to vector<1x8x16x128xf32>
    %404 = vector.extract_strided_slice %313 {offsets = [7, 0], sizes = [1, 128], strides = [1, 1]} : vector<9x128xf32> to vector<1x128xf32>
    %405 = vector.shape_cast %404 : vector<1x128xf32> to vector<1x1x1x128xf32>
    %406 = vector.broadcast %405 : vector<1x1x1x128xf32> to vector<1x8x16x128xf32>
    %407 = arith.mulf %403, %406 : vector<1x8x16x128xf32>
    %408 = arith.addf %401, %407 : vector<1x8x16x128xf32>
    %c0_80 = arith.constant 0 : index
    %409 = arith.index_cast %1 : i32 to index
    %c10 = arith.constant 10 : index
    %c0_81 = arith.constant 0 : index
    %410 = vector.load %arg2[%c0_80, %409, %c10, %c0_81] : memref<1x26x26x128xbf16, #tpu.memory_space<vmem>>, vector<1x18x16x128xbf16>
    %411 = vector.extract_strided_slice %410 {offsets = [0, 0, 0, 0], sizes = [1, 8, 16, 128], strides = [1, 1, 1, 1]} : vector<1x18x16x128xbf16> to vector<1x8x16x128xbf16>
    %412 = arith.extf %411 : vector<1x8x16x128xbf16> to vector<1x8x16x128xf32>
    %413 = vector.extract_strided_slice %311 {offsets = [2, 0], sizes = [1, 128], strides = [1, 1]} : vector<9x128xf32> to vector<1x128xf32>
    %414 = vector.shape_cast %413 : vector<1x128xf32> to vector<1x1x1x128xf32>
    %415 = vector.broadcast %414 : vector<1x1x1x128xf32> to vector<1x8x16x128xf32>
    %416 = arith.mulf %412, %415 : vector<1x8x16x128xf32>
    %417 = arith.addf %408, %416 : vector<1x8x16x128xf32>
    %418 = vector.extract_strided_slice %410 {offsets = [0, 5, 0, 0], sizes = [1, 8, 16, 128], strides = [1, 1, 1, 1]} : vector<1x18x16x128xbf16> to vector<1x8x16x128xbf16>
    %419 = arith.extf %418 : vector<1x8x16x128xbf16> to vector<1x8x16x128xf32>
    %420 = vector.extract_strided_slice %311 {offsets = [5, 0], sizes = [1, 128], strides = [1, 1]} : vector<9x128xf32> to vector<1x128xf32>
    %421 = vector.shape_cast %420 : vector<1x128xf32> to vector<1x1x1x128xf32>
    %422 = vector.broadcast %421 : vector<1x1x1x128xf32> to vector<1x8x16x128xf32>
    %423 = arith.mulf %419, %422 : vector<1x8x16x128xf32>
    %424 = arith.addf %417, %423 : vector<1x8x16x128xf32>
    %425 = vector.extract_strided_slice %410 {offsets = [0, 10, 0, 0], sizes = [1, 8, 16, 128], strides = [1, 1, 1, 1]} : vector<1x18x16x128xbf16> to vector<1x8x16x128xbf16>
    %426 = arith.extf %425 : vector<1x8x16x128xbf16> to vector<1x8x16x128xf32>
    %427 = vector.extract_strided_slice %311 {offsets = [8, 0], sizes = [1, 128], strides = [1, 1]} : vector<9x128xf32> to vector<1x128xf32>
    %428 = vector.shape_cast %427 : vector<1x128xf32> to vector<1x1x1x128xf32>
    %429 = vector.broadcast %428 : vector<1x1x1x128xf32> to vector<1x8x16x128xf32>
    %430 = arith.mulf %426, %429 : vector<1x8x16x128xf32>
    %431 = arith.addf %424, %430 : vector<1x8x16x128xf32>
    %c0_82 = arith.constant 0 : index
    %432 = arith.index_cast %1 : i32 to index
    %c10_83 = arith.constant 10 : index
    %c0_84 = arith.constant 0 : index
    %433 = vector.load %arg3[%c0_82, %432, %c10_83, %c0_84] : memref<1x26x26x128xbf16, #tpu.memory_space<vmem>>, vector<1x18x16x128xbf16>
    %434 = vector.extract_strided_slice %433 {offsets = [0, 0, 0, 0], sizes = [1, 8, 16, 128], strides = [1, 1, 1, 1]} : vector<1x18x16x128xbf16> to vector<1x8x16x128xbf16>
    %435 = arith.extf %434 : vector<1x8x16x128xbf16> to vector<1x8x16x128xf32>
    %436 = vector.extract_strided_slice %313 {offsets = [2, 0], sizes = [1, 128], strides = [1, 1]} : vector<9x128xf32> to vector<1x128xf32>
    %437 = vector.shape_cast %436 : vector<1x128xf32> to vector<1x1x1x128xf32>
    %438 = vector.broadcast %437 : vector<1x1x1x128xf32> to vector<1x8x16x128xf32>
    %439 = arith.mulf %435, %438 : vector<1x8x16x128xf32>
    %440 = arith.addf %431, %439 : vector<1x8x16x128xf32>
    %441 = vector.extract_strided_slice %433 {offsets = [0, 5, 0, 0], sizes = [1, 8, 16, 128], strides = [1, 1, 1, 1]} : vector<1x18x16x128xbf16> to vector<1x8x16x128xbf16>
    %442 = arith.extf %441 : vector<1x8x16x128xbf16> to vector<1x8x16x128xf32>
    %443 = vector.extract_strided_slice %313 {offsets = [5, 0], sizes = [1, 128], strides = [1, 1]} : vector<9x128xf32> to vector<1x128xf32>
    %444 = vector.shape_cast %443 : vector<1x128xf32> to vector<1x1x1x128xf32>
    %445 = vector.broadcast %444 : vector<1x1x1x128xf32> to vector<1x8x16x128xf32>
    %446 = arith.mulf %442, %445 : vector<1x8x16x128xf32>
    %447 = arith.addf %440, %446 : vector<1x8x16x128xf32>
    %448 = vector.extract_strided_slice %433 {offsets = [0, 10, 0, 0], sizes = [1, 8, 16, 128], strides = [1, 1, 1, 1]} : vector<1x18x16x128xbf16> to vector<1x8x16x128xbf16>
    %449 = arith.extf %448 : vector<1x8x16x128xbf16> to vector<1x8x16x128xf32>
    %450 = vector.extract_strided_slice %313 {offsets = [8, 0], sizes = [1, 128], strides = [1, 1]} : vector<9x128xf32> to vector<1x128xf32>
    %451 = vector.shape_cast %450 : vector<1x128xf32> to vector<1x1x1x128xf32>
    %452 = vector.broadcast %451 : vector<1x1x1x128xf32> to vector<1x8x16x128xf32>
    %453 = arith.mulf %449, %452 : vector<1x8x16x128xf32>
    %454 = arith.addf %447, %453 : vector<1x8x16x128xf32>
    %cst_85 = arith.constant 0.000000e+00 : f32
    %455 = vector.broadcast %cst_85 : f32 to vector<1x8x16x128xf32>
    %456 = arith.maximumf %454, %455 : vector<1x8x16x128xf32>
    %457 = arith.truncf %456 : vector<1x8x16x128xf32> to vector<1x8x16x128xbf16>
    %458 = vector.shape_cast %457 : vector<1x8x16x128xbf16> to vector<128x128xbf16>
    %c2_86 = arith.constant 2 : index
    %c0_87 = arith.constant 0 : index
    %c0_88 = arith.constant 0 : index
    %459 = vector.load %arg7[%c2_86, %c0_87, %c0_88] : memref<3x128x256xbf16, #tpu.memory_space<vmem>>, vector<1x128x256xbf16>
    %460 = vector.shape_cast %459 : vector<1x128x256xbf16> to vector<128x256xbf16>
    %cst_89 = arith.constant dense<0.000000e+00> : vector<128x256xf32>
    %461 = tpu.matmul %458, %460, %cst_89 {dimension_numbers = #tpu.dot_dimension_numbers<[1], [0], [0], [1], [0, 0, 1, 1], [], []>} : vector<128x128xbf16>, vector<128x256xbf16>, vector<128x256xf32> -> vector<128x256xf32>
    %c0_90 = arith.constant 0 : index
    %c0_91 = arith.constant 0 : index
    %462 = vector.load %arg10[%c0_90, %c0_91] : memref<128x256xf32, #tpu.memory_space<vmem>>, vector<128x256xf32>
    %463 = arith.addf %462, %461 : vector<128x256xf32>
    %c0_92 = arith.constant 0 : index
    %c0_93 = arith.constant 0 : index
    %464 = vector.load %arg10[%c0_92, %c0_93] : memref<128x256xf32, #tpu.memory_space<vmem>>, vector<128x256xf32>
    tpu.vector_store %arg10[%c0_92, %c0_93], %463 {strides = array<i32>} : memref<128x256xf32, #tpu.memory_space<vmem>>, vector<128x256xf32>,
    %c5_i32 = arith.constant 5 : i32
    %465 = arith.addi %1, %c5_i32 : i32
    %c0_94 = arith.constant 0 : index
    %466 = arith.index_cast %465 : i32 to index
    %c5_95 = arith.constant 5 : index
    %c0_96 = arith.constant 0 : index
    %467 = vector.load %arg2[%c0_94, %466, %c5_95, %c0_96] : memref<1x26x26x128xbf16, #tpu.memory_space<vmem>>, vector<1x8x16x128xbf16>
    %468 = vector.shape_cast %467 : vector<1x8x16x128xbf16> to vector<128x128xbf16>
    %c5_i32_97 = arith.constant 5 : i32
    %469 = arith.addi %1, %c5_i32_97 : i32
    %c0_98 = arith.constant 0 : index
    %470 = arith.index_cast %469 : i32 to index
    %c5_99 = arith.constant 5 : index
    %c0_100 = arith.constant 0 : index
    %471 = vector.load %arg3[%c0_98, %470, %c5_99, %c0_100] : memref<1x26x26x128xbf16, #tpu.memory_space<vmem>>, vector<1x8x16x128xbf16>
    %472 = vector.shape_cast %471 : vector<1x8x16x128xbf16> to vector<128x128xbf16>
    %473 = tpu.concatenate %468, %472 in 1 : vector<128x128xbf16>, vector<128x128xbf16> -> vector<128x256xbf16>
    %474 = arith.extf %473 : vector<128x256xbf16> to vector<128x256xf32>
    %c0_101 = arith.constant 0 : index
    %c0_102 = arith.constant 0 : index
    %475 = vector.load %arg10[%c0_101, %c0_102] : memref<128x256xf32, #tpu.memory_space<vmem>>, vector<128x256xf32>
    %c0_103 = arith.constant 0 : index
    %c0_104 = arith.constant 0 : index
    %476 = vector.load %arg8[%c0_103, %c0_104] : memref<1x256xf32, #tpu.memory_space<vmem>>, vector<1x256xf32>
    %477 = vector.broadcast %476 : vector<1x256xf32> to vector<128x256xf32>
    %478 = arith.addf %475, %477 : vector<128x256xf32>
    %479 = arith.addf %478, %474 : vector<128x256xf32>
    %480 = vector.shape_cast %479 : vector<128x256xf32> to vector<1x8x16x256xf32>
    %c0_105 = arith.constant 0 : index
    %c0_106 = arith.constant 0 : index
    %c0_107 = arith.constant 0 : index
    %c0_108 = arith.constant 0 : index
    %481 = vector.load %arg9[%c0_105, %c0_106, %c0_107, %c0_108] : memref<1x8x16x256xf32, #tpu.memory_space<vmem>>, vector<1x8x16x256xf32>
    tpu.vector_store %arg9[%c0_105, %c0_106, %c0_107, %c0_108], %480 {strides = array<i32>} : memref<1x8x16x256xf32, #tpu.memory_space<vmem>>, vector<1x8x16x256xf32>,
    return
  }
  func.func @transform_0(%arg0: i32, %arg1: i32) -> (i32, i32, i32, i32) {
    %c0_i32 = arith.constant 0 : i32
    %c0_i32_0 = arith.constant 0 : i32
    %c0_i32_1 = arith.constant 0 : i32
    %c0_i32_2 = arith.constant 0 : i32
    return %arg0, %c0_i32, %c0_i32_0, %c0_i32_1 : i32, i32, i32, i32
  }
  func.func @transform_1(%arg0: i32, %arg1: i32) -> (i32, i32, i32, i32) {
    %c0_i32 = arith.constant 0 : i32
    %c0_i32_0 = arith.constant 0 : i32
    %c0_i32_1 = arith.constant 0 : i32
    %c0_i32_2 = arith.constant 0 : i32
    return %arg0, %c0_i32, %c0_i32_0, %c0_i32_1 : i32, i32, i32, i32
  }
  func.func @transform_2(%arg0: i32, %arg1: i32) -> (i32, i32, i32) {
    %c0_i32 = arith.constant 0 : i32
    %c0_i32_0 = arith.constant 0 : i32
    %c0_i32_1 = arith.constant 0 : i32
    %c0_i32_2 = arith.constant 0 : i32
    return %c0_i32, %c0_i32_0, %c0_i32_1 : i32, i32, i32
  }
  func.func @transform_3(%arg0: i32, %arg1: i32) -> (i32, i32, i32) {
    %c0_i32 = arith.constant 0 : i32
    %c0_i32_0 = arith.constant 0 : i32
    %c0_i32_1 = arith.constant 0 : i32
    %c0_i32_2 = arith.constant 0 : i32
    return %c0_i32, %c0_i32_0, %c0_i32_1 : i32, i32, i32
  }
  func.func @transform_4(%arg0: i32, %arg1: i32) -> (i32, i32) {
    %c0_i32 = arith.constant 0 : i32
    %c0_i32_0 = arith.constant 0 : i32
    %c0_i32_1 = arith.constant 0 : i32
    return %c0_i32, %c0_i32_0 : i32, i32
  }
  func.func @transform_5(%arg0: i32, %arg1: i32) -> (i32, i32, i32) {
    %c0_i32 = arith.constant 0 : i32
    %c0_i32_0 = arith.constant 0 : i32
    %c0_i32_1 = arith.constant 0 : i32
    %c0_i32_2 = arith.constant 0 : i32
    return %c0_i32, %c0_i32_0, %c0_i32_1 : i32, i32, i32
  }
  func.func @transform_6(%arg0: i32, %arg1: i32) -> (i32, i32) {
    %c0_i32 = arith.constant 0 : i32
    %c0_i32_0 = arith.constant 0 : i32
    %c0_i32_1 = arith.constant 0 : i32
    return %c0_i32, %c0_i32_0 : i32, i32
  }
  func.func @transform_7(%arg0: i32, %arg1: i32) -> (i32, i32, i32, i32) {
    %c0_i32 = arith.constant 0 : i32
    %c0_i32_0 = arith.constant 0 : i32
    %c0_i32_1 = arith.constant 0 : i32
    return %arg0, %arg1, %c0_i32, %c0_i32_0 : i32, i32, i32, i32
  }
}

</mosaic_0001>

<llo_original>
// kernel: squeeze.11
$region0: #{squeeze.11}
  %s0 = inlined_call_operand.vmem [shape: f32[80,3,3], index: 0, kind: input, shape index: {}]
  %s1 = inlined_call_operand.vmem [shape: f32[80,9], index: 1, kind: output, shape index: {}]
  $region1: #{squeeze.11} parent=0
    #allocation0 [shape = 'u8[12288]{0}', space=vmem, size = 0x3000, scoped, tag = 'scoped mem for input reshape']
    %s3 = sshllo.u32 0, 4
    %s4 = smul.addr 4, 2
    %s5 = scalar_lea.vmem %s0, %s4
    %v6 = vld [vmem:[%s5] sm:%s3]
    %s7 = scalar_lea.vmem [#allocation0], 16
    %8 = vst [vmem:[%s7] sm:%s3] %v6
    %s9 = scalar_lea.vmem %s0, 4
    %v10 = vld [vmem:[%s9] sm:%s3]
    %s11 = scalar_lea.vmem [#allocation0], 8
    %12 = vst [vmem:[%s11] sm:%s3] %v10
    %v13 = vld [vmem:[%s0] sm:%s3]
    %14 = vst [vmem:[#allocation0] sm:%s3] %v13
    %v15 = vld [vmem:[#allocation0] sm:$0x7]
    %vm16 = vcmask 654336
    %17 = vst.msk [vmem:[%s1] sm:$0x7] %vm16, %v15
    %s18 = scalar_lea.vmem [#allocation0], 8
    %v19 = vld [vmem:[%s18] sm:$0x7]
    %vm20 = vcmask 654336
    %s21 = scalar_lea.vmem %s1, 3
    %22 = vst.msk [vmem:[%s21] sm:$0x7] %vm20, %v19
    %s23 = scalar_lea.vmem [#allocation0], 16
    %v24 = vld [vmem:[%s23] sm:$0x7]
    %vm25 = vcmask 654336
    %s26 = scalar_lea.vmem %s1, 6
    %27 = vst.msk [vmem:[%s26] sm:$0x7] %vm25, %v24

// kernel: sem_forward.1
$region0: #{sem_forward.1}
  #allocation0 [shape = 'u32[]', space=smem, size = 0x4, offset = 0x4, fixed_abs, tag = 'smem constant byte address 0x4 - core index']
  #allocation1 [shape = 'u32[144,128]{1,0:T(1,128)}', space=vmem, size = 0x12000, scoped, tag = 'internal scratch']
  #allocation2 [shape = 'f32[128,256]{1,0:T(8,128)}', space=vmem, size = 0x20000, scoped, tag = 'scratch operand']
  %s0 = inlined_call_operand.vmem [shape: bf16[2,26,26,128], index: 0, kind: input, shape index: {}]
  %s1 = inlined_call_operand.vmem [shape: bf16[2,26,26,128], index: 1, kind: input, shape index: {}]
  %s2 = inlined_call_operand.vmem [shape: f32[3,9,128], index: 2, kind: input, shape index: {}]
  %s3 = inlined_call_operand.vmem [shape: f32[3,9,128], index: 3, kind: input, shape index: {}]
  %s4 = inlined_call_operand.vmem [shape: f32[3,128], index: 4, kind: input, shape index: {}]
  %s5 = inlined_call_operand.vmem [shape: bf16[3,128,256], index: 5, kind: input, shape index: {}]
  %s6 = inlined_call_operand.vmem [shape: f32[1,256], index: 6, kind: input, shape index: {}]
  %s7 = inlined_call_operand.vmem [shape: f32[2,16,16,256], index: 7, kind: output, shape index: {}]
  %s8 = sld [smem:[#allocation0]]
  $region61: #{sem_forward.1} parent=0
    _
  %s10 = ssub.s32 1, %s8
  %s11 = scalar_select 0, %s10, %s8
  loop: start=0, step=1, limit=6
  $region2: #{sem_forward.1} parent=0 // loop_pre_header
    _
  $region3: #{sem_forward.1} parent=0 // loop_header
    %s13 = sphi 0, %s17
    %p14 = scmp.ge.s32.totalorder %s13, 6
    %s20 = sphi 0, %s32
    %s21 = sphi 0, %s28
    %s22 = sphi 0, %s20
    %s23 = sphi 0, %s21
    %s24 = sphi 0, %s22
    %s25 = sphi 0, %s23
    %s35 = sphi 0, %s37
    %s38 = sphi 0, %s35
    %s39 = sphi 0, %s38
    %s55 = sphi 0, %s39
    %s61 = sphi 0, %s63
    %s64 = sphi 0, %s61
    %s65 = sphi 0, %s64
    %s81 = sphi 0, %s65
    %s85 = sphi 0, %s85
    %s87 = sphi 0, %s85
    %s88 = sphi 0, %s87
    %s102 = sphi 0, %s88
    %s106 = sphi 0, %s106
    %s108 = sphi 0, %s106
    %s109 = sphi 0, %s108
    %s123 = sphi 0, %s109
    %s127 = sphi 0, %s127
    %s129 = sphi 0, %s127
    %s130 = sphi 0, %s129
    %s144 = sphi 0, %s130
    %s148 = sphi 0, %s148
    %s150 = sphi 0, %s148
    %s151 = sphi 0, %s150
    %s165 = sphi 0, %s151
    %s169 = sphi 0, %s169
    %s171 = sphi 0, %s169
    %s172 = sphi 0, %s171
    %s186 = sphi 0, %s172
    %s194 = sphi 0, %s196
    %s197 = sphi 0, %s194
    %s198 = sphi 0, %s197
    %s214 = sphi 0, %s198
  $region4: #{sem_forward.1} parent=0 // loop_header_branch
    %16 = sbr.rel (%p14) target = $region8
  $region5: #{sem_forward.1} parent=0 // loop_body
    %s18 = ssub.s32 %s13, 1
    %s19 = ssub.s32 %s13, 2
    %s26 = sadd.s32 1, %s21
    %p27 = scmp.ge.s32.totalorder %s26, 2
    %s28 = scalar_select %p27, 0, %s26
    %s29 = sadd.s32 1, %s20
    %s30 = scalar_select %p27, %s29, %s20
    %p31 = scmp.ge.s32.totalorder %s30, 2
    %s32 = scalar_select %p31, 0, %s30
    %s33 = ssub.s32 %s20, %s32
    %p34 = scmp.eq.s32.totalorder %s33, 0
    %s36 = sadd.s32 %s35, 1
    %s37 = scalar_select %p34, %s35, %s36
    %p40 = pneg %p34
    %p41 = scmp.eq.s32.totalorder %s13, 3
    %p42 = por %p40, %p41
    %p43 = scmp.ne.s32.totalorder %s35, %s38
    %p44 = scmp.eq.s32.totalorder %s13, 0
    %p45 = por %p43, %p44
    %p46 = scmp.ne.s32.totalorder %s35, %s38
    %p47 = scmp.eq.s32.totalorder %s18, 3
    %p48 = por %p46, %p47
    %p49 = scmp.ne.s32.totalorder %s38, %s39
    %p50 = scmp.eq.s32.totalorder %s18, 0
    %p51 = por %p49, %p50
    %p52 = scmp.ne.s32.totalorder %s38, %s39
    %p53 = scmp.eq.s32.totalorder %s19, 3
    %p54 = por %p52, %p53
    %p56 = scmp.ne.s32.totalorder %s39, %s55
    %p57 = scmp.eq.s32.totalorder %s19, 0
    %p58 = por %p56, %p57
    %s59 = ssub.s32 %s20, %s32
    %p60 = scmp.eq.s32.totalorder %s59, 0
    %s62 = sadd.s32 %s61, 1
    %s63 = scalar_select %p60, %s61, %s62
    %p66 = pneg %p60
    %p67 = scmp.eq.s32.totalorder %s13, 3
    %p68 = por %p66, %p67
    %p69 = scmp.ne.s32.totalorder %s61, %s64
    %p70 = scmp.eq.s32.totalorder %s13, 0
    %p71 = por %p69, %p70
    %p72 = scmp.ne.s32.totalorder %s61, %s64
    %p73 = scmp.eq.s32.totalorder %s18, 3
    %p74 = por %p72, %p73
    %p75 = scmp.ne.s32.totalorder %s64, %s65
    %p76 = scmp.eq.s32.totalorder %s18, 0
    %p77 = por %p75, %p76
    %p78 = scmp.ne.s32.totalorder %s64, %s65
    %p79 = scmp.eq.s32.totalorder %s19, 3
    %p80 = por %p78, %p79
    %p82 = scmp.ne.s32.totalorder %s65, %s81
    %p83 = scmp.eq.s32.totalorder %s19, 0
    %p84 = por %p82, %p83
    %s86 = sadd.s32 %s85, 1
    %p89 = scmp.eq.s32.totalorder %s13, 3
    %p90 = scmp.ne.s32.totalorder %s85, %s87
    %p91 = scmp.eq.s32.totalorder %s13, 0
    %p92 = por %p90, %p91
    %p93 = scmp.ne.s32.totalorder %s85, %s87
    %p94 = scmp.eq.s32.totalorder %s18, 3
    %p95 = por %p93, %p94
    %p96 = scmp.ne.s32.totalorder %s87, %s88
    %p97 = scmp.eq.s32.totalorder %s18, 0
    %p98 = por %p96, %p97
    %p99 = scmp.ne.s32.totalorder %s87, %s88
    %p100 = scmp.eq.s32.totalorder %s19, 3
    %p101 = por %p99, %p100
    %p103 = scmp.ne.s32.totalorder %s88, %s102
    %p104 = scmp.eq.s32.totalorder %s19, 0
    %p105 = por %p103, %p104
    %s107 = sadd.s32 %s106, 1
    %p110 = scmp.eq.s32.totalorder %s13, 3
    %p111 = scmp.ne.s32.totalorder %s106, %s108
    %p112 = scmp.eq.s32.totalorder %s13, 0
    %p113 = por %p111, %p112
    %p114 = scmp.ne.s32.totalorder %s106, %s108
    %p115 = scmp.eq.s32.totalorder %s18, 3
    %p116 = por %p114, %p115
    %p117 = scmp.ne.s32.totalorder %s108, %s109
    %p118 = scmp.eq.s32.totalorder %s18, 0
    %p119 = por %p117, %p118
    %p120 = scmp.ne.s32.totalorder %s108, %s109
    %p121 = scmp.eq.s32.totalorder %s19, 3
    %p122 = por %p120, %p121
    %p124 = scmp.ne.s32.totalorder %s109, %s123
    %p125 = scmp.eq.s32.totalorder %s19, 0
    %p126 = por %p124, %p125
    %s128 = sadd.s32 %s127, 1
    %p131 = scmp.eq.s32.totalorder %s13, 3
    %p132 = scmp.ne.s32.totalorder %s127, %s129
    %p133 = scmp.eq.s32.totalorder %s13, 0
    %p134 = por %p132, %p133
    %p135 = scmp.ne.s32.totalorder %s127, %s129
    %p136 = scmp.eq.s32.totalorder %s18, 3
    %p137 = por %p135, %p136
    %p138 = scmp.ne.s32.totalorder %s129, %s130
    %p139 = scmp.eq.s32.totalorder %s18, 0
    %p140 = por %p138, %p139
    %p141 = scmp.ne.s32.totalorder %s129, %s130
    %p142 = scmp.eq.s32.totalorder %s19, 3
    %p143 = por %p141, %p142
    %p145 = scmp.ne.s32.totalorder %s130, %s144
    %p146 = scmp.eq.s32.totalorder %s19, 0
    %p147 = por %p145, %p146
    %s149 = sadd.s32 %s148, 1
    %p152 = scmp.eq.s32.totalorder %s13, 3
    %p153 = scmp.ne.s32.totalorder %s148, %s150
    %p154 = scmp.eq.s32.totalorder %s13, 0
    %p155 = por %p153, %p154
    %p156 = scmp.ne.s32.totalorder %s148, %s150
    %p157 = scmp.eq.s32.totalorder %s18, 3
    %p158 = por %p156, %p157
    %p159 = scmp.ne.s32.totalorder %s150, %s151
    %p160 = scmp.eq.s32.totalorder %s18, 0
    %p161 = por %p159, %p160
    %p162 = scmp.ne.s32.totalorder %s150, %s151
    %p163 = scmp.eq.s32.totalorder %s19, 3
    %p164 = por %p162, %p163
    %p166 = scmp.ne.s32.totalorder %s151, %s165
    %p167 = scmp.eq.s32.totalorder %s19, 0
    %p168 = por %p166, %p167
    %s170 = sadd.s32 %s169, 1
    %p173 = scmp.eq.s32.totalorder %s13, 3
    %p174 = scmp.ne.s32.totalorder %s169, %s171
    %p175 = scmp.eq.s32.totalorder %s13, 0
    %p176 = por %p174, %p175
    %p177 = scmp.ne.s32.totalorder %s169, %s171
    %p178 = scmp.eq.s32.totalorder %s18, 3
    %p179 = por %p177, %p178
    %p180 = scmp.ne.s32.totalorder %s171, %s172
    %p181 = scmp.eq.s32.totalorder %s18, 0
    %p182 = por %p180, %p181
    %p183 = scmp.ne.s32.totalorder %s171, %s172
    %p184 = scmp.eq.s32.totalorder %s19, 3
    %p185 = por %p183, %p184
    %p187 = scmp.ne.s32.totalorder %s172, %s186
    %p188 = scmp.eq.s32.totalorder %s19, 0
    %p189 = por %p187, %p188
    %s190 = ssub.s32 %s20, %s32
    %s191 = ssub.s32 %s21, %s28
    %s192 = sor.u32 %s190, %s191
    %p193 = scmp.eq.s32.totalorder %s192, 0
    %s195 = sadd.s32 %s194, 1
    %s196 = scalar_select %p193, %s194, %s195
    %p199 = pneg %p193
    %p200 = scmp.eq.s32.totalorder %s13, 3
    %p201 = por %p199, %p200
    %p202 = scmp.ne.s32.totalorder %s194, %s197
    %p203 = scmp.eq.s32.totalorder %s13, 0
    %p204 = por %p202, %p203
    %p205 = scmp.ne.s32.totalorder %s194, %s197
    %p206 = scmp.eq.s32.totalorder %s18, 3
    %p207 = por %p205, %p206
    %p208 = scmp.ne.s32.totalorder %s197, %s198
    %p209 = scmp.eq.s32.totalorder %s18, 0
    %p210 = por %p208, %p209
    %p211 = scmp.ne.s32.totalorder %s197, %s198
    %p212 = scmp.eq.s32.totalorder %s19, 3
    %p213 = por %p211, %p212
    %p215 = scmp.ne.s32.totalorder %s198, %s214
    %p216 = scmp.eq.s32.totalorder %s19, 0
    %p217 = por %p215, %p216
    %p218 = scmp.le.s32.totalorder 1, %s13
    %p219 = scmp.lt.s32.totalorder %s13, 5
    %p220 = pnand %p218, %p219
    %p221 = pneg %p220
    // Predicated region
    $region9: #{sem_forward.1} parent=5 // pred_check
      _
    $region10: #{sem_forward.1} parent=5 // pred_check_branch
      %223 = sbr.rel (%p220) target = $region12
    $region11: #{sem_forward.1} parent=5 // pred_region
      %s224 = ssub.s32 %s13, 1
      // Predicated region
      $region13: #{sem_forward.1} parent=11 // pred_check
        %p225 = pneg %p98
      $region14: #{sem_forward.1} parent=11 // pred_check_branch
        %227 = sbr.rel (%p225) target = $region16
      $region15: #{sem_forward.1} parent=11 // pred_region
        _
      $region16: #{sem_forward.1} parent=11 // pred_fallthru
        _
      // Predicated region
      $region17: #{sem_forward.1} parent=11 // pred_check
        %p228 = pneg %p119
      $region18: #{sem_forward.1} parent=11 // pred_check_branch
        %230 = sbr.rel (%p228) target = $region20
      $region19: #{sem_forward.1} parent=11 // pred_region
        _
      $region20: #{sem_forward.1} parent=11 // pred_fallthru
        _
      // Predicated region
      $region21: #{sem_forward.1} parent=11 // pred_check
        %p231 = pneg %p140
      $region22: #{sem_forward.1} parent=11 // pred_check_branch
        %233 = sbr.rel (%p231) target = $region24
      $region23: #{sem_forward.1} parent=11 // pred_region
        _
      $region24: #{sem_forward.1} parent=11 // pred_fallthru
        _
      // Predicated region
      $region25: #{sem_forward.1} parent=11 // pred_check
        %p234 = pneg %p161
      $region26: #{sem_forward.1} parent=11 // pred_check_branch
        %236 = sbr.rel (%p234) target = $region28
      $region27: #{sem_forward.1} parent=11 // pred_region
        _
      $region28: #{sem_forward.1} parent=11 // pred_fallthru
        _
      // Predicated region
      $region29: #{sem_forward.1} parent=11 // pred_check
        %p237 = pneg %p182
      $region30: #{sem_forward.1} parent=11 // pred_check_branch
        %239 = sbr.rel (%p237) target = $region32
      $region31: #{sem_forward.1} parent=11 // pred_region
        _
      $region32: #{sem_forward.1} parent=11 // pred_fallthru
        _
    $region12: #{sem_forward.1} parent=5 // pred_fallthru
      _
    %p240 = scmp.lt.s32.totalorder %s13, 4
    // Predicated region
    $region33: #{sem_forward.1} parent=5 // pred_check
      %p241 = pneg %p240
    $region34: #{sem_forward.1} parent=5 // pred_check_branch
      %243 = sbr.rel (%p241) target = $region36
    $region35: #{sem_forward.1} parent=5 // pred_region
      // Predicated region
      $region37: #{sem_forward.1} parent=35 // pred_check
        %p244 = pneg %p45
      $region38: #{sem_forward.1} parent=35 // pred_check_branch
        %246 = sbr.rel (%p244) target = $region40
      $region39: #{sem_forward.1} parent=35 // pred_region
        %p247 = scmp.lt.s32.totalorder %s20, 1
        %s248 = scalar_select %p247, %s20, 1
        %s249 = smul.addr %s248, 104
        %s250 = smul.addr %s249, 4
        %s251 = scalar_lea.vmem %s0, %s250
      $region40: #{sem_forward.1} parent=35 // pred_fallthru
        _
      // Predicated region
      $region41: #{sem_forward.1} parent=35 // pred_check
        %p252 = pneg %p71
      $region42: #{sem_forward.1} parent=35 // pred_check_branch
        %254 = sbr.rel (%p252) target = $region44
      $region43: #{sem_forward.1} parent=35 // pred_region
        %p255 = scmp.lt.s32.totalorder %s20, 1
        %s256 = scalar_select %p255, %s20, 1
        %s257 = smul.addr %s256, 104
        %s258 = smul.addr %s257, 4
        %s259 = scalar_lea.vmem %s1, %s258
      $region44: #{sem_forward.1} parent=35 // pred_fallthru
        _
    $region36: #{sem_forward.1} parent=5 // pred_fallthru
      _
    %p260 = scmp.le.s32.totalorder 1, %s13
    %p261 = scmp.lt.s32.totalorder %s13, 5
    %p262 = pnand %p260, %p261
    %p263 = pneg %p262
    // Predicated region
    $region45: #{sem_forward.1} parent=5 // pred_check
      _
    $region46: #{sem_forward.1} parent=5 // pred_check_branch
      %265 = sbr.rel (%p262) target = $region48
    $region47: #{sem_forward.1} parent=5 // pred_region
      %s266 = ssub.s32 %s13, 1
      %p267 = scmp.lt.s32.totalorder %s22, 1
      %s268 = scalar_select %p267, %s22, 1
      %s269 = smul.addr %s268, 104
      %s270 = smul.addr %s269, 4
      %s271 = scalar_lea.vmem %s0, %s270
      %p272 = pneg %p51
      %p273 = pneg %p48
      %p274 = scmp.lt.s32.totalorder %s22, 1
      %s275 = scalar_select %p274, %s22, 1
      %s276 = smul.addr %s275, 104
      %s277 = smul.addr %s276, 4
      %s278 = scalar_lea.vmem %s1, %s277
      %p279 = pneg %p77
      %p280 = pneg %p74
      %p281 = pneg %p98
      %p282 = pneg %p95
      %p283 = pneg %p119
      %p284 = pneg %p116
      %p285 = pneg %p140
      %p286 = pneg %p137
      %p287 = pneg %p161
      %p288 = pneg %p158
      %p289 = pneg %p182
      %p290 = pneg %p179
      %p291 = pneg %p210
      %p292 = pneg %p207
      %s293 = smul.u32 8, %s23
      %p294 = scmp.lt.s32.totalorder %s22, 1
      %s295 = scalar_select %p294, %s22, 1
      %p296 = scmp.lt.s32.totalorder %s293, 15
      %s297 = scalar_select %p296, %s293, 15
      %s298 = smul.addr %s297, 4
      %s299 = smul.addr %s295, 64
      %s300 = sadd.s32 %s298, %s299
      %s301 = smul.addr %s300, 8
      %s302 = scalar_lea.vmem %s7, %s301
      %p303 = scmp.lt.s32.totalorder %s22, 1
      %s304 = scalar_select %p303, %s22, 1
      %s305 = smul.addr %s304, 104
      %s306 = smul.addr %s305, 4
      %s307 = scalar_lea.vmem %s0, %s306
      %p308 = scmp.lt.s32.totalorder %s22, 1
      %s309 = scalar_select %p308, %s22, 1
      %s310 = smul.addr %s309, 104
      %s311 = smul.addr %s310, 4
      %s312 = scalar_lea.vmem %s1, %s311
      %s313 = smul.u32 8, %s23
      %p314 = scmp.lt.s32.totalorder %s22, 1
      %s315 = scalar_select %p314, %s22, 1
      %p316 = scmp.lt.s32.totalorder %s313, 15
      %s317 = scalar_select %p316, %s313, 15
      %s318 = smul.addr %s317, 4
      %s319 = smul.addr %s315, 64
      %s320 = sadd.s32 %s318, %s319
      %s321 = smul.addr %s320, 8
      %s322 = scalar_lea.vmem %s7, %s321
      %s323 = smul.u32 8, %s23
      %s325 = smul.u32 %s23, 8
      %v326 = vld [vmem:[%s2] sm:$0xff]
      %v327 = vld [vmem:[%s2 + $0x8] sm:$0x1]
      %v328 = vld [vmem:[%s3] sm:$0xff]
      %v329 = vld [vmem:[%s3 + $0x8] sm:$0x1]
      %v330 = vld [vmem:[%s4] sm:$0x1]
      %v331 = vlaneseq
      %v332 = vshrl.u32 %v331, 7
      %v333 = vsub.s32 0, %v332
      %v334 = vrot.slane %v330, %v333
      %s335 = smul.u32 %s325, 4
      %s336 = smul.addr %s335, 4
      %s337 = scalar_lea.vmem %s307, %s336
      %v338 = vld [vmem:[%s337 + $0x40] sm:$0xc]
      %v339 = vld [vmem:[%s337 + $0x44] sm:$0xf]
      %v340 = vld [vmem:[%s337 + $0x48] sm:$0x3]
      %v341 = vld [vmem:[%s337 + $0x50] sm:$0xc]
      %v342 = vld [vmem:[%s337 + $0x54] sm:$0xf]
      %v343 = vld [vmem:[%s337 + $0x58] sm:$0x3]
      %v344 = vld [vmem:[%s337 + $0x60] sm:$0xc]
      %v345 = vld [vmem:[%s337 + $0x64] sm:$0xf]
      %v346 = vld [vmem:[%s337 + $0x68] sm:$0x3]
      %v347 = vld [vmem:[%s337 + $0x70] sm:$0xc]
      %v348 = vld [vmem:[%s337 + $0x74] sm:$0xf]
      %v349 = vld [vmem:[%s337 + $0x78] sm:$0x3]
      %v350 = vld [vmem:[%s337 + $0x80] sm:$0xc]
      %v351 = vld [vmem:[%s337 + $0x84] sm:$0xf]
      %v352 = vld [vmem:[%s337 + $0x88] sm:$0x3]
      %v353 = vld [vmem:[%s337 + $0x90] sm:$0xc]
      %v354 = vld [vmem:[%s337 + $0x94] sm:$0xf]
      %v355 = vld [vmem:[%s337 + $0x98] sm:$0x3]
      %v356 = vld [vmem:[%s337 + $0xa0] sm:$0xc]
      %v357 = vld [vmem:[%s337 + $0xa4] sm:$0xf]
      %v358 = vld [vmem:[%s337 + $0xa8] sm:$0x3]
      %v359 = vld [vmem:[%s337 + $0xb0] sm:$0xc]
      %v360 = vld [vmem:[%s337 + $0xb4] sm:$0xf]
      %v361 = vld [vmem:[%s337 + $0xb8] sm:$0x3]
      %v362 = vld [vmem:[%s337 + $0xc0] sm:$0xc]
      %v363 = vld [vmem:[%s337 + $0xc4] sm:$0xf]
      %v364 = vld [vmem:[%s337 + $0xc8] sm:$0x3]
      %v365 = vld [vmem:[%s337 + $0xd0] sm:$0xc]
      %v366 = vld [vmem:[%s337 + $0xd4] sm:$0xf]
      %v367 = vld [vmem:[%s337 + $0xd8] sm:$0x3]
      %v368 = vunpack.c.l.bf16 %v338
      %v369 = vunpack.c.l.bf16 %v339
      %v370 = vunpack.c.l.bf16 %v340
      %v371 = vunpack.c.l.bf16 %v341
      %v372 = vunpack.c.l.bf16 %v342
      %v373 = vunpack.c.l.bf16 %v343
      %v374 = vunpack.c.l.bf16 %v344
      %v375 = vunpack.c.l.bf16 %v345
      %v376 = vunpack.c.l.bf16 %v346
      %v377 = vunpack.c.l.bf16 %v347
      %v378 = vunpack.c.l.bf16 %v348
      %v379 = vunpack.c.l.bf16 %v349
      %v380 = vunpack.c.l.bf16 %v350
      %v381 = vunpack.c.l.bf16 %v351
      %v382 = vunpack.c.l.bf16 %v352
      %v383 = vunpack.c.l.bf16 %v353
      %v384 = vunpack.c.l.bf16 %v354
      %v385 = vunpack.c.l.bf16 %v355
      %v386 = vunpack.c.l.bf16 %v356
      %v387 = vunpack.c.l.bf16 %v357
      %v388 = vunpack.c.l.bf16 %v358
      %v389 = vunpack.c.l.bf16 %v359
      %v390 = vunpack.c.l.bf16 %v360
      %v391 = vunpack.c.l.bf16 %v361
      %v392 = vlaneseq
      %v393 = vshrl.u32 %v392, 7
      %v394 = vsub.s32 0, %v393
      %v395 = vrot.slane %v326, %v394
      %v396 = vmul.f32 %v368, %v395
      %v397 = vmul.f32 %v369, %v395
      %v398 = vmul.f32 %v370, %v395
      %v399 = vmul.f32 %v371, %v395
      %v400 = vmul.f32 %v372, %v395
      %v401 = vmul.f32 %v373, %v395
      %v402 = vmul.f32 %v374, %v395
      %v403 = vmul.f32 %v375, %v395
      %v404 = vmul.f32 %v376, %v395
      %v405 = vmul.f32 %v377, %v395
      %v406 = vmul.f32 %v378, %v395
      %v407 = vmul.f32 %v379, %v395
      %v408 = vmul.f32 %v380, %v395
      %v409 = vmul.f32 %v381, %v395
      %v410 = vmul.f32 %v382, %v395
      %v411 = vmul.f32 %v383, %v395
      %v412 = vmul.f32 %v384, %v395
      %v413 = vmul.f32 %v385, %v395
      %v414 = vmul.f32 %v386, %v395
      %v415 = vmul.f32 %v387, %v395
      %v416 = vmul.f32 %v388, %v395
      %v417 = vmul.f32 %v389, %v395
      %v418 = vmul.f32 %v390, %v395
      %v419 = vmul.f32 %v391, %v395
      %v420 = vadd.f32 %v334, %v396
      %v421 = vadd.f32 %v334, %v397
      %v422 = vadd.f32 %v334, %v398
      %v423 = vadd.f32 %v334, %v399
      %v424 = vadd.f32 %v334, %v400
      %v425 = vadd.f32 %v334, %v401
      %v426 = vadd.f32 %v334, %v402
      %v427 = vadd.f32 %v334, %v403
      %v428 = vadd.f32 %v334, %v404
      %v429 = vadd.f32 %v334, %v405
      %v430 = vadd.f32 %v334, %v406
      %v431 = vadd.f32 %v334, %v407
      %v432 = vadd.f32 %v334, %v408
      %v433 = vadd.f32 %v334, %v409
      %v434 = vadd.f32 %v334, %v410
      %v435 = vadd.f32 %v334, %v411
      %v436 = vadd.f32 %v334, %v412
      %v437 = vadd.f32 %v334, %v413
      %v438 = vadd.f32 %v334, %v414
      %v439 = vadd.f32 %v334, %v415
      %v440 = vadd.f32 %v334, %v416
      %v441 = vadd.f32 %v334, %v417
      %v442 = vadd.f32 %v334, %v418
      %v443 = vadd.f32 %v334, %v419
      %v444 = vunpack.c.l.bf16 %v362
      %v445 = vunpack.c.l.bf16 %v363
      %v446 = vunpack.c.l.bf16 %v364
      %v447 = vlaneseq
      %v448 = vshrl.u32 %v447, 7
      %v449 = vsub.s32 3, %v448
      %v450 = vrot.slane %v326, %v449
      %v451 = vmul.f32 %v371, %v450
      %v452 = vmul.f32 %v372, %v450
      %v453 = vmul.f32 %v373, %v450
      %v454 = vmul.f32 %v374, %v450
      %v455 = vmul.f32 %v375, %v450
      %v456 = vmul.f32 %v376, %v450
      %v457 = vmul.f32 %v377, %v450
      %v458 = vmul.f32 %v378, %v450
      %v459 = vmul.f32 %v379, %v450
      %v460 = vmul.f32 %v380, %v450
      %v461 = vmul.f32 %v381, %v450
      %v462 = vmul.f32 %v382, %v450
      %v463 = vmul.f32 %v383, %v450
      %v464 = vmul.f32 %v384, %v450
      %v465 = vmul.f32 %v385, %v450
      %v466 = vmul.f32 %v386, %v450
      %v467 = vmul.f32 %v387, %v450
      %v468 = vmul.f32 %v388, %v450
      %v469 = vmul.f32 %v389, %v450
      %v470 = vmul.f32 %v390, %v450
      %v471 = vmul.f32 %v391, %v450
      %v472 = vmul.f32 %v444, %v450
      %v473 = vmul.f32 %v445, %v450
      %v474 = vmul.f32 %v446, %v450
      %v475 = vadd.f32 %v420, %v451
      %v476 = vadd.f32 %v421, %v452
      %v477 = vadd.f32 %v422, %v453
      %v478 = vadd.f32 %v423, %v454
      %v479 = vadd.f32 %v424, %v455
      %v480 = vadd.f32 %v425, %v456
      %v481 = vadd.f32 %v426, %v457
      %v482 = vadd.f32 %v427, %v458
      %v483 = vadd.f32 %v428, %v459
      %v484 = vadd.f32 %v429, %v460
      %v485 = vadd.f32 %v430, %v461
      %v486 = vadd.f32 %v431, %v462
      %v487 = vadd.f32 %v432, %v463
      %v488 = vadd.f32 %v433, %v464
      %v489 = vadd.f32 %v434, %v465
      %v490 = vadd.f32 %v435, %v466
      %v491 = vadd.f32 %v436, %v467
      %v492 = vadd.f32 %v437, %v468
      %v493 = vadd.f32 %v438, %v469
      %v494 = vadd.f32 %v439, %v470
      %v495 = vadd.f32 %v440, %v471
      %v496 = vadd.f32 %v441, %v472
      %v497 = vadd.f32 %v442, %v473
      %v498 = vadd.f32 %v443, %v474
      %v499 = vunpack.c.l.bf16 %v365
      %v500 = vunpack.c.l.bf16 %v366
      %v501 = vunpack.c.l.bf16 %v367
      %v502 = vlaneseq
      %v503 = vshrl.u32 %v502, 7
      %v504 = vsub.s32 6, %v503
      %v505 = vrot.slane %v326, %v504
      %v506 = vmul.f32 %v374, %v505
      %v507 = vmul.f32 %v375, %v505
      %v508 = vmul.f32 %v376, %v505
      %v509 = vmul.f32 %v377, %v505
      %v510 = vmul.f32 %v378, %v505
      %v511 = vmul.f32 %v379, %v505
      %v512 = vmul.f32 %v380, %v505
      %v513 = vmul.f32 %v381, %v505
      %v514 = vmul.f32 %v382, %v505
      %v515 = vmul.f32 %v383, %v505
      %v516 = vmul.f32 %v384, %v505
      %v517 = vmul.f32 %v385, %v505
      %v518 = vmul.f32 %v386, %v505
      %v519 = vmul.f32 %v387, %v505
      %v520 = vmul.f32 %v388, %v505
      %v521 = vmul.f32 %v389, %v505
      %v522 = vmul.f32 %v390, %v505
      %v523 = vmul.f32 %v391, %v505
      %v524 = vmul.f32 %v444, %v505
      %v525 = vmul.f32 %v445, %v505
      %v526 = vmul.f32 %v446, %v505
      %v527 = vmul.f32 %v499, %v505
      %v528 = vmul.f32 %v500, %v505
      %v529 = vmul.f32 %v501, %v505
      %v530 = vadd.f32 %v475, %v506
      %v531 = vadd.f32 %v476, %v507
      %v532 = vadd.f32 %v477, %v508
      %v533 = vadd.f32 %v478, %v509
      %v534 = vadd.f32 %v479, %v510
      %v535 = vadd.f32 %v480, %v511
      %v536 = vadd.f32 %v481, %v512
      %v537 = vadd.f32 %v482, %v513
      %v538 = vadd.f32 %v483, %v514
      %v539 = vadd.f32 %v484, %v515
      %v540 = vadd.f32 %v485, %v516
      %v541 = vadd.f32 %v486, %v517
      %v542 = vadd.f32 %v487, %v518
      %v543 = vadd.f32 %v488, %v519
      %v544 = vadd.f32 %v489, %v520
      %v545 = vadd.f32 %v490, %v521
      %v546 = vadd.f32 %v491, %v522
      %v547 = vadd.f32 %v492, %v523
      %v548 = vadd.f32 %v493, %v524
      %v549 = vadd.f32 %v494, %v525
      %v550 = vadd.f32 %v495, %v526
      %v551 = vadd.f32 %v496, %v527
      %v552 = vadd.f32 %v497, %v528
      %v553 = vadd.f32 %v498, %v529
      %s554 = smul.addr %s335, 4
      %s555 = scalar_lea.vmem %s312, %s554
      %v556 = vld [vmem:[%s555 + $0x40] sm:$0xc]
      %v557 = vld [vmem:[%s555 + $0x44] sm:$0xf]
      %v558 = vld [vmem:[%s555 + $0x48] sm:$0x3]
      %v559 = vld [vmem:[%s555 + $0x50] sm:$0xc]
      %v560 = vld [vmem:[%s555 + $0x54] sm:$0xf]
      %v561 = vld [vmem:[%s555 + $0x58] sm:$0x3]
      %v562 = vld [vmem:[%s555 + $0x60] sm:$0xc]
      %v563 = vld [vmem:[%s555 + $0x64] sm:$0xf]
      %v564 = vld [vmem:[%s555 + $0x68] sm:$0x3]
      %v565 = vld [vmem:[%s555 + $0x70] sm:$0xc]
      %v566 = vld [vmem:[%s555 + $0x74] sm:$0xf]
      %v567 = vld [vmem:[%s555 + $0x78] sm:$0x3]
      %v568 = vld [vmem:[%s555 + $0x80] sm:$0xc]
      %v569 = vld [vmem:[%s555 + $0x84] sm:$0xf]
      %v570 = vld [vmem:[%s555 + $0x88] sm:$0x3]
      %v571 = vld [vmem:[%s555 + $0x90] sm:$0xc]
      %v572 = vld [vmem:[%s555 + $0x94] sm:$0xf]
      %v573 = vld [vmem:[%s555 + $0x98] sm:$0x3]
      %v574 = vld [vmem:[%s555 + $0xa0] sm:$0xc]
      %v575 = vld [vmem:[%s555 + $0xa4] sm:$0xf]
      %v576 = vld [vmem:[%s555 + $0xa8] sm:$0x3]
      %v577 = vld [vmem:[%s555 + $0xb0] sm:$0xc]
      %v578 = vld [vmem:[%s555 + $0xb4] sm:$0xf]
      %v579 = vld [vmem:[%s555 + $0xb8] sm:$0x3]
      %v580 = vld [vmem:[%s555 + $0xc0] sm:$0xc]
      %v581 = vld [vmem:[%s555 + $0xc4] sm:$0xf]
      %v582 = vld [vmem:[%s555 + $0xc8] sm:$0x3]
      %v583 = vld [vmem:[%s555 + $0xd0] sm:$0xc]
      %v584 = vld [vmem:[%s555 + $0xd4] sm:$0xf]
      %v585 = vld [vmem:[%s555 + $0xd8] sm:$0x3]
      %v586 = vunpack.c.l.bf16 %v556
      %v587 = vunpack.c.l.bf16 %v557
      %v588 = vunpack.c.l.bf16 %v558
      %v589 = vunpack.c.l.bf16 %v559
      %v590 = vunpack.c.l.bf16 %v560
      %v591 = vunpack.c.l.bf16 %v561
      %v592 = vunpack.c.l.bf16 %v562
      %v593 = vunpack.c.l.bf16 %v563
      %v594 = vunpack.c.l.bf16 %v564
      %v595 = vunpack.c.l.bf16 %v565
      %v596 = vunpack.c.l.bf16 %v566
      %v597 = vunpack.c.l.bf16 %v567
      %v598 = vunpack.c.l.bf16 %v568
      %v599 = vunpack.c.l.bf16 %v569
      %v600 = vunpack.c.l.bf16 %v570
      %v601 = vunpack.c.l.bf16 %v571
      %v602 = vunpack.c.l.bf16 %v572
      %v603 = vunpack.c.l.bf16 %v573
      %v604 = vunpack.c.l.bf16 %v574
      %v605 = vunpack.c.l.bf16 %v575
      %v606 = vunpack.c.l.bf16 %v576
      %v607 = vunpack.c.l.bf16 %v577
      %v608 = vunpack.c.l.bf16 %v578
      %v609 = vunpack.c.l.bf16 %v579
      %v610 = vlaneseq
      %v611 = vshrl.u32 %v610, 7
      %v612 = vsub.s32 0, %v611
      %v613 = vrot.slane %v328, %v612
      %v614 = vmul.f32 %v586, %v613
      %v615 = vmul.f32 %v587, %v613
      %v616 = vmul.f32 %v588, %v613
      %v617 = vmul.f32 %v589, %v613
      %v618 = vmul.f32 %v590, %v613
      %v619 = vmul.f32 %v591, %v613
      %v620 = vmul.f32 %v592, %v613
      %v621 = vmul.f32 %v593, %v613
      %v622 = vmul.f32 %v594, %v613
      %v623 = vmul.f32 %v595, %v613
      %v624 = vmul.f32 %v596, %v613
      %v625 = vmul.f32 %v597, %v613
      %v626 = vmul.f32 %v598, %v613
      %v627 = vmul.f32 %v599, %v613
      %v628 = vmul.f32 %v600, %v613
      %v629 = vmul.f32 %v601, %v613
      %v630 = vmul.f32 %v602, %v613
      %v631 = vmul.f32 %v603, %v613
      %v632 = vmul.f32 %v604, %v613
      %v633 = vmul.f32 %v605, %v613
      %v634 = vmul.f32 %v606, %v613
      %v635 = vmul.f32 %v607, %v613
      %v636 = vmul.f32 %v608, %v613
      %v637 = vmul.f32 %v609, %v613
      %v638 = vadd.f32 %v530, %v614
      %v639 = vadd.f32 %v531, %v615
      %v640 = vadd.f32 %v532, %v616
      %v641 = vadd.f32 %v533, %v617
      %v642 = vadd.f32 %v534, %v618
      %v643 = vadd.f32 %v535, %v619
      %v644 = vadd.f32 %v536, %v620
      %v645 = vadd.f32 %v537, %v621
      %v646 = vadd.f32 %v538, %v622
      %v647 = vadd.f32 %v539, %v623
      %v648 = vadd.f32 %v540, %v624
      %v649 = vadd.f32 %v541, %v625
      %v650 = vadd.f32 %v542, %v626
      %v651 = vadd.f32 %v543, %v627
      %v652 = vadd.f32 %v544, %v628
      %v653 = vadd.f32 %v545, %v629
      %v654 = vadd.f32 %v546, %v630
      %v655 = vadd.f32 %v547, %v631
      %v656 = vadd.f32 %v548, %v632
      %v657 = vadd.f32 %v549, %v633
      %v658 = vadd.f32 %v550, %v634
      %v659 = vadd.f32 %v551, %v635
      %v660 = vadd.f32 %v552, %v636
      %v661 = vadd.f32 %v553, %v637
      %v662 = vunpack.c.l.bf16 %v580
      %v663 = vunpack.c.l.bf16 %v581
      %v664 = vunpack.c.l.bf16 %v582
      %v665 = vlaneseq
      %v666 = vshrl.u32 %v665, 7
      %v667 = vsub.s32 3, %v666
      %v668 = vrot.slane %v328, %v667
      %v669 = vmul.f32 %v589, %v668
      %v670 = vmul.f32 %v590, %v668
      %v671 = vmul.f32 %v591, %v668
      %v672 = vmul.f32 %v592, %v668
      %v673 = vmul.f32 %v593, %v668
      %v674 = vmul.f32 %v594, %v668
      %v675 = vmul.f32 %v595, %v668
      %v676 = vmul.f32 %v596, %v668
      %v677 = vmul.f32 %v597, %v668
      %v678 = vmul.f32 %v598, %v668
      %v679 = vmul.f32 %v599, %v668
      %v680 = vmul.f32 %v600, %v668
      %v681 = vmul.f32 %v601, %v668
      %v682 = vmul.f32 %v602, %v668
      %v683 = vmul.f32 %v603, %v668
      %v684 = vmul.f32 %v604, %v668
      %v685 = vmul.f32 %v605, %v668
      %v686 = vmul.f32 %v606, %v668
      %v687 = vmul.f32 %v607, %v668
      %v688 = vmul.f32 %v608, %v668
      %v689 = vmul.f32 %v609, %v668
      %v690 = vmul.f32 %v662, %v668
      %v691 = vmul.f32 %v663, %v668
      %v692 = vmul.f32 %v664, %v668
      %v693 = vadd.f32 %v638, %v669
      %v694 = vadd.f32 %v639, %v670
      %v695 = vadd.f32 %v640, %v671
      %v696 = vadd.f32 %v641, %v672
      %v697 = vadd.f32 %v642, %v673
      %v698 = vadd.f32 %v643, %v674
      %v699 = vadd.f32 %v644, %v675
      %v700 = vadd.f32 %v645, %v676
      %v701 = vadd.f32 %v646, %v677
      %v702 = vadd.f32 %v647, %v678
      %v703 = vadd.f32 %v648, %v679
      %v704 = vadd.f32 %v649, %v680
      %v705 = vadd.f32 %v650, %v681
      %v706 = vadd.f32 %v651, %v682
      %v707 = vadd.f32 %v652, %v683
      %v708 = vadd.f32 %v653, %v684
      %v709 = vadd.f32 %v654, %v685
      %v710 = vadd.f32 %v655, %v686
      %v711 = vadd.f32 %v656, %v687
      %v712 = vadd.f32 %v657, %v688
      %v713 = vadd.f32 %v658, %v689
      %v714 = vadd.f32 %v659, %v690
      %v715 = vadd.f32 %v660, %v691
      %v716 = vadd.f32 %v661, %v692
      %v717 = vunpack.c.l.bf16 %v583
      %v718 = vunpack.c.l.bf16 %v584
      %v719 = vunpack.c.l.bf16 %v585
      %v720 = vlaneseq
      %v721 = vshrl.u32 %v720, 7
      %v722 = vsub.s32 6, %v721
      %v723 = vrot.slane %v328, %v722
      %v724 = vmul.f32 %v592, %v723
      %v725 = vmul.f32 %v593, %v723
      %v726 = vmul.f32 %v594, %v723
      %v727 = vmul.f32 %v595, %v723
      %v728 = vmul.f32 %v596, %v723
      %v729 = vmul.f32 %v597, %v723
      %v730 = vmul.f32 %v598, %v723
      %v731 = vmul.f32 %v599, %v723
      %v732 = vmul.f32 %v600, %v723
      %v733 = vmul.f32 %v601, %v723
      %v734 = vmul.f32 %v602, %v723
      %v735 = vmul.f32 %v603, %v723
      %v736 = vmul.f32 %v604, %v723
      %v737 = vmul.f32 %v605, %v723
      %v738 = vmul.f32 %v606, %v723
      %v739 = vmul.f32 %v607, %v723
      %v740 = vmul.f32 %v608, %v723
      %v741 = vmul.f32 %v609, %v723
      %v742 = vmul.f32 %v662, %v723
      %v743 = vmul.f32 %v663, %v723
      %v744 = vmul.f32 %v664, %v723
      %v745 = vmul.f32 %v717, %v723
      %v746 = vmul.f32 %v718, %v723
      %v747 = vmul.f32 %v719, %v723
      %v748 = vadd.f32 %v693, %v724
      %v749 = vadd.f32 %v694, %v725
      %v750 = vadd.f32 %v695, %v726
      %v751 = vadd.f32 %v696, %v727
      %v752 = vadd.f32 %v697, %v728
      %v753 = vadd.f32 %v698, %v729
      %v754 = vadd.f32 %v699, %v730
      %v755 = vadd.f32 %v700, %v731
      %v756 = vadd.f32 %v701, %v732
      %v757 = vadd.f32 %v702, %v733
      %v758 = vadd.f32 %v703, %v734
      %v759 = vadd.f32 %v704, %v735
      %v760 = vadd.f32 %v705, %v736
      %v761 = vadd.f32 %v706, %v737
      %v762 = vadd.f32 %v707, %v738
      %v763 = vadd.f32 %v708, %v739
      %v764 = vadd.f32 %v709, %v740
      %v765 = vadd.f32 %v710, %v741
      %v766 = vadd.f32 %v711, %v742
      %v767 = vadd.f32 %v712, %v743
      %v768 = vadd.f32 %v713, %v744
      %v769 = vadd.f32 %v714, %v745
      %v770 = vadd.f32 %v715, %v746
      %v771 = vadd.f32 %v716, %v747
      %v772 = vld [vmem:[%s337 + $0x48] sm:$0x7]
      %v773 = vld [vmem:[%s337 + $0x58] sm:$0x7]
      %v774 = vld [vmem:[%s337 + $0x68] sm:$0x7]
      %v775 = vld [vmem:[%s337 + $0x78] sm:$0x7]
      %v776 = vld [vmem:[%s337 + $0x88] sm:$0x7]
      %v777 = vld [vmem:[%s337 + $0x98] sm:$0x7]
      %v778 = vld [vmem:[%s337 + $0xa8] sm:$0x7]
      %v779 = vld [vmem:[%s337 + $0xb8] sm:$0x7]
      %v780 = vld [vmem:[%s337 + $0xc8] sm:$0x7]
      %v781 = vld [vmem:[%s337 + $0xd8] sm:$0x7]
      %v782 = vunpack.c.l.bf16 %v772
      %v783 = vunpack.c.l.bf16 %v773
      %v784 = vunpack.c.l.bf16 %v774
      %v785 = vunpack.c.l.bf16 %v775
      %v786 = vunpack.c.l.bf16 %v776
      %v787 = vunpack.c.l.bf16 %v777
      %v788 = vunpack.c.l.bf16 %v778
      %v789 = vunpack.c.l.bf16 %v779
      %v790 = vlaneseq
      %v791 = vshrl.u32 %v790, 7
      %v792 = vsub.s32 1, %v791
      %v793 = vrot.slane %v326, %v792
      %v794 = vmul.f32 %v368, %v793
      %v795 = vmul.f32 %v369, %v793
      %v796 = vmul.f32 %v782, %v793
      %v797 = vmul.f32 %v371, %v793
      %v798 = vmul.f32 %v372, %v793
      %v799 = vmul.f32 %v783, %v793
      %v800 = vmul.f32 %v374, %v793
      %v801 = vmul.f32 %v375, %v793
      %v802 = vmul.f32 %v784, %v793
      %v803 = vmul.f32 %v377, %v793
      %v804 = vmul.f32 %v378, %v793
      %v805 = vmul.f32 %v785, %v793
      %v806 = vmul.f32 %v380, %v793
      %v807 = vmul.f32 %v381, %v793
      %v808 = vmul.f32 %v786, %v793
      %v809 = vmul.f32 %v383, %v793
      %v810 = vmul.f32 %v384, %v793
      %v811 = vmul.f32 %v787, %v793
      %v812 = vmul.f32 %v386, %v793
      %v813 = vmul.f32 %v387, %v793
      %v814 = vmul.f32 %v788, %v793
      %v815 = vmul.f32 %v389, %v793
      %v816 = vmul.f32 %v390, %v793
      %v817 = vmul.f32 %v789, %v793
      %vm842 = vcmask 1046528
      %v843 = vrot.slane %v794, 1
      %v844 = vrot.slane %v795, 1
      %v845 = vsel %vm842, %v843, %v844
      %v846 = vrot.slane %v796, 1
      %v847 = vsel %vm842, %v844, %v846
      %v848 = vrot.slane %v797, 1
      %v849 = vrot.slane %v798, 1
      %v850 = vsel %vm842, %v848, %v849
      %v851 = vrot.slane %v799, 1
      %v852 = vsel %vm842, %v849, %v851
      %v853 = vrot.slane %v800, 1
      %v854 = vrot.slane %v801, 1
      %v855 = vsel %vm842, %v853, %v854
      %v856 = vrot.slane %v802, 1
      %v857 = vsel %vm842, %v854, %v856
      %v858 = vrot.slane %v803, 1
      %v859 = vrot.slane %v804, 1
      %v860 = vsel %vm842, %v858, %v859
      %v861 = vrot.slane %v805, 1
      %v862 = vsel %vm842, %v859, %v861
      %v863 = vrot.slane %v806, 1
      %v864 = vrot.slane %v807, 1
      %v865 = vsel %vm842, %v863, %v864
      %v866 = vrot.slane %v808, 1
      %v867 = vsel %vm842, %v864, %v866
      %v868 = vrot.slane %v809, 1
      %v869 = vrot.slane %v810, 1
      %v870 = vsel %vm842, %v868, %v869
      %v871 = vrot.slane %v811, 1
      %v872 = vsel %vm842, %v869, %v871
      %v873 = vrot.slane %v812, 1
      %v874 = vrot.slane %v813, 1
      %v875 = vsel %vm842, %v873, %v874
      %v876 = vrot.slane %v814, 1
      %v877 = vsel %vm842, %v874, %v876
      %v878 = vrot.slane %v815, 1
      %v879 = vrot.slane %v816, 1
      %v880 = vsel %vm842, %v878, %v879
      %v881 = vrot.slane %v817, 1
      %v882 = vsel %vm842, %v879, %v881
      %v907 = vadd.f32 %v748, %v845
      %v908 = vadd.f32 %v749, %v847
      %v909 = vadd.f32 %v750, %v846
      %v910 = vadd.f32 %v751, %v850
      %v911 = vadd.f32 %v752, %v852
      %v912 = vadd.f32 %v753, %v851
      %v913 = vadd.f32 %v754, %v855
      %v914 = vadd.f32 %v755, %v857
      %v915 = vadd.f32 %v756, %v856
      %v916 = vadd.f32 %v757, %v860
      %v917 = vadd.f32 %v758, %v862
      %v918 = vadd.f32 %v759, %v861
      %v919 = vadd.f32 %v760, %v865
      %v920 = vadd.f32 %v761, %v867
      %v921 = vadd.f32 %v762, %v866
      %v922 = vadd.f32 %v763, %v870
      %v923 = vadd.f32 %v764, %v872
      %v924 = vadd.f32 %v765, %v871
      %v925 = vadd.f32 %v766, %v875
      %v926 = vadd.f32 %v767, %v877
      %v927 = vadd.f32 %v768, %v876
      %v928 = vadd.f32 %v769, %v880
      %v929 = vadd.f32 %v770, %v882
      %v930 = vadd.f32 %v771, %v881
      %v931 = vunpack.c.l.bf16 %v780
      %v932 = vlaneseq
      %v933 = vshrl.u32 %v932, 7
      %v934 = vsub.s32 4, %v933
      %v935 = vrot.slane %v326, %v934
      %v936 = vmul.f32 %v371, %v935
      %v937 = vmul.f32 %v372, %v935
      %v938 = vmul.f32 %v783, %v935
      %v939 = vmul.f32 %v374, %v935
      %v940 = vmul.f32 %v375, %v935
      %v941 = vmul.f32 %v784, %v935
      %v942 = vmul.f32 %v377, %v935
      %v943 = vmul.f32 %v378, %v935
      %v944 = vmul.f32 %v785, %v935
      %v945 = vmul.f32 %v380, %v935
      %v946 = vmul.f32 %v381, %v935
      %v947 = vmul.f32 %v786, %v935
      %v948 = vmul.f32 %v383, %v935
      %v949 = vmul.f32 %v384, %v935
      %v950 = vmul.f32 %v787, %v935
      %v951 = vmul.f32 %v386, %v935
      %v952 = vmul.f32 %v387, %v935
      %v953 = vmul.f32 %v788, %v935
      %v954 = vmul.f32 %v389, %v935
      %v955 = vmul.f32 %v390, %v935
      %v956 = vmul.f32 %v789, %v935
      %v957 = vmul.f32 %v444, %v935
      %v958 = vmul.f32 %v445, %v935
      %v959 = vmul.f32 %v931, %v935
      %v984 = vrot.slane %v936, 1
      %v985 = vrot.slane %v937, 1
      %v986 = vsel %vm842, %v984, %v985
      %v987 = vrot.slane %v938, 1
      %v988 = vsel %vm842, %v985, %v987
      %v989 = vrot.slane %v939, 1
      %v990 = vrot.slane %v940, 1
      %v991 = vsel %vm842, %v989, %v990
      %v992 = vrot.slane %v941, 1
      %v993 = vsel %vm842, %v990, %v992
      %v994 = vrot.slane %v942, 1
      %v995 = vrot.slane %v943, 1
      %v996 = vsel %vm842, %v994, %v995
      %v997 = vrot.slane %v944, 1
      %v998 = vsel %vm842, %v995, %v997
      %v999 = vrot.slane %v945, 1
      %v1000 = vrot.slane %v946, 1
      %v1001 = vsel %vm842, %v999, %v1000
      %v1002 = vrot.slane %v947, 1
      %v1003 = vsel %vm842, %v1000, %v1002
      %v1004 = vrot.slane %v948, 1
      %v1005 = vrot.slane %v949, 1
      %v1006 = vsel %vm842, %v1004, %v1005
      %v1007 = vrot.slane %v950, 1
      %v1008 = vsel %vm842, %v1005, %v1007
      %v1009 = vrot.slane %v951, 1
      %v1010 = vrot.slane %v952, 1
      %v1011 = vsel %vm842, %v1009, %v1010
      %v1012 = vrot.slane %v953, 1
      %v1013 = vsel %vm842, %v1010, %v1012
      %v1014 = vrot.slane %v954, 1
      %v1015 = vrot.slane %v955, 1
      %v1016 = vsel %vm842, %v1014, %v1015
      %v1017 = vrot.slane %v956, 1
      %v1018 = vsel %vm842, %v1015, %v1017
      %v1019 = vrot.slane %v957, 1
      %v1020 = vrot.slane %v958, 1
      %v1021 = vsel %vm842, %v1019, %v1020
      %v1022 = vrot.slane %v959, 1
      %v1023 = vsel %vm842, %v1020, %v1022
      %v1048 = vadd.f32 %v907, %v986
      %v1049 = vadd.f32 %v908, %v988
      %v1050 = vadd.f32 %v909, %v987
      %v1051 = vadd.f32 %v910, %v991
      %v1052 = vadd.f32 %v911, %v993
      %v1053 = vadd.f32 %v912, %v992
      %v1054 = vadd.f32 %v913, %v996
      %v1055 = vadd.f32 %v914, %v998
      %v1056 = vadd.f32 %v915, %v997
      %v1057 = vadd.f32 %v916, %v1001
      %v1058 = vadd.f32 %v917, %v1003
      %v1059 = vadd.f32 %v918, %v1002
      %v1060 = vadd.f32 %v919, %v1006
      %v1061 = vadd.f32 %v920, %v1008
      %v1062 = vadd.f32 %v921, %v1007
      %v1063 = vadd.f32 %v922, %v1011
      %v1064 = vadd.f32 %v923, %v1013
      %v1065 = vadd.f32 %v924, %v1012
      %v1066 = vadd.f32 %v925, %v1016
      %v1067 = vadd.f32 %v926, %v1018
      %v1068 = vadd.f32 %v927, %v1017
      %v1069 = vadd.f32 %v928, %v1021
      %v1070 = vadd.f32 %v929, %v1023
      %v1071 = vadd.f32 %v930, %v1022
      %v1072 = vunpack.c.l.bf16 %v781
      %v1073 = vlaneseq
      %v1074 = vshrl.u32 %v1073, 7
      %v1075 = vsub.s32 7, %v1074
      %v1076 = vrot.slane %v326, %v1075
      %v1077 = vmul.f32 %v374, %v1076
      %v1078 = vmul.f32 %v375, %v1076
      %v1079 = vmul.f32 %v784, %v1076
      %v1080 = vmul.f32 %v377, %v1076
      %v1081 = vmul.f32 %v378, %v1076
      %v1082 = vmul.f32 %v785, %v1076
      %v1083 = vmul.f32 %v380, %v1076
      %v1084 = vmul.f32 %v381, %v1076
      %v1085 = vmul.f32 %v786, %v1076
      %v1086 = vmul.f32 %v383, %v1076
      %v1087 = vmul.f32 %v384, %v1076
      %v1088 = vmul.f32 %v787, %v1076
      %v1089 = vmul.f32 %v386, %v1076
      %v1090 = vmul.f32 %v387, %v1076
      %v1091 = vmul.f32 %v788, %v1076
      %v1092 = vmul.f32 %v389, %v1076
      %v1093 = vmul.f32 %v390, %v1076
      %v1094 = vmul.f32 %v789, %v1076
      %v1095 = vmul.f32 %v444, %v1076
      %v1096 = vmul.f32 %v445, %v1076
      %v1097 = vmul.f32 %v931, %v1076
      %v1098 = vmul.f32 %v499, %v1076
      %v1099 = vmul.f32 %v500, %v1076
      %v1100 = vmul.f32 %v1072, %v1076
      %v1125 = vrot.slane %v1077, 1
      %v1126 = vrot.slane %v1078, 1
      %v1127 = vsel %vm842, %v1125, %v1126
      %v1128 = vrot.slane %v1079, 1
      %v1129 = vsel %vm842, %v1126, %v1128
      %v1130 = vrot.slane %v1080, 1
      %v1131 = vrot.slane %v1081, 1
      %v1132 = vsel %vm842, %v1130, %v1131
      %v1133 = vrot.slane %v1082, 1
      %v1134 = vsel %vm842, %v1131, %v1133
      %v1135 = vrot.slane %v1083, 1
      %v1136 = vrot.slane %v1084, 1
      %v1137 = vsel %vm842, %v1135, %v1136
      %v1138 = vrot.slane %v1085, 1
      %v1139 = vsel %vm842, %v1136, %v1138
      %v1140 = vrot.slane %v1086, 1
      %v1141 = vrot.slane %v1087, 1
      %v1142 = vsel %vm842, %v1140, %v1141
      %v1143 = vrot.slane %v1088, 1
      %v1144 = vsel %vm842, %v1141, %v1143
      %v1145 = vrot.slane %v1089, 1
      %v1146 = vrot.slane %v1090, 1
      %v1147 = vsel %vm842, %v1145, %v1146
      %v1148 = vrot.slane %v1091, 1
      %v1149 = vsel %vm842, %v1146, %v1148
      %v1150 = vrot.slane %v1092, 1
      %v1151 = vrot.slane %v1093, 1
      %v1152 = vsel %vm842, %v1150, %v1151
      %v1153 = vrot.slane %v1094, 1
      %v1154 = vsel %vm842, %v1151, %v1153
      %v1155 = vrot.slane %v1095, 1
      %v1156 = vrot.slane %v1096, 1
      %v1157 = vsel %vm842, %v1155, %v1156
      %v1158 = vrot.slane %v1097, 1
      %v1159 = vsel %vm842, %v1156, %v1158
      %v1160 = vrot.slane %v1098, 1
      %v1161 = vrot.slane %v1099, 1
      %v1162 = vsel %vm842, %v1160, %v1161
      %v1163 = vrot.slane %v1100, 1
      %v1164 = vsel %vm842, %v1161, %v1163
      %v1189 = vadd.f32 %v1048, %v1127
      %v1190 = vadd.f32 %v1049, %v1129
      %v1191 = vadd.f32 %v1050, %v1128
      %v1192 = vadd.f32 %v1051, %v1132
      %v1193 = vadd.f32 %v1052, %v1134
      %v1194 = vadd.f32 %v1053, %v1133
      %v1195 = vadd.f32 %v1054, %v1137
      %v1196 = vadd.f32 %v1055, %v1139
      %v1197 = vadd.f32 %v1056, %v1138
      %v1198 = vadd.f32 %v1057, %v1142
      %v1199 = vadd.f32 %v1058, %v1144
      %v1200 = vadd.f32 %v1059, %v1143
      %v1201 = vadd.f32 %v1060, %v1147
      %v1202 = vadd.f32 %v1061, %v1149
      %v1203 = vadd.f32 %v1062, %v1148
      %v1204 = vadd.f32 %v1063, %v1152
      %v1205 = vadd.f32 %v1064, %v1154
      %v1206 = vadd.f32 %v1065, %v1153
      %v1207 = vadd.f32 %v1066, %v1157
      %v1208 = vadd.f32 %v1067, %v1159
      %v1209 = vadd.f32 %v1068, %v1158
      %v1210 = vadd.f32 %v1069, %v1162
      %v1211 = vadd.f32 %v1070, %v1164
      %v1212 = vadd.f32 %v1071, %v1163
      %v1213 = vld [vmem:[%s555 + $0x48] sm:$0x7]
      %v1214 = vld [vmem:[%s555 + $0x58] sm:$0x7]
      %v1215 = vld [vmem:[%s555 + $0x68] sm:$0x7]
      %v1216 = vld [vmem:[%s555 + $0x78] sm:$0x7]
      %v1217 = vld [vmem:[%s555 + $0x88] sm:$0x7]
      %v1218 = vld [vmem:[%s555 + $0x98] sm:$0x7]
      %v1219 = vld [vmem:[%s555 + $0xa8] sm:$0x7]
      %v1220 = vld [vmem:[%s555 + $0xb8] sm:$0x7]
      %v1221 = vld [vmem:[%s555 + $0xc8] sm:$0x7]
      %v1222 = vld [vmem:[%s555 + $0xd8] sm:$0x7]
      %v1223 = vunpack.c.l.bf16 %v1213
      %v1224 = vunpack.c.l.bf16 %v1214
      %v1225 = vunpack.c.l.bf16 %v1215
      %v1226 = vunpack.c.l.bf16 %v1216
      %v1227 = vunpack.c.l.bf16 %v1217
      %v1228 = vunpack.c.l.bf16 %v1218
      %v1229 = vunpack.c.l.bf16 %v1219
      %v1230 = vunpack.c.l.bf16 %v1220
      %v1231 = vlaneseq
      %v1232 = vshrl.u32 %v1231, 7
      %v1233 = vsub.s32 1, %v1232
      %v1234 = vrot.slane %v328, %v1233
      %v1235 = vmul.f32 %v586, %v1234
      %v1236 = vmul.f32 %v587, %v1234
      %v1237 = vmul.f32 %v1223, %v1234
      %v1238 = vmul.f32 %v589, %v1234
      %v1239 = vmul.f32 %v590, %v1234
      %v1240 = vmul.f32 %v1224, %v1234
      %v1241 = vmul.f32 %v592, %v1234
      %v1242 = vmul.f32 %v593, %v1234
      %v1243 = vmul.f32 %v1225, %v1234
      %v1244 = vmul.f32 %v595, %v1234
      %v1245 = vmul.f32 %v596, %v1234
      %v1246 = vmul.f32 %v1226, %v1234
      %v1247 = vmul.f32 %v598, %v1234
      %v1248 = vmul.f32 %v599, %v1234
      %v1249 = vmul.f32 %v1227, %v1234
      %v1250 = vmul.f32 %v601, %v1234
      %v1251 = vmul.f32 %v602, %v1234
      %v1252 = vmul.f32 %v1228, %v1234
      %v1253 = vmul.f32 %v604, %v1234
      %v1254 = vmul.f32 %v605, %v1234
      %v1255 = vmul.f32 %v1229, %v1234
      %v1256 = vmul.f32 %v607, %v1234
      %v1257 = vmul.f32 %v608, %v1234
      %v1258 = vmul.f32 %v1230, %v1234
      %v1283 = vrot.slane %v1235, 1
      %v1284 = vrot.slane %v1236, 1
      %v1285 = vsel %vm842, %v1283, %v1284
      %v1286 = vrot.slane %v1237, 1
      %v1287 = vsel %vm842, %v1284, %v1286
      %v1288 = vrot.slane %v1238, 1
      %v1289 = vrot.slane %v1239, 1
      %v1290 = vsel %vm842, %v1288, %v1289
      %v1291 = vrot.slane %v1240, 1
      %v1292 = vsel %vm842, %v1289, %v1291
      %v1293 = vrot.slane %v1241, 1
      %v1294 = vrot.slane %v1242, 1
      %v1295 = vsel %vm842, %v1293, %v1294
      %v1296 = vrot.slane %v1243, 1
      %v1297 = vsel %vm842, %v1294, %v1296
      %v1298 = vrot.slane %v1244, 1
      %v1299 = vrot.slane %v1245, 1
      %v1300 = vsel %vm842, %v1298, %v1299
      %v1301 = vrot.slane %v1246, 1
      %v1302 = vsel %vm842, %v1299, %v1301
      %v1303 = vrot.slane %v1247, 1
      %v1304 = vrot.slane %v1248, 1
      %v1305 = vsel %vm842, %v1303, %v1304
      %v1306 = vrot.slane %v1249, 1
      %v1307 = vsel %vm842, %v1304, %v1306
      %v1308 = vrot.slane %v1250, 1
      %v1309 = vrot.slane %v1251, 1
      %v1310 = vsel %vm842, %v1308, %v1309
      %v1311 = vrot.slane %v1252, 1
      %v1312 = vsel %vm842, %v1309, %v1311
      %v1313 = vrot.slane %v1253, 1
      %v1314 = vrot.slane %v1254, 1
      %v1315 = vsel %vm842, %v1313, %v1314
      %v1316 = vrot.slane %v1255, 1
      %v1317 = vsel %vm842, %v1314, %v1316
      %v1318 = vrot.slane %v1256, 1
      %v1319 = vrot.slane %v1257, 1
      %v1320 = vsel %vm842, %v1318, %v1319
      %v1321 = vrot.slane %v1258, 1
      %v1322 = vsel %vm842, %v1319, %v1321
      %v1347 = vadd.f32 %v1189, %v1285
      %v1348 = vadd.f32 %v1190, %v1287
      %v1349 = vadd.f32 %v1191, %v1286
      %v1350 = vadd.f32 %v1192, %v1290
      %v1351 = vadd.f32 %v1193, %v1292
      %v1352 = vadd.f32 %v1194, %v1291
      %v1353 = vadd.f32 %v1195, %v1295
      %v1354 = vadd.f32 %v1196, %v1297
      %v1355 = vadd.f32 %v1197, %v1296
      %v1356 = vadd.f32 %v1198, %v1300
      %v1357 = vadd.f32 %v1199, %v1302
      %v1358 = vadd.f32 %v1200, %v1301
      %v1359 = vadd.f32 %v1201, %v1305
      %v1360 = vadd.f32 %v1202, %v1307
      %v1361 = vadd.f32 %v1203, %v1306
      %v1362 = vadd.f32 %v1204, %v1310
      %v1363 = vadd.f32 %v1205, %v1312
      %v1364 = vadd.f32 %v1206, %v1311
      %v1365 = vadd.f32 %v1207, %v1315
      %v1366 = vadd.f32 %v1208, %v1317
      %v1367 = vadd.f32 %v1209, %v1316
      %v1368 = vadd.f32 %v1210, %v1320
      %v1369 = vadd.f32 %v1211, %v1322
      %v1370 = vadd.f32 %v1212, %v1321
      %v1371 = vunpack.c.l.bf16 %v1221
      %v1372 = vlaneseq
      %v1373 = vshrl.u32 %v1372, 7
      %v1374 = vsub.s32 4, %v1373
      %v1375 = vrot.slane %v328, %v1374
      %v1376 = vmul.f32 %v589, %v1375
      %v1377 = vmul.f32 %v590, %v1375
      %v1378 = vmul.f32 %v1224, %v1375
      %v1379 = vmul.f32 %v592, %v1375
      %v1380 = vmul.f32 %v593, %v1375
      %v1381 = vmul.f32 %v1225, %v1375
      %v1382 = vmul.f32 %v595, %v1375
      %v1383 = vmul.f32 %v596, %v1375
      %v1384 = vmul.f32 %v1226, %v1375
      %v1385 = vmul.f32 %v598, %v1375
      %v1386 = vmul.f32 %v599, %v1375
      %v1387 = vmul.f32 %v1227, %v1375
      %v1388 = vmul.f32 %v601, %v1375
      %v1389 = vmul.f32 %v602, %v1375
      %v1390 = vmul.f32 %v1228, %v1375
      %v1391 = vmul.f32 %v604, %v1375
      %v1392 = vmul.f32 %v605, %v1375
      %v1393 = vmul.f32 %v1229, %v1375
      %v1394 = vmul.f32 %v607, %v1375
      %v1395 = vmul.f32 %v608, %v1375
      %v1396 = vmul.f32 %v1230, %v1375
      %v1397 = vmul.f32 %v662, %v1375
      %v1398 = vmul.f32 %v663, %v1375
      %v1399 = vmul.f32 %v1371, %v1375
      %v1424 = vrot.slane %v1376, 1
      %v1425 = vrot.slane %v1377, 1
      %v1426 = vsel %vm842, %v1424, %v1425
      %v1427 = vrot.slane %v1378, 1
      %v1428 = vsel %vm842, %v1425, %v1427
      %v1429 = vrot.slane %v1379, 1
      %v1430 = vrot.slane %v1380, 1
      %v1431 = vsel %vm842, %v1429, %v1430
      %v1432 = vrot.slane %v1381, 1
      %v1433 = vsel %vm842, %v1430, %v1432
      %v1434 = vrot.slane %v1382, 1
      %v1435 = vrot.slane %v1383, 1
      %v1436 = vsel %vm842, %v1434, %v1435
      %v1437 = vrot.slane %v1384, 1
      %v1438 = vsel %vm842, %v1435, %v1437
      %v1439 = vrot.slane %v1385, 1
      %v1440 = vrot.slane %v1386, 1
      %v1441 = vsel %vm842, %v1439, %v1440
      %v1442 = vrot.slane %v1387, 1
      %v1443 = vsel %vm842, %v1440, %v1442
      %v1444 = vrot.slane %v1388, 1
      %v1445 = vrot.slane %v1389, 1
      %v1446 = vsel %vm842, %v1444, %v1445
      %v1447 = vrot.slane %v1390, 1
      %v1448 = vsel %vm842, %v1445, %v1447
      %v1449 = vrot.slane %v1391, 1
      %v1450 = vrot.slane %v1392, 1
      %v1451 = vsel %vm842, %v1449, %v1450
      %v1452 = vrot.slane %v1393, 1
      %v1453 = vsel %vm842, %v1450, %v1452
      %v1454 = vrot.slane %v1394, 1
      %v1455 = vrot.slane %v1395, 1
      %v1456 = vsel %vm842, %v1454, %v1455
      %v1457 = vrot.slane %v1396, 1
      %v1458 = vsel %vm842, %v1455, %v1457
      %v1459 = vrot.slane %v1397, 1
      %v1460 = vrot.slane %v1398, 1
      %v1461 = vsel %vm842, %v1459, %v1460
      %v1462 = vrot.slane %v1399, 1
      %v1463 = vsel %vm842, %v1460, %v1462
      %v1488 = vadd.f32 %v1347, %v1426
      %v1489 = vadd.f32 %v1348, %v1428
      %v1490 = vadd.f32 %v1349, %v1427
      %v1491 = vadd.f32 %v1350, %v1431
      %v1492 = vadd.f32 %v1351, %v1433
      %v1493 = vadd.f32 %v1352, %v1432
      %v1494 = vadd.f32 %v1353, %v1436
      %v1495 = vadd.f32 %v1354, %v1438
      %v1496 = vadd.f32 %v1355, %v1437
      %v1497 = vadd.f32 %v1356, %v1441
      %v1498 = vadd.f32 %v1357, %v1443
      %v1499 = vadd.f32 %v1358, %v1442
      %v1500 = vadd.f32 %v1359, %v1446
      %v1501 = vadd.f32 %v1360, %v1448
      %v1502 = vadd.f32 %v1361, %v1447
      %v1503 = vadd.f32 %v1362, %v1451
      %v1504 = vadd.f32 %v1363, %v1453
      %v1505 = vadd.f32 %v1364, %v1452
      %v1506 = vadd.f32 %v1365, %v1456
      %v1507 = vadd.f32 %v1366, %v1458
      %v1508 = vadd.f32 %v1367, %v1457
      %v1509 = vadd.f32 %v1368, %v1461
      %v1510 = vadd.f32 %v1369, %v1463
      %v1511 = vadd.f32 %v1370, %v1462
      %v1512 = vunpack.c.l.bf16 %v1222
      %v1513 = vlaneseq
      %v1514 = vshrl.u32 %v1513, 7
      %v1515 = vsub.s32 7, %v1514
      %v1516 = vrot.slane %v328, %v1515
      %v1517 = vmul.f32 %v592, %v1516
      %v1518 = vmul.f32 %v593, %v1516
      %v1519 = vmul.f32 %v1225, %v1516
      %v1520 = vmul.f32 %v595, %v1516
      %v1521 = vmul.f32 %v596, %v1516
      %v1522 = vmul.f32 %v1226, %v1516
      %v1523 = vmul.f32 %v598, %v1516
      %v1524 = vmul.f32 %v599, %v1516
      %v1525 = vmul.f32 %v1227, %v1516
      %v1526 = vmul.f32 %v601, %v1516
      %v1527 = vmul.f32 %v602, %v1516
      %v1528 = vmul.f32 %v1228, %v1516
      %v1529 = vmul.f32 %v604, %v1516
      %v1530 = vmul.f32 %v605, %v1516
      %v1531 = vmul.f32 %v1229, %v1516
      %v1532 = vmul.f32 %v607, %v1516
      %v1533 = vmul.f32 %v608, %v1516
      %v1534 = vmul.f32 %v1230, %v1516
      %v1535 = vmul.f32 %v662, %v1516
      %v1536 = vmul.f32 %v663, %v1516
      %v1537 = vmul.f32 %v1371, %v1516
      %v1538 = vmul.f32 %v717, %v1516
      %v1539 = vmul.f32 %v718, %v1516
      %v1540 = vmul.f32 %v1512, %v1516
      %v1565 = vrot.slane %v1517, 1
      %v1566 = vrot.slane %v1518, 1
      %v1567 = vsel %vm842, %v1565, %v1566
      %v1568 = vrot.slane %v1519, 1
      %v1569 = vsel %vm842, %v1566, %v1568
      %v1570 = vrot.slane %v1520, 1
      %v1571 = vrot.slane %v1521, 1
      %v1572 = vsel %vm842, %v1570, %v1571
      %v1573 = vrot.slane %v1522, 1
      %v1574 = vsel %vm842, %v1571, %v1573
      %v1575 = vrot.slane %v1523, 1
      %v1576 = vrot.slane %v1524, 1
      %v1577 = vsel %vm842, %v1575, %v1576
      %v1578 = vrot.slane %v1525, 1
      %v1579 = vsel %vm842, %v1576, %v1578
      %v1580 = vrot.slane %v1526, 1
      %v1581 = vrot.slane %v1527, 1
      %v1582 = vsel %vm842, %v1580, %v1581
      %v1583 = vrot.slane %v1528, 1
      %v1584 = vsel %vm842, %v1581, %v1583
      %v1585 = vrot.slane %v1529, 1
      %v1586 = vrot.slane %v1530, 1
      %v1587 = vsel %vm842, %v1585, %v1586
      %v1588 = vrot.slane %v1531, 1
      %v1589 = vsel %vm842, %v1586, %v1588
      %v1590 = vrot.slane %v1532, 1
      %v1591 = vrot.slane %v1533, 1
      %v1592 = vsel %vm842, %v1590, %v1591
      %v1593 = vrot.slane %v1534, 1
      %v1594 = vsel %vm842, %v1591, %v1593
      %v1595 = vrot.slane %v1535, 1
      %v1596 = vrot.slane %v1536, 1
      %v1597 = vsel %vm842, %v1595, %v1596
      %v1598 = vrot.slane %v1537, 1
      %v1599 = vsel %vm842, %v1596, %v1598
      %v1600 = vrot.slane %v1538, 1
      %v1601 = vrot.slane %v1539, 1
      %v1602 = vsel %vm842, %v1600, %v1601
      %v1603 = vrot.slane %v1540, 1
      %v1604 = vsel %vm842, %v1601, %v1603
      %v1629 = vadd.f32 %v1488, %v1567
      %v1630 = vadd.f32 %v1489, %v1569
      %v1631 = vadd.f32 %v1490, %v1568
      %v1632 = vadd.f32 %v1491, %v1572
      %v1633 = vadd.f32 %v1492, %v1574
      %v1634 = vadd.f32 %v1493, %v1573
      %v1635 = vadd.f32 %v1494, %v1577
      %v1636 = vadd.f32 %v1495, %v1579
      %v1637 = vadd.f32 %v1496, %v1578
      %v1638 = vadd.f32 %v1497, %v1582
      %v1639 = vadd.f32 %v1498, %v1584
      %v1640 = vadd.f32 %v1499, %v1583
      %v1641 = vadd.f32 %v1500, %v1587
      %v1642 = vadd.f32 %v1501, %v1589
      %v1643 = vadd.f32 %v1502, %v1588
      %v1644 = vadd.f32 %v1503, %v1592
      %v1645 = vadd.f32 %v1504, %v1594
      %v1646 = vadd.f32 %v1505, %v1593
      %v1647 = vadd.f32 %v1506, %v1597
      %v1648 = vadd.f32 %v1507, %v1599
      %v1649 = vadd.f32 %v1508, %v1598
      %v1650 = vadd.f32 %v1509, %v1602
      %v1651 = vadd.f32 %v1510, %v1604
      %v1652 = vadd.f32 %v1511, %v1603
      %v1653 = vld [vmem:[%s337 + $0x40] sm:$0x8]
      %v1654 = vld [vmem:[%s337 + $0x50] sm:$0x8]
      %v1655 = vld [vmem:[%s337 + $0x60] sm:$0x8]
      %v1656 = vld [vmem:[%s337 + $0x70] sm:$0x8]
      %v1657 = vld [vmem:[%s337 + $0x80] sm:$0x8]
      %v1658 = vld [vmem:[%s337 + $0x90] sm:$0x8]
      %v1659 = vld [vmem:[%s337 + $0xa0] sm:$0x8]
      %v1660 = vld [vmem:[%s337 + $0xb0] sm:$0x8]
      %v1661 = vld [vmem:[%s337 + $0xc0] sm:$0x8]
      %v1662 = vld [vmem:[%s337 + $0xd0] sm:$0x8]
      %v1663 = vunpack.c.l.bf16 %v1653
      %v1664 = vunpack.c.l.bf16 %v1654
      %v1665 = vunpack.c.l.bf16 %v1655
      %v1666 = vunpack.c.l.bf16 %v1656
      %v1667 = vunpack.c.l.bf16 %v1657
      %v1668 = vunpack.c.l.bf16 %v1658
      %v1669 = vunpack.c.l.bf16 %v1659
      %v1670 = vunpack.c.l.bf16 %v1660
      %v1671 = vlaneseq
      %v1672 = vshrl.u32 %v1671, 7
      %v1673 = vsub.s32 2, %v1672
      %v1674 = vrot.slane %v326, %v1673
      %v1675 = vmul.f32 %v1663, %v1674
      %v1676 = vmul.f32 %v369, %v1674
      %v1677 = vmul.f32 %v782, %v1674
      %v1678 = vmul.f32 %v1664, %v1674
      %v1679 = vmul.f32 %v372, %v1674
      %v1680 = vmul.f32 %v783, %v1674
      %v1681 = vmul.f32 %v1665, %v1674
      %v1682 = vmul.f32 %v375, %v1674
      %v1683 = vmul.f32 %v784, %v1674
      %v1684 = vmul.f32 %v1666, %v1674
      %v1685 = vmul.f32 %v378, %v1674
      %v1686 = vmul.f32 %v785, %v1674
      %v1687 = vmul.f32 %v1667, %v1674
      %v1688 = vmul.f32 %v381, %v1674
      %v1689 = vmul.f32 %v786, %v1674
      %v1690 = vmul.f32 %v1668, %v1674
      %v1691 = vmul.f32 %v384, %v1674
      %v1692 = vmul.f32 %v787, %v1674
      %v1693 = vmul.f32 %v1669, %v1674
      %v1694 = vmul.f32 %v387, %v1674
      %v1695 = vmul.f32 %v788, %v1674
      %v1696 = vmul.f32 %v1670, %v1674
      %v1697 = vmul.f32 %v390, %v1674
      %v1698 = vmul.f32 %v789, %v1674
      %vm1723 = vcmask 1045504
      %v1724 = vrot.slane %v1675, 2
      %v1725 = vrot.slane %v1676, 2
      %v1726 = vsel %vm1723, %v1724, %v1725
      %v1727 = vrot.slane %v1677, 2
      %v1728 = vsel %vm1723, %v1725, %v1727
      %v1729 = vrot.slane %v1678, 2
      %v1730 = vrot.slane %v1679, 2
      %v1731 = vsel %vm1723, %v1729, %v1730
      %v1732 = vrot.slane %v1680, 2
      %v1733 = vsel %vm1723, %v1730, %v1732
      %v1734 = vrot.slane %v1681, 2
      %v1735 = vrot.slane %v1682, 2
      %v1736 = vsel %vm1723, %v1734, %v1735
      %v1737 = vrot.slane %v1683, 2
      %v1738 = vsel %vm1723, %v1735, %v1737
      %v1739 = vrot.slane %v1684, 2
      %v1740 = vrot.slane %v1685, 2
      %v1741 = vsel %vm1723, %v1739, %v1740
      %v1742 = vrot.slane %v1686, 2
      %v1743 = vsel %vm1723, %v1740, %v1742
      %v1744 = vrot.slane %v1687, 2
      %v1745 = vrot.slane %v1688, 2
      %v1746 = vsel %vm1723, %v1744, %v1745
      %v1747 = vrot.slane %v1689, 2
      %v1748 = vsel %vm1723, %v1745, %v1747
      %v1749 = vrot.slane %v1690, 2
      %v1750 = vrot.slane %v1691, 2
      %v1751 = vsel %vm1723, %v1749, %v1750
      %v1752 = vrot.slane %v1692, 2
      %v1753 = vsel %vm1723, %v1750, %v1752
      %v1754 = vrot.slane %v1693, 2
      %v1755 = vrot.slane %v1694, 2
      %v1756 = vsel %vm1723, %v1754, %v1755
      %v1757 = vrot.slane %v1695, 2
      %v1758 = vsel %vm1723, %v1755, %v1757
      %v1759 = vrot.slane %v1696, 2
      %v1760 = vrot.slane %v1697, 2
      %v1761 = vsel %vm1723, %v1759, %v1760
      %v1762 = vrot.slane %v1698, 2
      %v1763 = vsel %vm1723, %v1760, %v1762
      %v1788 = vadd.f32 %v1629, %v1726
      %v1789 = vadd.f32 %v1630, %v1728
      %v1790 = vadd.f32 %v1631, %v1727
      %v1791 = vadd.f32 %v1632, %v1731
      %v1792 = vadd.f32 %v1633, %v1733
      %v1793 = vadd.f32 %v1634, %v1732
      %v1794 = vadd.f32 %v1635, %v1736
      %v1795 = vadd.f32 %v1636, %v1738
      %v1796 = vadd.f32 %v1637, %v1737
      %v1797 = vadd.f32 %v1638, %v1741
      %v1798 = vadd.f32 %v1639, %v1743
      %v1799 = vadd.f32 %v1640, %v1742
      %v1800 = vadd.f32 %v1641, %v1746
      %v1801 = vadd.f32 %v1642, %v1748
      %v1802 = vadd.f32 %v1643, %v1747
      %v1803 = vadd.f32 %v1644, %v1751
      %v1804 = vadd.f32 %v1645, %v1753
      %v1805 = vadd.f32 %v1646, %v1752
      %v1806 = vadd.f32 %v1647, %v1756
      %v1807 = vadd.f32 %v1648, %v1758
      %v1808 = vadd.f32 %v1649, %v1757
      %v1809 = vadd.f32 %v1650, %v1761
      %v1810 = vadd.f32 %v1651, %v1763
      %v1811 = vadd.f32 %v1652, %v1762
      %v1812 = vunpack.c.l.bf16 %v1661
      %v1813 = vlaneseq
      %v1814 = vshrl.u32 %v1813, 7
      %v1815 = vsub.s32 5, %v1814
      %v1816 = vrot.slane %v326, %v1815
      %v1817 = vmul.f32 %v1664, %v1816
      %v1818 = vmul.f32 %v372, %v1816
      %v1819 = vmul.f32 %v783, %v1816
      %v1820 = vmul.f32 %v1665, %v1816
      %v1821 = vmul.f32 %v375, %v1816
      %v1822 = vmul.f32 %v784, %v1816
      %v1823 = vmul.f32 %v1666, %v1816
      %v1824 = vmul.f32 %v378, %v1816
      %v1825 = vmul.f32 %v785, %v1816
      %v1826 = vmul.f32 %v1667, %v1816
      %v1827 = vmul.f32 %v381, %v1816
      %v1828 = vmul.f32 %v786, %v1816
      %v1829 = vmul.f32 %v1668, %v1816
      %v1830 = vmul.f32 %v384, %v1816
      %v1831 = vmul.f32 %v787, %v1816
      %v1832 = vmul.f32 %v1669, %v1816
      %v1833 = vmul.f32 %v387, %v1816
      %v1834 = vmul.f32 %v788, %v1816
      %v1835 = vmul.f32 %v1670, %v1816
      %v1836 = vmul.f32 %v390, %v1816
      %v1837 = vmul.f32 %v789, %v1816
      %v1838 = vmul.f32 %v1812, %v1816
      %v1839 = vmul.f32 %v445, %v1816
      %v1840 = vmul.f32 %v931, %v1816
      %v1865 = vrot.slane %v1817, 2
      %v1866 = vrot.slane %v1818, 2
      %v1867 = vsel %vm1723, %v1865, %v1866
      %v1868 = vrot.slane %v1819, 2
      %v1869 = vsel %vm1723, %v1866, %v1868
      %v1870 = vrot.slane %v1820, 2
      %v1871 = vrot.slane %v1821, 2
      %v1872 = vsel %vm1723, %v1870, %v1871
      %v1873 = vrot.slane %v1822, 2
      %v1874 = vsel %vm1723, %v1871, %v1873
      %v1875 = vrot.slane %v1823, 2
      %v1876 = vrot.slane %v1824, 2
      %v1877 = vsel %vm1723, %v1875, %v1876
      %v1878 = vrot.slane %v1825, 2
      %v1879 = vsel %vm1723, %v1876, %v1878
      %v1880 = vrot.slane %v1826, 2
      %v1881 = vrot.slane %v1827, 2
      %v1882 = vsel %vm1723, %v1880, %v1881
      %v1883 = vrot.slane %v1828, 2
      %v1884 = vsel %vm1723, %v1881, %v1883
      %v1885 = vrot.slane %v1829, 2
      %v1886 = vrot.slane %v1830, 2
      %v1887 = vsel %vm1723, %v1885, %v1886
      %v1888 = vrot.slane %v1831, 2
      %v1889 = vsel %vm1723, %v1886, %v1888
      %v1890 = vrot.slane %v1832, 2
      %v1891 = vrot.slane %v1833, 2
      %v1892 = vsel %vm1723, %v1890, %v1891
      %v1893 = vrot.slane %v1834, 2
      %v1894 = vsel %vm1723, %v1891, %v1893
      %v1895 = vrot.slane %v1835, 2
      %v1896 = vrot.slane %v1836, 2
      %v1897 = vsel %vm1723, %v1895, %v1896
      %v1898 = vrot.slane %v1837, 2
      %v1899 = vsel %vm1723, %v1896, %v1898
      %v1900 = vrot.slane %v1838, 2
      %v1901 = vrot.slane %v1839, 2
      %v1902 = vsel %vm1723, %v1900, %v1901
      %v1903 = vrot.slane %v1840, 2
      %v1904 = vsel %vm1723, %v1901, %v1903
      %v1929 = vadd.f32 %v1788, %v1867
      %v1930 = vadd.f32 %v1789, %v1869
      %v1931 = vadd.f32 %v1790, %v1868
      %v1932 = vadd.f32 %v1791, %v1872
      %v1933 = vadd.f32 %v1792, %v1874
      %v1934 = vadd.f32 %v1793, %v1873
      %v1935 = vadd.f32 %v1794, %v1877
      %v1936 = vadd.f32 %v1795, %v1879
      %v1937 = vadd.f32 %v1796, %v1878
      %v1938 = vadd.f32 %v1797, %v1882
      %v1939 = vadd.f32 %v1798, %v1884
      %v1940 = vadd.f32 %v1799, %v1883
      %v1941 = vadd.f32 %v1800, %v1887
      %v1942 = vadd.f32 %v1801, %v1889
      %v1943 = vadd.f32 %v1802, %v1888
      %v1944 = vadd.f32 %v1803, %v1892
      %v1945 = vadd.f32 %v1804, %v1894
      %v1946 = vadd.f32 %v1805, %v1893
      %v1947 = vadd.f32 %v1806, %v1897
      %v1948 = vadd.f32 %v1807, %v1899
      %v1949 = vadd.f32 %v1808, %v1898
      %v1950 = vadd.f32 %v1809, %v1902
      %v1951 = vadd.f32 %v1810, %v1904
      %v1952 = vadd.f32 %v1811, %v1903
      %v1953 = vunpack.c.l.bf16 %v1662
      %v1954 = vlaneseq
      %v1955 = vshrl.u32 %v1954, 7
      %v1956 = vsub.s32 0, %v1955
      %v1957 = vrot.slane %v327, %v1956
      %v1958 = vmul.f32 %v1665, %v1957
      %v1959 = vmul.f32 %v375, %v1957
      %v1960 = vmul.f32 %v784, %v1957
      %v1961 = vmul.f32 %v1666, %v1957
      %v1962 = vmul.f32 %v378, %v1957
      %v1963 = vmul.f32 %v785, %v1957
      %v1964 = vmul.f32 %v1667, %v1957
      %v1965 = vmul.f32 %v381, %v1957
      %v1966 = vmul.f32 %v786, %v1957
      %v1967 = vmul.f32 %v1668, %v1957
      %v1968 = vmul.f32 %v384, %v1957
      %v1969 = vmul.f32 %v787, %v1957
      %v1970 = vmul.f32 %v1669, %v1957
      %v1971 = vmul.f32 %v387, %v1957
      %v1972 = vmul.f32 %v788, %v1957
      %v1973 = vmul.f32 %v1670, %v1957
      %v1974 = vmul.f32 %v390, %v1957
      %v1975 = vmul.f32 %v789, %v1957
      %v1976 = vmul.f32 %v1812, %v1957
      %v1977 = vmul.f32 %v445, %v1957
      %v1978 = vmul.f32 %v931, %v1957
      %v1979 = vmul.f32 %v1953, %v1957
      %v1980 = vmul.f32 %v500, %v1957
      %v1981 = vmul.f32 %v1072, %v1957
      %v2006 = vrot.slane %v1958, 2
      %v2007 = vrot.slane %v1959, 2
      %v2008 = vsel %vm1723, %v2006, %v2007
      %v2009 = vrot.slane %v1960, 2
      %v2010 = vsel %vm1723, %v2007, %v2009
      %v2011 = vrot.slane %v1961, 2
      %v2012 = vrot.slane %v1962, 2
      %v2013 = vsel %vm1723, %v2011, %v2012
      %v2014 = vrot.slane %v1963, 2
      %v2015 = vsel %vm1723, %v2012, %v2014
      %v2016 = vrot.slane %v1964, 2
      %v2017 = vrot.slane %v1965, 2
      %v2018 = vsel %vm1723, %v2016, %v2017
      %v2019 = vrot.slane %v1966, 2
      %v2020 = vsel %vm1723, %v2017, %v2019
      %v2021 = vrot.slane %v1967, 2
      %v2022 = vrot.slane %v1968, 2
      %v2023 = vsel %vm1723, %v2021, %v2022
      %v2024 = vrot.slane %v1969, 2
      %v2025 = vsel %vm1723, %v2022, %v2024
      %v2026 = vrot.slane %v1970, 2
      %v2027 = vrot.slane %v1971, 2
      %v2028 = vsel %vm1723, %v2026, %v2027
      %v2029 = vrot.slane %v1972, 2
      %v2030 = vsel %vm1723, %v2027, %v2029
      %v2031 = vrot.slane %v1973, 2
      %v2032 = vrot.slane %v1974, 2
      %v2033 = vsel %vm1723, %v2031, %v2032
      %v2034 = vrot.slane %v1975, 2
      %v2035 = vsel %vm1723, %v2032, %v2034
      %v2036 = vrot.slane %v1976, 2
      %v2037 = vrot.slane %v1977, 2
      %v2038 = vsel %vm1723, %v2036, %v2037
      %v2039 = vrot.slane %v1978, 2
      %v2040 = vsel %vm1723, %v2037, %v2039
      %v2041 = vrot.slane %v1979, 2
      %v2042 = vrot.slane %v1980, 2
      %v2043 = vsel %vm1723, %v2041, %v2042
      %v2044 = vrot.slane %v1981, 2
      %v2045 = vsel %vm1723, %v2042, %v2044
      %v2070 = vadd.f32 %v1929, %v2008
      %v2071 = vadd.f32 %v1930, %v2010
      %v2072 = vadd.f32 %v1931, %v2009
      %v2073 = vadd.f32 %v1932, %v2013
      %v2074 = vadd.f32 %v1933, %v2015
      %v2075 = vadd.f32 %v1934, %v2014
      %v2076 = vadd.f32 %v1935, %v2018
      %v2077 = vadd.f32 %v1936, %v2020
      %v2078 = vadd.f32 %v1937, %v2019
      %v2079 = vadd.f32 %v1938, %v2023
      %v2080 = vadd.f32 %v1939, %v2025
      %v2081 = vadd.f32 %v1940, %v2024
      %v2082 = vadd.f32 %v1941, %v2028
      %v2083 = vadd.f32 %v1942, %v2030
      %v2084 = vadd.f32 %v1943, %v2029
      %v2085 = vadd.f32 %v1944, %v2033
      %v2086 = vadd.f32 %v1945, %v2035
      %v2087 = vadd.f32 %v1946, %v2034
      %v2088 = vadd.f32 %v1947, %v2038
      %v2089 = vadd.f32 %v1948, %v2040
      %v2090 = vadd.f32 %v1949, %v2039
      %v2091 = vadd.f32 %v1950, %v2043
      %v2092 = vadd.f32 %v1951, %v2045
      %v2093 = vadd.f32 %v1952, %v2044
      %v2094 = vld [vmem:[%s555 + $0x40] sm:$0x8]
      %v2095 = vld [vmem:[%s555 + $0x50] sm:$0x8]
      %v2096 = vld [vmem:[%s555 + $0x60] sm:$0x8]
      %v2097 = vld [vmem:[%s555 + $0x70] sm:$0x8]
      %v2098 = vld [vmem:[%s555 + $0x80] sm:$0x8]
      %v2099 = vld [vmem:[%s555 + $0x90] sm:$0x8]
      %v2100 = vld [vmem:[%s555 + $0xa0] sm:$0x8]
      %v2101 = vld [vmem:[%s555 + $0xb0] sm:$0x8]
      %v2102 = vld [vmem:[%s555 + $0xc0] sm:$0x8]
      %v2103 = vld [vmem:[%s555 + $0xd0] sm:$0x8]
      %v2104 = vunpack.c.l.bf16 %v2094
      %v2105 = vunpack.c.l.bf16 %v2095
      %v2106 = vunpack.c.l.bf16 %v2096
      %v2107 = vunpack.c.l.bf16 %v2097
      %v2108 = vunpack.c.l.bf16 %v2098
      %v2109 = vunpack.c.l.bf16 %v2099
      %v2110 = vunpack.c.l.bf16 %v2100
      %v2111 = vunpack.c.l.bf16 %v2101
      %v2112 = vlaneseq
      %v2113 = vshrl.u32 %v2112, 7
      %v2114 = vsub.s32 2, %v2113
      %v2115 = vrot.slane %v328, %v2114
      %v2116 = vmul.f32 %v2104, %v2115
      %v2117 = vmul.f32 %v587, %v2115
      %v2118 = vmul.f32 %v1223, %v2115
      %v2119 = vmul.f32 %v2105, %v2115
      %v2120 = vmul.f32 %v590, %v2115
      %v2121 = vmul.f32 %v1224, %v2115
      %v2122 = vmul.f32 %v2106, %v2115
      %v2123 = vmul.f32 %v593, %v2115
      %v2124 = vmul.f32 %v1225, %v2115
      %v2125 = vmul.f32 %v2107, %v2115
      %v2126 = vmul.f32 %v596, %v2115
      %v2127 = vmul.f32 %v1226, %v2115
      %v2128 = vmul.f32 %v2108, %v2115
      %v2129 = vmul.f32 %v599, %v2115
      %v2130 = vmul.f32 %v1227, %v2115
      %v2131 = vmul.f32 %v2109, %v2115
      %v2132 = vmul.f32 %v602, %v2115
      %v2133 = vmul.f32 %v1228, %v2115
      %v2134 = vmul.f32 %v2110, %v2115
      %v2135 = vmul.f32 %v605, %v2115
      %v2136 = vmul.f32 %v1229, %v2115
      %v2137 = vmul.f32 %v2111, %v2115
      %v2138 = vmul.f32 %v608, %v2115
      %v2139 = vmul.f32 %v1230, %v2115
      %v2164 = vrot.slane %v2116, 2
      %v2165 = vrot.slane %v2117, 2
      %v2166 = vsel %vm1723, %v2164, %v2165
      %v2167 = vrot.slane %v2118, 2
      %v2168 = vsel %vm1723, %v2165, %v2167
      %v2169 = vrot.slane %v2119, 2
      %v2170 = vrot.slane %v2120, 2
      %v2171 = vsel %vm1723, %v2169, %v2170
      %v2172 = vrot.slane %v2121, 2
      %v2173 = vsel %vm1723, %v2170, %v2172
      %v2174 = vrot.slane %v2122, 2
      %v2175 = vrot.slane %v2123, 2
      %v2176 = vsel %vm1723, %v2174, %v2175
      %v2177 = vrot.slane %v2124, 2
      %v2178 = vsel %vm1723, %v2175, %v2177
      %v2179 = vrot.slane %v2125, 2
      %v2180 = vrot.slane %v2126, 2
      %v2181 = vsel %vm1723, %v2179, %v2180
      %v2182 = vrot.slane %v2127, 2
      %v2183 = vsel %vm1723, %v2180, %v2182
      %v2184 = vrot.slane %v2128, 2
      %v2185 = vrot.slane %v2129, 2
      %v2186 = vsel %vm1723, %v2184, %v2185
      %v2187 = vrot.slane %v2130, 2
      %v2188 = vsel %vm1723, %v2185, %v2187
      %v2189 = vrot.slane %v2131, 2
      %v2190 = vrot.slane %v2132, 2
      %v2191 = vsel %vm1723, %v2189, %v2190
      %v2192 = vrot.slane %v2133, 2
      %v2193 = vsel %vm1723, %v2190, %v2192
      %v2194 = vrot.slane %v2134, 2
      %v2195 = vrot.slane %v2135, 2
      %v2196 = vsel %vm1723, %v2194, %v2195
      %v2197 = vrot.slane %v2136, 2
      %v2198 = vsel %vm1723, %v2195, %v2197
      %v2199 = vrot.slane %v2137, 2
      %v2200 = vrot.slane %v2138, 2
      %v2201 = vsel %vm1723, %v2199, %v2200
      %v2202 = vrot.slane %v2139, 2
      %v2203 = vsel %vm1723, %v2200, %v2202
      %v2228 = vadd.f32 %v2070, %v2166
      %v2229 = vadd.f32 %v2071, %v2168
      %v2230 = vadd.f32 %v2072, %v2167
      %v2231 = vadd.f32 %v2073, %v2171
      %v2232 = vadd.f32 %v2074, %v2173
      %v2233 = vadd.f32 %v2075, %v2172
      %v2234 = vadd.f32 %v2076, %v2176
      %v2235 = vadd.f32 %v2077, %v2178
      %v2236 = vadd.f32 %v2078, %v2177
      %v2237 = vadd.f32 %v2079, %v2181
      %v2238 = vadd.f32 %v2080, %v2183
      %v2239 = vadd.f32 %v2081, %v2182
      %v2240 = vadd.f32 %v2082, %v2186
      %v2241 = vadd.f32 %v2083, %v2188
      %v2242 = vadd.f32 %v2084, %v2187
      %v2243 = vadd.f32 %v2085, %v2191
      %v2244 = vadd.f32 %v2086, %v2193
      %v2245 = vadd.f32 %v2087, %v2192
      %v2246 = vadd.f32 %v2088, %v2196
      %v2247 = vadd.f32 %v2089, %v2198
      %v2248 = vadd.f32 %v2090, %v2197
      %v2249 = vadd.f32 %v2091, %v2201
      %v2250 = vadd.f32 %v2092, %v2203
      %v2251 = vadd.f32 %v2093, %v2202
      %v2252 = vunpack.c.l.bf16 %v2102
      %v2253 = vlaneseq
      %v2254 = vshrl.u32 %v2253, 7
      %v2255 = vsub.s32 5, %v2254
      %v2256 = vrot.slane %v328, %v2255
      %v2257 = vmul.f32 %v2105, %v2256
      %v2258 = vmul.f32 %v590, %v2256
      %v2259 = vmul.f32 %v1224, %v2256
      %v2260 = vmul.f32 %v2106, %v2256
      %v2261 = vmul.f32 %v593, %v2256
      %v2262 = vmul.f32 %v1225, %v2256
      %v2263 = vmul.f32 %v2107, %v2256
      %v2264 = vmul.f32 %v596, %v2256
      %v2265 = vmul.f32 %v1226, %v2256
      %v2266 = vmul.f32 %v2108, %v2256
      %v2267 = vmul.f32 %v599, %v2256
      %v2268 = vmul.f32 %v1227, %v2256
      %v2269 = vmul.f32 %v2109, %v2256
      %v2270 = vmul.f32 %v602, %v2256
      %v2271 = vmul.f32 %v1228, %v2256
      %v2272 = vmul.f32 %v2110, %v2256
      %v2273 = vmul.f32 %v605, %v2256
      %v2274 = vmul.f32 %v1229, %v2256
      %v2275 = vmul.f32 %v2111, %v2256
      %v2276 = vmul.f32 %v608, %v2256
      %v2277 = vmul.f32 %v1230, %v2256
      %v2278 = vmul.f32 %v2252, %v2256
      %v2279 = vmul.f32 %v663, %v2256
      %v2280 = vmul.f32 %v1371, %v2256
      %v2305 = vrot.slane %v2257, 2
      %v2306 = vrot.slane %v2258, 2
      %v2307 = vsel %vm1723, %v2305, %v2306
      %v2308 = vrot.slane %v2259, 2
      %v2309 = vsel %vm1723, %v2306, %v2308
      %v2310 = vrot.slane %v2260, 2
      %v2311 = vrot.slane %v2261, 2
      %v2312 = vsel %vm1723, %v2310, %v2311
      %v2313 = vrot.slane %v2262, 2
      %v2314 = vsel %vm1723, %v2311, %v2313
      %v2315 = vrot.slane %v2263, 2
      %v2316 = vrot.slane %v2264, 2
      %v2317 = vsel %vm1723, %v2315, %v2316
      %v2318 = vrot.slane %v2265, 2
      %v2319 = vsel %vm1723, %v2316, %v2318
      %v2320 = vrot.slane %v2266, 2
      %v2321 = vrot.slane %v2267, 2
      %v2322 = vsel %vm1723, %v2320, %v2321
      %v2323 = vrot.slane %v2268, 2
      %v2324 = vsel %vm1723, %v2321, %v2323
      %v2325 = vrot.slane %v2269, 2
      %v2326 = vrot.slane %v2270, 2
      %v2327 = vsel %vm1723, %v2325, %v2326
      %v2328 = vrot.slane %v2271, 2
      %v2329 = vsel %vm1723, %v2326, %v2328
      %v2330 = vrot.slane %v2272, 2
      %v2331 = vrot.slane %v2273, 2
      %v2332 = vsel %vm1723, %v2330, %v2331
      %v2333 = vrot.slane %v2274, 2
      %v2334 = vsel %vm1723, %v2331, %v2333
      %v2335 = vrot.slane %v2275, 2
      %v2336 = vrot.slane %v2276, 2
      %v2337 = vsel %vm1723, %v2335, %v2336
      %v2338 = vrot.slane %v2277, 2
      %v2339 = vsel %vm1723, %v2336, %v2338
      %v2340 = vrot.slane %v2278, 2
      %v2341 = vrot.slane %v2279, 2
      %v2342 = vsel %vm1723, %v2340, %v2341
      %v2343 = vrot.slane %v2280, 2
      %v2344 = vsel %vm1723, %v2341, %v2343
      %v2369 = vadd.f32 %v2228, %v2307
      %v2370 = vadd.f32 %v2229, %v2309
      %v2371 = vadd.f32 %v2230, %v2308
      %v2372 = vadd.f32 %v2231, %v2312
      %v2373 = vadd.f32 %v2232, %v2314
      %v2374 = vadd.f32 %v2233, %v2313
      %v2375 = vadd.f32 %v2234, %v2317
      %v2376 = vadd.f32 %v2235, %v2319
      %v2377 = vadd.f32 %v2236, %v2318
      %v2378 = vadd.f32 %v2237, %v2322
      %v2379 = vadd.f32 %v2238, %v2324
      %v2380 = vadd.f32 %v2239, %v2323
      %v2381 = vadd.f32 %v2240, %v2327
      %v2382 = vadd.f32 %v2241, %v2329
      %v2383 = vadd.f32 %v2242, %v2328
      %v2384 = vadd.f32 %v2243, %v2332
      %v2385 = vadd.f32 %v2244, %v2334
      %v2386 = vadd.f32 %v2245, %v2333
      %v2387 = vadd.f32 %v2246, %v2337
      %v2388 = vadd.f32 %v2247, %v2339
      %v2389 = vadd.f32 %v2248, %v2338
      %v2390 = vadd.f32 %v2249, %v2342
      %v2391 = vadd.f32 %v2250, %v2344
      %v2392 = vadd.f32 %v2251, %v2343
      %v2393 = vunpack.c.l.bf16 %v2103
      %v2394 = vlaneseq
      %v2395 = vshrl.u32 %v2394, 7
      %v2396 = vsub.s32 0, %v2395
      %v2397 = vrot.slane %v329, %v2396
      %v2398 = vmul.f32 %v2106, %v2397
      %v2399 = vmul.f32 %v593, %v2397
      %v2400 = vmul.f32 %v1225, %v2397
      %v2401 = vmul.f32 %v2107, %v2397
      %v2402 = vmul.f32 %v596, %v2397
      %v2403 = vmul.f32 %v1226, %v2397
      %v2404 = vmul.f32 %v2108, %v2397
      %v2405 = vmul.f32 %v599, %v2397
      %v2406 = vmul.f32 %v1227, %v2397
      %v2407 = vmul.f32 %v2109, %v2397
      %v2408 = vmul.f32 %v602, %v2397
      %v2409 = vmul.f32 %v1228, %v2397
      %v2410 = vmul.f32 %v2110, %v2397
      %v2411 = vmul.f32 %v605, %v2397
      %v2412 = vmul.f32 %v1229, %v2397
      %v2413 = vmul.f32 %v2111, %v2397
      %v2414 = vmul.f32 %v608, %v2397
      %v2415 = vmul.f32 %v1230, %v2397
      %v2416 = vmul.f32 %v2252, %v2397
      %v2417 = vmul.f32 %v663, %v2397
      %v2418 = vmul.f32 %v1371, %v2397
      %v2419 = vmul.f32 %v2393, %v2397
      %v2420 = vmul.f32 %v718, %v2397
      %v2421 = vmul.f32 %v1512, %v2397
      %v2446 = vrot.slane %v2398, 2
      %v2447 = vrot.slane %v2399, 2
      %v2448 = vsel %vm1723, %v2446, %v2447
      %v2449 = vrot.slane %v2400, 2
      %v2450 = vsel %vm1723, %v2447, %v2449
      %v2451 = vrot.slane %v2401, 2
      %v2452 = vrot.slane %v2402, 2
      %v2453 = vsel %vm1723, %v2451, %v2452
      %v2454 = vrot.slane %v2403, 2
      %v2455 = vsel %vm1723, %v2452, %v2454
      %v2456 = vrot.slane %v2404, 2
      %v2457 = vrot.slane %v2405, 2
      %v2458 = vsel %vm1723, %v2456, %v2457
      %v2459 = vrot.slane %v2406, 2
      %v2460 = vsel %vm1723, %v2457, %v2459
      %v2461 = vrot.slane %v2407, 2
      %v2462 = vrot.slane %v2408, 2
      %v2463 = vsel %vm1723, %v2461, %v2462
      %v2464 = vrot.slane %v2409, 2
      %v2465 = vsel %vm1723, %v2462, %v2464
      %v2466 = vrot.slane %v2410, 2
      %v2467 = vrot.slane %v2411, 2
      %v2468 = vsel %vm1723, %v2466, %v2467
      %v2469 = vrot.slane %v2412, 2
      %v2470 = vsel %vm1723, %v2467, %v2469
      %v2471 = vrot.slane %v2413, 2
      %v2472 = vrot.slane %v2414, 2
      %v2473 = vsel %vm1723, %v2471, %v2472
      %v2474 = vrot.slane %v2415, 2
      %v2475 = vsel %vm1723, %v2472, %v2474
      %v2476 = vrot.slane %v2416, 2
      %v2477 = vrot.slane %v2417, 2
      %v2478 = vsel %vm1723, %v2476, %v2477
      %v2479 = vrot.slane %v2418, 2
      %v2480 = vsel %vm1723, %v2477, %v2479
      %v2481 = vrot.slane %v2419, 2
      %v2482 = vrot.slane %v2420, 2
      %v2483 = vsel %vm1723, %v2481, %v2482
      %v2484 = vrot.slane %v2421, 2
      %v2485 = vsel %vm1723, %v2482, %v2484
      %v2510 = vadd.f32 %v2369, %v2448
      %v2511 = vadd.f32 %v2370, %v2450
      %v2512 = vadd.f32 %v2371, %v2449
      %v2513 = vadd.f32 %v2372, %v2453
      %v2514 = vadd.f32 %v2373, %v2455
      %v2515 = vadd.f32 %v2374, %v2454
      %v2516 = vadd.f32 %v2375, %v2458
      %v2517 = vadd.f32 %v2376, %v2460
      %v2518 = vadd.f32 %v2377, %v2459
      %v2519 = vadd.f32 %v2378, %v2463
      %v2520 = vadd.f32 %v2379, %v2465
      %v2521 = vadd.f32 %v2380, %v2464
      %v2522 = vadd.f32 %v2381, %v2468
      %v2523 = vadd.f32 %v2382, %v2470
      %v2524 = vadd.f32 %v2383, %v2469
      %v2525 = vadd.f32 %v2384, %v2473
      %v2526 = vadd.f32 %v2385, %v2475
      %v2527 = vadd.f32 %v2386, %v2474
      %v2528 = vadd.f32 %v2387, %v2478
      %v2529 = vadd.f32 %v2388, %v2480
      %v2530 = vadd.f32 %v2389, %v2479
      %v2531 = vadd.f32 %v2390, %v2483
      %v2532 = vadd.f32 %v2391, %v2485
      %v2533 = vadd.f32 %v2392, %v2484
      %v2534 = vmax.f32 %v2510, 0.0
      %v2535 = vmax.f32 %v2511, 0.0
      %v2536 = vmax.f32 %v2512, 0.0
      %v2537 = vmax.f32 %v2513, 0.0
      %v2538 = vmax.f32 %v2514, 0.0
      %v2539 = vmax.f32 %v2515, 0.0
      %v2540 = vmax.f32 %v2516, 0.0
      %v2541 = vmax.f32 %v2517, 0.0
      %v2542 = vmax.f32 %v2518, 0.0
      %v2543 = vmax.f32 %v2519, 0.0
      %v2544 = vmax.f32 %v2520, 0.0
      %v2545 = vmax.f32 %v2521, 0.0
      %v2546 = vmax.f32 %v2522, 0.0
      %v2547 = vmax.f32 %v2523, 0.0
      %v2548 = vmax.f32 %v2524, 0.0
      %v2549 = vmax.f32 %v2525, 0.0
      %v2550 = vmax.f32 %v2526, 0.0
      %v2551 = vmax.f32 %v2527, 0.0
      %v2552 = vmax.f32 %v2528, 0.0
      %v2553 = vmax.f32 %v2529, 0.0
      %v2554 = vmax.f32 %v2530, 0.0
      %v2555 = vmax.f32 %v2531, 0.0
      %v2556 = vmax.f32 %v2532, 0.0
      %v2557 = vmax.f32 %v2533, 0.0
      %v2558 = vpack.c.bf16 %v2535, %v2534
      %v2559 = vpack.c.bf16 %v2536, %v2536
      %v2560 = vpack.c.bf16 %v2538, %v2537
      %v2561 = vpack.c.bf16 %v2539, %v2539
      %v2562 = vpack.c.bf16 %v2541, %v2540
      %v2563 = vpack.c.bf16 %v2542, %v2542
      %v2564 = vpack.c.bf16 %v2544, %v2543
      %v2565 = vpack.c.bf16 %v2545, %v2545
      %v2566 = vpack.c.bf16 %v2547, %v2546
      %v2567 = vpack.c.bf16 %v2548, %v2548
      %v2568 = vpack.c.bf16 %v2550, %v2549
      %v2569 = vpack.c.bf16 %v2551, %v2551
      %v2570 = vpack.c.bf16 %v2553, %v2552
      %v2571 = vpack.c.bf16 %v2554, %v2554
      %v2572 = vpack.c.bf16 %v2556, %v2555
      %v2573 = vpack.c.bf16 %v2557, %v2557
      %vm2590 = vcmask 1045504
      %v2591 = vrot.slane %v2558, 2
      %v2592 = vrot.slane %v2559, 2
      %v2593 = vsel %vm2590, %v2591, %v2592
      %v2594 = vrot.slane %v2560, 2
      %v2595 = vrot.slane %v2561, 2
      %v2596 = vsel %vm2590, %v2594, %v2595
      %v2597 = vrot.slane %v2562, 2
      %v2598 = vrot.slane %v2563, 2
      %v2599 = vsel %vm2590, %v2597, %v2598
      %v2600 = vrot.slane %v2564, 2
      %v2601 = vrot.slane %v2565, 2
      %v2602 = vsel %vm2590, %v2600, %v2601
      %v2603 = vrot.slane %v2566, 2
      %v2604 = vrot.slane %v2567, 2
      %v2605 = vsel %vm2590, %v2603, %v2604
      %v2606 = vrot.slane %v2568, 2
      %v2607 = vrot.slane %v2569, 2
      %v2608 = vsel %vm2590, %v2606, %v2607
      %v2609 = vrot.slane %v2570, 2
      %v2610 = vrot.slane %v2571, 2
      %v2611 = vsel %vm2590, %v2609, %v2610
      %v2612 = vrot.slane %v2572, 2
      %v2613 = vrot.slane %v2573, 2
      %v2614 = vsel %vm2590, %v2612, %v2613
      %v2623 = vld [vmem:[%s5] sm:$0xff]
      %v2624 = vld [vmem:[%s5 + $0x8] sm:$0xff]
      %v2625 = vld [vmem:[%s5 + $0x10] sm:$0xff]
      %v2626 = vld [vmem:[%s5 + $0x18] sm:$0xff]
      %v2627 = vld [vmem:[%s5 + $0x20] sm:$0xff]
      %v2628 = vld [vmem:[%s5 + $0x28] sm:$0xff]
      %v2629 = vld [vmem:[%s5 + $0x30] sm:$0xff]
      %v2630 = vld [vmem:[%s5 + $0x38] sm:$0xff]
      %v2631 = vld [vmem:[%s5 + $0x40] sm:$0xff]
      %v2632 = vld [vmem:[%s5 + $0x48] sm:$0xff]
      %v2633 = vld [vmem:[%s5 + $0x50] sm:$0xff]
      %v2634 = vld [vmem:[%s5 + $0x58] sm:$0xff]
      %v2635 = vld [vmem:[%s5 + $0x60] sm:$0xff]
      %v2636 = vld [vmem:[%s5 + $0x68] sm:$0xff]
      %v2637 = vld [vmem:[%s5 + $0x70] sm:$0xff]
      %v2638 = vld [vmem:[%s5 + $0x78] sm:$0xff]
      %v2655 = vunpack.c.l.b16 %v2623
      %v2656 = vunpack.c.h.b16 %v2623
      %v2657 = vunpack.c.l.b16 %v2624
      %v2658 = vunpack.c.h.b16 %v2624
      %v2659 = vunpack.c.l.b16 %v2625
      %v2660 = vunpack.c.h.b16 %v2625
      %v2661 = vunpack.c.l.b16 %v2626
      %v2662 = vunpack.c.h.b16 %v2626
      %v2663 = vunpack.c.l.b16 %v2627
      %v2664 = vunpack.c.h.b16 %v2627
      %v2665 = vunpack.c.l.b16 %v2628
      %v2666 = vunpack.c.h.b16 %v2628
      %v2667 = vunpack.c.l.b16 %v2629
      %v2668 = vunpack.c.h.b16 %v2629
      %v2669 = vunpack.c.l.b16 %v2630
      %v2670 = vunpack.c.h.b16 %v2630
      %v2671 = vunpack.c.l.b16 %v2631
      %v2672 = vunpack.c.h.b16 %v2631
      %v2673 = vunpack.c.l.b16 %v2632
      %v2674 = vunpack.c.h.b16 %v2632
      %v2675 = vunpack.c.l.b16 %v2633
      %v2676 = vunpack.c.h.b16 %v2633
      %v2677 = vunpack.c.l.b16 %v2634
      %v2678 = vunpack.c.h.b16 %v2634
      %v2679 = vunpack.c.l.b16 %v2635
      %v2680 = vunpack.c.h.b16 %v2635
      %v2681 = vunpack.c.l.b16 %v2636
      %v2682 = vunpack.c.h.b16 %v2636
      %v2683 = vunpack.c.l.b16 %v2637
      %v2684 = vunpack.c.h.b16 %v2637
      %v2685 = vunpack.c.l.b16 %v2638
      %v2686 = vunpack.c.h.b16 %v2638
      %v2687 = vpack.c.b16 %v2657, %v2655
      %v2688 = vpack.c.b16 %v2658, %v2656
      %v2689 = vpack.c.b16 %v2661, %v2659
      %v2690 = vpack.c.b16 %v2662, %v2660
      %v2691 = vpack.c.b16 %v2665, %v2663
      %v2692 = vpack.c.b16 %v2666, %v2664
      %v2693 = vpack.c.b16 %v2669, %v2667
      %v2694 = vpack.c.b16 %v2670, %v2668
      %v2695 = vpack.c.b16 %v2673, %v2671
      %v2696 = vpack.c.b16 %v2674, %v2672
      %v2697 = vpack.c.b16 %v2677, %v2675
      %v2698 = vpack.c.b16 %v2678, %v2676
      %v2699 = vpack.c.b16 %v2681, %v2679
      %v2700 = vpack.c.b16 %v2682, %v2680
      %v2701 = vpack.c.b16 %v2685, %v2683
      %v2702 = vpack.c.b16 %v2686, %v2684
      %2719 = vmatprep.subr.bf16.mxu0 %v2688
      %2720 = vmatpush1.bf16.msra.mxu0 %v2687
      %2721 = vmatprep.subr.bf16.mxu0 %v2690
      %2722 = vmatpush1.bf16.msra.mxu0 %v2689
      %2723 = vmatprep.subr.bf16.mxu0 %v2692
      %2724 = vmatpush1.bf16.msra.mxu0 %v2691
      %2725 = vmatprep.subr.bf16.mxu0 %v2694
      %2726 = vmatpush1.bf16.msra.mxu0 %v2693
      %2727 = vmatprep.subr.bf16.mxu0 %v2696
      %2728 = vmatpush1.bf16.msra.mxu0 %v2695
      %2729 = vmatprep.subr.bf16.mxu0 %v2698
      %2730 = vmatpush1.bf16.msra.mxu0 %v2697
      %2731 = vmatprep.subr.bf16.mxu0 %v2700
      %2732 = vmatpush1.bf16.msra.mxu0 %v2699
      %2733 = vmatprep.subr.bf16.mxu0 %v2702
      %2734 = vmatpush1.bf16.msra.mxu0 %v2701
      %2735 = vmatprep.subr.bf16.mxu0 0
      %2736 = vmatpush1.bf16.msra.mxu0 0
      %2737 = vmatprep.subr.bf16.mxu0 0
      %2738 = vmatpush1.bf16.msra.mxu0 0
      %2739 = vmatprep.subr.bf16.mxu0 0
      %2740 = vmatpush1.bf16.msra.mxu0 0
      %2741 = vmatprep.subr.bf16.mxu0 0
      %2742 = vmatpush1.bf16.msra.mxu0 0
      %2743 = vmatprep.subr.bf16.mxu0 0
      %2744 = vmatpush1.bf16.msra.mxu0 0
      %2745 = vmatprep.subr.bf16.mxu0 0
      %2746 = vmatpush1.bf16.msra.mxu0 0
      %2747 = vmatprep.subr.bf16.mxu0 0
      %2748 = vmatpush1.bf16.msra.mxu0 0
      %2749 = vmatprep.subr.bf16.mxu0 0
      %2750 = vmatpush1.bf16.msra.mxu0 0
      %2751 = vmatprep.mubr.bf16.mxu0 0
      %2752 = vmatmul.mubr.bf16.gmra.mrb[0].mxu0 %v2593
      %v2753 = vpop.f32.mrb[0].mxu0
      %v2754 = vadd.f32 0.0, %v2753
      %v2755 = vpop.f32.mrb[0].mxu0
      %v2756 = vadd.f32 0.0, %v2755
      %v2757 = vpop.f32.mrb[0].mxu0
      %v2758 = vadd.f32 0.0, %v2757
      %v2759 = vpop.f32.mrb[0].mxu0
      %v2760 = vadd.f32 0.0, %v2759
      %2761 = vmatprep.mubr.bf16.mxu0 0
      %2762 = vmatmul.mubr.bf16.gmra.mrb[0].mxu0 %v2596
      %v2763 = vpop.f32.mrb[0].mxu0
      %v2764 = vadd.f32 0.0, %v2763
      %v2765 = vpop.f32.mrb[0].mxu0
      %v2766 = vadd.f32 0.0, %v2765
      %v2767 = vpop.f32.mrb[0].mxu0
      %v2768 = vadd.f32 0.0, %v2767
      %v2769 = vpop.f32.mrb[0].mxu0
      %v2770 = vadd.f32 0.0, %v2769
      %2771 = vmatprep.mubr.bf16.mxu0 0
      %2772 = vmatmul.mubr.bf16.gmra.mrb[0].mxu0 %v2599
      %v2773 = vpop.f32.mrb[0].mxu0
      %v2774 = vadd.f32 0.0, %v2773
      %v2775 = vpop.f32.mrb[0].mxu0
      %v2776 = vadd.f32 0.0, %v2775
      %v2777 = vpop.f32.mrb[0].mxu0
      %v2778 = vadd.f32 0.0, %v2777
      %v2779 = vpop.f32.mrb[0].mxu0
      %v2780 = vadd.f32 0.0, %v2779
      %2781 = vmatprep.mubr.bf16.mxu0 0
      %2782 = vmatmul.mubr.bf16.gmra.mrb[0].mxu0 %v2602
      %v2783 = vpop.f32.mrb[0].mxu0
      %v2784 = vadd.f32 0.0, %v2783
      %v2785 = vpop.f32.mrb[0].mxu0
      %v2786 = vadd.f32 0.0, %v2785
      %v2787 = vpop.f32.mrb[0].mxu0
      %v2788 = vadd.f32 0.0, %v2787
      %v2789 = vpop.f32.mrb[0].mxu0
      %v2790 = vadd.f32 0.0, %v2789
      %2791 = vmatprep.mubr.bf16.mxu0 0
      %2792 = vmatmul.mubr.bf16.gmra.mrb[0].mxu0 %v2605
      %v2793 = vpop.f32.mrb[0].mxu0
      %v2794 = vadd.f32 0.0, %v2793
      %v2795 = vpop.f32.mrb[0].mxu0
      %v2796 = vadd.f32 0.0, %v2795
      %v2797 = vpop.f32.mrb[0].mxu0
      %v2798 = vadd.f32 0.0, %v2797
      %v2799 = vpop.f32.mrb[0].mxu0
      %v2800 = vadd.f32 0.0, %v2799
      %2801 = vmatprep.mubr.bf16.mxu0 0
      %2802 = vmatmul.mubr.bf16.gmra.mrb[0].mxu0 %v2608
      %v2803 = vpop.f32.mrb[0].mxu0
      %v2804 = vadd.f32 0.0, %v2803
      %v2805 = vpop.f32.mrb[0].mxu0
      %v2806 = vadd.f32 0.0, %v2805
      %v2807 = vpop.f32.mrb[0].mxu0
      %v2808 = vadd.f32 0.0, %v2807
      %v2809 = vpop.f32.mrb[0].mxu0
      %v2810 = vadd.f32 0.0, %v2809
      %2811 = vmatprep.mubr.bf16.mxu0 0
      %2812 = vmatmul.mubr.bf16.gmra.mrb[0].mxu0 %v2611
      %v2813 = vpop.f32.mrb[0].mxu0
      %v2814 = vadd.f32 0.0, %v2813
      %v2815 = vpop.f32.mrb[0].mxu0
      %v2816 = vadd.f32 0.0, %v2815
      %v2817 = vpop.f32.mrb[0].mxu0
      %v2818 = vadd.f32 0.0, %v2817
      %v2819 = vpop.f32.mrb[0].mxu0
      %v2820 = vadd.f32 0.0, %v2819
      %2821 = vmatprep.mubr.bf16.mxu0 0
      %2822 = vmatmul.mubr.bf16.gmra.mrb[0].mxu0 %v2614
      %v2823 = vpop.f32.mrb[0].mxu0
      %v2824 = vadd.f32 0.0, %v2823
      %v2825 = vpop.f32.mrb[0].mxu0
      %v2826 = vadd.f32 0.0, %v2825
      %v2827 = vpop.f32.mrb[0].mxu0
      %v2828 = vadd.f32 0.0, %v2827
      %v2829 = vpop.f32.mrb[0].mxu0
      %v2830 = vadd.f32 0.0, %v2829
      %2831 = vdwg.mxu0
      %2832 = vst [vmem:[#allocation2] sm:$0xff] %v2754
      %2833 = vst [vmem:[#allocation2 + $0x8] sm:$0xff] %v2756
      %2834 = vst [vmem:[#allocation2 + $0x10] sm:$0xff] %v2758
      %2835 = vst [vmem:[#allocation2 + $0x18] sm:$0xff] %v2760
      %2836 = vst [vmem:[#allocation2 + $0x20] sm:$0xff] %v2764
      %2837 = vst [vmem:[#allocation2 + $0x28] sm:$0xff] %v2766
      %2838 = vst [vmem:[#allocation2 + $0x30] sm:$0xff] %v2768
      %2839 = vst [vmem:[#allocation2 + $0x38] sm:$0xff] %v2770
      %2840 = vst [vmem:[#allocation2 + $0x40] sm:$0xff] %v2774
      %2841 = vst [vmem:[#allocation2 + $0x48] sm:$0xff] %v2776
      %2842 = vst [vmem:[#allocation2 + $0x50] sm:$0xff] %v2778
      %2843 = vst [vmem:[#allocation2 + $0x58] sm:$0xff] %v2780
      %2844 = vst [vmem:[#allocation2 + $0x60] sm:$0xff] %v2784
      %2845 = vst [vmem:[#allocation2 + $0x68] sm:$0xff] %v2786
      %2846 = vst [vmem:[#allocation2 + $0x70] sm:$0xff] %v2788
      %2847 = vst [vmem:[#allocation2 + $0x78] sm:$0xff] %v2790
      %2848 = vst [vmem:[#allocation2 + $0x80] sm:$0xff] %v2794
      %2849 = vst [vmem:[#allocation2 + $0x88] sm:$0xff] %v2796
      %2850 = vst [vmem:[#allocation2 + $0x90] sm:$0xff] %v2798
      %2851 = vst [vmem:[#allocation2 + $0x98] sm:$0xff] %v2800
      %2852 = vst [vmem:[#allocation2 + $0xa0] sm:$0xff] %v2804
      %2853 = vst [vmem:[#allocation2 + $0xa8] sm:$0xff] %v2806
      %2854 = vst [vmem:[#allocation2 + $0xb0] sm:$0xff] %v2808
      %2855 = vst [vmem:[#allocation2 + $0xb8] sm:$0xff] %v2810
      %2856 = vst [vmem:[#allocation2 + $0xc0] sm:$0xff] %v2814
      %2857 = vst [vmem:[#allocation2 + $0xc8] sm:$0xff] %v2816
      %2858 = vst [vmem:[#allocation2 + $0xd0] sm:$0xff] %v2818
      %2859 = vst [vmem:[#allocation2 + $0xd8] sm:$0xff] %v2820
      %2860 = vst [vmem:[#allocation2 + $0xe0] sm:$0xff] %v2824
      %2861 = vst [vmem:[#allocation2 + $0xe8] sm:$0xff] %v2826
      %2862 = vst [vmem:[#allocation2 + $0xf0] sm:$0xff] %v2828
      %2863 = vst [vmem:[#allocation2 + $0xf8] sm:$0xff] %v2830
      %s2864 = scalar_lea.vmem %s2, 16
      %v2865 = vld [vmem:[%s2864] sm:$0xff]
      %v2866 = vld [vmem:[%s2864 + $0x8] sm:$0x1]
      %s2867 = scalar_lea.vmem %s3, 16
      %v2868 = vld [vmem:[%s2867] sm:$0xff]
      %v2869 = vld [vmem:[%s2867 + $0x8] sm:$0x1]
      %v2870 = vld [vmem:[%s4 + $0x1] sm:$0x1]
      %v2871 = vlaneseq
      %v2872 = vshrl.u32 %v2871, 7
      %v2873 = vsub.s32 0, %v2872
      %v2874 = vrot.slane %v2870, %v2873
      %v2875 = vld [vmem:[%s337 + $0x20] sm:$0xe]
      %v2876 = vld [vmem:[%s337 + $0x24] sm:$0xf]
      %v2877 = vld [vmem:[%s337 + $0x28] sm:$0x1]
      %v2878 = vld [vmem:[%s337 + $0x30] sm:$0xe]
      %v2879 = vld [vmem:[%s337 + $0x34] sm:$0xf]
      %v2880 = vld [vmem:[%s337 + $0x38] sm:$0x1]
      %v2881 = vld [vmem:[%s337 + $0x40] sm:$0xe]
      %v2882 = vld [vmem:[%s337 + $0x44] sm:$0xf]
      %v2883 = vld [vmem:[%s337 + $0x48] sm:$0x1]
      %v2884 = vld [vmem:[%s337 + $0x50] sm:$0xe]
      %v2885 = vld [vmem:[%s337 + $0x54] sm:$0xf]
      %v2886 = vld [vmem:[%s337 + $0x58] sm:$0x1]
      %v2887 = vld [vmem:[%s337 + $0x60] sm:$0xe]
      %v2888 = vld [vmem:[%s337 + $0x64] sm:$0xf]
      %v2889 = vld [vmem:[%s337 + $0x68] sm:$0x1]
      %v2890 = vld [vmem:[%s337 + $0x70] sm:$0xe]
      %v2891 = vld [vmem:[%s337 + $0x74] sm:$0xf]
      %v2892 = vld [vmem:[%s337 + $0x78] sm:$0x1]
      %v2893 = vld [vmem:[%s337 + $0x80] sm:$0xe]
      %v2894 = vld [vmem:[%s337 + $0x84] sm:$0xf]
      %v2895 = vld [vmem:[%s337 + $0x88] sm:$0x1]
      %v2896 = vld [vmem:[%s337 + $0x90] sm:$0xe]
      %v2897 = vld [vmem:[%s337 + $0x94] sm:$0xf]
      %v2898 = vld [vmem:[%s337 + $0x98] sm:$0x1]
      %v2899 = vld [vmem:[%s337 + $0xa0] sm:$0xe]
      %v2900 = vld [vmem:[%s337 + $0xa4] sm:$0xf]
      %v2901 = vld [vmem:[%s337 + $0xa8] sm:$0x1]
      %v2902 = vld [vmem:[%s337 + $0xb0] sm:$0xe]
      %v2903 = vld [vmem:[%s337 + $0xb4] sm:$0xf]
      %v2904 = vld [vmem:[%s337 + $0xb8] sm:$0x1]
      %v2905 = vld [vmem:[%s337 + $0xc0] sm:$0xe]
      %v2906 = vld [vmem:[%s337 + $0xc4] sm:$0xf]
      %v2907 = vld [vmem:[%s337 + $0xc8] sm:$0x1]
      %v2908 = vld [vmem:[%s337 + $0xd0] sm:$0xe]
      %v2909 = vld [vmem:[%s337 + $0xd4] sm:$0xf]
      %v2910 = vld [vmem:[%s337 + $0xd8] sm:$0x1]
      %v2911 = vld [vmem:[%s337 + $0xe0] sm:$0xe]
      %v2912 = vld [vmem:[%s337 + $0xe4] sm:$0xf]
      %v2913 = vld [vmem:[%s337 + $0xe8] sm:$0x1]
      %v2914 = vld [vmem:[%s337 + $0xf0] sm:$0xe]
      %v2915 = vld [vmem:[%s337 + $0xf4] sm:$0xf]
      %v2916 = vld [vmem:[%s337 + $0xf8] sm:$0x1]
      %v2917 = vunpack.c.l.bf16 %v2875
      %v2918 = vunpack.c.l.bf16 %v2876
      %v2919 = vunpack.c.l.bf16 %v2877
      %v2920 = vunpack.c.l.bf16 %v2878
      %v2921 = vunpack.c.l.bf16 %v2879
      %v2922 = vunpack.c.l.bf16 %v2880
      %v2923 = vunpack.c.l.bf16 %v2881
      %v2924 = vunpack.c.l.bf16 %v2882
      %v2925 = vunpack.c.l.bf16 %v2883
      %v2926 = vunpack.c.l.bf16 %v2884
      %v2927 = vunpack.c.l.bf16 %v2885
      %v2928 = vunpack.c.l.bf16 %v2886
      %v2929 = vunpack.c.l.bf16 %v2887
      %v2930 = vunpack.c.l.bf16 %v2888
      %v2931 = vunpack.c.l.bf16 %v2889
      %v2932 = vunpack.c.l.bf16 %v2890
      %v2933 = vunpack.c.l.bf16 %v2891
      %v2934 = vunpack.c.l.bf16 %v2892
      %v2935 = vunpack.c.l.bf16 %v2893
      %v2936 = vunpack.c.l.bf16 %v2894
      %v2937 = vunpack.c.l.bf16 %v2895
      %v2938 = vunpack.c.l.bf16 %v2896
      %v2939 = vunpack.c.l.bf16 %v2897
      %v2940 = vunpack.c.l.bf16 %v2898
      %v2941 = vlaneseq
      %v2942 = vshrl.u32 %v2941, 7
      %v2943 = vsub.s32 0, %v2942
      %v2944 = vrot.slane %v2865, %v2943
      %v2945 = vmul.f32 %v2917, %v2944
      %v2946 = vmul.f32 %v2918, %v2944
      %v2947 = vmul.f32 %v2919, %v2944
      %v2948 = vmul.f32 %v2920, %v2944
      %v2949 = vmul.f32 %v2921, %v2944
      %v2950 = vmul.f32 %v2922, %v2944
      %v2951 = vmul.f32 %v2923, %v2944
      %v2952 = vmul.f32 %v2924, %v2944
      %v2953 = vmul.f32 %v2925, %v2944
      %v2954 = vmul.f32 %v2926, %v2944
      %v2955 = vmul.f32 %v2927, %v2944
      %v2956 = vmul.f32 %v2928, %v2944
      %v2957 = vmul.f32 %v2929, %v2944
      %v2958 = vmul.f32 %v2930, %v2944
      %v2959 = vmul.f32 %v2931, %v2944
      %v2960 = vmul.f32 %v2932, %v2944
      %v2961 = vmul.f32 %v2933, %v2944
      %v2962 = vmul.f32 %v2934, %v2944
      %v2963 = vmul.f32 %v2935, %v2944
      %v2964 = vmul.f32 %v2936, %v2944
      %v2965 = vmul.f32 %v2937, %v2944
      %v2966 = vmul.f32 %v2938, %v2944
      %v2967 = vmul.f32 %v2939, %v2944
      %v2968 = vmul.f32 %v2940, %v2944
      %v2969 = vadd.f32 %v2874, %v2945
      %v2970 = vadd.f32 %v2874, %v2946
      %v2971 = vadd.f32 %v2874, %v2947
      %v2972 = vadd.f32 %v2874, %v2948
      %v2973 = vadd.f32 %v2874, %v2949
      %v2974 = vadd.f32 %v2874, %v2950
      %v2975 = vadd.f32 %v2874, %v2951
      %v2976 = vadd.f32 %v2874, %v2952
      %v2977 = vadd.f32 %v2874, %v2953
      %v2978 = vadd.f32 %v2874, %v2954
      %v2979 = vadd.f32 %v2874, %v2955
      %v2980 = vadd.f32 %v2874, %v2956
      %v2981 = vadd.f32 %v2874, %v2957
      %v2982 = vadd.f32 %v2874, %v2958
      %v2983 = vadd.f32 %v2874, %v2959
      %v2984 = vadd.f32 %v2874, %v2960
      %v2985 = vadd.f32 %v2874, %v2961
      %v2986 = vadd.f32 %v2874, %v2962
      %v2987 = vadd.f32 %v2874, %v2963
      %v2988 = vadd.f32 %v2874, %v2964
      %v2989 = vadd.f32 %v2874, %v2965
      %v2990 = vadd.f32 %v2874, %v2966
      %v2991 = vadd.f32 %v2874, %v2967
      %v2992 = vadd.f32 %v2874, %v2968
      %v2993 = vunpack.c.l.bf16 %v2899
      %v2994 = vunpack.c.l.bf16 %v2900
      %v2995 = vunpack.c.l.bf16 %v2901
      %v2996 = vunpack.c.l.bf16 %v2902
      %v2997 = vunpack.c.l.bf16 %v2903
      %v2998 = vunpack.c.l.bf16 %v2904
      %v2999 = vunpack.c.l.bf16 %v2905
      %v3000 = vunpack.c.l.bf16 %v2906
      %v3001 = vunpack.c.l.bf16 %v2907
      %v3002 = vlaneseq
      %v3003 = vshrl.u32 %v3002, 7
      %v3004 = vsub.s32 3, %v3003
      %v3005 = vrot.slane %v2865, %v3004
      %v3006 = vmul.f32 %v2926, %v3005
      %v3007 = vmul.f32 %v2927, %v3005
      %v3008 = vmul.f32 %v2928, %v3005
      %v3009 = vmul.f32 %v2929, %v3005
      %v3010 = vmul.f32 %v2930, %v3005
      %v3011 = vmul.f32 %v2931, %v3005
      %v3012 = vmul.f32 %v2932, %v3005
      %v3013 = vmul.f32 %v2933, %v3005
      %v3014 = vmul.f32 %v2934, %v3005
      %v3015 = vmul.f32 %v2935, %v3005
      %v3016 = vmul.f32 %v2936, %v3005
      %v3017 = vmul.f32 %v2937, %v3005
      %v3018 = vmul.f32 %v2938, %v3005
      %v3019 = vmul.f32 %v2939, %v3005
      %v3020 = vmul.f32 %v2940, %v3005
      %v3021 = vmul.f32 %v2993, %v3005
      %v3022 = vmul.f32 %v2994, %v3005
      %v3023 = vmul.f32 %v2995, %v3005
      %v3024 = vmul.f32 %v2996, %v3005
      %v3025 = vmul.f32 %v2997, %v3005
      %v3026 = vmul.f32 %v2998, %v3005
      %v3027 = vmul.f32 %v2999, %v3005
      %v3028 = vmul.f32 %v3000, %v3005
      %v3029 = vmul.f32 %v3001, %v3005
      %v3030 = vadd.f32 %v2969, %v3006
      %v3031 = vadd.f32 %v2970, %v3007
      %v3032 = vadd.f32 %v2971, %v3008
      %v3033 = vadd.f32 %v2972, %v3009
      %v3034 = vadd.f32 %v2973, %v3010
      %v3035 = vadd.f32 %v2974, %v3011
      %v3036 = vadd.f32 %v2975, %v3012
      %v3037 = vadd.f32 %v2976, %v3013
      %v3038 = vadd.f32 %v2977, %v3014
      %v3039 = vadd.f32 %v2978, %v3015
      %v3040 = vadd.f32 %v2979, %v3016
      %v3041 = vadd.f32 %v2980, %v3017
      %v3042 = vadd.f32 %v2981, %v3018
      %v3043 = vadd.f32 %v2982, %v3019
      %v3044 = vadd.f32 %v2983, %v3020
      %v3045 = vadd.f32 %v2984, %v3021
      %v3046 = vadd.f32 %v2985, %v3022
      %v3047 = vadd.f32 %v2986, %v3023
      %v3048 = vadd.f32 %v2987, %v3024
      %v3049 = vadd.f32 %v2988, %v3025
      %v3050 = vadd.f32 %v2989, %v3026
      %v3051 = vadd.f32 %v2990, %v3027
      %v3052 = vadd.f32 %v2991, %v3028
      %v3053 = vadd.f32 %v2992, %v3029
      %v3054 = vunpack.c.l.bf16 %v2908
      %v3055 = vunpack.c.l.bf16 %v2909
      %v3056 = vunpack.c.l.bf16 %v2910
      %v3057 = vunpack.c.l.bf16 %v2911
      %v3058 = vunpack.c.l.bf16 %v2912
      %v3059 = vunpack.c.l.bf16 %v2913
      %v3060 = vunpack.c.l.bf16 %v2914
      %v3061 = vunpack.c.l.bf16 %v2915
      %v3062 = vunpack.c.l.bf16 %v2916
      %v3063 = vlaneseq
      %v3064 = vshrl.u32 %v3063, 7
      %v3065 = vsub.s32 6, %v3064
      %v3066 = vrot.slane %v2865, %v3065
      %v3067 = vmul.f32 %v2935, %v3066
      %v3068 = vmul.f32 %v2936, %v3066
      %v3069 = vmul.f32 %v2937, %v3066
      %v3070 = vmul.f32 %v2938, %v3066
      %v3071 = vmul.f32 %v2939, %v3066
      %v3072 = vmul.f32 %v2940, %v3066
      %v3073 = vmul.f32 %v2993, %v3066
      %v3074 = vmul.f32 %v2994, %v3066
      %v3075 = vmul.f32 %v2995, %v3066
      %v3076 = vmul.f32 %v2996, %v3066
      %v3077 = vmul.f32 %v2997, %v3066
      %v3078 = vmul.f32 %v2998, %v3066
      %v3079 = vmul.f32 %v2999, %v3066
      %v3080 = vmul.f32 %v3000, %v3066
      %v3081 = vmul.f32 %v3001, %v3066
      %v3082 = vmul.f32 %v3054, %v3066
      %v3083 = vmul.f32 %v3055, %v3066
      %v3084 = vmul.f32 %v3056, %v3066
      %v3085 = vmul.f32 %v3057, %v3066
      %v3086 = vmul.f32 %v3058, %v3066
      %v3087 = vmul.f32 %v3059, %v3066
      %v3088 = vmul.f32 %v3060, %v3066
      %v3089 = vmul.f32 %v3061, %v3066
      %v3090 = vmul.f32 %v3062, %v3066
      %v3091 = vadd.f32 %v3030, %v3067
      %v3092 = vadd.f32 %v3031, %v3068
      %v3093 = vadd.f32 %v3032, %v3069
      %v3094 = vadd.f32 %v3033, %v3070
      %v3095 = vadd.f32 %v3034, %v3071
      %v3096 = vadd.f32 %v3035, %v3072
      %v3097 = vadd.f32 %v3036, %v3073
      %v3098 = vadd.f32 %v3037, %v3074
      %v3099 = vadd.f32 %v3038, %v3075
      %v3100 = vadd.f32 %v3039, %v3076
      %v3101 = vadd.f32 %v3040, %v3077
      %v3102 = vadd.f32 %v3041, %v3078
      %v3103 = vadd.f32 %v3042, %v3079
      %v3104 = vadd.f32 %v3043, %v3080
      %v3105 = vadd.f32 %v3044, %v3081
      %v3106 = vadd.f32 %v3045, %v3082
      %v3107 = vadd.f32 %v3046, %v3083
      %v3108 = vadd.f32 %v3047, %v3084
      %v3109 = vadd.f32 %v3048, %v3085
      %v3110 = vadd.f32 %v3049, %v3086
      %v3111 = vadd.f32 %v3050, %v3087
      %v3112 = vadd.f32 %v3051, %v3088
      %v3113 = vadd.f32 %v3052, %v3089
      %v3114 = vadd.f32 %v3053, %v3090
      %v3115 = vld [vmem:[%s555 + $0x20] sm:$0xe]
      %v3116 = vld [vmem:[%s555 + $0x24] sm:$0xf]
      %v3117 = vld [vmem:[%s555 + $0x28] sm:$0x1]
      %v3118 = vld [vmem:[%s555 + $0x30] sm:$0xe]
      %v3119 = vld [vmem:[%s555 + $0x34] sm:$0xf]
      %v3120 = vld [vmem:[%s555 + $0x38] sm:$0x1]
      %v3121 = vld [vmem:[%s555 + $0x40] sm:$0xe]
      %v3122 = vld [vmem:[%s555 + $0x44] sm:$0xf]
      %v3123 = vld [vmem:[%s555 + $0x48] sm:$0x1]
      %v3124 = vld [vmem:[%s555 + $0x50] sm:$0xe]
      %v3125 = vld [vmem:[%s555 + $0x54] sm:$0xf]
      %v3126 = vld [vmem:[%s555 + $0x58] sm:$0x1]
      %v3127 = vld [vmem:[%s555 + $0x60] sm:$0xe]
      %v3128 = vld [vmem:[%s555 + $0x64] sm:$0xf]
      %v3129 = vld [vmem:[%s555 + $0x68] sm:$0x1]
      %v3130 = vld [vmem:[%s555 + $0x70] sm:$0xe]
      %v3131 = vld [vmem:[%s555 + $0x74] sm:$0xf]
      %v3132 = vld [vmem:[%s555 + $0x78] sm:$0x1]
      %v3133 = vld [vmem:[%s555 + $0x80] sm:$0xe]
      %v3134 = vld [vmem:[%s555 + $0x84] sm:$0xf]
      %v3135 = vld [vmem:[%s555 + $0x88] sm:$0x1]
      %v3136 = vld [vmem:[%s555 + $0x90] sm:$0xe]
      %v3137 = vld [vmem:[%s555 + $0x94] sm:$0xf]
      %v3138 = vld [vmem:[%s555 + $0x98] sm:$0x1]
      %v3139 = vld [vmem:[%s555 + $0xa0] sm:$0xe]
      %v3140 = vld [vmem:[%s555 + $0xa4] sm:$0xf]
      %v3141 = vld [vmem:[%s555 + $0xa8] sm:$0x1]
      %v3142 = vld [vmem:[%s555 + $0xb0] sm:$0xe]
      %v3143 = vld [vmem:[%s555 + $0xb4] sm:$0xf]
      %v3144 = vld [vmem:[%s555 + $0xb8] sm:$0x1]
      %v3145 = vld [vmem:[%s555 + $0xc0] sm:$0xe]
      %v3146 = vld [vmem:[%s555 + $0xc4] sm:$0xf]
      %v3147 = vld [vmem:[%s555 + $0xc8] sm:$0x1]
      %v3148 = vld [vmem:[%s555 + $0xd0] sm:$0xe]
      %v3149 = vld [vmem:[%s555 + $0xd4] sm:$0xf]
      %v3150 = vld [vmem:[%s555 + $0xd8] sm:$0x1]
      %v3151 = vld [vmem:[%s555 + $0xe0] sm:$0xe]
      %v3152 = vld [vmem:[%s555 + $0xe4] sm:$0xf]
      %v3153 = vld [vmem:[%s555 + $0xe8] sm:$0x1]
      %v3154 = vld [vmem:[%s555 + $0xf0] sm:$0xe]
      %v3155 = vld [vmem:[%s555 + $0xf4] sm:$0xf]
      %v3156 = vld [vmem:[%s555 + $0xf8] sm:$0x1]
      %v3157 = vunpack.c.l.bf16 %v3115
      %v3158 = vunpack.c.l.bf16 %v3116
      %v3159 = vunpack.c.l.bf16 %v3117
      %v3160 = vunpack.c.l.bf16 %v3118
      %v3161 = vunpack.c.l.bf16 %v3119
      %v3162 = vunpack.c.l.bf16 %v3120
      %v3163 = vunpack.c.l.bf16 %v3121
      %v3164 = vunpack.c.l.bf16 %v3122
      %v3165 = vunpack.c.l.bf16 %v3123
      %v3166 = vunpack.c.l.bf16 %v3124
      %v3167 = vunpack.c.l.bf16 %v3125
      %v3168 = vunpack.c.l.bf16 %v3126
      %v3169 = vunpack.c.l.bf16 %v3127
      %v3170 = vunpack.c.l.bf16 %v3128
      %v3171 = vunpack.c.l.bf16 %v3129
      %v3172 = vunpack.c.l.bf16 %v3130
      %v3173 = vunpack.c.l.bf16 %v3131
      %v3174 = vunpack.c.l.bf16 %v3132
      %v3175 = vunpack.c.l.bf16 %v3133
      %v3176 = vunpack.c.l.bf16 %v3134
      %v3177 = vunpack.c.l.bf16 %v3135
      %v3178 = vunpack.c.l.bf16 %v3136
      %v3179 = vunpack.c.l.bf16 %v3137
      %v3180 = vunpack.c.l.bf16 %v3138
      %v3181 = vlaneseq
      %v3182 = vshrl.u32 %v3181, 7
      %v3183 = vsub.s32 0, %v3182
      %v3184 = vrot.slane %v2868, %v3183
      %v3185 = vmul.f32 %v3157, %v3184
      %v3186 = vmul.f32 %v3158, %v3184
      %v3187 = vmul.f32 %v3159, %v3184
      %v3188 = vmul.f32 %v3160, %v3184
      %v3189 = vmul.f32 %v3161, %v3184
      %v3190 = vmul.f32 %v3162, %v3184
      %v3191 = vmul.f32 %v3163, %v3184
      %v3192 = vmul.f32 %v3164, %v3184
      %v3193 = vmul.f32 %v3165, %v3184
      %v3194 = vmul.f32 %v3166, %v3184
      %v3195 = vmul.f32 %v3167, %v3184
      %v3196 = vmul.f32 %v3168, %v3184
      %v3197 = vmul.f32 %v3169, %v3184
      %v3198 = vmul.f32 %v3170, %v3184
      %v3199 = vmul.f32 %v3171, %v3184
      %v3200 = vmul.f32 %v3172, %v3184
      %v3201 = vmul.f32 %v3173, %v3184
      %v3202 = vmul.f32 %v3174, %v3184
      %v3203 = vmul.f32 %v3175, %v3184
      %v3204 = vmul.f32 %v3176, %v3184
      %v3205 = vmul.f32 %v3177, %v3184
      %v3206 = vmul.f32 %v3178, %v3184
      %v3207 = vmul.f32 %v3179, %v3184
      %v3208 = vmul.f32 %v3180, %v3184
      %v3209 = vadd.f32 %v3091, %v3185
      %v3210 = vadd.f32 %v3092, %v3186
      %v3211 = vadd.f32 %v3093, %v3187
      %v3212 = vadd.f32 %v3094, %v3188
      %v3213 = vadd.f32 %v3095, %v3189
      %v3214 = vadd.f32 %v3096, %v3190
      %v3215 = vadd.f32 %v3097, %v3191
      %v3216 = vadd.f32 %v3098, %v3192
      %v3217 = vadd.f32 %v3099, %v3193
      %v3218 = vadd.f32 %v3100, %v3194
      %v3219 = vadd.f32 %v3101, %v3195
      %v3220 = vadd.f32 %v3102, %v3196
      %v3221 = vadd.f32 %v3103, %v3197
      %v3222 = vadd.f32 %v3104, %v3198
      %v3223 = vadd.f32 %v3105, %v3199
      %v3224 = vadd.f32 %v3106, %v3200
      %v3225 = vadd.f32 %v3107, %v3201
      %v3226 = vadd.f32 %v3108, %v3202
      %v3227 = vadd.f32 %v3109, %v3203
      %v3228 = vadd.f32 %v3110, %v3204
      %v3229 = vadd.f32 %v3111, %v3205
      %v3230 = vadd.f32 %v3112, %v3206
      %v3231 = vadd.f32 %v3113, %v3207
      %v3232 = vadd.f32 %v3114, %v3208
      %v3233 = vunpack.c.l.bf16 %v3139
      %v3234 = vunpack.c.l.bf16 %v3140
      %v3235 = vunpack.c.l.bf16 %v3141
      %v3236 = vunpack.c.l.bf16 %v3142
      %v3237 = vunpack.c.l.bf16 %v3143
      %v3238 = vunpack.c.l.bf16 %v3144
      %v3239 = vunpack.c.l.bf16 %v3145
      %v3240 = vunpack.c.l.bf16 %v3146
      %v3241 = vunpack.c.l.bf16 %v3147
      %v3242 = vlaneseq
      %v3243 = vshrl.u32 %v3242, 7
      %v3244 = vsub.s32 3, %v3243
      %v3245 = vrot.slane %v2868, %v3244
      %v3246 = vmul.f32 %v3166, %v3245
      %v3247 = vmul.f32 %v3167, %v3245
      %v3248 = vmul.f32 %v3168, %v3245
      %v3249 = vmul.f32 %v3169, %v3245
      %v3250 = vmul.f32 %v3170, %v3245
      %v3251 = vmul.f32 %v3171, %v3245
      %v3252 = vmul.f32 %v3172, %v3245
      %v3253 = vmul.f32 %v3173, %v3245
      %v3254 = vmul.f32 %v3174, %v3245
      %v3255 = vmul.f32 %v3175, %v3245
      %v3256 = vmul.f32 %v3176, %v3245
      %v3257 = vmul.f32 %v3177, %v3245
      %v3258 = vmul.f32 %v3178, %v3245
      %v3259 = vmul.f32 %v3179, %v3245
      %v3260 = vmul.f32 %v3180, %v3245
      %v3261 = vmul.f32 %v3233, %v3245
      %v3262 = vmul.f32 %v3234, %v3245
      %v3263 = vmul.f32 %v3235, %v3245
      %v3264 = vmul.f32 %v3236, %v3245
      %v3265 = vmul.f32 %v3237, %v3245
      %v3266 = vmul.f32 %v3238, %v3245
      %v3267 = vmul.f32 %v3239, %v3245
      %v3268 = vmul.f32 %v3240, %v3245
      %v3269 = vmul.f32 %v3241, %v3245
      %v3270 = vadd.f32 %v3209, %v3246
      %v3271 = vadd.f32 %v3210, %v3247
      %v3272 = vadd.f32 %v3211, %v3248
      %v3273 = vadd.f32 %v3212, %v3249
      %v3274 = vadd.f32 %v3213, %v3250
      %v3275 = vadd.f32 %v3214, %v3251
      %v3276 = vadd.f32 %v3215, %v3252
      %v3277 = vadd.f32 %v3216, %v3253
      %v3278 = vadd.f32 %v3217, %v3254
      %v3279 = vadd.f32 %v3218, %v3255
      %v3280 = vadd.f32 %v3219, %v3256
      %v3281 = vadd.f32 %v3220, %v3257
      %v3282 = vadd.f32 %v3221, %v3258
      %v3283 = vadd.f32 %v3222, %v3259
      %v3284 = vadd.f32 %v3223, %v3260
      %v3285 = vadd.f32 %v3224, %v3261
      %v3286 = vadd.f32 %v3225, %v3262
      %v3287 = vadd.f32 %v3226, %v3263
      %v3288 = vadd.f32 %v3227, %v3264
      %v3289 = vadd.f32 %v3228, %v3265
      %v3290 = vadd.f32 %v3229, %v3266
      %v3291 = vadd.f32 %v3230, %v3267
      %v3292 = vadd.f32 %v3231, %v3268
      %v3293 = vadd.f32 %v3232, %v3269
      %v3294 = vunpack.c.l.bf16 %v3148
      %v3295 = vunpack.c.l.bf16 %v3149
      %v3296 = vunpack.c.l.bf16 %v3150
      %v3297 = vunpack.c.l.bf16 %v3151
      %v3298 = vunpack.c.l.bf16 %v3152
      %v3299 = vunpack.c.l.bf16 %v3153
      %v3300 = vunpack.c.l.bf16 %v3154
      %v3301 = vunpack.c.l.bf16 %v3155
      %v3302 = vunpack.c.l.bf16 %v3156
      %v3303 = vlaneseq
      %v3304 = vshrl.u32 %v3303, 7
      %v3305 = vsub.s32 6, %v3304
      %v3306 = vrot.slane %v2868, %v3305
      %v3307 = vmul.f32 %v3175, %v3306
      %v3308 = vmul.f32 %v3176, %v3306
      %v3309 = vmul.f32 %v3177, %v3306
      %v3310 = vmul.f32 %v3178, %v3306
      %v3311 = vmul.f32 %v3179, %v3306
      %v3312 = vmul.f32 %v3180, %v3306
      %v3313 = vmul.f32 %v3233, %v3306
      %v3314 = vmul.f32 %v3234, %v3306
      %v3315 = vmul.f32 %v3235, %v3306
      %v3316 = vmul.f32 %v3236, %v3306
      %v3317 = vmul.f32 %v3237, %v3306
      %v3318 = vmul.f32 %v3238, %v3306
      %v3319 = vmul.f32 %v3239, %v3306
      %v3320 = vmul.f32 %v3240, %v3306
      %v3321 = vmul.f32 %v3241, %v3306
      %v3322 = vmul.f32 %v3294, %v3306
      %v3323 = vmul.f32 %v3295, %v3306
      %v3324 = vmul.f32 %v3296, %v3306
      %v3325 = vmul.f32 %v3297, %v3306
      %v3326 = vmul.f32 %v3298, %v3306
      %v3327 = vmul.f32 %v3299, %v3306
      %v3328 = vmul.f32 %v3300, %v3306
      %v3329 = vmul.f32 %v3301, %v3306
      %v3330 = vmul.f32 %v3302, %v3306
      %v3331 = vadd.f32 %v3270, %v3307
      %v3332 = vadd.f32 %v3271, %v3308
      %v3333 = vadd.f32 %v3272, %v3309
      %v3334 = vadd.f32 %v3273, %v3310
      %v3335 = vadd.f32 %v3274, %v3311
      %v3336 = vadd.f32 %v3275, %v3312
      %v3337 = vadd.f32 %v3276, %v3313
      %v3338 = vadd.f32 %v3277, %v3314
      %v3339 = vadd.f32 %v3278, %v3315
      %v3340 = vadd.f32 %v3279, %v3316
      %v3341 = vadd.f32 %v3280, %v3317
      %v3342 = vadd.f32 %v3281, %v3318
      %v3343 = vadd.f32 %v3282, %v3319
      %v3344 = vadd.f32 %v3283, %v3320
      %v3345 = vadd.f32 %v3284, %v3321
      %v3346 = vadd.f32 %v3285, %v3322
      %v3347 = vadd.f32 %v3286, %v3323
      %v3348 = vadd.f32 %v3287, %v3324
      %v3349 = vadd.f32 %v3288, %v3325
      %v3350 = vadd.f32 %v3289, %v3326
      %v3351 = vadd.f32 %v3290, %v3327
      %v3352 = vadd.f32 %v3291, %v3328
      %v3353 = vadd.f32 %v3292, %v3329
      %v3354 = vadd.f32 %v3293, %v3330
      %v3355 = vld [vmem:[%s337 + $0x20] sm:$0xc]
      %v3356 = vld [vmem:[%s337 + $0x28] sm:$0x7]
      %v3357 = vld [vmem:[%s337 + $0x30] sm:$0xc]
      %v3358 = vld [vmem:[%s337 + $0x38] sm:$0x7]
      %v3359 = vld [vmem:[%s337 + $0x40] sm:$0xc]
      %v3360 = vld [vmem:[%s337 + $0x48] sm:$0x7]
      %v3361 = vld [vmem:[%s337 + $0x50] sm:$0xc]
      %v3362 = vld [vmem:[%s337 + $0x58] sm:$0x7]
      %v3363 = vld [vmem:[%s337 + $0x60] sm:$0xc]
      %v3364 = vld [vmem:[%s337 + $0x68] sm:$0x7]
      %v3365 = vld [vmem:[%s337 + $0x70] sm:$0xc]
      %v3366 = vld [vmem:[%s337 + $0x78] sm:$0x7]
      %v3367 = vld [vmem:[%s337 + $0x80] sm:$0xc]
      %v3368 = vld [vmem:[%s337 + $0x88] sm:$0x7]
      %v3369 = vld [vmem:[%s337 + $0x90] sm:$0xc]
      %v3370 = vld [vmem:[%s337 + $0x98] sm:$0x7]
      %v3371 = vld [vmem:[%s337 + $0xa0] sm:$0xc]
      %v3372 = vld [vmem:[%s337 + $0xa8] sm:$0x7]
      %v3373 = vld [vmem:[%s337 + $0xb0] sm:$0xc]
      %v3374 = vld [vmem:[%s337 + $0xb8] sm:$0x7]
      %v3375 = vld [vmem:[%s337 + $0xc0] sm:$0xc]
      %v3376 = vld [vmem:[%s337 + $0xc8] sm:$0x7]
      %v3377 = vld [vmem:[%s337 + $0xd0] sm:$0xc]
      %v3378 = vld [vmem:[%s337 + $0xd8] sm:$0x7]
      %v3379 = vld [vmem:[%s337 + $0xe0] sm:$0xc]
      %v3380 = vld [vmem:[%s337 + $0xe8] sm:$0x7]
      %v3381 = vld [vmem:[%s337 + $0xf0] sm:$0xc]
      %v3382 = vld [vmem:[%s337 + $0xf8] sm:$0x7]
      %v3383 = vunpack.c.l.bf16 %v3355
      %v3384 = vunpack.c.l.bf16 %v3356
      %v3385 = vunpack.c.l.bf16 %v3357
      %v3386 = vunpack.c.l.bf16 %v3358
      %v3387 = vunpack.c.l.bf16 %v3359
      %v3388 = vunpack.c.l.bf16 %v3360
      %v3389 = vunpack.c.l.bf16 %v3361
      %v3390 = vunpack.c.l.bf16 %v3362
      %v3391 = vunpack.c.l.bf16 %v3363
      %v3392 = vunpack.c.l.bf16 %v3364
      %v3393 = vunpack.c.l.bf16 %v3365
      %v3394 = vunpack.c.l.bf16 %v3366
      %v3395 = vunpack.c.l.bf16 %v3367
      %v3396 = vunpack.c.l.bf16 %v3368
      %v3397 = vunpack.c.l.bf16 %v3369
      %v3398 = vunpack.c.l.bf16 %v3370
      %v3399 = vlaneseq
      %v3400 = vshrl.u32 %v3399, 7
      %v3401 = vsub.s32 1, %v3400
      %v3402 = vrot.slane %v2865, %v3401
      %v3403 = vmul.f32 %v3383, %v3402
      %v3404 = vmul.f32 %v2918, %v3402
      %v3405 = vmul.f32 %v3384, %v3402
      %v3406 = vmul.f32 %v3385, %v3402
      %v3407 = vmul.f32 %v2921, %v3402
      %v3408 = vmul.f32 %v3386, %v3402
      %v3409 = vmul.f32 %v3387, %v3402
      %v3410 = vmul.f32 %v2924, %v3402
      %v3411 = vmul.f32 %v3388, %v3402
      %v3412 = vmul.f32 %v3389, %v3402
      %v3413 = vmul.f32 %v2927, %v3402
      %v3414 = vmul.f32 %v3390, %v3402
      %v3415 = vmul.f32 %v3391, %v3402
      %v3416 = vmul.f32 %v2930, %v3402
      %v3417 = vmul.f32 %v3392, %v3402
      %v3418 = vmul.f32 %v3393, %v3402
      %v3419 = vmul.f32 %v2933, %v3402
      %v3420 = vmul.f32 %v3394, %v3402
      %v3421 = vmul.f32 %v3395, %v3402
      %v3422 = vmul.f32 %v2936, %v3402
      %v3423 = vmul.f32 %v3396, %v3402
      %v3424 = vmul.f32 %v3397, %v3402
      %v3425 = vmul.f32 %v2939, %v3402
      %v3426 = vmul.f32 %v3398, %v3402
      %vm3451 = vcmask 1044480
      %v3452 = vrot.slane %v3403, 3
      %v3453 = vrot.slane %v3404, 3
      %v3454 = vsel %vm3451, %v3452, %v3453
      %v3455 = vrot.slane %v3405, 3
      %v3456 = vsel %vm3451, %v3453, %v3455
      %v3457 = vrot.slane %v3406, 3
      %v3458 = vrot.slane %v3407, 3
      %v3459 = vsel %vm3451, %v3457, %v3458
      %v3460 = vrot.slane %v3408, 3
      %v3461 = vsel %vm3451, %v3458, %v3460
      %v3462 = vrot.slane %v3409, 3
      %v3463 = vrot.slane %v3410, 3
      %v3464 = vsel %vm3451, %v3462, %v3463
      %v3465 = vrot.slane %v3411, 3
      %v3466 = vsel %vm3451, %v3463, %v3465
      %v3467 = vrot.slane %v3412, 3
      %v3468 = vrot.slane %v3413, 3
      %v3469 = vsel %vm3451, %v3467, %v3468
      %v3470 = vrot.slane %v3414, 3
      %v3471 = vsel %vm3451, %v3468, %v3470
      %v3472 = vrot.slane %v3415, 3
      %v3473 = vrot.slane %v3416, 3
      %v3474 = vsel %vm3451, %v3472, %v3473
      %v3475 = vrot.slane %v3417, 3
      %v3476 = vsel %vm3451, %v3473, %v3475
      %v3477 = vrot.slane %v3418, 3
      %v3478 = vrot.slane %v3419, 3
      %v3479 = vsel %vm3451, %v3477, %v3478
      %v3480 = vrot.slane %v3420, 3
      %v3481 = vsel %vm3451, %v3478, %v3480
      %v3482 = vrot.slane %v3421, 3
      %v3483 = vrot.slane %v3422, 3
      %v3484 = vsel %vm3451, %v3482, %v3483
      %v3485 = vrot.slane %v3423, 3
      %v3486 = vsel %vm3451, %v3483, %v3485
      %v3487 = vrot.slane %v3424, 3
      %v3488 = vrot.slane %v3425, 3
      %v3489 = vsel %vm3451, %v3487, %v3488
      %v3490 = vrot.slane %v3426, 3
      %v3491 = vsel %vm3451, %v3488, %v3490
      %v3516 = vadd.f32 %v3331, %v3454
      %v3517 = vadd.f32 %v3332, %v3456
      %v3518 = vadd.f32 %v3333, %v3455
      %v3519 = vadd.f32 %v3334, %v3459
      %v3520 = vadd.f32 %v3335, %v3461
      %v3521 = vadd.f32 %v3336, %v3460
      %v3522 = vadd.f32 %v3337, %v3464
      %v3523 = vadd.f32 %v3338, %v3466
      %v3524 = vadd.f32 %v3339, %v3465
      %v3525 = vadd.f32 %v3340, %v3469
      %v3526 = vadd.f32 %v3341, %v3471
      %v3527 = vadd.f32 %v3342, %v3470
      %v3528 = vadd.f32 %v3343, %v3474
      %v3529 = vadd.f32 %v3344, %v3476
      %v3530 = vadd.f32 %v3345, %v3475
      %v3531 = vadd.f32 %v3346, %v3479
      %v3532 = vadd.f32 %v3347, %v3481
      %v3533 = vadd.f32 %v3348, %v3480
      %v3534 = vadd.f32 %v3349, %v3484
      %v3535 = vadd.f32 %v3350, %v3486
      %v3536 = vadd.f32 %v3351, %v3485
      %v3537 = vadd.f32 %v3352, %v3489
      %v3538 = vadd.f32 %v3353, %v3491
      %v3539 = vadd.f32 %v3354, %v3490
      %v3540 = vunpack.c.l.bf16 %v3371
      %v3541 = vunpack.c.l.bf16 %v3372
      %v3542 = vunpack.c.l.bf16 %v3373
      %v3543 = vunpack.c.l.bf16 %v3374
      %v3544 = vunpack.c.l.bf16 %v3375
      %v3545 = vunpack.c.l.bf16 %v3376
      %v3546 = vlaneseq
      %v3547 = vshrl.u32 %v3546, 7
      %v3548 = vsub.s32 4, %v3547
      %v3549 = vrot.slane %v2865, %v3548
      %v3550 = vmul.f32 %v3389, %v3549
      %v3551 = vmul.f32 %v2927, %v3549
      %v3552 = vmul.f32 %v3390, %v3549
      %v3553 = vmul.f32 %v3391, %v3549
      %v3554 = vmul.f32 %v2930, %v3549
      %v3555 = vmul.f32 %v3392, %v3549
      %v3556 = vmul.f32 %v3393, %v3549
      %v3557 = vmul.f32 %v2933, %v3549
      %v3558 = vmul.f32 %v3394, %v3549
      %v3559 = vmul.f32 %v3395, %v3549
      %v3560 = vmul.f32 %v2936, %v3549
      %v3561 = vmul.f32 %v3396, %v3549
      %v3562 = vmul.f32 %v3397, %v3549
      %v3563 = vmul.f32 %v2939, %v3549
      %v3564 = vmul.f32 %v3398, %v3549
      %v3565 = vmul.f32 %v3540, %v3549
      %v3566 = vmul.f32 %v2994, %v3549
      %v3567 = vmul.f32 %v3541, %v3549
      %v3568 = vmul.f32 %v3542, %v3549
      %v3569 = vmul.f32 %v2997, %v3549
      %v3570 = vmul.f32 %v3543, %v3549
      %v3571 = vmul.f32 %v3544, %v3549
      %v3572 = vmul.f32 %v3000, %v3549
      %v3573 = vmul.f32 %v3545, %v3549
      %v3598 = vrot.slane %v3550, 3
      %v3599 = vrot.slane %v3551, 3
      %v3600 = vsel %vm3451, %v3598, %v3599
      %v3601 = vrot.slane %v3552, 3
      %v3602 = vsel %vm3451, %v3599, %v3601
      %v3603 = vrot.slane %v3553, 3
      %v3604 = vrot.slane %v3554, 3
      %v3605 = vsel %vm3451, %v3603, %v3604
      %v3606 = vrot.slane %v3555, 3
      %v3607 = vsel %vm3451, %v3604, %v3606
      %v3608 = vrot.slane %v3556, 3
      %v3609 = vrot.slane %v3557, 3
      %v3610 = vsel %vm3451, %v3608, %v3609
      %v3611 = vrot.slane %v3558, 3
      %v3612 = vsel %vm3451, %v3609, %v3611
      %v3613 = vrot.slane %v3559, 3
      %v3614 = vrot.slane %v3560, 3
      %v3615 = vsel %vm3451, %v3613, %v3614
      %v3616 = vrot.slane %v3561, 3
      %v3617 = vsel %vm3451, %v3614, %v3616
      %v3618 = vrot.slane %v3562, 3
      %v3619 = vrot.slane %v3563, 3
      %v3620 = vsel %vm3451, %v3618, %v3619
      %v3621 = vrot.slane %v3564, 3
      %v3622 = vsel %vm3451, %v3619, %v3621
      %v3623 = vrot.slane %v3565, 3
      %v3624 = vrot.slane %v3566, 3
      %v3625 = vsel %vm3451, %v3623, %v3624
      %v3626 = vrot.slane %v3567, 3
      %v3627 = vsel %vm3451, %v3624, %v3626
      %v3628 = vrot.slane %v3568, 3
      %v3629 = vrot.slane %v3569, 3
      %v3630 = vsel %vm3451, %v3628, %v3629
      %v3631 = vrot.slane %v3570, 3
      %v3632 = vsel %vm3451, %v3629, %v3631
      %v3633 = vrot.slane %v3571, 3
      %v3634 = vrot.slane %v3572, 3
      %v3635 = vsel %vm3451, %v3633, %v3634
      %v3636 = vrot.slane %v3573, 3
      %v3637 = vsel %vm3451, %v3634, %v3636
      %v3662 = vadd.f32 %v3516, %v3600
      %v3663 = vadd.f32 %v3517, %v3602
      %v3664 = vadd.f32 %v3518, %v3601
      %v3665 = vadd.f32 %v3519, %v3605
      %v3666 = vadd.f32 %v3520, %v3607
      %v3667 = vadd.f32 %v3521, %v3606
      %v3668 = vadd.f32 %v3522, %v3610
      %v3669 = vadd.f32 %v3523, %v3612
      %v3670 = vadd.f32 %v3524, %v3611
      %v3671 = vadd.f32 %v3525, %v3615
      %v3672 = vadd.f32 %v3526, %v3617
      %v3673 = vadd.f32 %v3527, %v3616
      %v3674 = vadd.f32 %v3528, %v3620
      %v3675 = vadd.f32 %v3529, %v3622
      %v3676 = vadd.f32 %v3530, %v3621
      %v3677 = vadd.f32 %v3531, %v3625
      %v3678 = vadd.f32 %v3532, %v3627
      %v3679 = vadd.f32 %v3533, %v3626
      %v3680 = vadd.f32 %v3534, %v3630
      %v3681 = vadd.f32 %v3535, %v3632
      %v3682 = vadd.f32 %v3536, %v3631
      %v3683 = vadd.f32 %v3537, %v3635
      %v3684 = vadd.f32 %v3538, %v3637
      %v3685 = vadd.f32 %v3539, %v3636
      %v3686 = vunpack.c.l.bf16 %v3377
      %v3687 = vunpack.c.l.bf16 %v3378
      %v3688 = vunpack.c.l.bf16 %v3379
      %v3689 = vunpack.c.l.bf16 %v3380
      %v3690 = vunpack.c.l.bf16 %v3381
      %v3691 = vunpack.c.l.bf16 %v3382
      %v3692 = vlaneseq
      %v3693 = vshrl.u32 %v3692, 7
      %v3694 = vsub.s32 7, %v3693
      %v3695 = vrot.slane %v2865, %v3694
      %v3696 = vmul.f32 %v3395, %v3695
      %v3697 = vmul.f32 %v2936, %v3695
      %v3698 = vmul.f32 %v3396, %v3695
      %v3699 = vmul.f32 %v3397, %v3695
      %v3700 = vmul.f32 %v2939, %v3695
      %v3701 = vmul.f32 %v3398, %v3695
      %v3702 = vmul.f32 %v3540, %v3695
      %v3703 = vmul.f32 %v2994, %v3695
      %v3704 = vmul.f32 %v3541, %v3695
      %v3705 = vmul.f32 %v3542, %v3695
      %v3706 = vmul.f32 %v2997, %v3695
      %v3707 = vmul.f32 %v3543, %v3695
      %v3708 = vmul.f32 %v3544, %v3695
      %v3709 = vmul.f32 %v3000, %v3695
      %v3710 = vmul.f32 %v3545, %v3695
      %v3711 = vmul.f32 %v3686, %v3695
      %v3712 = vmul.f32 %v3055, %v3695
      %v3713 = vmul.f32 %v3687, %v3695
      %v3714 = vmul.f32 %v3688, %v3695
      %v3715 = vmul.f32 %v3058, %v3695
      %v3716 = vmul.f32 %v3689, %v3695
      %v3717 = vmul.f32 %v3690, %v3695
      %v3718 = vmul.f32 %v3061, %v3695
      %v3719 = vmul.f32 %v3691, %v3695
      %v3744 = vrot.slane %v3696, 3
      %v3745 = vrot.slane %v3697, 3
      %v3746 = vsel %vm3451, %v3744, %v3745
      %v3747 = vrot.slane %v3698, 3
      %v3748 = vsel %vm3451, %v3745, %v3747
      %v3749 = vrot.slane %v3699, 3
      %v3750 = vrot.slane %v3700, 3
      %v3751 = vsel %vm3451, %v3749, %v3750
      %v3752 = vrot.slane %v3701, 3
      %v3753 = vsel %vm3451, %v3750, %v3752
      %v3754 = vrot.slane %v3702, 3
      %v3755 = vrot.slane %v3703, 3
      %v3756 = vsel %vm3451, %v3754, %v3755
      %v3757 = vrot.slane %v3704, 3
      %v3758 = vsel %vm3451, %v3755, %v3757
      %v3759 = vrot.slane %v3705, 3
      %v3760 = vrot.slane %v3706, 3
      %v3761 = vsel %vm3451, %v3759, %v3760
      %v3762 = vrot.slane %v3707, 3
      %v3763 = vsel %vm3451, %v3760, %v3762
      %v3764 = vrot.slane %v3708, 3
      %v3765 = vrot.slane %v3709, 3
      %v3766 = vsel %vm3451, %v3764, %v3765
      %v3767 = vrot.slane %v3710, 3
      %v3768 = vsel %vm3451, %v3765, %v3767
      %v3769 = vrot.slane %v3711, 3
      %v3770 = vrot.slane %v3712, 3
      %v3771 = vsel %vm3451, %v3769, %v3770
      %v3772 = vrot.slane %v3713, 3
      %v3773 = vsel %vm3451, %v3770, %v3772
      %v3774 = vrot.slane %v3714, 3
      %v3775 = vrot.slane %v3715, 3
      %v3776 = vsel %vm3451, %v3774, %v3775
      %v3777 = vrot.slane %v3716, 3
      %v3778 = vsel %vm3451, %v3775, %v3777
      %v3779 = vrot.slane %v3717, 3
      %v3780 = vrot.slane %v3718, 3
      %v3781 = vsel %vm3451, %v3779, %v3780
      %v3782 = vrot.slane %v3719, 3
      %v3783 = vsel %vm3451, %v3780, %v3782
      %v3808 = vadd.f32 %v3662, %v3746
      %v3809 = vadd.f32 %v3663, %v3748
      %v3810 = vadd.f32 %v3664, %v3747
      %v3811 = vadd.f32 %v3665, %v3751
      %v3812 = vadd.f32 %v3666, %v3753
      %v3813 = vadd.f32 %v3667, %v3752
      %v3814 = vadd.f32 %v3668, %v3756
      %v3815 = vadd.f32 %v3669, %v3758
      %v3816 = vadd.f32 %v3670, %v3757
      %v3817 = vadd.f32 %v3671, %v3761
      %v3818 = vadd.f32 %v3672, %v3763
      %v3819 = vadd.f32 %v3673, %v3762
      %v3820 = vadd.f32 %v3674, %v3766
      %v3821 = vadd.f32 %v3675, %v3768
      %v3822 = vadd.f32 %v3676, %v3767
      %v3823 = vadd.f32 %v3677, %v3771
      %v3824 = vadd.f32 %v3678, %v3773
      %v3825 = vadd.f32 %v3679, %v3772
      %v3826 = vadd.f32 %v3680, %v3776
      %v3827 = vadd.f32 %v3681, %v3778
      %v3828 = vadd.f32 %v3682, %v3777
      %v3829 = vadd.f32 %v3683, %v3781
      %v3830 = vadd.f32 %v3684, %v3783
      %v3831 = vadd.f32 %v3685, %v3782
      %v3832 = vld [vmem:[%s555 + $0x20] sm:$0xc]
      %v3833 = vld [vmem:[%s555 + $0x28] sm:$0x7]
      %v3834 = vld [vmem:[%s555 + $0x30] sm:$0xc]
      %v3835 = vld [vmem:[%s555 + $0x38] sm:$0x7]
      %v3836 = vld [vmem:[%s555 + $0x40] sm:$0xc]
      %v3837 = vld [vmem:[%s555 + $0x48] sm:$0x7]
      %v3838 = vld [vmem:[%s555 + $0x50] sm:$0xc]
      %v3839 = vld [vmem:[%s555 + $0x58] sm:$0x7]
      %v3840 = vld [vmem:[%s555 + $0x60] sm:$0xc]
      %v3841 = vld [vmem:[%s555 + $0x68] sm:$0x7]
      %v3842 = vld [vmem:[%s555 + $0x70] sm:$0xc]
      %v3843 = vld [vmem:[%s555 + $0x78] sm:$0x7]
      %v3844 = vld [vmem:[%s555 + $0x80] sm:$0xc]
      %v3845 = vld [vmem:[%s555 + $0x88] sm:$0x7]
      %v3846 = vld [vmem:[%s555 + $0x90] sm:$0xc]
      %v3847 = vld [vmem:[%s555 + $0x98] sm:$0x7]
      %v3848 = vld [vmem:[%s555 + $0xa0] sm:$0xc]
      %v3849 = vld [vmem:[%s555 + $0xa8] sm:$0x7]
      %v3850 = vld [vmem:[%s555 + $0xb0] sm:$0xc]
      %v3851 = vld [vmem:[%s555 + $0xb8] sm:$0x7]
      %v3852 = vld [vmem:[%s555 + $0xc0] sm:$0xc]
      %v3853 = vld [vmem:[%s555 + $0xc8] sm:$0x7]
      %v3854 = vld [vmem:[%s555 + $0xd0] sm:$0xc]
      %v3855 = vld [vmem:[%s555 + $0xd8] sm:$0x7]
      %v3856 = vld [vmem:[%s555 + $0xe0] sm:$0xc]
      %v3857 = vld [vmem:[%s555 + $0xe8] sm:$0x7]
      %v3858 = vld [vmem:[%s555 + $0xf0] sm:$0xc]
      %v3859 = vld [vmem:[%s555 + $0xf8] sm:$0x7]
      %v3860 = vunpack.c.l.bf16 %v3832
      %v3861 = vunpack.c.l.bf16 %v3833
      %v3862 = vunpack.c.l.bf16 %v3834
      %v3863 = vunpack.c.l.bf16 %v3835
      %v3864 = vunpack.c.l.bf16 %v3836
      %v3865 = vunpack.c.l.bf16 %v3837
      %v3866 = vunpack.c.l.bf16 %v3838
      %v3867 = vunpack.c.l.bf16 %v3839
      %v3868 = vunpack.c.l.bf16 %v3840
      %v3869 = vunpack.c.l.bf16 %v3841
      %v3870 = vunpack.c.l.bf16 %v3842
      %v3871 = vunpack.c.l.bf16 %v3843
      %v3872 = vunpack.c.l.bf16 %v3844
      %v3873 = vunpack.c.l.bf16 %v3845
      %v3874 = vunpack.c.l.bf16 %v3846
      %v3875 = vunpack.c.l.bf16 %v3847
      %v3876 = vlaneseq
      %v3877 = vshrl.u32 %v3876, 7
      %v3878 = vsub.s32 1, %v3877
      %v3879 = vrot.slane %v2868, %v3878
      %v3880 = vmul.f32 %v3860, %v3879
      %v3881 = vmul.f32 %v3158, %v3879
      %v3882 = vmul.f32 %v3861, %v3879
      %v3883 = vmul.f32 %v3862, %v3879
      %v3884 = vmul.f32 %v3161, %v3879
      %v3885 = vmul.f32 %v3863, %v3879
      %v3886 = vmul.f32 %v3864, %v3879
      %v3887 = vmul.f32 %v3164, %v3879
      %v3888 = vmul.f32 %v3865, %v3879
      %v3889 = vmul.f32 %v3866, %v3879
      %v3890 = vmul.f32 %v3167, %v3879
      %v3891 = vmul.f32 %v3867, %v3879
      %v3892 = vmul.f32 %v3868, %v3879
      %v3893 = vmul.f32 %v3170, %v3879
      %v3894 = vmul.f32 %v3869, %v3879
      %v3895 = vmul.f32 %v3870, %v3879
      %v3896 = vmul.f32 %v3173, %v3879
      %v3897 = vmul.f32 %v3871, %v3879
      %v3898 = vmul.f32 %v3872, %v3879
      %v3899 = vmul.f32 %v3176, %v3879
      %v3900 = vmul.f32 %v3873, %v3879
      %v3901 = vmul.f32 %v3874, %v3879
      %v3902 = vmul.f32 %v3179, %v3879
      %v3903 = vmul.f32 %v3875, %v3879
      %v3928 = vrot.slane %v3880, 3
      %v3929 = vrot.slane %v3881, 3
      %v3930 = vsel %vm3451, %v3928, %v3929
      %v3931 = vrot.slane %v3882, 3
      %v3932 = vsel %vm3451, %v3929, %v3931
      %v3933 = vrot.slane %v3883, 3
      %v3934 = vrot.slane %v3884, 3
      %v3935 = vsel %vm3451, %v3933, %v3934
      %v3936 = vrot.slane %v3885, 3
      %v3937 = vsel %vm3451, %v3934, %v3936
      %v3938 = vrot.slane %v3886, 3
      %v3939 = vrot.slane %v3887, 3
      %v3940 = vsel %vm3451, %v3938, %v3939
      %v3941 = vrot.slane %v3888, 3
      %v3942 = vsel %vm3451, %v3939, %v3941
      %v3943 = vrot.slane %v3889, 3
      %v3944 = vrot.slane %v3890, 3
      %v3945 = vsel %vm3451, %v3943, %v3944
      %v3946 = vrot.slane %v3891, 3
      %v3947 = vsel %vm3451, %v3944, %v3946
      %v3948 = vrot.slane %v3892, 3
      %v3949 = vrot.slane %v3893, 3
      %v3950 = vsel %vm3451, %v3948, %v3949
      %v3951 = vrot.slane %v3894, 3
      %v3952 = vsel %vm3451, %v3949, %v3951
      %v3953 = vrot.slane %v3895, 3
      %v3954 = vrot.slane %v3896, 3
      %v3955 = vsel %vm3451, %v3953, %v3954
      %v3956 = vrot.slane %v3897, 3
      %v3957 = vsel %vm3451, %v3954, %v3956
      %v3958 = vrot.slane %v3898, 3
      %v3959 = vrot.slane %v3899, 3
      %v3960 = vsel %vm3451, %v3958, %v3959
      %v3961 = vrot.slane %v3900, 3
      %v3962 = vsel %vm3451, %v3959, %v3961
      %v3963 = vrot.slane %v3901, 3
      %v3964 = vrot.slane %v3902, 3
      %v3965 = vsel %vm3451, %v3963, %v3964
      %v3966 = vrot.slane %v3903, 3
      %v3967 = vsel %vm3451, %v3964, %v3966
      %v3992 = vadd.f32 %v3808, %v3930
      %v3993 = vadd.f32 %v3809, %v3932
      %v3994 = vadd.f32 %v3810, %v3931
      %v3995 = vadd.f32 %v3811, %v3935
      %v3996 = vadd.f32 %v3812, %v3937
      %v3997 = vadd.f32 %v3813, %v3936
      %v3998 = vadd.f32 %v3814, %v3940
      %v3999 = vadd.f32 %v3815, %v3942
      %v4000 = vadd.f32 %v3816, %v3941
      %v4001 = vadd.f32 %v3817, %v3945
      %v4002 = vadd.f32 %v3818, %v3947
      %v4003 = vadd.f32 %v3819, %v3946
      %v4004 = vadd.f32 %v3820, %v3950
      %v4005 = vadd.f32 %v3821, %v3952
      %v4006 = vadd.f32 %v3822, %v3951
      %v4007 = vadd.f32 %v3823, %v3955
      %v4008 = vadd.f32 %v3824, %v3957
      %v4009 = vadd.f32 %v3825, %v3956
      %v4010 = vadd.f32 %v3826, %v3960
      %v4011 = vadd.f32 %v3827, %v3962
      %v4012 = vadd.f32 %v3828, %v3961
      %v4013 = vadd.f32 %v3829, %v3965
      %v4014 = vadd.f32 %v3830, %v3967
      %v4015 = vadd.f32 %v3831, %v3966
      %v4016 = vunpack.c.l.bf16 %v3848
      %v4017 = vunpack.c.l.bf16 %v3849
      %v4018 = vunpack.c.l.bf16 %v3850
      %v4019 = vunpack.c.l.bf16 %v3851
      %v4020 = vunpack.c.l.bf16 %v3852
      %v4021 = vunpack.c.l.bf16 %v3853
      %v4022 = vlaneseq
      %v4023 = vshrl.u32 %v4022, 7
      %v4024 = vsub.s32 4, %v4023
      %v4025 = vrot.slane %v2868, %v4024
      %v4026 = vmul.f32 %v3866, %v4025
      %v4027 = vmul.f32 %v3167, %v4025
      %v4028 = vmul.f32 %v3867, %v4025
      %v4029 = vmul.f32 %v3868, %v4025
      %v4030 = vmul.f32 %v3170, %v4025
      %v4031 = vmul.f32 %v3869, %v4025
      %v4032 = vmul.f32 %v3870, %v4025
      %v4033 = vmul.f32 %v3173, %v4025
      %v4034 = vmul.f32 %v3871, %v4025
      %v4035 = vmul.f32 %v3872, %v4025
      %v4036 = vmul.f32 %v3176, %v4025
      %v4037 = vmul.f32 %v3873, %v4025
      %v4038 = vmul.f32 %v3874, %v4025
      %v4039 = vmul.f32 %v3179, %v4025
      %v4040 = vmul.f32 %v3875, %v4025
      %v4041 = vmul.f32 %v4016, %v4025
      %v4042 = vmul.f32 %v3234, %v4025
      %v4043 = vmul.f32 %v4017, %v4025
      %v4044 = vmul.f32 %v4018, %v4025
      %v4045 = vmul.f32 %v3237, %v4025
      %v4046 = vmul.f32 %v4019, %v4025
      %v4047 = vmul.f32 %v4020, %v4025
      %v4048 = vmul.f32 %v3240, %v4025
      %v4049 = vmul.f32 %v4021, %v4025
      %v4074 = vrot.slane %v4026, 3
      %v4075 = vrot.slane %v4027, 3
      %v4076 = vsel %vm3451, %v4074, %v4075
      %v4077 = vrot.slane %v4028, 3
      %v4078 = vsel %vm3451, %v4075, %v4077
      %v4079 = vrot.slane %v4029, 3
      %v4080 = vrot.slane %v4030, 3
      %v4081 = vsel %vm3451, %v4079, %v4080
      %v4082 = vrot.slane %v4031, 3
      %v4083 = vsel %vm3451, %v4080, %v4082
      %v4084 = vrot.slane %v4032, 3
      %v4085 = vrot.slane %v4033, 3
      %v4086 = vsel %vm3451, %v4084, %v4085
      %v4087 = vrot.slane %v4034, 3
      %v4088 = vsel %vm3451, %v4085, %v4087
      %v4089 = vrot.slane %v4035, 3
      %v4090 = vrot.slane %v4036, 3
      %v4091 = vsel %vm3451, %v4089, %v4090
      %v4092 = vrot.slane %v4037, 3
      %v4093 = vsel %vm3451, %v4090, %v4092
      %v4094 = vrot.slane %v4038, 3
      %v4095 = vrot.slane %v4039, 3
      %v4096 = vsel %vm3451, %v4094, %v4095
      %v4097 = vrot.slane %v4040, 3
      %v4098 = vsel %vm3451, %v4095, %v4097
      %v4099 = vrot.slane %v4041, 3
      %v4100 = vrot.slane %v4042, 3
      %v4101 = vsel %vm3451, %v4099, %v4100
      %v4102 = vrot.slane %v4043, 3
      %v4103 = vsel %vm3451, %v4100, %v4102
      %v4104 = vrot.slane %v4044, 3
      %v4105 = vrot.slane %v4045, 3
      %v4106 = vsel %vm3451, %v4104, %v4105
      %v4107 = vrot.slane %v4046, 3
      %v4108 = vsel %vm3451, %v4105, %v4107
      %v4109 = vrot.slane %v4047, 3
      %v4110 = vrot.slane %v4048, 3
      %v4111 = vsel %vm3451, %v4109, %v4110
      %v4112 = vrot.slane %v4049, 3
      %v4113 = vsel %vm3451, %v4110, %v4112
      %v4138 = vadd.f32 %v3992, %v4076
      %v4139 = vadd.f32 %v3993, %v4078
      %v4140 = vadd.f32 %v3994, %v4077
      %v4141 = vadd.f32 %v3995, %v4081
      %v4142 = vadd.f32 %v3996, %v4083
      %v4143 = vadd.f32 %v3997, %v4082
      %v4144 = vadd.f32 %v3998, %v4086
      %v4145 = vadd.f32 %v3999, %v4088
      %v4146 = vadd.f32 %v4000, %v4087
      %v4147 = vadd.f32 %v4001, %v4091
      %v4148 = vadd.f32 %v4002, %v4093
      %v4149 = vadd.f32 %v4003, %v4092
      %v4150 = vadd.f32 %v4004, %v4096
      %v4151 = vadd.f32 %v4005, %v4098
      %v4152 = vadd.f32 %v4006, %v4097
      %v4153 = vadd.f32 %v4007, %v4101
      %v4154 = vadd.f32 %v4008, %v4103
      %v4155 = vadd.f32 %v4009, %v4102
      %v4156 = vadd.f32 %v4010, %v4106
      %v4157 = vadd.f32 %v4011, %v4108
      %v4158 = vadd.f32 %v4012, %v4107
      %v4159 = vadd.f32 %v4013, %v4111
      %v4160 = vadd.f32 %v4014, %v4113
      %v4161 = vadd.f32 %v4015, %v4112
      %v4162 = vunpack.c.l.bf16 %v3854
      %v4163 = vunpack.c.l.bf16 %v3855
      %v4164 = vunpack.c.l.bf16 %v3856
      %v4165 = vunpack.c.l.bf16 %v3857
      %v4166 = vunpack.c.l.bf16 %v3858
      %v4167 = vunpack.c.l.bf16 %v3859
      %v4168 = vlaneseq
      %v4169 = vshrl.u32 %v4168, 7
      %v4170 = vsub.s32 7, %v4169
      %v4171 = vrot.slane %v2868, %v4170
      %v4172 = vmul.f32 %v3872, %v4171
      %v4173 = vmul.f32 %v3176, %v4171
      %v4174 = vmul.f32 %v3873, %v4171
      %v4175 = vmul.f32 %v3874, %v4171
      %v4176 = vmul.f32 %v3179, %v4171
      %v4177 = vmul.f32 %v3875, %v4171
      %v4178 = vmul.f32 %v4016, %v4171
      %v4179 = vmul.f32 %v3234, %v4171
      %v4180 = vmul.f32 %v4017, %v4171
      %v4181 = vmul.f32 %v4018, %v4171
      %v4182 = vmul.f32 %v3237, %v4171
      %v4183 = vmul.f32 %v4019, %v4171
      %v4184 = vmul.f32 %v4020, %v4171
      %v4185 = vmul.f32 %v3240, %v4171
      %v4186 = vmul.f32 %v4021, %v4171
      %v4187 = vmul.f32 %v4162, %v4171
      %v4188 = vmul.f32 %v3295, %v4171
      %v4189 = vmul.f32 %v4163, %v4171
      %v4190 = vmul.f32 %v4164, %v4171
      %v4191 = vmul.f32 %v3298, %v4171
      %v4192 = vmul.f32 %v4165, %v4171
      %v4193 = vmul.f32 %v4166, %v4171
      %v4194 = vmul.f32 %v3301, %v4171
      %v4195 = vmul.f32 %v4167, %v4171
      %v4220 = vrot.slane %v4172, 3
      %v4221 = vrot.slane %v4173, 3
      %v4222 = vsel %vm3451, %v4220, %v4221
      %v4223 = vrot.slane %v4174, 3
      %v4224 = vsel %vm3451, %v4221, %v4223
      %v4225 = vrot.slane %v4175, 3
      %v4226 = vrot.slane %v4176, 3
      %v4227 = vsel %vm3451, %v4225, %v4226
      %v4228 = vrot.slane %v4177, 3
      %v4229 = vsel %vm3451, %v4226, %v4228
      %v4230 = vrot.slane %v4178, 3
      %v4231 = vrot.slane %v4179, 3
      %v4232 = vsel %vm3451, %v4230, %v4231
      %v4233 = vrot.slane %v4180, 3
      %v4234 = vsel %vm3451, %v4231, %v4233
      %v4235 = vrot.slane %v4181, 3
      %v4236 = vrot.slane %v4182, 3
      %v4237 = vsel %vm3451, %v4235, %v4236
      %v4238 = vrot.slane %v4183, 3
      %v4239 = vsel %vm3451, %v4236, %v4238
      %v4240 = vrot.slane %v4184, 3
      %v4241 = vrot.slane %v4185, 3
      %v4242 = vsel %vm3451, %v4240, %v4241
      %v4243 = vrot.slane %v4186, 3
      %v4244 = vsel %vm3451, %v4241, %v4243
      %v4245 = vrot.slane %v4187, 3
      %v4246 = vrot.slane %v4188, 3
      %v4247 = vsel %vm3451, %v4245, %v4246
      %v4248 = vrot.slane %v4189, 3
      %v4249 = vsel %vm3451, %v4246, %v4248
      %v4250 = vrot.slane %v4190, 3
      %v4251 = vrot.slane %v4191, 3
      %v4252 = vsel %vm3451, %v4250, %v4251
      %v4253 = vrot.slane %v4192, 3
      %v4254 = vsel %vm3451, %v4251, %v4253
      %v4255 = vrot.slane %v4193, 3
      %v4256 = vrot.slane %v4194, 3
      %v4257 = vsel %vm3451, %v4255, %v4256
      %v4258 = vrot.slane %v4195, 3
      %v4259 = vsel %vm3451, %v4256, %v4258
      %v4284 = vadd.f32 %v4138, %v4222
      %v4285 = vadd.f32 %v4139, %v4224
      %v4286 = vadd.f32 %v4140, %v4223
      %v4287 = vadd.f32 %v4141, %v4227
      %v4288 = vadd.f32 %v4142, %v4229
      %v4289 = vadd.f32 %v4143, %v4228
      %v4290 = vadd.f32 %v4144, %v4232
      %v4291 = vadd.f32 %v4145, %v4234
      %v4292 = vadd.f32 %v4146, %v4233
      %v4293 = vadd.f32 %v4147, %v4237
      %v4294 = vadd.f32 %v4148, %v4239
      %v4295 = vadd.f32 %v4149, %v4238
      %v4296 = vadd.f32 %v4150, %v4242
      %v4297 = vadd.f32 %v4151, %v4244
      %v4298 = vadd.f32 %v4152, %v4243
      %v4299 = vadd.f32 %v4153, %v4247
      %v4300 = vadd.f32 %v4154, %v4249
      %v4301 = vadd.f32 %v4155, %v4248
      %v4302 = vadd.f32 %v4156, %v4252
      %v4303 = vadd.f32 %v4157, %v4254
      %v4304 = vadd.f32 %v4158, %v4253
      %v4305 = vadd.f32 %v4159, %v4257
      %v4306 = vadd.f32 %v4160, %v4259
      %v4307 = vadd.f32 %v4161, %v4258
      %v4308 = vld [vmem:[%s337 + $0x28] sm:$0xf]
      %v4309 = vld [vmem:[%s337 + $0x38] sm:$0xf]
      %v4310 = vld [vmem:[%s337 + $0x48] sm:$0xf]
      %v4311 = vld [vmem:[%s337 + $0x58] sm:$0xf]
      %v4312 = vld [vmem:[%s337 + $0x68] sm:$0xf]
      %v4313 = vld [vmem:[%s337 + $0x78] sm:$0xf]
      %v4314 = vld [vmem:[%s337 + $0x88] sm:$0xf]
      %v4315 = vld [vmem:[%s337 + $0x98] sm:$0xf]
      %v4316 = vld [vmem:[%s337 + $0xa8] sm:$0xf]
      %v4317 = vld [vmem:[%s337 + $0xb8] sm:$0xf]
      %v4318 = vld [vmem:[%s337 + $0xc8] sm:$0xf]
      %v4319 = vld [vmem:[%s337 + $0xd8] sm:$0xf]
      %v4320 = vld [vmem:[%s337 + $0xe8] sm:$0xf]
      %v4321 = vld [vmem:[%s337 + $0xf8] sm:$0xf]
      %v4322 = vunpack.c.l.bf16 %v4308
      %v4323 = vunpack.c.l.bf16 %v4309
      %v4324 = vunpack.c.l.bf16 %v4310
      %v4325 = vunpack.c.l.bf16 %v4311
      %v4326 = vunpack.c.l.bf16 %v4312
      %v4327 = vunpack.c.l.bf16 %v4313
      %v4328 = vunpack.c.l.bf16 %v4314
      %v4329 = vunpack.c.l.bf16 %v4315
      %v4330 = vlaneseq
      %v4331 = vshrl.u32 %v4330, 7
      %v4332 = vsub.s32 2, %v4331
      %v4333 = vrot.slane %v2865, %v4332
      %v4334 = vmul.f32 %v2918, %v4333
      %v4335 = vmul.f32 %v4322, %v4333
      %v4336 = vmul.f32 %v2921, %v4333
      %v4337 = vmul.f32 %v4323, %v4333
      %v4338 = vmul.f32 %v2924, %v4333
      %v4339 = vmul.f32 %v4324, %v4333
      %v4340 = vmul.f32 %v2927, %v4333
      %v4341 = vmul.f32 %v4325, %v4333
      %v4342 = vmul.f32 %v2930, %v4333
      %v4343 = vmul.f32 %v4326, %v4333
      %v4344 = vmul.f32 %v2933, %v4333
      %v4345 = vmul.f32 %v4327, %v4333
      %v4346 = vmul.f32 %v2936, %v4333
      %v4347 = vmul.f32 %v4328, %v4333
      %v4348 = vmul.f32 %v2939, %v4333
      %v4349 = vmul.f32 %v4329, %v4333
      %vm4366 = vcmask 1041408
      %v4367 = vrot.slane %v4334, 6
      %v4368 = vrot.slane %v4335, 6
      %v4369 = vsel %vm4366, %v4367, %v4368
      %v4370 = vrot.slane %v4336, 6
      %v4371 = vrot.slane %v4337, 6
      %v4372 = vsel %vm4366, %v4370, %v4371
      %v4373 = vrot.slane %v4338, 6
      %v4374 = vrot.slane %v4339, 6
      %v4375 = vsel %vm4366, %v4373, %v4374
      %v4376 = vrot.slane %v4340, 6
      %v4377 = vrot.slane %v4341, 6
      %v4378 = vsel %vm4366, %v4376, %v4377
      %v4379 = vrot.slane %v4342, 6
      %v4380 = vrot.slane %v4343, 6
      %v4381 = vsel %vm4366, %v4379, %v4380
      %v4382 = vrot.slane %v4344, 6
      %v4383 = vrot.slane %v4345, 6
      %v4384 = vsel %vm4366, %v4382, %v4383
      %v4385 = vrot.slane %v4346, 6
      %v4386 = vrot.slane %v4347, 6
      %v4387 = vsel %vm4366, %v4385, %v4386
      %v4388 = vrot.slane %v4348, 6
      %v4389 = vrot.slane %v4349, 6
      %v4390 = vsel %vm4366, %v4388, %v4389
      %v4415 = vadd.f32 %v4284, %v4367
      %v4416 = vadd.f32 %v4285, %v4369
      %v4417 = vadd.f32 %v4286, %v4368
      %v4418 = vadd.f32 %v4287, %v4370
      %v4419 = vadd.f32 %v4288, %v4372
      %v4420 = vadd.f32 %v4289, %v4371
      %v4421 = vadd.f32 %v4290, %v4373
      %v4422 = vadd.f32 %v4291, %v4375
      %v4423 = vadd.f32 %v4292, %v4374
      %v4424 = vadd.f32 %v4293, %v4376
      %v4425 = vadd.f32 %v4294, %v4378
      %v4426 = vadd.f32 %v4295, %v4377
      %v4427 = vadd.f32 %v4296, %v4379
      %v4428 = vadd.f32 %v4297, %v4381
      %v4429 = vadd.f32 %v4298, %v4380
      %v4430 = vadd.f32 %v4299, %v4382
      %v4431 = vadd.f32 %v4300, %v4384
      %v4432 = vadd.f32 %v4301, %v4383
      %v4433 = vadd.f32 %v4302, %v4385
      %v4434 = vadd.f32 %v4303, %v4387
      %v4435 = vadd.f32 %v4304, %v4386
      %v4436 = vadd.f32 %v4305, %v4388
      %v4437 = vadd.f32 %v4306, %v4390
      %v4438 = vadd.f32 %v4307, %v4389
      %v4439 = vunpack.c.l.bf16 %v4316
      %v4440 = vunpack.c.l.bf16 %v4317
      %v4441 = vunpack.c.l.bf16 %v4318
      %v4442 = vlaneseq
      %v4443 = vshrl.u32 %v4442, 7
      %v4444 = vsub.s32 5, %v4443
      %v4445 = vrot.slane %v2865, %v4444
      %v4446 = vmul.f32 %v2927, %v4445
      %v4447 = vmul.f32 %v4325, %v4445
      %v4448 = vmul.f32 %v2930, %v4445
      %v4449 = vmul.f32 %v4326, %v4445
      %v4450 = vmul.f32 %v2933, %v4445
      %v4451 = vmul.f32 %v4327, %v4445
      %v4452 = vmul.f32 %v2936, %v4445
      %v4453 = vmul.f32 %v4328, %v4445
      %v4454 = vmul.f32 %v2939, %v4445
      %v4455 = vmul.f32 %v4329, %v4445
      %v4456 = vmul.f32 %v2994, %v4445
      %v4457 = vmul.f32 %v4439, %v4445
      %v4458 = vmul.f32 %v2997, %v4445
      %v4459 = vmul.f32 %v4440, %v4445
      %v4460 = vmul.f32 %v3000, %v4445
      %v4461 = vmul.f32 %v4441, %v4445
      %v4478 = vrot.slane %v4446, 6
      %v4479 = vrot.slane %v4447, 6
      %v4480 = vsel %vm4366, %v4478, %v4479
      %v4481 = vrot.slane %v4448, 6
      %v4482 = vrot.slane %v4449, 6
      %v4483 = vsel %vm4366, %v4481, %v4482
      %v4484 = vrot.slane %v4450, 6
      %v4485 = vrot.slane %v4451, 6
      %v4486 = vsel %vm4366, %v4484, %v4485
      %v4487 = vrot.slane %v4452, 6
      %v4488 = vrot.slane %v4453, 6
      %v4489 = vsel %vm4366, %v4487, %v4488
      %v4490 = vrot.slane %v4454, 6
      %v4491 = vrot.slane %v4455, 6
      %v4492 = vsel %vm4366, %v4490, %v4491
      %v4493 = vrot.slane %v4456, 6
      %v4494 = vrot.slane %v4457, 6
      %v4495 = vsel %vm4366, %v4493, %v4494
      %v4496 = vrot.slane %v4458, 6
      %v4497 = vrot.slane %v4459, 6
      %v4498 = vsel %vm4366, %v4496, %v4497
      %v4499 = vrot.slane %v4460, 6
      %v4500 = vrot.slane %v4461, 6
      %v4501 = vsel %vm4366, %v4499, %v4500
      %v4526 = vadd.f32 %v4415, %v4478
      %v4527 = vadd.f32 %v4416, %v4480
      %v4528 = vadd.f32 %v4417, %v4479
      %v4529 = vadd.f32 %v4418, %v4481
      %v4530 = vadd.f32 %v4419, %v4483
      %v4531 = vadd.f32 %v4420, %v4482
      %v4532 = vadd.f32 %v4421, %v4484
      %v4533 = vadd.f32 %v4422, %v4486
      %v4534 = vadd.f32 %v4423, %v4485
      %v4535 = vadd.f32 %v4424, %v4487
      %v4536 = vadd.f32 %v4425, %v4489
      %v4537 = vadd.f32 %v4426, %v4488
      %v4538 = vadd.f32 %v4427, %v4490
      %v4539 = vadd.f32 %v4428, %v4492
      %v4540 = vadd.f32 %v4429, %v4491
      %v4541 = vadd.f32 %v4430, %v4493
      %v4542 = vadd.f32 %v4431, %v4495
      %v4543 = vadd.f32 %v4432, %v4494
      %v4544 = vadd.f32 %v4433, %v4496
      %v4545 = vadd.f32 %v4434, %v4498
      %v4546 = vadd.f32 %v4435, %v4497
      %v4547 = vadd.f32 %v4436, %v4499
      %v4548 = vadd.f32 %v4437, %v4501
      %v4549 = vadd.f32 %v4438, %v4500
      %v4550 = vunpack.c.l.bf16 %v4319
      %v4551 = vunpack.c.l.bf16 %v4320
      %v4552 = vunpack.c.l.bf16 %v4321
      %v4553 = vlaneseq
      %v4554 = vshrl.u32 %v4553, 7
      %v4555 = vsub.s32 0, %v4554
      %v4556 = vrot.slane %v2866, %v4555
      %v4557 = vmul.f32 %v2936, %v4556
      %v4558 = vmul.f32 %v4328, %v4556
      %v4559 = vmul.f32 %v2939, %v4556
      %v4560 = vmul.f32 %v4329, %v4556
      %v4561 = vmul.f32 %v2994, %v4556
      %v4562 = vmul.f32 %v4439, %v4556
      %v4563 = vmul.f32 %v2997, %v4556
      %v4564 = vmul.f32 %v4440, %v4556
      %v4565 = vmul.f32 %v3000, %v4556
      %v4566 = vmul.f32 %v4441, %v4556
      %v4567 = vmul.f32 %v3055, %v4556
      %v4568 = vmul.f32 %v4550, %v4556
      %v4569 = vmul.f32 %v3058, %v4556
      %v4570 = vmul.f32 %v4551, %v4556
      %v4571 = vmul.f32 %v3061, %v4556
      %v4572 = vmul.f32 %v4552, %v4556
      %v4589 = vrot.slane %v4557, 6
      %v4590 = vrot.slane %v4558, 6
      %v4591 = vsel %vm4366, %v4589, %v4590
      %v4592 = vrot.slane %v4559, 6
      %v4593 = vrot.slane %v4560, 6
      %v4594 = vsel %vm4366, %v4592, %v4593
      %v4595 = vrot.slane %v4561, 6
      %v4596 = vrot.slane %v4562, 6
      %v4597 = vsel %vm4366, %v4595, %v4596
      %v4598 = vrot.slane %v4563, 6
      %v4599 = vrot.slane %v4564, 6
      %v4600 = vsel %vm4366, %v4598, %v4599
      %v4601 = vrot.slane %v4565, 6
      %v4602 = vrot.slane %v4566, 6
      %v4603 = vsel %vm4366, %v4601, %v4602
      %v4604 = vrot.slane %v4567, 6
      %v4605 = vrot.slane %v4568, 6
      %v4606 = vsel %vm4366, %v4604, %v4605
      %v4607 = vrot.slane %v4569, 6
      %v4608 = vrot.slane %v4570, 6
      %v4609 = vsel %vm4366, %v4607, %v4608
      %v4610 = vrot.slane %v4571, 6
      %v4611 = vrot.slane %v4572, 6
      %v4612 = vsel %vm4366, %v4610, %v4611
      %v4637 = vadd.f32 %v4526, %v4589
      %v4638 = vadd.f32 %v4527, %v4591
      %v4639 = vadd.f32 %v4528, %v4590
      %v4640 = vadd.f32 %v4529, %v4592
      %v4641 = vadd.f32 %v4530, %v4594
      %v4642 = vadd.f32 %v4531, %v4593
      %v4643 = vadd.f32 %v4532, %v4595
      %v4644 = vadd.f32 %v4533, %v4597
      %v4645 = vadd.f32 %v4534, %v4596
      %v4646 = vadd.f32 %v4535, %v4598
      %v4647 = vadd.f32 %v4536, %v4600
      %v4648 = vadd.f32 %v4537, %v4599
      %v4649 = vadd.f32 %v4538, %v4601
      %v4650 = vadd.f32 %v4539, %v4603
      %v4651 = vadd.f32 %v4540, %v4602
      %v4652 = vadd.f32 %v4541, %v4604
      %v4653 = vadd.f32 %v4542, %v4606
      %v4654 = vadd.f32 %v4543, %v4605
      %v4655 = vadd.f32 %v4544, %v4607
      %v4656 = vadd.f32 %v4545, %v4609
      %v4657 = vadd.f32 %v4546, %v4608
      %v4658 = vadd.f32 %v4547, %v4610
      %v4659 = vadd.f32 %v4548, %v4612
      %v4660 = vadd.f32 %v4549, %v4611
      %v4661 = vld [vmem:[%s555 + $0x28] sm:$0xf]
      %v4662 = vld [vmem:[%s555 + $0x38] sm:$0xf]
      %v4663 = vld [vmem:[%s555 + $0x48] sm:$0xf]
      %v4664 = vld [vmem:[%s555 + $0x58] sm:$0xf]
      %v4665 = vld [vmem:[%s555 + $0x68] sm:$0xf]
      %v4666 = vld [vmem:[%s555 + $0x78] sm:$0xf]
      %v4667 = vld [vmem:[%s555 + $0x88] sm:$0xf]
      %v4668 = vld [vmem:[%s555 + $0x98] sm:$0xf]
      %v4669 = vld [vmem:[%s555 + $0xa8] sm:$0xf]
      %v4670 = vld [vmem:[%s555 + $0xb8] sm:$0xf]
      %v4671 = vld [vmem:[%s555 + $0xc8] sm:$0xf]
      %v4672 = vld [vmem:[%s555 + $0xd8] sm:$0xf]
      %v4673 = vld [vmem:[%s555 + $0xe8] sm:$0xf]
      %v4674 = vld [vmem:[%s555 + $0xf8] sm:$0xf]
      %v4675 = vunpack.c.l.bf16 %v4661
      %v4676 = vunpack.c.l.bf16 %v4662
      %v4677 = vunpack.c.l.bf16 %v4663
      %v4678 = vunpack.c.l.bf16 %v4664
      %v4679 = vunpack.c.l.bf16 %v4665
      %v4680 = vunpack.c.l.bf16 %v4666
      %v4681 = vunpack.c.l.bf16 %v4667
      %v4682 = vunpack.c.l.bf16 %v4668
      %v4683 = vlaneseq
      %v4684 = vshrl.u32 %v4683, 7
      %v4685 = vsub.s32 2, %v4684
      %v4686 = vrot.slane %v2868, %v4685
      %v4687 = vmul.f32 %v3158, %v4686
      %v4688 = vmul.f32 %v4675, %v4686
      %v4689 = vmul.f32 %v3161, %v4686
      %v4690 = vmul.f32 %v4676, %v4686
      %v4691 = vmul.f32 %v3164, %v4686
      %v4692 = vmul.f32 %v4677, %v4686
      %v4693 = vmul.f32 %v3167, %v4686
      %v4694 = vmul.f32 %v4678, %v4686
      %v4695 = vmul.f32 %v3170, %v4686
      %v4696 = vmul.f32 %v4679, %v4686
      %v4697 = vmul.f32 %v3173, %v4686
      %v4698 = vmul.f32 %v4680, %v4686
      %v4699 = vmul.f32 %v3176, %v4686
      %v4700 = vmul.f32 %v4681, %v4686
      %v4701 = vmul.f32 %v3179, %v4686
      %v4702 = vmul.f32 %v4682, %v4686
      %v4719 = vrot.slane %v4687, 6
      %v4720 = vrot.slane %v4688, 6
      %v4721 = vsel %vm4366, %v4719, %v4720
      %v4722 = vrot.slane %v4689, 6
      %v4723 = vrot.slane %v4690, 6
      %v4724 = vsel %vm4366, %v4722, %v4723
      %v4725 = vrot.slane %v4691, 6
      %v4726 = vrot.slane %v4692, 6
      %v4727 = vsel %vm4366, %v4725, %v4726
      %v4728 = vrot.slane %v4693, 6
      %v4729 = vrot.slane %v4694, 6
      %v4730 = vsel %vm4366, %v4728, %v4729
      %v4731 = vrot.slane %v4695, 6
      %v4732 = vrot.slane %v4696, 6
      %v4733 = vsel %vm4366, %v4731, %v4732
      %v4734 = vrot.slane %v4697, 6
      %v4735 = vrot.slane %v4698, 6
      %v4736 = vsel %vm4366, %v4734, %v4735
      %v4737 = vrot.slane %v4699, 6
      %v4738 = vrot.slane %v4700, 6
      %v4739 = vsel %vm4366, %v4737, %v4738
      %v4740 = vrot.slane %v4701, 6
      %v4741 = vrot.slane %v4702, 6
      %v4742 = vsel %vm4366, %v4740, %v4741
      %v4767 = vadd.f32 %v4637, %v4719
      %v4768 = vadd.f32 %v4638, %v4721
      %v4769 = vadd.f32 %v4639, %v4720
      %v4770 = vadd.f32 %v4640, %v4722
      %v4771 = vadd.f32 %v4641, %v4724
      %v4772 = vadd.f32 %v4642, %v4723
      %v4773 = vadd.f32 %v4643, %v4725
      %v4774 = vadd.f32 %v4644, %v4727
      %v4775 = vadd.f32 %v4645, %v4726
      %v4776 = vadd.f32 %v4646, %v4728
      %v4777 = vadd.f32 %v4647, %v4730
      %v4778 = vadd.f32 %v4648, %v4729
      %v4779 = vadd.f32 %v4649, %v4731
      %v4780 = vadd.f32 %v4650, %v4733
      %v4781 = vadd.f32 %v4651, %v4732
      %v4782 = vadd.f32 %v4652, %v4734
      %v4783 = vadd.f32 %v4653, %v4736
      %v4784 = vadd.f32 %v4654, %v4735
      %v4785 = vadd.f32 %v4655, %v4737
      %v4786 = vadd.f32 %v4656, %v4739
      %v4787 = vadd.f32 %v4657, %v4738
      %v4788 = vadd.f32 %v4658, %v4740
      %v4789 = vadd.f32 %v4659, %v4742
      %v4790 = vadd.f32 %v4660, %v4741
      %v4791 = vunpack.c.l.bf16 %v4669
      %v4792 = vunpack.c.l.bf16 %v4670
      %v4793 = vunpack.c.l.bf16 %v4671
      %v4794 = vlaneseq
      %v4795 = vshrl.u32 %v4794, 7
      %v4796 = vsub.s32 5, %v4795
      %v4797 = vrot.slane %v2868, %v4796
      %v4798 = vmul.f32 %v3167, %v4797
      %v4799 = vmul.f32 %v4678, %v4797
      %v4800 = vmul.f32 %v3170, %v4797
      %v4801 = vmul.f32 %v4679, %v4797
      %v4802 = vmul.f32 %v3173, %v4797
      %v4803 = vmul.f32 %v4680, %v4797
      %v4804 = vmul.f32 %v3176, %v4797
      %v4805 = vmul.f32 %v4681, %v4797
      %v4806 = vmul.f32 %v3179, %v4797
      %v4807 = vmul.f32 %v4682, %v4797
      %v4808 = vmul.f32 %v3234, %v4797
      %v4809 = vmul.f32 %v4791, %v4797
      %v4810 = vmul.f32 %v3237, %v4797
      %v4811 = vmul.f32 %v4792, %v4797
      %v4812 = vmul.f32 %v3240, %v4797
      %v4813 = vmul.f32 %v4793, %v4797
      %v4830 = vrot.slane %v4798, 6
      %v4831 = vrot.slane %v4799, 6
      %v4832 = vsel %vm4366, %v4830, %v4831
      %v4833 = vrot.slane %v4800, 6
      %v4834 = vrot.slane %v4801, 6
      %v4835 = vsel %vm4366, %v4833, %v4834
      %v4836 = vrot.slane %v4802, 6
      %v4837 = vrot.slane %v4803, 6
      %v4838 = vsel %vm4366, %v4836, %v4837
      %v4839 = vrot.slane %v4804, 6
      %v4840 = vrot.slane %v4805, 6
      %v4841 = vsel %vm4366, %v4839, %v4840
      %v4842 = vrot.slane %v4806, 6
      %v4843 = vrot.slane %v4807, 6
      %v4844 = vsel %vm4366, %v4842, %v4843
      %v4845 = vrot.slane %v4808, 6
      %v4846 = vrot.slane %v4809, 6
      %v4847 = vsel %vm4366, %v4845, %v4846
      %v4848 = vrot.slane %v4810, 6
      %v4849 = vrot.slane %v4811, 6
      %v4850 = vsel %vm4366, %v4848, %v4849
      %v4851 = vrot.slane %v4812, 6
      %v4852 = vrot.slane %v4813, 6
      %v4853 = vsel %vm4366, %v4851, %v4852
      %v4878 = vadd.f32 %v4767, %v4830
      %v4879 = vadd.f32 %v4768, %v4832
      %v4880 = vadd.f32 %v4769, %v4831
      %v4881 = vadd.f32 %v4770, %v4833
      %v4882 = vadd.f32 %v4771, %v4835
      %v4883 = vadd.f32 %v4772, %v4834
      %v4884 = vadd.f32 %v4773, %v4836
      %v4885 = vadd.f32 %v4774, %v4838
      %v4886 = vadd.f32 %v4775, %v4837
      %v4887 = vadd.f32 %v4776, %v4839
      %v4888 = vadd.f32 %v4777, %v4841
      %v4889 = vadd.f32 %v4778, %v4840
      %v4890 = vadd.f32 %v4779, %v4842
      %v4891 = vadd.f32 %v4780, %v4844
      %v4892 = vadd.f32 %v4781, %v4843
      %v4893 = vadd.f32 %v4782, %v4845
      %v4894 = vadd.f32 %v4783, %v4847
      %v4895 = vadd.f32 %v4784, %v4846
      %v4896 = vadd.f32 %v4785, %v4848
      %v4897 = vadd.f32 %v4786, %v4850
      %v4898 = vadd.f32 %v4787, %v4849
      %v4899 = vadd.f32 %v4788, %v4851
      %v4900 = vadd.f32 %v4789, %v4853
      %v4901 = vadd.f32 %v4790, %v4852
      %v4902 = vunpack.c.l.bf16 %v4672
      %v4903 = vunpack.c.l.bf16 %v4673
      %v4904 = vunpack.c.l.bf16 %v4674
      %v4905 = vlaneseq
      %v4906 = vshrl.u32 %v4905, 7
      %v4907 = vsub.s32 0, %v4906
      %v4908 = vrot.slane %v2869, %v4907
      %v4909 = vmul.f32 %v3176, %v4908
      %v4910 = vmul.f32 %v4681, %v4908
      %v4911 = vmul.f32 %v3179, %v4908
      %v4912 = vmul.f32 %v4682, %v4908
      %v4913 = vmul.f32 %v3234, %v4908
      %v4914 = vmul.f32 %v4791, %v4908
      %v4915 = vmul.f32 %v3237, %v4908
      %v4916 = vmul.f32 %v4792, %v4908
      %v4917 = vmul.f32 %v3240, %v4908
      %v4918 = vmul.f32 %v4793, %v4908
      %v4919 = vmul.f32 %v3295, %v4908
      %v4920 = vmul.f32 %v4902, %v4908
      %v4921 = vmul.f32 %v3298, %v4908
      %v4922 = vmul.f32 %v4903, %v4908
      %v4923 = vmul.f32 %v3301, %v4908
      %v4924 = vmul.f32 %v4904, %v4908
      %v4941 = vrot.slane %v4909, 6
      %v4942 = vrot.slane %v4910, 6
      %v4943 = vsel %vm4366, %v4941, %v4942
      %v4944 = vrot.slane %v4911, 6
      %v4945 = vrot.slane %v4912, 6
      %v4946 = vsel %vm4366, %v4944, %v4945
      %v4947 = vrot.slane %v4913, 6
      %v4948 = vrot.slane %v4914, 6
      %v4949 = vsel %vm4366, %v4947, %v4948
      %v4950 = vrot.slane %v4915, 6
      %v4951 = vrot.slane %v4916, 6
      %v4952 = vsel %vm4366, %v4950, %v4951
      %v4953 = vrot.slane %v4917, 6
      %v4954 = vrot.slane %v4918, 6
      %v4955 = vsel %vm4366, %v4953, %v4954
      %v4956 = vrot.slane %v4919, 6
      %v4957 = vrot.slane %v4920, 6
      %v4958 = vsel %vm4366, %v4956, %v4957
      %v4959 = vrot.slane %v4921, 6
      %v4960 = vrot.slane %v4922, 6
      %v4961 = vsel %vm4366, %v4959, %v4960
      %v4962 = vrot.slane %v4923, 6
      %v4963 = vrot.slane %v4924, 6
      %v4964 = vsel %vm4366, %v4962, %v4963
      %v4989 = vadd.f32 %v4878, %v4941
      %v4990 = vadd.f32 %v4879, %v4943
      %v4991 = vadd.f32 %v4880, %v4942
      %v4992 = vadd.f32 %v4881, %v4944
      %v4993 = vadd.f32 %v4882, %v4946
      %v4994 = vadd.f32 %v4883, %v4945
      %v4995 = vadd.f32 %v4884, %v4947
      %v4996 = vadd.f32 %v4885, %v4949
      %v4997 = vadd.f32 %v4886, %v4948
      %v4998 = vadd.f32 %v4887, %v4950
      %v4999 = vadd.f32 %v4888, %v4952
      %v5000 = vadd.f32 %v4889, %v4951
      %v5001 = vadd.f32 %v4890, %v4953
      %v5002 = vadd.f32 %v4891, %v4955
      %v5003 = vadd.f32 %v4892, %v4954
      %v5004 = vadd.f32 %v4893, %v4956
      %v5005 = vadd.f32 %v4894, %v4958
      %v5006 = vadd.f32 %v4895, %v4957
      %v5007 = vadd.f32 %v4896, %v4959
      %v5008 = vadd.f32 %v4897, %v4961
      %v5009 = vadd.f32 %v4898, %v4960
      %v5010 = vadd.f32 %v4899, %v4962
      %v5011 = vadd.f32 %v4900, %v4964
      %v5012 = vadd.f32 %v4901, %v4963
      %v5013 = vmax.f32 %v4989, 0.0
      %v5014 = vmax.f32 %v4990, 0.0
      %v5015 = vmax.f32 %v4991, 0.0
      %v5016 = vmax.f32 %v4992, 0.0
      %v5017 = vmax.f32 %v4993, 0.0
      %v5018 = vmax.f32 %v4994, 0.0
      %v5019 = vmax.f32 %v4995, 0.0
      %v5020 = vmax.f32 %v4996, 0.0
      %v5021 = vmax.f32 %v4997, 0.0
      %v5022 = vmax.f32 %v4998, 0.0
      %v5023 = vmax.f32 %v4999, 0.0
      %v5024 = vmax.f32 %v5000, 0.0
      %v5025 = vmax.f32 %v5001, 0.0
      %v5026 = vmax.f32 %v5002, 0.0
      %v5027 = vmax.f32 %v5003, 0.0
      %v5028 = vmax.f32 %v5004, 0.0
      %v5029 = vmax.f32 %v5005, 0.0
      %v5030 = vmax.f32 %v5006, 0.0
      %v5031 = vmax.f32 %v5007, 0.0
      %v5032 = vmax.f32 %v5008, 0.0
      %v5033 = vmax.f32 %v5009, 0.0
      %v5034 = vmax.f32 %v5010, 0.0
      %v5035 = vmax.f32 %v5011, 0.0
      %v5036 = vmax.f32 %v5012, 0.0
      %v5037 = vpack.c.bf16 %v5014, %v5013
      %v5038 = vpack.c.bf16 %v5015, %v5015
      %v5039 = vpack.c.bf16 %v5017, %v5016
      %v5040 = vpack.c.bf16 %v5018, %v5018
      %v5041 = vpack.c.bf16 %v5020, %v5019
      %v5042 = vpack.c.bf16 %v5021, %v5021
      %v5043 = vpack.c.bf16 %v5023, %v5022
      %v5044 = vpack.c.bf16 %v5024, %v5024
      %v5045 = vpack.c.bf16 %v5026, %v5025
      %v5046 = vpack.c.bf16 %v5027, %v5027
      %v5047 = vpack.c.bf16 %v5029, %v5028
      %v5048 = vpack.c.bf16 %v5030, %v5030
      %v5049 = vpack.c.bf16 %v5032, %v5031
      %v5050 = vpack.c.bf16 %v5033, %v5033
      %v5051 = vpack.c.bf16 %v5035, %v5034
      %v5052 = vpack.c.bf16 %v5036, %v5036
      %vm5069 = vcmask 1046528
      %v5070 = vrot.slane %v5037, 1
      %v5071 = vrot.slane %v5038, 1
      %v5072 = vsel %vm5069, %v5070, %v5071
      %v5073 = vrot.slane %v5039, 1
      %v5074 = vrot.slane %v5040, 1
      %v5075 = vsel %vm5069, %v5073, %v5074
      %v5076 = vrot.slane %v5041, 1
      %v5077 = vrot.slane %v5042, 1
      %v5078 = vsel %vm5069, %v5076, %v5077
      %v5079 = vrot.slane %v5043, 1
      %v5080 = vrot.slane %v5044, 1
      %v5081 = vsel %vm5069, %v5079, %v5080
      %v5082 = vrot.slane %v5045, 1
      %v5083 = vrot.slane %v5046, 1
      %v5084 = vsel %vm5069, %v5082, %v5083
      %v5085 = vrot.slane %v5047, 1
      %v5086 = vrot.slane %v5048, 1
      %v5087 = vsel %vm5069, %v5085, %v5086
      %v5088 = vrot.slane %v5049, 1
      %v5089 = vrot.slane %v5050, 1
      %v5090 = vsel %vm5069, %v5088, %v5089
      %v5091 = vrot.slane %v5051, 1
      %v5092 = vrot.slane %v5052, 1
      %v5093 = vsel %vm5069, %v5091, %v5092
      %s5102 = scalar_lea.vmem %s5, 128
      %v5103 = vld [vmem:[%s5102] sm:$0xff]
      %v5104 = vld [vmem:[%s5102 + $0x8] sm:$0xff]
      %v5105 = vld [vmem:[%s5102 + $0x10] sm:$0xff]
      %v5106 = vld [vmem:[%s5102 + $0x18] sm:$0xff]
      %v5107 = vld [vmem:[%s5102 + $0x20] sm:$0xff]
      %v5108 = vld [vmem:[%s5102 + $0x28] sm:$0xff]
      %v5109 = vld [vmem:[%s5102 + $0x30] sm:$0xff]
      %v5110 = vld [vmem:[%s5102 + $0x38] sm:$0xff]
      %v5111 = vld [vmem:[%s5102 + $0x40] sm:$0xff]
      %v5112 = vld [vmem:[%s5102 + $0x48] sm:$0xff]
      %v5113 = vld [vmem:[%s5102 + $0x50] sm:$0xff]
      %v5114 = vld [vmem:[%s5102 + $0x58] sm:$0xff]
      %v5115 = vld [vmem:[%s5102 + $0x60] sm:$0xff]
      %v5116 = vld [vmem:[%s5102 + $0x68] sm:$0xff]
      %v5117 = vld [vmem:[%s5102 + $0x70] sm:$0xff]
      %v5118 = vld [vmem:[%s5102 + $0x78] sm:$0xff]
      %v5135 = vunpack.c.l.b16 %v5103
      %v5136 = vunpack.c.h.b16 %v5103
      %v5137 = vunpack.c.l.b16 %v5104
      %v5138 = vunpack.c.h.b16 %v5104
      %v5139 = vunpack.c.l.b16 %v5105
      %v5140 = vunpack.c.h.b16 %v5105
      %v5141 = vunpack.c.l.b16 %v5106
      %v5142 = vunpack.c.h.b16 %v5106
      %v5143 = vunpack.c.l.b16 %v5107
      %v5144 = vunpack.c.h.b16 %v5107
      %v5145 = vunpack.c.l.b16 %v5108
      %v5146 = vunpack.c.h.b16 %v5108
      %v5147 = vunpack.c.l.b16 %v5109
      %v5148 = vunpack.c.h.b16 %v5109
      %v5149 = vunpack.c.l.b16 %v5110
      %v5150 = vunpack.c.h.b16 %v5110
      %v5151 = vunpack.c.l.b16 %v5111
      %v5152 = vunpack.c.h.b16 %v5111
      %v5153 = vunpack.c.l.b16 %v5112
      %v5154 = vunpack.c.h.b16 %v5112
      %v5155 = vunpack.c.l.b16 %v5113
      %v5156 = vunpack.c.h.b16 %v5113
      %v5157 = vunpack.c.l.b16 %v5114
      %v5158 = vunpack.c.h.b16 %v5114
      %v5159 = vunpack.c.l.b16 %v5115
      %v5160 = vunpack.c.h.b16 %v5115
      %v5161 = vunpack.c.l.b16 %v5116
      %v5162 = vunpack.c.h.b16 %v5116
      %v5163 = vunpack.c.l.b16 %v5117
      %v5164 = vunpack.c.h.b16 %v5117
      %v5165 = vunpack.c.l.b16 %v5118
      %v5166 = vunpack.c.h.b16 %v5118
      %v5167 = vpack.c.b16 %v5137, %v5135
      %v5168 = vpack.c.b16 %v5138, %v5136
      %v5169 = vpack.c.b16 %v5141, %v5139
      %v5170 = vpack.c.b16 %v5142, %v5140
      %v5171 = vpack.c.b16 %v5145, %v5143
      %v5172 = vpack.c.b16 %v5146, %v5144
      %v5173 = vpack.c.b16 %v5149, %v5147
      %v5174 = vpack.c.b16 %v5150, %v5148
      %v5175 = vpack.c.b16 %v5153, %v5151
      %v5176 = vpack.c.b16 %v5154, %v5152
      %v5177 = vpack.c.b16 %v5157, %v5155
      %v5178 = vpack.c.b16 %v5158, %v5156
      %v5179 = vpack.c.b16 %v5161, %v5159
      %v5180 = vpack.c.b16 %v5162, %v5160
      %v5181 = vpack.c.b16 %v5165, %v5163
      %v5182 = vpack.c.b16 %v5166, %v5164
      %5199 = vmatprep.subr.bf16.mxu0 %v5168
      %5200 = vmatpush1.bf16.msra.mxu0 %v5167
      %5201 = vmatprep.subr.bf16.mxu0 %v5170
      %5202 = vmatpush1.bf16.msra.mxu0 %v5169
      %5203 = vmatprep.subr.bf16.mxu0 %v5172
      %5204 = vmatpush1.bf16.msra.mxu0 %v5171
      %5205 = vmatprep.subr.bf16.mxu0 %v5174
      %5206 = vmatpush1.bf16.msra.mxu0 %v5173
      %5207 = vmatprep.subr.bf16.mxu0 %v5176
      %5208 = vmatpush1.bf16.msra.mxu0 %v5175
      %5209 = vmatprep.subr.bf16.mxu0 %v5178
      %5210 = vmatpush1.bf16.msra.mxu0 %v5177
      %5211 = vmatprep.subr.bf16.mxu0 %v5180
      %5212 = vmatpush1.bf16.msra.mxu0 %v5179
      %5213 = vmatprep.subr.bf16.mxu0 %v5182
      %5214 = vmatpush1.bf16.msra.mxu0 %v5181
      %5215 = vmatprep.subr.bf16.mxu0 0
      %5216 = vmatpush1.bf16.msra.mxu0 0
      %5217 = vmatprep.subr.bf16.mxu0 0
      %5218 = vmatpush1.bf16.msra.mxu0 0
      %5219 = vmatprep.subr.bf16.mxu0 0
      %5220 = vmatpush1.bf16.msra.mxu0 0
      %5221 = vmatprep.subr.bf16.mxu0 0
      %5222 = vmatpush1.bf16.msra.mxu0 0
      %5223 = vmatprep.subr.bf16.mxu0 0
      %5224 = vmatpush1.bf16.msra.mxu0 0
      %5225 = vmatprep.subr.bf16.mxu0 0
      %5226 = vmatpush1.bf16.msra.mxu0 0
      %5227 = vmatprep.subr.bf16.mxu0 0
      %5228 = vmatpush1.bf16.msra.mxu0 0
      %5229 = vmatprep.subr.bf16.mxu0 0
      %5230 = vmatpush1.bf16.msra.mxu0 0
      %5231 = vmatprep.mubr.bf16.mxu0 0
      %5232 = vmatmul.mubr.bf16.gmra.mrb[0].mxu0 %v5072
      %v5233 = vpop.f32.mrb[0].mxu0
      %v5234 = vadd.f32 0.0, %v5233
      %v5235 = vpop.f32.mrb[0].mxu0
      %v5236 = vadd.f32 0.0, %v5235
      %v5237 = vpop.f32.mrb[0].mxu0
      %v5238 = vadd.f32 0.0, %v5237
      %v5239 = vpop.f32.mrb[0].mxu0
      %v5240 = vadd.f32 0.0, %v5239
      %5241 = vmatprep.mubr.bf16.mxu0 0
      %5242 = vmatmul.mubr.bf16.gmra.mrb[0].mxu0 %v5075
      %v5243 = vpop.f32.mrb[0].mxu0
      %v5244 = vadd.f32 0.0, %v5243
      %v5245 = vpop.f32.mrb[0].mxu0
      %v5246 = vadd.f32 0.0, %v5245
      %v5247 = vpop.f32.mrb[0].mxu0
      %v5248 = vadd.f32 0.0, %v5247
      %v5249 = vpop.f32.mrb[0].mxu0
      %v5250 = vadd.f32 0.0, %v5249
      %5251 = vmatprep.mubr.bf16.mxu0 0
      %5252 = vmatmul.mubr.bf16.gmra.mrb[0].mxu0 %v5078
      %v5253 = vpop.f32.mrb[0].mxu0
      %v5254 = vadd.f32 0.0, %v5253
      %v5255 = vpop.f32.mrb[0].mxu0
      %v5256 = vadd.f32 0.0, %v5255
      %v5257 = vpop.f32.mrb[0].mxu0
      %v5258 = vadd.f32 0.0, %v5257
      %v5259 = vpop.f32.mrb[0].mxu0
      %v5260 = vadd.f32 0.0, %v5259
      %5261 = vmatprep.mubr.bf16.mxu0 0
      %5262 = vmatmul.mubr.bf16.gmra.mrb[0].mxu0 %v5081
      %v5263 = vpop.f32.mrb[0].mxu0
      %v5264 = vadd.f32 0.0, %v5263
      %v5265 = vpop.f32.mrb[0].mxu0
      %v5266 = vadd.f32 0.0, %v5265
      %v5267 = vpop.f32.mrb[0].mxu0
      %v5268 = vadd.f32 0.0, %v5267
      %v5269 = vpop.f32.mrb[0].mxu0
      %v5270 = vadd.f32 0.0, %v5269
      %5271 = vmatprep.mubr.bf16.mxu0 0
      %5272 = vmatmul.mubr.bf16.gmra.mrb[0].mxu0 %v5084
      %v5273 = vpop.f32.mrb[0].mxu0
      %v5274 = vadd.f32 0.0, %v5273
      %v5275 = vpop.f32.mrb[0].mxu0
      %v5276 = vadd.f32 0.0, %v5275
      %v5277 = vpop.f32.mrb[0].mxu0
      %v5278 = vadd.f32 0.0, %v5277
      %v5279 = vpop.f32.mrb[0].mxu0
      %v5280 = vadd.f32 0.0, %v5279
      %5281 = vmatprep.mubr.bf16.mxu0 0
      %5282 = vmatmul.mubr.bf16.gmra.mrb[0].mxu0 %v5087
      %v5283 = vpop.f32.mrb[0].mxu0
      %v5284 = vadd.f32 0.0, %v5283
      %v5285 = vpop.f32.mrb[0].mxu0
      %v5286 = vadd.f32 0.0, %v5285
      %v5287 = vpop.f32.mrb[0].mxu0
      %v5288 = vadd.f32 0.0, %v5287
      %v5289 = vpop.f32.mrb[0].mxu0
      %v5290 = vadd.f32 0.0, %v5289
      %5291 = vmatprep.mubr.bf16.mxu0 0
      %5292 = vmatmul.mubr.bf16.gmra.mrb[0].mxu0 %v5090
      %v5293 = vpop.f32.mrb[0].mxu0
      %v5294 = vadd.f32 0.0, %v5293
      %v5295 = vpop.f32.mrb[0].mxu0
      %v5296 = vadd.f32 0.0, %v5295
      %v5297 = vpop.f32.mrb[0].mxu0
      %v5298 = vadd.f32 0.0, %v5297
      %v5299 = vpop.f32.mrb[0].mxu0
      %v5300 = vadd.f32 0.0, %v5299
      %5301 = vmatprep.mubr.bf16.mxu0 0
      %5302 = vmatmul.mubr.bf16.gmra.mrb[0].mxu0 %v5093
      %v5303 = vpop.f32.mrb[0].mxu0
      %v5304 = vadd.f32 0.0, %v5303
      %v5305 = vpop.f32.mrb[0].mxu0
      %v5306 = vadd.f32 0.0, %v5305
      %v5307 = vpop.f32.mrb[0].mxu0
      %v5308 = vadd.f32 0.0, %v5307
      %v5309 = vpop.f32.mrb[0].mxu0
      %v5310 = vadd.f32 0.0, %v5309
      %5311 = vdwg.mxu0
      %v5312 = vld [vmem:[#allocation2] sm:$0xff]
      %v5313 = vld [vmem:[#allocation2 + $0x8] sm:$0xff]
      %v5314 = vld [vmem:[#allocation2 + $0x10] sm:$0xff]
      %v5315 = vld [vmem:[#allocation2 + $0x18] sm:$0xff]
      %v5316 = vld [vmem:[#allocation2 + $0x20] sm:$0xff]
      %v5317 = vld [vmem:[#allocation2 + $0x28] sm:$0xff]
      %v5318 = vld [vmem:[#allocation2 + $0x30] sm:$0xff]
      %v5319 = vld [vmem:[#allocation2 + $0x38] sm:$0xff]
      %v5320 = vld [vmem:[#allocation2 + $0x40] sm:$0xff]
      %v5321 = vld [vmem:[#allocation2 + $0x48] sm:$0xff]
      %v5322 = vld [vmem:[#allocation2 + $0x50] sm:$0xff]
      %v5323 = vld [vmem:[#allocation2 + $0x58] sm:$0xff]
      %v5324 = vld [vmem:[#allocation2 + $0x60] sm:$0xff]
      %v5325 = vld [vmem:[#allocation2 + $0x68] sm:$0xff]
      %v5326 = vld [vmem:[#allocation2 + $0x70] sm:$0xff]
      %v5327 = vld [vmem:[#allocation2 + $0x78] sm:$0xff]
      %v5328 = vld [vmem:[#allocation2 + $0x80] sm:$0xff]
      %v5329 = vld [vmem:[#allocation2 + $0x88] sm:$0xff]
      %v5330 = vld [vmem:[#allocation2 + $0x90] sm:$0xff]
      %v5331 = vld [vmem:[#allocation2 + $0x98] sm:$0xff]
      %v5332 = vld [vmem:[#allocation2 + $0xa0] sm:$0xff]
      %v5333 = vld [vmem:[#allocation2 + $0xa8] sm:$0xff]
      %v5334 = vld [vmem:[#allocation2 + $0xb0] sm:$0xff]
      %v5335 = vld [vmem:[#allocation2 + $0xb8] sm:$0xff]
      %v5336 = vld [vmem:[#allocation2 + $0xc0] sm:$0xff]
      %v5337 = vld [vmem:[#allocation2 + $0xc8] sm:$0xff]
      %v5338 = vld [vmem:[#allocation2 + $0xd0] sm:$0xff]
      %v5339 = vld [vmem:[#allocation2 + $0xd8] sm:$0xff]
      %v5340 = vld [vmem:[#allocation2 + $0xe0] sm:$0xff]
      %v5341 = vld [vmem:[#allocation2 + $0xe8] sm:$0xff]
      %v5342 = vld [vmem:[#allocation2 + $0xf0] sm:$0xff]
      %v5343 = vld [vmem:[#allocation2 + $0xf8] sm:$0xff]
      %v5344 = vadd.f32 %v5312, %v5234
      %v5345 = vadd.f32 %v5313, %v5236
      %v5346 = vadd.f32 %v5314, %v5238
      %v5347 = vadd.f32 %v5315, %v5240
      %v5348 = vadd.f32 %v5316, %v5244
      %v5349 = vadd.f32 %v5317, %v5246
      %v5350 = vadd.f32 %v5318, %v5248
      %v5351 = vadd.f32 %v5319, %v5250
      %v5352 = vadd.f32 %v5320, %v5254
      %v5353 = vadd.f32 %v5321, %v5256
      %v5354 = vadd.f32 %v5322, %v5258
      %v5355 = vadd.f32 %v5323, %v5260
      %v5356 = vadd.f32 %v5324, %v5264
      %v5357 = vadd.f32 %v5325, %v5266
      %v5358 = vadd.f32 %v5326, %v5268
      %v5359 = vadd.f32 %v5327, %v5270
      %v5360 = vadd.f32 %v5328, %v5274
      %v5361 = vadd.f32 %v5329, %v5276
      %v5362 = vadd.f32 %v5330, %v5278
      %v5363 = vadd.f32 %v5331, %v5280
      %v5364 = vadd.f32 %v5332, %v5284
      %v5365 = vadd.f32 %v5333, %v5286
      %v5366 = vadd.f32 %v5334, %v5288
      %v5367 = vadd.f32 %v5335, %v5290
      %v5368 = vadd.f32 %v5336, %v5294
      %v5369 = vadd.f32 %v5337, %v5296
      %v5370 = vadd.f32 %v5338, %v5298
      %v5371 = vadd.f32 %v5339, %v5300
      %v5372 = vadd.f32 %v5340, %v5304
      %v5373 = vadd.f32 %v5341, %v5306
      %v5374 = vadd.f32 %v5342, %v5308
      %v5375 = vadd.f32 %v5343, %v5310
      %5376 = vst [vmem:[#allocation2] sm:$0xff] %v5344
      %5377 = vst [vmem:[#allocation2 + $0x8] sm:$0xff] %v5345
      %5378 = vst [vmem:[#allocation2 + $0x10] sm:$0xff] %v5346
      %5379 = vst [vmem:[#allocation2 + $0x18] sm:$0xff] %v5347
      %5380 = vst [vmem:[#allocation2 + $0x20] sm:$0xff] %v5348
      %5381 = vst [vmem:[#allocation2 + $0x28] sm:$0xff] %v5349
      %5382 = vst [vmem:[#allocation2 + $0x30] sm:$0xff] %v5350
      %5383 = vst [vmem:[#allocation2 + $0x38] sm:$0xff] %v5351
      %5384 = vst [vmem:[#allocation2 + $0x40] sm:$0xff] %v5352
      %5385 = vst [vmem:[#allocation2 + $0x48] sm:$0xff] %v5353
      %5386 = vst [vmem:[#allocation2 + $0x50] sm:$0xff] %v5354
      %5387 = vst [vmem:[#allocation2 + $0x58] sm:$0xff] %v5355
      %5388 = vst [vmem:[#allocation2 + $0x60] sm:$0xff] %v5356
      %5389 = vst [vmem:[#allocation2 + $0x68] sm:$0xff] %v5357
      %5390 = vst [vmem:[#allocation2 + $0x70] sm:$0xff] %v5358
      %5391 = vst [vmem:[#allocation2 + $0x78] sm:$0xff] %v5359
      %5392 = vst [vmem:[#allocation2 + $0x80] sm:$0xff] %v5360
      %5393 = vst [vmem:[#allocation2 + $0x88] sm:$0xff] %v5361
      %5394 = vst [vmem:[#allocation2 + $0x90] sm:$0xff] %v5362
      %5395 = vst [vmem:[#allocation2 + $0x98] sm:$0xff] %v5363
      %5396 = vst [vmem:[#allocation2 + $0xa0] sm:$0xff] %v5364
      %5397 = vst [vmem:[#allocation2 + $0xa8] sm:$0xff] %v5365
      %5398 = vst [vmem:[#allocation2 + $0xb0] sm:$0xff] %v5366
      %5399 = vst [vmem:[#allocation2 + $0xb8] sm:$0xff] %v5367
      %5400 = vst [vmem:[#allocation2 + $0xc0] sm:$0xff] %v5368
      %5401 = vst [vmem:[#allocation2 + $0xc8] sm:$0xff] %v5369
      %5402 = vst [vmem:[#allocation2 + $0xd0] sm:$0xff] %v5370
      %5403 = vst [vmem:[#allocation2 + $0xd8] sm:$0xff] %v5371
      %5404 = vst [vmem:[#allocation2 + $0xe0] sm:$0xff] %v5372
      %5405 = vst [vmem:[#allocation2 + $0xe8] sm:$0xff] %v5373
      %5406 = vst [vmem:[#allocation2 + $0xf0] sm:$0xff] %v5374
      %5407 = vst [vmem:[#allocation2 + $0xf8] sm:$0xff] %v5375
      %s5408 = scalar_lea.vmem %s2, 32
      %v5409 = vld [vmem:[%s5408] sm:$0xff]
      %v5410 = vld [vmem:[%s5408 + $0x8] sm:$0x1]
      %s5411 = scalar_lea.vmem %s3, 32
      %v5412 = vld [vmem:[%s5411] sm:$0xff]
      %v5413 = vld [vmem:[%s5411 + $0x8] sm:$0x1]
      %v5414 = vld [vmem:[%s4 + $0x2] sm:$0x1]
      %v5415 = vlaneseq
      %v5416 = vshrl.u32 %v5415, 7
      %v5417 = vsub.s32 0, %v5416
      %v5418 = vrot.slane %v5414, %v5417
      %v5419 = vld [vmem:[%s337] sm:$0xf]
      %v5420 = vld [vmem:[%s337 + $0x4] sm:$0xf]
      %v5421 = vld [vmem:[%s337 + $0x10] sm:$0xf]
      %v5422 = vld [vmem:[%s337 + $0x14] sm:$0xf]
      %v5423 = vld [vmem:[%s337 + $0x20] sm:$0xf]
      %v5424 = vld [vmem:[%s337 + $0x24] sm:$0xf]
      %v5425 = vld [vmem:[%s337 + $0x30] sm:$0xf]
      %v5426 = vld [vmem:[%s337 + $0x34] sm:$0xf]
      %v5427 = vld [vmem:[%s337 + $0x40] sm:$0xf]
      %v5428 = vld [vmem:[%s337 + $0x44] sm:$0xf]
      %v5429 = vld [vmem:[%s337 + $0x50] sm:$0xf]
      %v5430 = vld [vmem:[%s337 + $0x54] sm:$0xf]
      %v5431 = vld [vmem:[%s337 + $0x60] sm:$0xf]
      %v5432 = vld [vmem:[%s337 + $0x64] sm:$0xf]
      %v5433 = vld [vmem:[%s337 + $0x70] sm:$0xf]
      %v5434 = vld [vmem:[%s337 + $0x74] sm:$0xf]
      %v5435 = vld [vmem:[%s337 + $0x80] sm:$0xf]
      %v5436 = vld [vmem:[%s337 + $0x84] sm:$0xf]
      %v5437 = vld [vmem:[%s337 + $0x90] sm:$0xf]
      %v5438 = vld [vmem:[%s337 + $0x94] sm:$0xf]
      %v5439 = vld [vmem:[%s337 + $0xa0] sm:$0xf]
      %v5440 = vld [vmem:[%s337 + $0xa4] sm:$0xf]
      %v5441 = vld [vmem:[%s337 + $0xb0] sm:$0xf]
      %v5442 = vld [vmem:[%s337 + $0xb4] sm:$0xf]
      %v5443 = vld [vmem:[%s337 + $0xc0] sm:$0xf]
      %v5444 = vld [vmem:[%s337 + $0xc4] sm:$0xf]
      %v5445 = vld [vmem:[%s337 + $0xd0] sm:$0xf]
      %v5446 = vld [vmem:[%s337 + $0xd4] sm:$0xf]
      %v5447 = vld [vmem:[%s337 + $0xe0] sm:$0xf]
      %v5448 = vld [vmem:[%s337 + $0xe4] sm:$0xf]
      %v5449 = vld [vmem:[%s337 + $0xf0] sm:$0xf]
      %v5450 = vld [vmem:[%s337 + $0xf4] sm:$0xf]
      %v5451 = vld [vmem:[%s337 + $0x100] sm:$0xf]
      %v5452 = vld [vmem:[%s337 + $0x104] sm:$0xf]
      %v5453 = vld [vmem:[%s337 + $0x110] sm:$0xf]
      %v5454 = vld [vmem:[%s337 + $0x114] sm:$0xf]
      %v5455 = vunpack.c.l.bf16 %v5419
      %v5456 = vunpack.c.l.bf16 %v5420
      %v5457 = vunpack.c.l.bf16 %v5421
      %v5458 = vunpack.c.l.bf16 %v5422
      %v5459 = vunpack.c.l.bf16 %v5423
      %v5460 = vunpack.c.l.bf16 %v5424
      %v5461 = vunpack.c.l.bf16 %v5425
      %v5462 = vunpack.c.l.bf16 %v5426
      %v5463 = vunpack.c.l.bf16 %v5427
      %v5464 = vunpack.c.l.bf16 %v5428
      %v5465 = vunpack.c.l.bf16 %v5429
      %v5466 = vunpack.c.l.bf16 %v5430
      %v5467 = vunpack.c.l.bf16 %v5431
      %v5468 = vunpack.c.l.bf16 %v5432
      %v5469 = vunpack.c.l.bf16 %v5433
      %v5470 = vunpack.c.l.bf16 %v5434
      %v5471 = vlaneseq
      %v5472 = vshrl.u32 %v5471, 7
      %v5473 = vsub.s32 0, %v5472
      %v5474 = vrot.slane %v5409, %v5473
      %v5475 = vmul.f32 %v5455, %v5474
      %v5476 = vmul.f32 %v5456, %v5474
      %v5477 = vmul.f32 %v5457, %v5474
      %v5478 = vmul.f32 %v5458, %v5474
      %v5479 = vmul.f32 %v5459, %v5474
      %v5480 = vmul.f32 %v5460, %v5474
      %v5481 = vmul.f32 %v5461, %v5474
      %v5482 = vmul.f32 %v5462, %v5474
      %v5483 = vmul.f32 %v5463, %v5474
      %v5484 = vmul.f32 %v5464, %v5474
      %v5485 = vmul.f32 %v5465, %v5474
      %v5486 = vmul.f32 %v5466, %v5474
      %v5487 = vmul.f32 %v5467, %v5474
      %v5488 = vmul.f32 %v5468, %v5474
      %v5489 = vmul.f32 %v5469, %v5474
      %v5490 = vmul.f32 %v5470, %v5474
      %v5491 = vadd.f32 %v5418, %v5475
      %v5492 = vadd.f32 %v5418, %v5476
      %v5493 = vadd.f32 %v5418, %v5477
      %v5494 = vadd.f32 %v5418, %v5478
      %v5495 = vadd.f32 %v5418, %v5479
      %v5496 = vadd.f32 %v5418, %v5480
      %v5497 = vadd.f32 %v5418, %v5481
      %v5498 = vadd.f32 %v5418, %v5482
      %v5499 = vadd.f32 %v5418, %v5483
      %v5500 = vadd.f32 %v5418, %v5484
      %v5501 = vadd.f32 %v5418, %v5485
      %v5502 = vadd.f32 %v5418, %v5486
      %v5503 = vadd.f32 %v5418, %v5487
      %v5504 = vadd.f32 %v5418, %v5488
      %v5505 = vadd.f32 %v5418, %v5489
      %v5506 = vadd.f32 %v5418, %v5490
      %v5507 = vunpack.c.l.bf16 %v5435
      %v5508 = vunpack.c.l.bf16 %v5436
      %v5509 = vunpack.c.l.bf16 %v5437
      %v5510 = vunpack.c.l.bf16 %v5438
      %v5511 = vunpack.c.l.bf16 %v5439
      %v5512 = vunpack.c.l.bf16 %v5440
      %v5513 = vunpack.c.l.bf16 %v5441
      %v5514 = vunpack.c.l.bf16 %v5442
      %v5515 = vunpack.c.l.bf16 %v5443
      %v5516 = vunpack.c.l.bf16 %v5444
      %v5517 = vlaneseq
      %v5518 = vshrl.u32 %v5517, 7
      %v5519 = vsub.s32 3, %v5518
      %v5520 = vrot.slane %v5409, %v5519
      %v5521 = vmul.f32 %v5465, %v5520
      %v5522 = vmul.f32 %v5466, %v5520
      %v5523 = vmul.f32 %v5467, %v5520
      %v5524 = vmul.f32 %v5468, %v5520
      %v5525 = vmul.f32 %v5469, %v5520
      %v5526 = vmul.f32 %v5470, %v5520
      %v5527 = vmul.f32 %v5507, %v5520
      %v5528 = vmul.f32 %v5508, %v5520
      %v5529 = vmul.f32 %v5509, %v5520
      %v5530 = vmul.f32 %v5510, %v5520
      %v5531 = vmul.f32 %v5511, %v5520
      %v5532 = vmul.f32 %v5512, %v5520
      %v5533 = vmul.f32 %v5513, %v5520
      %v5534 = vmul.f32 %v5514, %v5520
      %v5535 = vmul.f32 %v5515, %v5520
      %v5536 = vmul.f32 %v5516, %v5520
      %v5537 = vadd.f32 %v5491, %v5521
      %v5538 = vadd.f32 %v5492, %v5522
      %v5539 = vadd.f32 %v5493, %v5523
      %v5540 = vadd.f32 %v5494, %v5524
      %v5541 = vadd.f32 %v5495, %v5525
      %v5542 = vadd.f32 %v5496, %v5526
      %v5543 = vadd.f32 %v5497, %v5527
      %v5544 = vadd.f32 %v5498, %v5528
      %v5545 = vadd.f32 %v5499, %v5529
      %v5546 = vadd.f32 %v5500, %v5530
      %v5547 = vadd.f32 %v5501, %v5531
      %v5548 = vadd.f32 %v5502, %v5532
      %v5549 = vadd.f32 %v5503, %v5533
      %v5550 = vadd.f32 %v5504, %v5534
      %v5551 = vadd.f32 %v5505, %v5535
      %v5552 = vadd.f32 %v5506, %v5536
      %v5553 = vunpack.c.l.bf16 %v5445
      %v5554 = vunpack.c.l.bf16 %v5446
      %v5555 = vunpack.c.l.bf16 %v5447
      %v5556 = vunpack.c.l.bf16 %v5448
      %v5557 = vunpack.c.l.bf16 %v5449
      %v5558 = vunpack.c.l.bf16 %v5450
      %v5559 = vunpack.c.l.bf16 %v5451
      %v5560 = vunpack.c.l.bf16 %v5452
      %v5561 = vunpack.c.l.bf16 %v5453
      %v5562 = vunpack.c.l.bf16 %v5454
      %v5563 = vlaneseq
      %v5564 = vshrl.u32 %v5563, 7
      %v5565 = vsub.s32 6, %v5564
      %v5566 = vrot.slane %v5409, %v5565
      %v5567 = vmul.f32 %v5511, %v5566
      %v5568 = vmul.f32 %v5512, %v5566
      %v5569 = vmul.f32 %v5513, %v5566
      %v5570 = vmul.f32 %v5514, %v5566
      %v5571 = vmul.f32 %v5515, %v5566
      %v5572 = vmul.f32 %v5516, %v5566
      %v5573 = vmul.f32 %v5553, %v5566
      %v5574 = vmul.f32 %v5554, %v5566
      %v5575 = vmul.f32 %v5555, %v5566
      %v5576 = vmul.f32 %v5556, %v5566
      %v5577 = vmul.f32 %v5557, %v5566
      %v5578 = vmul.f32 %v5558, %v5566
      %v5579 = vmul.f32 %v5559, %v5566
      %v5580 = vmul.f32 %v5560, %v5566
      %v5581 = vmul.f32 %v5561, %v5566
      %v5582 = vmul.f32 %v5562, %v5566
      %v5583 = vadd.f32 %v5537, %v5567
      %v5584 = vadd.f32 %v5538, %v5568
      %v5585 = vadd.f32 %v5539, %v5569
      %v5586 = vadd.f32 %v5540, %v5570
      %v5587 = vadd.f32 %v5541, %v5571
      %v5588 = vadd.f32 %v5542, %v5572
      %v5589 = vadd.f32 %v5543, %v5573
      %v5590 = vadd.f32 %v5544, %v5574
      %v5591 = vadd.f32 %v5545, %v5575
      %v5592 = vadd.f32 %v5546, %v5576
      %v5593 = vadd.f32 %v5547, %v5577
      %v5594 = vadd.f32 %v5548, %v5578
      %v5595 = vadd.f32 %v5549, %v5579
      %v5596 = vadd.f32 %v5550, %v5580
      %v5597 = vadd.f32 %v5551, %v5581
      %v5598 = vadd.f32 %v5552, %v5582
      %v5599 = vld [vmem:[%s555] sm:$0xf]
      %v5600 = vld [vmem:[%s555 + $0x4] sm:$0xf]
      %v5601 = vld [vmem:[%s555 + $0x10] sm:$0xf]
      %v5602 = vld [vmem:[%s555 + $0x14] sm:$0xf]
      %v5603 = vld [vmem:[%s555 + $0x20] sm:$0xf]
      %v5604 = vld [vmem:[%s555 + $0x24] sm:$0xf]
      %v5605 = vld [vmem:[%s555 + $0x30] sm:$0xf]
      %v5606 = vld [vmem:[%s555 + $0x34] sm:$0xf]
      %v5607 = vld [vmem:[%s555 + $0x40] sm:$0xf]
      %v5608 = vld [vmem:[%s555 + $0x44] sm:$0xf]
      %v5609 = vld [vmem:[%s555 + $0x50] sm:$0xf]
      %v5610 = vld [vmem:[%s555 + $0x54] sm:$0xf]
      %v5611 = vld [vmem:[%s555 + $0x60] sm:$0xf]
      %v5612 = vld [vmem:[%s555 + $0x64] sm:$0xf]
      %v5613 = vld [vmem:[%s555 + $0x70] sm:$0xf]
      %v5614 = vld [vmem:[%s555 + $0x74] sm:$0xf]
      %v5615 = vld [vmem:[%s555 + $0x80] sm:$0xf]
      %v5616 = vld [vmem:[%s555 + $0x84] sm:$0xf]
      %v5617 = vld [vmem:[%s555 + $0x90] sm:$0xf]
      %v5618 = vld [vmem:[%s555 + $0x94] sm:$0xf]
      %v5619 = vld [vmem:[%s555 + $0xa0] sm:$0xf]
      %v5620 = vld [vmem:[%s555 + $0xa4] sm:$0xf]
      %v5621 = vld [vmem:[%s555 + $0xb0] sm:$0xf]
      %v5622 = vld [vmem:[%s555 + $0xb4] sm:$0xf]
      %v5623 = vld [vmem:[%s555 + $0xc0] sm:$0xf]
      %v5624 = vld [vmem:[%s555 + $0xc4] sm:$0xf]
      %v5625 = vld [vmem:[%s555 + $0xd0] sm:$0xf]
      %v5626 = vld [vmem:[%s555 + $0xd4] sm:$0xf]
      %v5627 = vld [vmem:[%s555 + $0xe0] sm:$0xf]
      %v5628 = vld [vmem:[%s555 + $0xe4] sm:$0xf]
      %v5629 = vld [vmem:[%s555 + $0xf0] sm:$0xf]
      %v5630 = vld [vmem:[%s555 + $0xf4] sm:$0xf]
      %v5631 = vld [vmem:[%s555 + $0x100] sm:$0xf]
      %v5632 = vld [vmem:[%s555 + $0x104] sm:$0xf]
      %v5633 = vld [vmem:[%s555 + $0x110] sm:$0xf]
      %v5634 = vld [vmem:[%s555 + $0x114] sm:$0xf]
      %v5635 = vunpack.c.l.bf16 %v5599
      %v5636 = vunpack.c.l.bf16 %v5600
      %v5637 = vunpack.c.l.bf16 %v5601
      %v5638 = vunpack.c.l.bf16 %v5602
      %v5639 = vunpack.c.l.bf16 %v5603
      %v5640 = vunpack.c.l.bf16 %v5604
      %v5641 = vunpack.c.l.bf16 %v5605
      %v5642 = vunpack.c.l.bf16 %v5606
      %v5643 = vunpack.c.l.bf16 %v5607
      %v5644 = vunpack.c.l.bf16 %v5608
      %v5645 = vunpack.c.l.bf16 %v5609
      %v5646 = vunpack.c.l.bf16 %v5610
      %v5647 = vunpack.c.l.bf16 %v5611
      %v5648 = vunpack.c.l.bf16 %v5612
      %v5649 = vunpack.c.l.bf16 %v5613
      %v5650 = vunpack.c.l.bf16 %v5614
      %v5651 = vlaneseq
      %v5652 = vshrl.u32 %v5651, 7
      %v5653 = vsub.s32 0, %v5652
      %v5654 = vrot.slane %v5412, %v5653
      %v5655 = vmul.f32 %v5635, %v5654
      %v5656 = vmul.f32 %v5636, %v5654
      %v5657 = vmul.f32 %v5637, %v5654
      %v5658 = vmul.f32 %v5638, %v5654
      %v5659 = vmul.f32 %v5639, %v5654
      %v5660 = vmul.f32 %v5640, %v5654
      %v5661 = vmul.f32 %v5641, %v5654
      %v5662 = vmul.f32 %v5642, %v5654
      %v5663 = vmul.f32 %v5643, %v5654
      %v5664 = vmul.f32 %v5644, %v5654
      %v5665 = vmul.f32 %v5645, %v5654
      %v5666 = vmul.f32 %v5646, %v5654
      %v5667 = vmul.f32 %v5647, %v5654
      %v5668 = vmul.f32 %v5648, %v5654
      %v5669 = vmul.f32 %v5649, %v5654
      %v5670 = vmul.f32 %v5650, %v5654
      %v5671 = vadd.f32 %v5583, %v5655
      %v5672 = vadd.f32 %v5584, %v5656
      %v5673 = vadd.f32 %v5585, %v5657
      %v5674 = vadd.f32 %v5586, %v5658
      %v5675 = vadd.f32 %v5587, %v5659
      %v5676 = vadd.f32 %v5588, %v5660
      %v5677 = vadd.f32 %v5589, %v5661
      %v5678 = vadd.f32 %v5590, %v5662
      %v5679 = vadd.f32 %v5591, %v5663
      %v5680 = vadd.f32 %v5592, %v5664
      %v5681 = vadd.f32 %v5593, %v5665
      %v5682 = vadd.f32 %v5594, %v5666
      %v5683 = vadd.f32 %v5595, %v5667
      %v5684 = vadd.f32 %v5596, %v5668
      %v5685 = vadd.f32 %v5597, %v5669
      %v5686 = vadd.f32 %v5598, %v5670
      %v5687 = vunpack.c.l.bf16 %v5615
      %v5688 = vunpack.c.l.bf16 %v5616
      %v5689 = vunpack.c.l.bf16 %v5617
      %v5690 = vunpack.c.l.bf16 %v5618
      %v5691 = vunpack.c.l.bf16 %v5619
      %v5692 = vunpack.c.l.bf16 %v5620
      %v5693 = vunpack.c.l.bf16 %v5621
      %v5694 = vunpack.c.l.bf16 %v5622
      %v5695 = vunpack.c.l.bf16 %v5623
      %v5696 = vunpack.c.l.bf16 %v5624
      %v5697 = vlaneseq
      %v5698 = vshrl.u32 %v5697, 7
      %v5699 = vsub.s32 3, %v5698
      %v5700 = vrot.slane %v5412, %v5699
      %v5701 = vmul.f32 %v5645, %v5700
      %v5702 = vmul.f32 %v5646, %v5700
      %v5703 = vmul.f32 %v5647, %v5700
      %v5704 = vmul.f32 %v5648, %v5700
      %v5705 = vmul.f32 %v5649, %v5700
      %v5706 = vmul.f32 %v5650, %v5700
      %v5707 = vmul.f32 %v5687, %v5700
      %v5708 = vmul.f32 %v5688, %v5700
      %v5709 = vmul.f32 %v5689, %v5700
      %v5710 = vmul.f32 %v5690, %v5700
      %v5711 = vmul.f32 %v5691, %v5700
      %v5712 = vmul.f32 %v5692, %v5700
      %v5713 = vmul.f32 %v5693, %v5700
      %v5714 = vmul.f32 %v5694, %v5700
      %v5715 = vmul.f32 %v5695, %v5700
      %v5716 = vmul.f32 %v5696, %v5700
      %v5717 = vadd.f32 %v5671, %v5701
      %v5718 = vadd.f32 %v5672, %v5702
      %v5719 = vadd.f32 %v5673, %v5703
      %v5720 = vadd.f32 %v5674, %v5704
      %v5721 = vadd.f32 %v5675, %v5705
      %v5722 = vadd.f32 %v5676, %v5706
      %v5723 = vadd.f32 %v5677, %v5707
      %v5724 = vadd.f32 %v5678, %v5708
      %v5725 = vadd.f32 %v5679, %v5709
      %v5726 = vadd.f32 %v5680, %v5710
      %v5727 = vadd.f32 %v5681, %v5711
      %v5728 = vadd.f32 %v5682, %v5712
      %v5729 = vadd.f32 %v5683, %v5713
      %v5730 = vadd.f32 %v5684, %v5714
      %v5731 = vadd.f32 %v5685, %v5715
      %v5732 = vadd.f32 %v5686, %v5716
      %v5733 = vunpack.c.l.bf16 %v5625
      %v5734 = vunpack.c.l.bf16 %v5626
      %v5735 = vunpack.c.l.bf16 %v5627
      %v5736 = vunpack.c.l.bf16 %v5628
      %v5737 = vunpack.c.l.bf16 %v5629
      %v5738 = vunpack.c.l.bf16 %v5630
      %v5739 = vunpack.c.l.bf16 %v5631
      %v5740 = vunpack.c.l.bf16 %v5632
      %v5741 = vunpack.c.l.bf16 %v5633
      %v5742 = vunpack.c.l.bf16 %v5634
      %v5743 = vlaneseq
      %v5744 = vshrl.u32 %v5743, 7
      %v5745 = vsub.s32 6, %v5744
      %v5746 = vrot.slane %v5412, %v5745
      %v5747 = vmul.f32 %v5691, %v5746
      %v5748 = vmul.f32 %v5692, %v5746
      %v5749 = vmul.f32 %v5693, %v5746
      %v5750 = vmul.f32 %v5694, %v5746
      %v5751 = vmul.f32 %v5695, %v5746
      %v5752 = vmul.f32 %v5696, %v5746
      %v5753 = vmul.f32 %v5733, %v5746
      %v5754 = vmul.f32 %v5734, %v5746
      %v5755 = vmul.f32 %v5735, %v5746
      %v5756 = vmul.f32 %v5736, %v5746
      %v5757 = vmul.f32 %v5737, %v5746
      %v5758 = vmul.f32 %v5738, %v5746
      %v5759 = vmul.f32 %v5739, %v5746
      %v5760 = vmul.f32 %v5740, %v5746
      %v5761 = vmul.f32 %v5741, %v5746
      %v5762 = vmul.f32 %v5742, %v5746
      %v5763 = vadd.f32 %v5717, %v5747
      %v5764 = vadd.f32 %v5718, %v5748
      %v5765 = vadd.f32 %v5719, %v5749
      %v5766 = vadd.f32 %v5720, %v5750
      %v5767 = vadd.f32 %v5721, %v5751
      %v5768 = vadd.f32 %v5722, %v5752
      %v5769 = vadd.f32 %v5723, %v5753
      %v5770 = vadd.f32 %v5724, %v5754
      %v5771 = vadd.f32 %v5725, %v5755
      %v5772 = vadd.f32 %v5726, %v5756
      %v5773 = vadd.f32 %v5727, %v5757
      %v5774 = vadd.f32 %v5728, %v5758
      %v5775 = vadd.f32 %v5729, %v5759
      %v5776 = vadd.f32 %v5730, %v5760
      %v5777 = vadd.f32 %v5731, %v5761
      %v5778 = vadd.f32 %v5732, %v5762
      %v5779 = vld [vmem:[%s337] sm:$0xc]
      %v5780 = vld [vmem:[%s337 + $0x8] sm:$0x7]
      %v5781 = vld [vmem:[%s337 + $0x10] sm:$0xc]
      %v5782 = vld [vmem:[%s337 + $0x18] sm:$0x7]
      %v5783 = vld [vmem:[%s337 + $0x20] sm:$0xc]
      %v5784 = vld [vmem:[%s337 + $0x28] sm:$0x7]
      %v5785 = vld [vmem:[%s337 + $0x30] sm:$0xc]
      %v5786 = vld [vmem:[%s337 + $0x38] sm:$0x7]
      %v5787 = vld [vmem:[%s337 + $0x40] sm:$0xc]
      %v5788 = vld [vmem:[%s337 + $0x48] sm:$0x7]
      %v5789 = vld [vmem:[%s337 + $0x50] sm:$0xc]
      %v5790 = vld [vmem:[%s337 + $0x58] sm:$0x7]
      %v5791 = vld [vmem:[%s337 + $0x60] sm:$0xc]
      %v5792 = vld [vmem:[%s337 + $0x68] sm:$0x7]
      %v5793 = vld [vmem:[%s337 + $0x70] sm:$0xc]
      %v5794 = vld [vmem:[%s337 + $0x78] sm:$0x7]
      %v5795 = vld [vmem:[%s337 + $0x80] sm:$0xc]
      %v5796 = vld [vmem:[%s337 + $0x88] sm:$0x7]
      %v5797 = vld [vmem:[%s337 + $0x90] sm:$0xc]
      %v5798 = vld [vmem:[%s337 + $0x98] sm:$0x7]
      %v5799 = vld [vmem:[%s337 + $0xa0] sm:$0xc]
      %v5800 = vld [vmem:[%s337 + $0xa8] sm:$0x7]
      %v5801 = vld [vmem:[%s337 + $0xb0] sm:$0xc]
      %v5802 = vld [vmem:[%s337 + $0xb8] sm:$0x7]
      %v5803 = vld [vmem:[%s337 + $0xc0] sm:$0xc]
      %v5804 = vld [vmem:[%s337 + $0xc8] sm:$0x7]
      %v5805 = vld [vmem:[%s337 + $0xd0] sm:$0xc]
      %v5806 = vld [vmem:[%s337 + $0xd8] sm:$0x7]
      %v5807 = vld [vmem:[%s337 + $0xe0] sm:$0xc]
      %v5808 = vld [vmem:[%s337 + $0xe8] sm:$0x7]
      %v5809 = vld [vmem:[%s337 + $0xf0] sm:$0xc]
      %v5810 = vld [vmem:[%s337 + $0xf8] sm:$0x7]
      %v5811 = vld [vmem:[%s337 + $0x100] sm:$0xc]
      %v5812 = vld [vmem:[%s337 + $0x108] sm:$0x7]
      %v5813 = vld [vmem:[%s337 + $0x110] sm:$0xc]
      %v5814 = vld [vmem:[%s337 + $0x118] sm:$0x7]
      %v5815 = vunpack.c.l.bf16 %v5779
      %v5816 = vunpack.c.l.bf16 %v5780
      %v5817 = vunpack.c.l.bf16 %v5781
      %v5818 = vunpack.c.l.bf16 %v5782
      %v5819 = vunpack.c.l.bf16 %v5783
      %v5820 = vunpack.c.l.bf16 %v5784
      %v5821 = vunpack.c.l.bf16 %v5785
      %v5822 = vunpack.c.l.bf16 %v5786
      %v5823 = vunpack.c.l.bf16 %v5787
      %v5824 = vunpack.c.l.bf16 %v5788
      %v5825 = vunpack.c.l.bf16 %v5789
      %v5826 = vunpack.c.l.bf16 %v5790
      %v5827 = vunpack.c.l.bf16 %v5791
      %v5828 = vunpack.c.l.bf16 %v5792
      %v5829 = vunpack.c.l.bf16 %v5793
      %v5830 = vunpack.c.l.bf16 %v5794
      %v5831 = vlaneseq
      %v5832 = vshrl.u32 %v5831, 7
      %v5833 = vsub.s32 1, %v5832
      %v5834 = vrot.slane %v5409, %v5833
      %v5835 = vmul.f32 %v5815, %v5834
      %v5836 = vmul.f32 %v5456, %v5834
      %v5837 = vmul.f32 %v5816, %v5834
      %v5838 = vmul.f32 %v5817, %v5834
      %v5839 = vmul.f32 %v5458, %v5834
      %v5840 = vmul.f32 %v5818, %v5834
      %v5841 = vmul.f32 %v5819, %v5834
      %v5842 = vmul.f32 %v5460, %v5834
      %v5843 = vmul.f32 %v5820, %v5834
      %v5844 = vmul.f32 %v5821, %v5834
      %v5845 = vmul.f32 %v5462, %v5834
      %v5846 = vmul.f32 %v5822, %v5834
      %v5847 = vmul.f32 %v5823, %v5834
      %v5848 = vmul.f32 %v5464, %v5834
      %v5849 = vmul.f32 %v5824, %v5834
      %v5850 = vmul.f32 %v5825, %v5834
      %v5851 = vmul.f32 %v5466, %v5834
      %v5852 = vmul.f32 %v5826, %v5834
      %v5853 = vmul.f32 %v5827, %v5834
      %v5854 = vmul.f32 %v5468, %v5834
      %v5855 = vmul.f32 %v5828, %v5834
      %v5856 = vmul.f32 %v5829, %v5834
      %v5857 = vmul.f32 %v5470, %v5834
      %v5858 = vmul.f32 %v5830, %v5834
      %vm5883 = vcmask 1042432
      %v5884 = vrot.slane %v5835, 5
      %v5885 = vrot.slane %v5836, 5
      %v5886 = vsel %vm5883, %v5884, %v5885
      %v5887 = vrot.slane %v5837, 5
      %v5888 = vsel %vm5883, %v5885, %v5887
      %v5889 = vrot.slane %v5838, 5
      %v5890 = vrot.slane %v5839, 5
      %v5891 = vsel %vm5883, %v5889, %v5890
      %v5892 = vrot.slane %v5840, 5
      %v5893 = vsel %vm5883, %v5890, %v5892
      %v5894 = vrot.slane %v5841, 5
      %v5895 = vrot.slane %v5842, 5
      %v5896 = vsel %vm5883, %v5894, %v5895
      %v5897 = vrot.slane %v5843, 5
      %v5898 = vsel %vm5883, %v5895, %v5897
      %v5899 = vrot.slane %v5844, 5
      %v5900 = vrot.slane %v5845, 5
      %v5901 = vsel %vm5883, %v5899, %v5900
      %v5902 = vrot.slane %v5846, 5
      %v5903 = vsel %vm5883, %v5900, %v5902
      %v5904 = vrot.slane %v5847, 5
      %v5905 = vrot.slane %v5848, 5
      %v5906 = vsel %vm5883, %v5904, %v5905
      %v5907 = vrot.slane %v5849, 5
      %v5908 = vsel %vm5883, %v5905, %v5907
      %v5909 = vrot.slane %v5850, 5
      %v5910 = vrot.slane %v5851, 5
      %v5911 = vsel %vm5883, %v5909, %v5910
      %v5912 = vrot.slane %v5852, 5
      %v5913 = vsel %vm5883, %v5910, %v5912
      %v5914 = vrot.slane %v5853, 5
      %v5915 = vrot.slane %v5854, 5
      %v5916 = vsel %vm5883, %v5914, %v5915
      %v5917 = vrot.slane %v5855, 5
      %v5918 = vsel %vm5883, %v5915, %v5917
      %v5919 = vrot.slane %v5856, 5
      %v5920 = vrot.slane %v5857, 5
      %v5921 = vsel %vm5883, %v5919, %v5920
      %v5922 = vrot.slane %v5858, 5
      %v5923 = vsel %vm5883, %v5920, %v5922
      %v5940 = vadd.f32 %v5763, %v5886
      %v5941 = vadd.f32 %v5764, %v5888
      %v5942 = vadd.f32 %v5765, %v5891
      %v5943 = vadd.f32 %v5766, %v5893
      %v5944 = vadd.f32 %v5767, %v5896
      %v5945 = vadd.f32 %v5768, %v5898
      %v5946 = vadd.f32 %v5769, %v5901
      %v5947 = vadd.f32 %v5770, %v5903
      %v5948 = vadd.f32 %v5771, %v5906
      %v5949 = vadd.f32 %v5772, %v5908
      %v5950 = vadd.f32 %v5773, %v5911
      %v5951 = vadd.f32 %v5774, %v5913
      %v5952 = vadd.f32 %v5775, %v5916
      %v5953 = vadd.f32 %v5776, %v5918
      %v5954 = vadd.f32 %v5777, %v5921
      %v5955 = vadd.f32 %v5778, %v5923
      %v5956 = vunpack.c.l.bf16 %v5795
      %v5957 = vunpack.c.l.bf16 %v5796
      %v5958 = vunpack.c.l.bf16 %v5797
      %v5959 = vunpack.c.l.bf16 %v5798
      %v5960 = vunpack.c.l.bf16 %v5799
      %v5961 = vunpack.c.l.bf16 %v5800
      %v5962 = vunpack.c.l.bf16 %v5801
      %v5963 = vunpack.c.l.bf16 %v5802
      %v5964 = vunpack.c.l.bf16 %v5803
      %v5965 = vunpack.c.l.bf16 %v5804
      %v5966 = vlaneseq
      %v5967 = vshrl.u32 %v5966, 7
      %v5968 = vsub.s32 4, %v5967
      %v5969 = vrot.slane %v5409, %v5968
      %v5970 = vmul.f32 %v5825, %v5969
      %v5971 = vmul.f32 %v5466, %v5969
      %v5972 = vmul.f32 %v5826, %v5969
      %v5973 = vmul.f32 %v5827, %v5969
      %v5974 = vmul.f32 %v5468, %v5969
      %v5975 = vmul.f32 %v5828, %v5969
      %v5976 = vmul.f32 %v5829, %v5969
      %v5977 = vmul.f32 %v5470, %v5969
      %v5978 = vmul.f32 %v5830, %v5969
      %v5979 = vmul.f32 %v5956, %v5969
      %v5980 = vmul.f32 %v5508, %v5969
      %v5981 = vmul.f32 %v5957, %v5969
      %v5982 = vmul.f32 %v5958, %v5969
      %v5983 = vmul.f32 %v5510, %v5969
      %v5984 = vmul.f32 %v5959, %v5969
      %v5985 = vmul.f32 %v5960, %v5969
      %v5986 = vmul.f32 %v5512, %v5969
      %v5987 = vmul.f32 %v5961, %v5969
      %v5988 = vmul.f32 %v5962, %v5969
      %v5989 = vmul.f32 %v5514, %v5969
      %v5990 = vmul.f32 %v5963, %v5969
      %v5991 = vmul.f32 %v5964, %v5969
      %v5992 = vmul.f32 %v5516, %v5969
      %v5993 = vmul.f32 %v5965, %v5969
      %v6018 = vrot.slane %v5970, 5
      %v6019 = vrot.slane %v5971, 5
      %v6020 = vsel %vm5883, %v6018, %v6019
      %v6021 = vrot.slane %v5972, 5
      %v6022 = vsel %vm5883, %v6019, %v6021
      %v6023 = vrot.slane %v5973, 5
      %v6024 = vrot.slane %v5974, 5
      %v6025 = vsel %vm5883, %v6023, %v6024
      %v6026 = vrot.slane %v5975, 5
      %v6027 = vsel %vm5883, %v6024, %v6026
      %v6028 = vrot.slane %v5976, 5
      %v6029 = vrot.slane %v5977, 5
      %v6030 = vsel %vm5883, %v6028, %v6029
      %v6031 = vrot.slane %v5978, 5
      %v6032 = vsel %vm5883, %v6029, %v6031
      %v6033 = vrot.slane %v5979, 5
      %v6034 = vrot.slane %v5980, 5
      %v6035 = vsel %vm5883, %v6033, %v6034
      %v6036 = vrot.slane %v5981, 5
      %v6037 = vsel %vm5883, %v6034, %v6036
      %v6038 = vrot.slane %v5982, 5
      %v6039 = vrot.slane %v5983, 5
      %v6040 = vsel %vm5883, %v6038, %v6039
      %v6041 = vrot.slane %v5984, 5
      %v6042 = vsel %vm5883, %v6039, %v6041
      %v6043 = vrot.slane %v5985, 5
      %v6044 = vrot.slane %v5986, 5
      %v6045 = vsel %vm5883, %v6043, %v6044
      %v6046 = vrot.slane %v5987, 5
      %v6047 = vsel %vm5883, %v6044, %v6046
      %v6048 = vrot.slane %v5988, 5
      %v6049 = vrot.slane %v5989, 5
      %v6050 = vsel %vm5883, %v6048, %v6049
      %v6051 = vrot.slane %v5990, 5
      %v6052 = vsel %vm5883, %v6049, %v6051
      %v6053 = vrot.slane %v5991, 5
      %v6054 = vrot.slane %v5992, 5
      %v6055 = vsel %vm5883, %v6053, %v6054
      %v6056 = vrot.slane %v5993, 5
      %v6057 = vsel %vm5883, %v6054, %v6056
      %v6074 = vadd.f32 %v5940, %v6020
      %v6075 = vadd.f32 %v5941, %v6022
      %v6076 = vadd.f32 %v5942, %v6025
      %v6077 = vadd.f32 %v5943, %v6027
      %v6078 = vadd.f32 %v5944, %v6030
      %v6079 = vadd.f32 %v5945, %v6032
      %v6080 = vadd.f32 %v5946, %v6035
      %v6081 = vadd.f32 %v5947, %v6037
      %v6082 = vadd.f32 %v5948, %v6040
      %v6083 = vadd.f32 %v5949, %v6042
      %v6084 = vadd.f32 %v5950, %v6045
      %v6085 = vadd.f32 %v5951, %v6047
      %v6086 = vadd.f32 %v5952, %v6050
      %v6087 = vadd.f32 %v5953, %v6052
      %v6088 = vadd.f32 %v5954, %v6055
      %v6089 = vadd.f32 %v5955, %v6057
      %v6090 = vunpack.c.l.bf16 %v5805
      %v6091 = vunpack.c.l.bf16 %v5806
      %v6092 = vunpack.c.l.bf16 %v5807
      %v6093 = vunpack.c.l.bf16 %v5808
      %v6094 = vunpack.c.l.bf16 %v5809
      %v6095 = vunpack.c.l.bf16 %v5810
      %v6096 = vunpack.c.l.bf16 %v5811
      %v6097 = vunpack.c.l.bf16 %v5812
      %v6098 = vunpack.c.l.bf16 %v5813
      %v6099 = vunpack.c.l.bf16 %v5814
      %v6100 = vlaneseq
      %v6101 = vshrl.u32 %v6100, 7
      %v6102 = vsub.s32 7, %v6101
      %v6103 = vrot.slane %v5409, %v6102
      %v6104 = vmul.f32 %v5960, %v6103
      %v6105 = vmul.f32 %v5512, %v6103
      %v6106 = vmul.f32 %v5961, %v6103
      %v6107 = vmul.f32 %v5962, %v6103
      %v6108 = vmul.f32 %v5514, %v6103
      %v6109 = vmul.f32 %v5963, %v6103
      %v6110 = vmul.f32 %v5964, %v6103
      %v6111 = vmul.f32 %v5516, %v6103
      %v6112 = vmul.f32 %v5965, %v6103
      %v6113 = vmul.f32 %v6090, %v6103
      %v6114 = vmul.f32 %v5554, %v6103
      %v6115 = vmul.f32 %v6091, %v6103
      %v6116 = vmul.f32 %v6092, %v6103
      %v6117 = vmul.f32 %v5556, %v6103
      %v6118 = vmul.f32 %v6093, %v6103
      %v6119 = vmul.f32 %v6094, %v6103
      %v6120 = vmul.f32 %v5558, %v6103
      %v6121 = vmul.f32 %v6095, %v6103
      %v6122 = vmul.f32 %v6096, %v6103
      %v6123 = vmul.f32 %v5560, %v6103
      %v6124 = vmul.f32 %v6097, %v6103
      %v6125 = vmul.f32 %v6098, %v6103
      %v6126 = vmul.f32 %v5562, %v6103
      %v6127 = vmul.f32 %v6099, %v6103
      %v6152 = vrot.slane %v6104, 5
      %v6153 = vrot.slane %v6105, 5
      %v6154 = vsel %vm5883, %v6152, %v6153
      %v6155 = vrot.slane %v6106, 5
      %v6156 = vsel %vm5883, %v6153, %v6155
      %v6157 = vrot.slane %v6107, 5
      %v6158 = vrot.slane %v6108, 5
      %v6159 = vsel %vm5883, %v6157, %v6158
      %v6160 = vrot.slane %v6109, 5
      %v6161 = vsel %vm5883, %v6158, %v6160
      %v6162 = vrot.slane %v6110, 5
      %v6163 = vrot.slane %v6111, 5
      %v6164 = vsel %vm5883, %v6162, %v6163
      %v6165 = vrot.slane %v6112, 5
      %v6166 = vsel %vm5883, %v6163, %v6165
      %v6167 = vrot.slane %v6113, 5
      %v6168 = vrot.slane %v6114, 5
      %v6169 = vsel %vm5883, %v6167, %v6168
      %v6170 = vrot.slane %v6115, 5
      %v6171 = vsel %vm5883, %v6168, %v6170
      %v6172 = vrot.slane %v6116, 5
      %v6173 = vrot.slane %v6117, 5
      %v6174 = vsel %vm5883, %v6172, %v6173
      %v6175 = vrot.slane %v6118, 5
      %v6176 = vsel %vm5883, %v6173, %v6175
      %v6177 = vrot.slane %v6119, 5
      %v6178 = vrot.slane %v6120, 5
      %v6179 = vsel %vm5883, %v6177, %v6178
      %v6180 = vrot.slane %v6121, 5
      %v6181 = vsel %vm5883, %v6178, %v6180
      %v6182 = vrot.slane %v6122, 5
      %v6183 = vrot.slane %v6123, 5
      %v6184 = vsel %vm5883, %v6182, %v6183
      %v6185 = vrot.slane %v6124, 5
      %v6186 = vsel %vm5883, %v6183, %v6185
      %v6187 = vrot.slane %v6125, 5
      %v6188 = vrot.slane %v6126, 5
      %v6189 = vsel %vm5883, %v6187, %v6188
      %v6190 = vrot.slane %v6127, 5
      %v6191 = vsel %vm5883, %v6188, %v6190
      %v6208 = vadd.f32 %v6074, %v6154
      %v6209 = vadd.f32 %v6075, %v6156
      %v6210 = vadd.f32 %v6076, %v6159
      %v6211 = vadd.f32 %v6077, %v6161
      %v6212 = vadd.f32 %v6078, %v6164
      %v6213 = vadd.f32 %v6079, %v6166
      %v6214 = vadd.f32 %v6080, %v6169
      %v6215 = vadd.f32 %v6081, %v6171
      %v6216 = vadd.f32 %v6082, %v6174
      %v6217 = vadd.f32 %v6083, %v6176
      %v6218 = vadd.f32 %v6084, %v6179
      %v6219 = vadd.f32 %v6085, %v6181
      %v6220 = vadd.f32 %v6086, %v6184
      %v6221 = vadd.f32 %v6087, %v6186
      %v6222 = vadd.f32 %v6088, %v6189
      %v6223 = vadd.f32 %v6089, %v6191
      %v6224 = vld [vmem:[%s555] sm:$0xc]
      %v6225 = vld [vmem:[%s555 + $0x8] sm:$0x7]
      %v6226 = vld [vmem:[%s555 + $0x10] sm:$0xc]
      %v6227 = vld [vmem:[%s555 + $0x18] sm:$0x7]
      %v6228 = vld [vmem:[%s555 + $0x20] sm:$0xc]
      %v6229 = vld [vmem:[%s555 + $0x28] sm:$0x7]
      %v6230 = vld [vmem:[%s555 + $0x30] sm:$0xc]
      %v6231 = vld [vmem:[%s555 + $0x38] sm:$0x7]
      %v6232 = vld [vmem:[%s555 + $0x40] sm:$0xc]
      %v6233 = vld [vmem:[%s555 + $0x48] sm:$0x7]
      %v6234 = vld [vmem:[%s555 + $0x50] sm:$0xc]
      %v6235 = vld [vmem:[%s555 + $0x58] sm:$0x7]
      %v6236 = vld [vmem:[%s555 + $0x60] sm:$0xc]
      %v6237 = vld [vmem:[%s555 + $0x68] sm:$0x7]
      %v6238 = vld [vmem:[%s555 + $0x70] sm:$0xc]
      %v6239 = vld [vmem:[%s555 + $0x78] sm:$0x7]
      %v6240 = vld [vmem:[%s555 + $0x80] sm:$0xc]
      %v6241 = vld [vmem:[%s555 + $0x88] sm:$0x7]
      %v6242 = vld [vmem:[%s555 + $0x90] sm:$0xc]
      %v6243 = vld [vmem:[%s555 + $0x98] sm:$0x7]
      %v6244 = vld [vmem:[%s555 + $0xa0] sm:$0xc]
      %v6245 = vld [vmem:[%s555 + $0xa8] sm:$0x7]
      %v6246 = vld [vmem:[%s555 + $0xb0] sm:$0xc]
      %v6247 = vld [vmem:[%s555 + $0xb8] sm:$0x7]
      %v6248 = vld [vmem:[%s555 + $0xc0] sm:$0xc]
      %v6249 = vld [vmem:[%s555 + $0xc8] sm:$0x7]
      %v6250 = vld [vmem:[%s555 + $0xd0] sm:$0xc]
      %v6251 = vld [vmem:[%s555 + $0xd8] sm:$0x7]
      %v6252 = vld [vmem:[%s555 + $0xe0] sm:$0xc]
      %v6253 = vld [vmem:[%s555 + $0xe8] sm:$0x7]
      %v6254 = vld [vmem:[%s555 + $0xf0] sm:$0xc]
      %v6255 = vld [vmem:[%s555 + $0xf8] sm:$0x7]
      %v6256 = vld [vmem:[%s555 + $0x100] sm:$0xc]
      %v6257 = vld [vmem:[%s555 + $0x108] sm:$0x7]
      %v6258 = vld [vmem:[%s555 + $0x110] sm:$0xc]
      %v6259 = vld [vmem:[%s555 + $0x118] sm:$0x7]
      %v6260 = vunpack.c.l.bf16 %v6224
      %v6261 = vunpack.c.l.bf16 %v6225
      %v6262 = vunpack.c.l.bf16 %v6226
      %v6263 = vunpack.c.l.bf16 %v6227
      %v6264 = vunpack.c.l.bf16 %v6228
      %v6265 = vunpack.c.l.bf16 %v6229
      %v6266 = vunpack.c.l.bf16 %v6230
      %v6267 = vunpack.c.l.bf16 %v6231
      %v6268 = vunpack.c.l.bf16 %v6232
      %v6269 = vunpack.c.l.bf16 %v6233
      %v6270 = vunpack.c.l.bf16 %v6234
      %v6271 = vunpack.c.l.bf16 %v6235
      %v6272 = vunpack.c.l.bf16 %v6236
      %v6273 = vunpack.c.l.bf16 %v6237
      %v6274 = vunpack.c.l.bf16 %v6238
      %v6275 = vunpack.c.l.bf16 %v6239
      %v6276 = vlaneseq
      %v6277 = vshrl.u32 %v6276, 7
      %v6278 = vsub.s32 1, %v6277
      %v6279 = vrot.slane %v5412, %v6278
      %v6280 = vmul.f32 %v6260, %v6279
      %v6281 = vmul.f32 %v5636, %v6279
      %v6282 = vmul.f32 %v6261, %v6279
      %v6283 = vmul.f32 %v6262, %v6279
      %v6284 = vmul.f32 %v5638, %v6279
      %v6285 = vmul.f32 %v6263, %v6279
      %v6286 = vmul.f32 %v6264, %v6279
      %v6287 = vmul.f32 %v5640, %v6279
      %v6288 = vmul.f32 %v6265, %v6279
      %v6289 = vmul.f32 %v6266, %v6279
      %v6290 = vmul.f32 %v5642, %v6279
      %v6291 = vmul.f32 %v6267, %v6279
      %v6292 = vmul.f32 %v6268, %v6279
      %v6293 = vmul.f32 %v5644, %v6279
      %v6294 = vmul.f32 %v6269, %v6279
      %v6295 = vmul.f32 %v6270, %v6279
      %v6296 = vmul.f32 %v5646, %v6279
      %v6297 = vmul.f32 %v6271, %v6279
      %v6298 = vmul.f32 %v6272, %v6279
      %v6299 = vmul.f32 %v5648, %v6279
      %v6300 = vmul.f32 %v6273, %v6279
      %v6301 = vmul.f32 %v6274, %v6279
      %v6302 = vmul.f32 %v5650, %v6279
      %v6303 = vmul.f32 %v6275, %v6279
      %v6328 = vrot.slane %v6280, 5
      %v6329 = vrot.slane %v6281, 5
      %v6330 = vsel %vm5883, %v6328, %v6329
      %v6331 = vrot.slane %v6282, 5
      %v6332 = vsel %vm5883, %v6329, %v6331
      %v6333 = vrot.slane %v6283, 5
      %v6334 = vrot.slane %v6284, 5
      %v6335 = vsel %vm5883, %v6333, %v6334
      %v6336 = vrot.slane %v6285, 5
      %v6337 = vsel %vm5883, %v6334, %v6336
      %v6338 = vrot.slane %v6286, 5
      %v6339 = vrot.slane %v6287, 5
      %v6340 = vsel %vm5883, %v6338, %v6339
      %v6341 = vrot.slane %v6288, 5
      %v6342 = vsel %vm5883, %v6339, %v6341
      %v6343 = vrot.slane %v6289, 5
      %v6344 = vrot.slane %v6290, 5
      %v6345 = vsel %vm5883, %v6343, %v6344
      %v6346 = vrot.slane %v6291, 5
      %v6347 = vsel %vm5883, %v6344, %v6346
      %v6348 = vrot.slane %v6292, 5
      %v6349 = vrot.slane %v6293, 5
      %v6350 = vsel %vm5883, %v6348, %v6349
      %v6351 = vrot.slane %v6294, 5
      %v6352 = vsel %vm5883, %v6349, %v6351
      %v6353 = vrot.slane %v6295, 5
      %v6354 = vrot.slane %v6296, 5
      %v6355 = vsel %vm5883, %v6353, %v6354
      %v6356 = vrot.slane %v6297, 5
      %v6357 = vsel %vm5883, %v6354, %v6356
      %v6358 = vrot.slane %v6298, 5
      %v6359 = vrot.slane %v6299, 5
      %v6360 = vsel %vm5883, %v6358, %v6359
      %v6361 = vrot.slane %v6300, 5
      %v6362 = vsel %vm5883, %v6359, %v6361
      %v6363 = vrot.slane %v6301, 5
      %v6364 = vrot.slane %v6302, 5
      %v6365 = vsel %vm5883, %v6363, %v6364
      %v6366 = vrot.slane %v6303, 5
      %v6367 = vsel %vm5883, %v6364, %v6366
      %v6384 = vadd.f32 %v6208, %v6330
      %v6385 = vadd.f32 %v6209, %v6332
      %v6386 = vadd.f32 %v6210, %v6335
      %v6387 = vadd.f32 %v6211, %v6337
      %v6388 = vadd.f32 %v6212, %v6340
      %v6389 = vadd.f32 %v6213, %v6342
      %v6390 = vadd.f32 %v6214, %v6345
      %v6391 = vadd.f32 %v6215, %v6347
      %v6392 = vadd.f32 %v6216, %v6350
      %v6393 = vadd.f32 %v6217, %v6352
      %v6394 = vadd.f32 %v6218, %v6355
      %v6395 = vadd.f32 %v6219, %v6357
      %v6396 = vadd.f32 %v6220, %v6360
      %v6397 = vadd.f32 %v6221, %v6362
      %v6398 = vadd.f32 %v6222, %v6365
      %v6399 = vadd.f32 %v6223, %v6367
      %v6400 = vunpack.c.l.bf16 %v6240
      %v6401 = vunpack.c.l.bf16 %v6241
      %v6402 = vunpack.c.l.bf16 %v6242
      %v6403 = vunpack.c.l.bf16 %v6243
      %v6404 = vunpack.c.l.bf16 %v6244
      %v6405 = vunpack.c.l.bf16 %v6245
      %v6406 = vunpack.c.l.bf16 %v6246
      %v6407 = vunpack.c.l.bf16 %v6247
      %v6408 = vunpack.c.l.bf16 %v6248
      %v6409 = vunpack.c.l.bf16 %v6249
      %v6410 = vlaneseq
      %v6411 = vshrl.u32 %v6410, 7
      %v6412 = vsub.s32 4, %v6411
      %v6413 = vrot.slane %v5412, %v6412
      %v6414 = vmul.f32 %v6270, %v6413
      %v6415 = vmul.f32 %v5646, %v6413
      %v6416 = vmul.f32 %v6271, %v6413
      %v6417 = vmul.f32 %v6272, %v6413
      %v6418 = vmul.f32 %v5648, %v6413
      %v6419 = vmul.f32 %v6273, %v6413
      %v6420 = vmul.f32 %v6274, %v6413
      %v6421 = vmul.f32 %v5650, %v6413
      %v6422 = vmul.f32 %v6275, %v6413
      %v6423 = vmul.f32 %v6400, %v6413
      %v6424 = vmul.f32 %v5688, %v6413
      %v6425 = vmul.f32 %v6401, %v6413
      %v6426 = vmul.f32 %v6402, %v6413
      %v6427 = vmul.f32 %v5690, %v6413
      %v6428 = vmul.f32 %v6403, %v6413
      %v6429 = vmul.f32 %v6404, %v6413
      %v6430 = vmul.f32 %v5692, %v6413
      %v6431 = vmul.f32 %v6405, %v6413
      %v6432 = vmul.f32 %v6406, %v6413
      %v6433 = vmul.f32 %v5694, %v6413
      %v6434 = vmul.f32 %v6407, %v6413
      %v6435 = vmul.f32 %v6408, %v6413
      %v6436 = vmul.f32 %v5696, %v6413
      %v6437 = vmul.f32 %v6409, %v6413
      %v6462 = vrot.slane %v6414, 5
      %v6463 = vrot.slane %v6415, 5
      %v6464 = vsel %vm5883, %v6462, %v6463
      %v6465 = vrot.slane %v6416, 5
      %v6466 = vsel %vm5883, %v6463, %v6465
      %v6467 = vrot.slane %v6417, 5
      %v6468 = vrot.slane %v6418, 5
      %v6469 = vsel %vm5883, %v6467, %v6468
      %v6470 = vrot.slane %v6419, 5
      %v6471 = vsel %vm5883, %v6468, %v6470
      %v6472 = vrot.slane %v6420, 5
      %v6473 = vrot.slane %v6421, 5
      %v6474 = vsel %vm5883, %v6472, %v6473
      %v6475 = vrot.slane %v6422, 5
      %v6476 = vsel %vm5883, %v6473, %v6475
      %v6477 = vrot.slane %v6423, 5
      %v6478 = vrot.slane %v6424, 5
      %v6479 = vsel %vm5883, %v6477, %v6478
      %v6480 = vrot.slane %v6425, 5
      %v6481 = vsel %vm5883, %v6478, %v6480
      %v6482 = vrot.slane %v6426, 5
      %v6483 = vrot.slane %v6427, 5
      %v6484 = vsel %vm5883, %v6482, %v6483
      %v6485 = vrot.slane %v6428, 5
      %v6486 = vsel %vm5883, %v6483, %v6485
      %v6487 = vrot.slane %v6429, 5
      %v6488 = vrot.slane %v6430, 5
      %v6489 = vsel %vm5883, %v6487, %v6488
      %v6490 = vrot.slane %v6431, 5
      %v6491 = vsel %vm5883, %v6488, %v6490
      %v6492 = vrot.slane %v6432, 5
      %v6493 = vrot.slane %v6433, 5
      %v6494 = vsel %vm5883, %v6492, %v6493
      %v6495 = vrot.slane %v6434, 5
      %v6496 = vsel %vm5883, %v6493, %v6495
      %v6497 = vrot.slane %v6435, 5
      %v6498 = vrot.slane %v6436, 5
      %v6499 = vsel %vm5883, %v6497, %v6498
      %v6500 = vrot.slane %v6437, 5
      %v6501 = vsel %vm5883, %v6498, %v6500
      %v6518 = vadd.f32 %v6384, %v6464
      %v6519 = vadd.f32 %v6385, %v6466
      %v6520 = vadd.f32 %v6386, %v6469
      %v6521 = vadd.f32 %v6387, %v6471
      %v6522 = vadd.f32 %v6388, %v6474
      %v6523 = vadd.f32 %v6389, %v6476
      %v6524 = vadd.f32 %v6390, %v6479
      %v6525 = vadd.f32 %v6391, %v6481
      %v6526 = vadd.f32 %v6392, %v6484
      %v6527 = vadd.f32 %v6393, %v6486
      %v6528 = vadd.f32 %v6394, %v6489
      %v6529 = vadd.f32 %v6395, %v6491
      %v6530 = vadd.f32 %v6396, %v6494
      %v6531 = vadd.f32 %v6397, %v6496
      %v6532 = vadd.f32 %v6398, %v6499
      %v6533 = vadd.f32 %v6399, %v6501
      %v6534 = vunpack.c.l.bf16 %v6250
      %v6535 = vunpack.c.l.bf16 %v6251
      %v6536 = vunpack.c.l.bf16 %v6252
      %v6537 = vunpack.c.l.bf16 %v6253
      %v6538 = vunpack.c.l.bf16 %v6254
      %v6539 = vunpack.c.l.bf16 %v6255
      %v6540 = vunpack.c.l.bf16 %v6256
      %v6541 = vunpack.c.l.bf16 %v6257
      %v6542 = vunpack.c.l.bf16 %v6258
      %v6543 = vunpack.c.l.bf16 %v6259
      %v6544 = vlaneseq
      %v6545 = vshrl.u32 %v6544, 7
      %v6546 = vsub.s32 7, %v6545
      %v6547 = vrot.slane %v5412, %v6546
      %v6548 = vmul.f32 %v6404, %v6547
      %v6549 = vmul.f32 %v5692, %v6547
      %v6550 = vmul.f32 %v6405, %v6547
      %v6551 = vmul.f32 %v6406, %v6547
      %v6552 = vmul.f32 %v5694, %v6547
      %v6553 = vmul.f32 %v6407, %v6547
      %v6554 = vmul.f32 %v6408, %v6547
      %v6555 = vmul.f32 %v5696, %v6547
      %v6556 = vmul.f32 %v6409, %v6547
      %v6557 = vmul.f32 %v6534, %v6547
      %v6558 = vmul.f32 %v5734, %v6547
      %v6559 = vmul.f32 %v6535, %v6547
      %v6560 = vmul.f32 %v6536, %v6547
      %v6561 = vmul.f32 %v5736, %v6547
      %v6562 = vmul.f32 %v6537, %v6547
      %v6563 = vmul.f32 %v6538, %v6547
      %v6564 = vmul.f32 %v5738, %v6547
      %v6565 = vmul.f32 %v6539, %v6547
      %v6566 = vmul.f32 %v6540, %v6547
      %v6567 = vmul.f32 %v5740, %v6547
      %v6568 = vmul.f32 %v6541, %v6547
      %v6569 = vmul.f32 %v6542, %v6547
      %v6570 = vmul.f32 %v5742, %v6547
      %v6571 = vmul.f32 %v6543, %v6547
      %v6596 = vrot.slane %v6548, 5
      %v6597 = vrot.slane %v6549, 5
      %v6598 = vsel %vm5883, %v6596, %v6597
      %v6599 = vrot.slane %v6550, 5
      %v6600 = vsel %vm5883, %v6597, %v6599
      %v6601 = vrot.slane %v6551, 5
      %v6602 = vrot.slane %v6552, 5
      %v6603 = vsel %vm5883, %v6601, %v6602
      %v6604 = vrot.slane %v6553, 5
      %v6605 = vsel %vm5883, %v6602, %v6604
      %v6606 = vrot.slane %v6554, 5
      %v6607 = vrot.slane %v6555, 5
      %v6608 = vsel %vm5883, %v6606, %v6607
      %v6609 = vrot.slane %v6556, 5
      %v6610 = vsel %vm5883, %v6607, %v6609
      %v6611 = vrot.slane %v6557, 5
      %v6612 = vrot.slane %v6558, 5
      %v6613 = vsel %vm5883, %v6611, %v6612
      %v6614 = vrot.slane %v6559, 5
      %v6615 = vsel %vm5883, %v6612, %v6614
      %v6616 = vrot.slane %v6560, 5
      %v6617 = vrot.slane %v6561, 5
      %v6618 = vsel %vm5883, %v6616, %v6617
      %v6619 = vrot.slane %v6562, 5
      %v6620 = vsel %vm5883, %v6617, %v6619
      %v6621 = vrot.slane %v6563, 5
      %v6622 = vrot.slane %v6564, 5
      %v6623 = vsel %vm5883, %v6621, %v6622
      %v6624 = vrot.slane %v6565, 5
      %v6625 = vsel %vm5883, %v6622, %v6624
      %v6626 = vrot.slane %v6566, 5
      %v6627 = vrot.slane %v6567, 5
      %v6628 = vsel %vm5883, %v6626, %v6627
      %v6629 = vrot.slane %v6568, 5
      %v6630 = vsel %vm5883, %v6627, %v6629
      %v6631 = vrot.slane %v6569, 5
      %v6632 = vrot.slane %v6570, 5
      %v6633 = vsel %vm5883, %v6631, %v6632
      %v6634 = vrot.slane %v6571, 5
      %v6635 = vsel %vm5883, %v6632, %v6634
      %v6652 = vadd.f32 %v6518, %v6598
      %v6653 = vadd.f32 %v6519, %v6600
      %v6654 = vadd.f32 %v6520, %v6603
      %v6655 = vadd.f32 %v6521, %v6605
      %v6656 = vadd.f32 %v6522, %v6608
      %v6657 = vadd.f32 %v6523, %v6610
      %v6658 = vadd.f32 %v6524, %v6613
      %v6659 = vadd.f32 %v6525, %v6615
      %v6660 = vadd.f32 %v6526, %v6618
      %v6661 = vadd.f32 %v6527, %v6620
      %v6662 = vadd.f32 %v6528, %v6623
      %v6663 = vadd.f32 %v6529, %v6625
      %v6664 = vadd.f32 %v6530, %v6628
      %v6665 = vadd.f32 %v6531, %v6630
      %v6666 = vadd.f32 %v6532, %v6633
      %v6667 = vadd.f32 %v6533, %v6635
      %v6668 = vld [vmem:[%s337 + $0x4] sm:$0xe]
      %v6669 = vld [vmem:[%s337 + $0x8] sm:$0xf]
      %v6670 = vld [vmem:[%s337 + $0xc] sm:$0x1]
      %v6671 = vld [vmem:[%s337 + $0x14] sm:$0xe]
      %v6672 = vld [vmem:[%s337 + $0x18] sm:$0xf]
      %v6673 = vld [vmem:[%s337 + $0x1c] sm:$0x1]
      %v6674 = vld [vmem:[%s337 + $0x24] sm:$0xe]
      %v6675 = vld [vmem:[%s337 + $0x28] sm:$0xf]
      %v6676 = vld [vmem:[%s337 + $0x2c] sm:$0x1]
      %v6677 = vld [vmem:[%s337 + $0x34] sm:$0xe]
      %v6678 = vld [vmem:[%s337 + $0x38] sm:$0xf]
      %v6679 = vld [vmem:[%s337 + $0x3c] sm:$0x1]
      %v6680 = vld [vmem:[%s337 + $0x44] sm:$0xe]
      %v6681 = vld [vmem:[%s337 + $0x48] sm:$0xf]
      %v6682 = vld [vmem:[%s337 + $0x4c] sm:$0x1]
      %v6683 = vld [vmem:[%s337 + $0x54] sm:$0xe]
      %v6684 = vld [vmem:[%s337 + $0x58] sm:$0xf]
      %v6685 = vld [vmem:[%s337 + $0x5c] sm:$0x1]
      %v6686 = vld [vmem:[%s337 + $0x64] sm:$0xe]
      %v6687 = vld [vmem:[%s337 + $0x68] sm:$0xf]
      %v6688 = vld [vmem:[%s337 + $0x6c] sm:$0x1]
      %v6689 = vld [vmem:[%s337 + $0x74] sm:$0xe]
      %v6690 = vld [vmem:[%s337 + $0x78] sm:$0xf]
      %v6691 = vld [vmem:[%s337 + $0x7c] sm:$0x1]
      %v6692 = vld [vmem:[%s337 + $0x84] sm:$0xe]
      %v6693 = vld [vmem:[%s337 + $0x88] sm:$0xf]
      %v6694 = vld [vmem:[%s337 + $0x8c] sm:$0x1]
      %v6695 = vld [vmem:[%s337 + $0x94] sm:$0xe]
      %v6696 = vld [vmem:[%s337 + $0x98] sm:$0xf]
      %v6697 = vld [vmem:[%s337 + $0x9c] sm:$0x1]
      %v6698 = vld [vmem:[%s337 + $0xa4] sm:$0xe]
      %v6699 = vld [vmem:[%s337 + $0xa8] sm:$0xf]
      %v6700 = vld [vmem:[%s337 + $0xac] sm:$0x1]
      %v6701 = vld [vmem:[%s337 + $0xb4] sm:$0xe]
      %v6702 = vld [vmem:[%s337 + $0xb8] sm:$0xf]
      %v6703 = vld [vmem:[%s337 + $0xbc] sm:$0x1]
      %v6704 = vld [vmem:[%s337 + $0xc4] sm:$0xe]
      %v6705 = vld [vmem:[%s337 + $0xc8] sm:$0xf]
      %v6706 = vld [vmem:[%s337 + $0xcc] sm:$0x1]
      %v6707 = vld [vmem:[%s337 + $0xd4] sm:$0xe]
      %v6708 = vld [vmem:[%s337 + $0xd8] sm:$0xf]
      %v6709 = vld [vmem:[%s337 + $0xdc] sm:$0x1]
      %v6710 = vld [vmem:[%s337 + $0xe4] sm:$0xe]
      %v6711 = vld [vmem:[%s337 + $0xe8] sm:$0xf]
      %v6712 = vld [vmem:[%s337 + $0xec] sm:$0x1]
      %v6713 = vld [vmem:[%s337 + $0xf4] sm:$0xe]
      %v6714 = vld [vmem:[%s337 + $0xf8] sm:$0xf]
      %v6715 = vld [vmem:[%s337 + $0xfc] sm:$0x1]
      %v6716 = vld [vmem:[%s337 + $0x104] sm:$0xe]
      %v6717 = vld [vmem:[%s337 + $0x108] sm:$0xf]
      %v6718 = vld [vmem:[%s337 + $0x10c] sm:$0x1]
      %v6719 = vld [vmem:[%s337 + $0x114] sm:$0xe]
      %v6720 = vld [vmem:[%s337 + $0x118] sm:$0xf]
      %v6721 = vld [vmem:[%s337 + $0x11c] sm:$0x1]
      %v6722 = vunpack.c.l.bf16 %v6668
      %v6723 = vunpack.c.l.bf16 %v6669
      %v6724 = vunpack.c.l.bf16 %v6670
      %v6725 = vunpack.c.l.bf16 %v6671
      %v6726 = vunpack.c.l.bf16 %v6672
      %v6727 = vunpack.c.l.bf16 %v6673
      %v6728 = vunpack.c.l.bf16 %v6674
      %v6729 = vunpack.c.l.bf16 %v6675
      %v6730 = vunpack.c.l.bf16 %v6676
      %v6731 = vunpack.c.l.bf16 %v6677
      %v6732 = vunpack.c.l.bf16 %v6678
      %v6733 = vunpack.c.l.bf16 %v6679
      %v6734 = vunpack.c.l.bf16 %v6680
      %v6735 = vunpack.c.l.bf16 %v6681
      %v6736 = vunpack.c.l.bf16 %v6682
      %v6737 = vunpack.c.l.bf16 %v6683
      %v6738 = vunpack.c.l.bf16 %v6684
      %v6739 = vunpack.c.l.bf16 %v6685
      %v6740 = vunpack.c.l.bf16 %v6686
      %v6741 = vunpack.c.l.bf16 %v6687
      %v6742 = vunpack.c.l.bf16 %v6688
      %v6743 = vunpack.c.l.bf16 %v6689
      %v6744 = vunpack.c.l.bf16 %v6690
      %v6745 = vunpack.c.l.bf16 %v6691
      %v6746 = vlaneseq
      %v6747 = vshrl.u32 %v6746, 7
      %v6748 = vsub.s32 2, %v6747
      %v6749 = vrot.slane %v5409, %v6748
      %v6750 = vmul.f32 %v6722, %v6749
      %v6751 = vmul.f32 %v6723, %v6749
      %v6752 = vmul.f32 %v6724, %v6749
      %v6753 = vmul.f32 %v6725, %v6749
      %v6754 = vmul.f32 %v6726, %v6749
      %v6755 = vmul.f32 %v6727, %v6749
      %v6756 = vmul.f32 %v6728, %v6749
      %v6757 = vmul.f32 %v6729, %v6749
      %v6758 = vmul.f32 %v6730, %v6749
      %v6759 = vmul.f32 %v6731, %v6749
      %v6760 = vmul.f32 %v6732, %v6749
      %v6761 = vmul.f32 %v6733, %v6749
      %v6762 = vmul.f32 %v6734, %v6749
      %v6763 = vmul.f32 %v6735, %v6749
      %v6764 = vmul.f32 %v6736, %v6749
      %v6765 = vmul.f32 %v6737, %v6749
      %v6766 = vmul.f32 %v6738, %v6749
      %v6767 = vmul.f32 %v6739, %v6749
      %v6768 = vmul.f32 %v6740, %v6749
      %v6769 = vmul.f32 %v6741, %v6749
      %v6770 = vmul.f32 %v6742, %v6749
      %v6771 = vmul.f32 %v6743, %v6749
      %v6772 = vmul.f32 %v6744, %v6749
      %v6773 = vmul.f32 %v6745, %v6749
      %v6798 = vrot.slane %v6750, 2
      %v6799 = vrot.slane %v6751, 2
      %v6800 = vsel %vm1723, %v6798, %v6799
      %v6801 = vrot.slane %v6752, 2
      %v6802 = vsel %vm1723, %v6799, %v6801
      %v6803 = vrot.slane %v6753, 2
      %v6804 = vrot.slane %v6754, 2
      %v6805 = vsel %vm1723, %v6803, %v6804
      %v6806 = vrot.slane %v6755, 2
      %v6807 = vsel %vm1723, %v6804, %v6806
      %v6808 = vrot.slane %v6756, 2
      %v6809 = vrot.slane %v6757, 2
      %v6810 = vsel %vm1723, %v6808, %v6809
      %v6811 = vrot.slane %v6758, 2
      %v6812 = vsel %vm1723, %v6809, %v6811
      %v6813 = vrot.slane %v6759, 2
      %v6814 = vrot.slane %v6760, 2
      %v6815 = vsel %vm1723, %v6813, %v6814
      %v6816 = vrot.slane %v6761, 2
      %v6817 = vsel %vm1723, %v6814, %v6816
      %v6818 = vrot.slane %v6762, 2
      %v6819 = vrot.slane %v6763, 2
      %v6820 = vsel %vm1723, %v6818, %v6819
      %v6821 = vrot.slane %v6764, 2
      %v6822 = vsel %vm1723, %v6819, %v6821
      %v6823 = vrot.slane %v6765, 2
      %v6824 = vrot.slane %v6766, 2
      %v6825 = vsel %vm1723, %v6823, %v6824
      %v6826 = vrot.slane %v6767, 2
      %v6827 = vsel %vm1723, %v6824, %v6826
      %v6828 = vrot.slane %v6768, 2
      %v6829 = vrot.slane %v6769, 2
      %v6830 = vsel %vm1723, %v6828, %v6829
      %v6831 = vrot.slane %v6770, 2
      %v6832 = vsel %vm1723, %v6829, %v6831
      %v6833 = vrot.slane %v6771, 2
      %v6834 = vrot.slane %v6772, 2
      %v6835 = vsel %vm1723, %v6833, %v6834
      %v6836 = vrot.slane %v6773, 2
      %v6837 = vsel %vm1723, %v6834, %v6836
      %v6854 = vadd.f32 %v6652, %v6800
      %v6855 = vadd.f32 %v6653, %v6802
      %v6856 = vadd.f32 %v6654, %v6805
      %v6857 = vadd.f32 %v6655, %v6807
      %v6858 = vadd.f32 %v6656, %v6810
      %v6859 = vadd.f32 %v6657, %v6812
      %v6860 = vadd.f32 %v6658, %v6815
      %v6861 = vadd.f32 %v6659, %v6817
      %v6862 = vadd.f32 %v6660, %v6820
      %v6863 = vadd.f32 %v6661, %v6822
      %v6864 = vadd.f32 %v6662, %v6825
      %v6865 = vadd.f32 %v6663, %v6827
      %v6866 = vadd.f32 %v6664, %v6830
      %v6867 = vadd.f32 %v6665, %v6832
      %v6868 = vadd.f32 %v6666, %v6835
      %v6869 = vadd.f32 %v6667, %v6837
      %v6870 = vunpack.c.l.bf16 %v6692
      %v6871 = vunpack.c.l.bf16 %v6693
      %v6872 = vunpack.c.l.bf16 %v6694
      %v6873 = vunpack.c.l.bf16 %v6695
      %v6874 = vunpack.c.l.bf16 %v6696
      %v6875 = vunpack.c.l.bf16 %v6697
      %v6876 = vunpack.c.l.bf16 %v6698
      %v6877 = vunpack.c.l.bf16 %v6699
      %v6878 = vunpack.c.l.bf16 %v6700
      %v6879 = vunpack.c.l.bf16 %v6701
      %v6880 = vunpack.c.l.bf16 %v6702
      %v6881 = vunpack.c.l.bf16 %v6703
      %v6882 = vunpack.c.l.bf16 %v6704
      %v6883 = vunpack.c.l.bf16 %v6705
      %v6884 = vunpack.c.l.bf16 %v6706
      %v6885 = vlaneseq
      %v6886 = vshrl.u32 %v6885, 7
      %v6887 = vsub.s32 5, %v6886
      %v6888 = vrot.slane %v5409, %v6887
      %v6889 = vmul.f32 %v6737, %v6888
      %v6890 = vmul.f32 %v6738, %v6888
      %v6891 = vmul.f32 %v6739, %v6888
      %v6892 = vmul.f32 %v6740, %v6888
      %v6893 = vmul.f32 %v6741, %v6888
      %v6894 = vmul.f32 %v6742, %v6888
      %v6895 = vmul.f32 %v6743, %v6888
      %v6896 = vmul.f32 %v6744, %v6888
      %v6897 = vmul.f32 %v6745, %v6888
      %v6898 = vmul.f32 %v6870, %v6888
      %v6899 = vmul.f32 %v6871, %v6888
      %v6900 = vmul.f32 %v6872, %v6888
      %v6901 = vmul.f32 %v6873, %v6888
      %v6902 = vmul.f32 %v6874, %v6888
      %v6903 = vmul.f32 %v6875, %v6888
      %v6904 = vmul.f32 %v6876, %v6888
      %v6905 = vmul.f32 %v6877, %v6888
      %v6906 = vmul.f32 %v6878, %v6888
      %v6907 = vmul.f32 %v6879, %v6888
      %v6908 = vmul.f32 %v6880, %v6888
      %v6909 = vmul.f32 %v6881, %v6888
      %v6910 = vmul.f32 %v6882, %v6888
      %v6911 = vmul.f32 %v6883, %v6888
      %v6912 = vmul.f32 %v6884, %v6888
      %v6937 = vrot.slane %v6889, 2
      %v6938 = vrot.slane %v6890, 2
      %v6939 = vsel %vm1723, %v6937, %v6938
      %v6940 = vrot.slane %v6891, 2
      %v6941 = vsel %vm1723, %v6938, %v6940
      %v6942 = vrot.slane %v6892, 2
      %v6943 = vrot.slane %v6893, 2
      %v6944 = vsel %vm1723, %v6942, %v6943
      %v6945 = vrot.slane %v6894, 2
      %v6946 = vsel %vm1723, %v6943, %v6945
      %v6947 = vrot.slane %v6895, 2
      %v6948 = vrot.slane %v6896, 2
      %v6949 = vsel %vm1723, %v6947, %v6948
      %v6950 = vrot.slane %v6897, 2
      %v6951 = vsel %vm1723, %v6948, %v6950
      %v6952 = vrot.slane %v6898, 2
      %v6953 = vrot.slane %v6899, 2
      %v6954 = vsel %vm1723, %v6952, %v6953
      %v6955 = vrot.slane %v6900, 2
      %v6956 = vsel %vm1723, %v6953, %v6955
      %v6957 = vrot.slane %v6901, 2
      %v6958 = vrot.slane %v6902, 2
      %v6959 = vsel %vm1723, %v6957, %v6958
      %v6960 = vrot.slane %v6903, 2
      %v6961 = vsel %vm1723, %v6958, %v6960
      %v6962 = vrot.slane %v6904, 2
      %v6963 = vrot.slane %v6905, 2
      %v6964 = vsel %vm1723, %v6962, %v6963
      %v6965 = vrot.slane %v6906, 2
      %v6966 = vsel %vm1723, %v6963, %v6965
      %v6967 = vrot.slane %v6907, 2
      %v6968 = vrot.slane %v6908, 2
      %v6969 = vsel %vm1723, %v6967, %v6968
      %v6970 = vrot.slane %v6909, 2
      %v6971 = vsel %vm1723, %v6968, %v6970
      %v6972 = vrot.slane %v6910, 2
      %v6973 = vrot.slane %v6911, 2
      %v6974 = vsel %vm1723, %v6972, %v6973
      %v6975 = vrot.slane %v6912, 2
      %v6976 = vsel %vm1723, %v6973, %v6975
      %v6993 = vadd.f32 %v6854, %v6939
      %v6994 = vadd.f32 %v6855, %v6941
      %v6995 = vadd.f32 %v6856, %v6944
      %v6996 = vadd.f32 %v6857, %v6946
      %v6997 = vadd.f32 %v6858, %v6949
      %v6998 = vadd.f32 %v6859, %v6951
      %v6999 = vadd.f32 %v6860, %v6954
      %v7000 = vadd.f32 %v6861, %v6956
      %v7001 = vadd.f32 %v6862, %v6959
      %v7002 = vadd.f32 %v6863, %v6961
      %v7003 = vadd.f32 %v6864, %v6964
      %v7004 = vadd.f32 %v6865, %v6966
      %v7005 = vadd.f32 %v6866, %v6969
      %v7006 = vadd.f32 %v6867, %v6971
      %v7007 = vadd.f32 %v6868, %v6974
      %v7008 = vadd.f32 %v6869, %v6976
      %v7009 = vunpack.c.l.bf16 %v6707
      %v7010 = vunpack.c.l.bf16 %v6708
      %v7011 = vunpack.c.l.bf16 %v6709
      %v7012 = vunpack.c.l.bf16 %v6710
      %v7013 = vunpack.c.l.bf16 %v6711
      %v7014 = vunpack.c.l.bf16 %v6712
      %v7015 = vunpack.c.l.bf16 %v6713
      %v7016 = vunpack.c.l.bf16 %v6714
      %v7017 = vunpack.c.l.bf16 %v6715
      %v7018 = vunpack.c.l.bf16 %v6716
      %v7019 = vunpack.c.l.bf16 %v6717
      %v7020 = vunpack.c.l.bf16 %v6718
      %v7021 = vunpack.c.l.bf16 %v6719
      %v7022 = vunpack.c.l.bf16 %v6720
      %v7023 = vunpack.c.l.bf16 %v6721
      %v7024 = vlaneseq
      %v7025 = vshrl.u32 %v7024, 7
      %v7026 = vsub.s32 0, %v7025
      %v7027 = vrot.slane %v5410, %v7026
      %v7028 = vmul.f32 %v6876, %v7027
      %v7029 = vmul.f32 %v6877, %v7027
      %v7030 = vmul.f32 %v6878, %v7027
      %v7031 = vmul.f32 %v6879, %v7027
      %v7032 = vmul.f32 %v6880, %v7027
      %v7033 = vmul.f32 %v6881, %v7027
      %v7034 = vmul.f32 %v6882, %v7027
      %v7035 = vmul.f32 %v6883, %v7027
      %v7036 = vmul.f32 %v6884, %v7027
      %v7037 = vmul.f32 %v7009, %v7027
      %v7038 = vmul.f32 %v7010, %v7027
      %v7039 = vmul.f32 %v7011, %v7027
      %v7040 = vmul.f32 %v7012, %v7027
      %v7041 = vmul.f32 %v7013, %v7027
      %v7042 = vmul.f32 %v7014, %v7027
      %v7043 = vmul.f32 %v7015, %v7027
      %v7044 = vmul.f32 %v7016, %v7027
      %v7045 = vmul.f32 %v7017, %v7027
      %v7046 = vmul.f32 %v7018, %v7027
      %v7047 = vmul.f32 %v7019, %v7027
      %v7048 = vmul.f32 %v7020, %v7027
      %v7049 = vmul.f32 %v7021, %v7027
      %v7050 = vmul.f32 %v7022, %v7027
      %v7051 = vmul.f32 %v7023, %v7027
      %v7076 = vrot.slane %v7028, 2
      %v7077 = vrot.slane %v7029, 2
      %v7078 = vsel %vm1723, %v7076, %v7077
      %v7079 = vrot.slane %v7030, 2
      %v7080 = vsel %vm1723, %v7077, %v7079
      %v7081 = vrot.slane %v7031, 2
      %v7082 = vrot.slane %v7032, 2
      %v7083 = vsel %vm1723, %v7081, %v7082
      %v7084 = vrot.slane %v7033, 2
      %v7085 = vsel %vm1723, %v7082, %v7084
      %v7086 = vrot.slane %v7034, 2
      %v7087 = vrot.slane %v7035, 2
      %v7088 = vsel %vm1723, %v7086, %v7087
      %v7089 = vrot.slane %v7036, 2
      %v7090 = vsel %vm1723, %v7087, %v7089
      %v7091 = vrot.slane %v7037, 2
      %v7092 = vrot.slane %v7038, 2
      %v7093 = vsel %vm1723, %v7091, %v7092
      %v7094 = vrot.slane %v7039, 2
      %v7095 = vsel %vm1723, %v7092, %v7094
      %v7096 = vrot.slane %v7040, 2
      %v7097 = vrot.slane %v7041, 2
      %v7098 = vsel %vm1723, %v7096, %v7097
      %v7099 = vrot.slane %v7042, 2
      %v7100 = vsel %vm1723, %v7097, %v7099
      %v7101 = vrot.slane %v7043, 2
      %v7102 = vrot.slane %v7044, 2
      %v7103 = vsel %vm1723, %v7101, %v7102
      %v7104 = vrot.slane %v7045, 2
      %v7105 = vsel %vm1723, %v7102, %v7104
      %v7106 = vrot.slane %v7046, 2
      %v7107 = vrot.slane %v7047, 2
      %v7108 = vsel %vm1723, %v7106, %v7107
      %v7109 = vrot.slane %v7048, 2
      %v7110 = vsel %vm1723, %v7107, %v7109
      %v7111 = vrot.slane %v7049, 2
      %v7112 = vrot.slane %v7050, 2
      %v7113 = vsel %vm1723, %v7111, %v7112
      %v7114 = vrot.slane %v7051, 2
      %v7115 = vsel %vm1723, %v7112, %v7114
      %v7132 = vadd.f32 %v6993, %v7078
      %v7133 = vadd.f32 %v6994, %v7080
      %v7134 = vadd.f32 %v6995, %v7083
      %v7135 = vadd.f32 %v6996, %v7085
      %v7136 = vadd.f32 %v6997, %v7088
      %v7137 = vadd.f32 %v6998, %v7090
      %v7138 = vadd.f32 %v6999, %v7093
      %v7139 = vadd.f32 %v7000, %v7095
      %v7140 = vadd.f32 %v7001, %v7098
      %v7141 = vadd.f32 %v7002, %v7100
      %v7142 = vadd.f32 %v7003, %v7103
      %v7143 = vadd.f32 %v7004, %v7105
      %v7144 = vadd.f32 %v7005, %v7108
      %v7145 = vadd.f32 %v7006, %v7110
      %v7146 = vadd.f32 %v7007, %v7113
      %v7147 = vadd.f32 %v7008, %v7115
      %v7148 = vld [vmem:[%s555 + $0x4] sm:$0xe]
      %v7149 = vld [vmem:[%s555 + $0x8] sm:$0xf]
      %v7150 = vld [vmem:[%s555 + $0xc] sm:$0x1]
      %v7151 = vld [vmem:[%s555 + $0x14] sm:$0xe]
      %v7152 = vld [vmem:[%s555 + $0x18] sm:$0xf]
      %v7153 = vld [vmem:[%s555 + $0x1c] sm:$0x1]
      %v7154 = vld [vmem:[%s555 + $0x24] sm:$0xe]
      %v7155 = vld [vmem:[%s555 + $0x28] sm:$0xf]
      %v7156 = vld [vmem:[%s555 + $0x2c] sm:$0x1]
      %v7157 = vld [vmem:[%s555 + $0x34] sm:$0xe]
      %v7158 = vld [vmem:[%s555 + $0x38] sm:$0xf]
      %v7159 = vld [vmem:[%s555 + $0x3c] sm:$0x1]
      %v7160 = vld [vmem:[%s555 + $0x44] sm:$0xe]
      %v7161 = vld [vmem:[%s555 + $0x48] sm:$0xf]
      %v7162 = vld [vmem:[%s555 + $0x4c] sm:$0x1]
      %v7163 = vld [vmem:[%s555 + $0x54] sm:$0xe]
      %v7164 = vld [vmem:[%s555 + $0x58] sm:$0xf]
      %v7165 = vld [vmem:[%s555 + $0x5c] sm:$0x1]
      %v7166 = vld [vmem:[%s555 + $0x64] sm:$0xe]
      %v7167 = vld [vmem:[%s555 + $0x68] sm:$0xf]
      %v7168 = vld [vmem:[%s555 + $0x6c] sm:$0x1]
      %v7169 = vld [vmem:[%s555 + $0x74] sm:$0xe]
      %v7170 = vld [vmem:[%s555 + $0x78] sm:$0xf]
      %v7171 = vld [vmem:[%s555 + $0x7c] sm:$0x1]
      %v7172 = vld [vmem:[%s555 + $0x84] sm:$0xe]
      %v7173 = vld [vmem:[%s555 + $0x88] sm:$0xf]
      %v7174 = vld [vmem:[%s555 + $0x8c] sm:$0x1]
      %v7175 = vld [vmem:[%s555 + $0x94] sm:$0xe]
      %v7176 = vld [vmem:[%s555 + $0x98] sm:$0xf]
      %v7177 = vld [vmem:[%s555 + $0x9c] sm:$0x1]
      %v7178 = vld [vmem:[%s555 + $0xa4] sm:$0xe]
      %v7179 = vld [vmem:[%s555 + $0xa8] sm:$0xf]
      %v7180 = vld [vmem:[%s555 + $0xac] sm:$0x1]
      %v7181 = vld [vmem:[%s555 + $0xb4] sm:$0xe]
      %v7182 = vld [vmem:[%s555 + $0xb8] sm:$0xf]
      %v7183 = vld [vmem:[%s555 + $0xbc] sm:$0x1]
      %v7184 = vld [vmem:[%s555 + $0xc4] sm:$0xe]
      %v7185 = vld [vmem:[%s555 + $0xc8] sm:$0xf]
      %v7186 = vld [vmem:[%s555 + $0xcc] sm:$0x1]
      %v7187 = vld [vmem:[%s555 + $0xd4] sm:$0xe]
      %v7188 = vld [vmem:[%s555 + $0xd8] sm:$0xf]
      %v7189 = vld [vmem:[%s555 + $0xdc] sm:$0x1]
      %v7190 = vld [vmem:[%s555 + $0xe4] sm:$0xe]
      %v7191 = vld [vmem:[%s555 + $0xe8] sm:$0xf]
      %v7192 = vld [vmem:[%s555 + $0xec] sm:$0x1]
      %v7193 = vld [vmem:[%s555 + $0xf4] sm:$0xe]
      %v7194 = vld [vmem:[%s555 + $0xf8] sm:$0xf]
      %v7195 = vld [vmem:[%s555 + $0xfc] sm:$0x1]
      %v7196 = vld [vmem:[%s555 + $0x104] sm:$0xe]
      %v7197 = vld [vmem:[%s555 + $0x108] sm:$0xf]
      %v7198 = vld [vmem:[%s555 + $0x10c] sm:$0x1]
      %v7199 = vld [vmem:[%s555 + $0x114] sm:$0xe]
      %v7200 = vld [vmem:[%s555 + $0x118] sm:$0xf]
      %v7201 = vld [vmem:[%s555 + $0x11c] sm:$0x1]
      %v7202 = vunpack.c.l.bf16 %v7148
      %v7203 = vunpack.c.l.bf16 %v7149
      %v7204 = vunpack.c.l.bf16 %v7150
      %v7205 = vunpack.c.l.bf16 %v7151
      %v7206 = vunpack.c.l.bf16 %v7152
      %v7207 = vunpack.c.l.bf16 %v7153
      %v7208 = vunpack.c.l.bf16 %v7154
      %v7209 = vunpack.c.l.bf16 %v7155
      %v7210 = vunpack.c.l.bf16 %v7156
      %v7211 = vunpack.c.l.bf16 %v7157
      %v7212 = vunpack.c.l.bf16 %v7158
      %v7213 = vunpack.c.l.bf16 %v7159
      %v7214 = vunpack.c.l.bf16 %v7160
      %v7215 = vunpack.c.l.bf16 %v7161
      %v7216 = vunpack.c.l.bf16 %v7162
      %v7217 = vunpack.c.l.bf16 %v7163
      %v7218 = vunpack.c.l.bf16 %v7164
      %v7219 = vunpack.c.l.bf16 %v7165
      %v7220 = vunpack.c.l.bf16 %v7166
      %v7221 = vunpack.c.l.bf16 %v7167
      %v7222 = vunpack.c.l.bf16 %v7168
      %v7223 = vunpack.c.l.bf16 %v7169
      %v7224 = vunpack.c.l.bf16 %v7170
      %v7225 = vunpack.c.l.bf16 %v7171
      %v7226 = vlaneseq
      %v7227 = vshrl.u32 %v7226, 7
      %v7228 = vsub.s32 2, %v7227
      %v7229 = vrot.slane %v5412, %v7228
      %v7230 = vmul.f32 %v7202, %v7229
      %v7231 = vmul.f32 %v7203, %v7229
      %v7232 = vmul.f32 %v7204, %v7229
      %v7233 = vmul.f32 %v7205, %v7229
      %v7234 = vmul.f32 %v7206, %v7229
      %v7235 = vmul.f32 %v7207, %v7229
      %v7236 = vmul.f32 %v7208, %v7229
      %v7237 = vmul.f32 %v7209, %v7229
      %v7238 = vmul.f32 %v7210, %v7229
      %v7239 = vmul.f32 %v7211, %v7229
      %v7240 = vmul.f32 %v7212, %v7229
      %v7241 = vmul.f32 %v7213, %v7229
      %v7242 = vmul.f32 %v7214, %v7229
      %v7243 = vmul.f32 %v7215, %v7229
      %v7244 = vmul.f32 %v7216, %v7229
      %v7245 = vmul.f32 %v7217, %v7229
      %v7246 = vmul.f32 %v7218, %v7229
      %v7247 = vmul.f32 %v7219, %v7229
      %v7248 = vmul.f32 %v7220, %v7229
      %v7249 = vmul.f32 %v7221, %v7229
      %v7250 = vmul.f32 %v7222, %v7229
      %v7251 = vmul.f32 %v7223, %v7229
      %v7252 = vmul.f32 %v7224, %v7229
      %v7253 = vmul.f32 %v7225, %v7229
      %v7278 = vrot.slane %v7230, 2
      %v7279 = vrot.slane %v7231, 2
      %v7280 = vsel %vm1723, %v7278, %v7279
      %v7281 = vrot.slane %v7232, 2
      %v7282 = vsel %vm1723, %v7279, %v7281
      %v7283 = vrot.slane %v7233, 2
      %v7284 = vrot.slane %v7234, 2
      %v7285 = vsel %vm1723, %v7283, %v7284
      %v7286 = vrot.slane %v7235, 2
      %v7287 = vsel %vm1723, %v7284, %v7286
      %v7288 = vrot.slane %v7236, 2
      %v7289 = vrot.slane %v7237, 2
      %v7290 = vsel %vm1723, %v7288, %v7289
      %v7291 = vrot.slane %v7238, 2
      %v7292 = vsel %vm1723, %v7289, %v7291
      %v7293 = vrot.slane %v7239, 2
      %v7294 = vrot.slane %v7240, 2
      %v7295 = vsel %vm1723, %v7293, %v7294
      %v7296 = vrot.slane %v7241, 2
      %v7297 = vsel %vm1723, %v7294, %v7296
      %v7298 = vrot.slane %v7242, 2
      %v7299 = vrot.slane %v7243, 2
      %v7300 = vsel %vm1723, %v7298, %v7299
      %v7301 = vrot.slane %v7244, 2
      %v7302 = vsel %vm1723, %v7299, %v7301
      %v7303 = vrot.slane %v7245, 2
      %v7304 = vrot.slane %v7246, 2
      %v7305 = vsel %vm1723, %v7303, %v7304
      %v7306 = vrot.slane %v7247, 2
      %v7307 = vsel %vm1723, %v7304, %v7306
      %v7308 = vrot.slane %v7248, 2
      %v7309 = vrot.slane %v7249, 2
      %v7310 = vsel %vm1723, %v7308, %v7309
      %v7311 = vrot.slane %v7250, 2
      %v7312 = vsel %vm1723, %v7309, %v7311
      %v7313 = vrot.slane %v7251, 2
      %v7314 = vrot.slane %v7252, 2
      %v7315 = vsel %vm1723, %v7313, %v7314
      %v7316 = vrot.slane %v7253, 2
      %v7317 = vsel %vm1723, %v7314, %v7316
      %v7334 = vadd.f32 %v7132, %v7280
      %v7335 = vadd.f32 %v7133, %v7282
      %v7336 = vadd.f32 %v7134, %v7285
      %v7337 = vadd.f32 %v7135, %v7287
      %v7338 = vadd.f32 %v7136, %v7290
      %v7339 = vadd.f32 %v7137, %v7292
      %v7340 = vadd.f32 %v7138, %v7295
      %v7341 = vadd.f32 %v7139, %v7297
      %v7342 = vadd.f32 %v7140, %v7300
      %v7343 = vadd.f32 %v7141, %v7302
      %v7344 = vadd.f32 %v7142, %v7305
      %v7345 = vadd.f32 %v7143, %v7307
      %v7346 = vadd.f32 %v7144, %v7310
      %v7347 = vadd.f32 %v7145, %v7312
      %v7348 = vadd.f32 %v7146, %v7315
      %v7349 = vadd.f32 %v7147, %v7317
      %v7350 = vunpack.c.l.bf16 %v7172
      %v7351 = vunpack.c.l.bf16 %v7173
      %v7352 = vunpack.c.l.bf16 %v7174
      %v7353 = vunpack.c.l.bf16 %v7175
      %v7354 = vunpack.c.l.bf16 %v7176
      %v7355 = vunpack.c.l.bf16 %v7177
      %v7356 = vunpack.c.l.bf16 %v7178
      %v7357 = vunpack.c.l.bf16 %v7179
      %v7358 = vunpack.c.l.bf16 %v7180
      %v7359 = vunpack.c.l.bf16 %v7181
      %v7360 = vunpack.c.l.bf16 %v7182
      %v7361 = vunpack.c.l.bf16 %v7183
      %v7362 = vunpack.c.l.bf16 %v7184
      %v7363 = vunpack.c.l.bf16 %v7185
      %v7364 = vunpack.c.l.bf16 %v7186
      %v7365 = vlaneseq
      %v7366 = vshrl.u32 %v7365, 7
      %v7367 = vsub.s32 5, %v7366
      %v7368 = vrot.slane %v5412, %v7367
      %v7369 = vmul.f32 %v7217, %v7368
      %v7370 = vmul.f32 %v7218, %v7368
      %v7371 = vmul.f32 %v7219, %v7368
      %v7372 = vmul.f32 %v7220, %v7368
      %v7373 = vmul.f32 %v7221, %v7368
      %v7374 = vmul.f32 %v7222, %v7368
      %v7375 = vmul.f32 %v7223, %v7368
      %v7376 = vmul.f32 %v7224, %v7368
      %v7377 = vmul.f32 %v7225, %v7368
      %v7378 = vmul.f32 %v7350, %v7368
      %v7379 = vmul.f32 %v7351, %v7368
      %v7380 = vmul.f32 %v7352, %v7368
      %v7381 = vmul.f32 %v7353, %v7368
      %v7382 = vmul.f32 %v7354, %v7368
      %v7383 = vmul.f32 %v7355, %v7368
      %v7384 = vmul.f32 %v7356, %v7368
      %v7385 = vmul.f32 %v7357, %v7368
      %v7386 = vmul.f32 %v7358, %v7368
      %v7387 = vmul.f32 %v7359, %v7368
      %v7388 = vmul.f32 %v7360, %v7368
      %v7389 = vmul.f32 %v7361, %v7368
      %v7390 = vmul.f32 %v7362, %v7368
      %v7391 = vmul.f32 %v7363, %v7368
      %v7392 = vmul.f32 %v7364, %v7368
      %v7417 = vrot.slane %v7369, 2
      %v7418 = vrot.slane %v7370, 2
      %v7419 = vsel %vm1723, %v7417, %v7418
      %v7420 = vrot.slane %v7371, 2
      %v7421 = vsel %vm1723, %v7418, %v7420
      %v7422 = vrot.slane %v7372, 2
      %v7423 = vrot.slane %v7373, 2
      %v7424 = vsel %vm1723, %v7422, %v7423
      %v7425 = vrot.slane %v7374, 2
      %v7426 = vsel %vm1723, %v7423, %v7425
      %v7427 = vrot.slane %v7375, 2
      %v7428 = vrot.slane %v7376, 2
      %v7429 = vsel %vm1723, %v7427, %v7428
      %v7430 = vrot.slane %v7377, 2
      %v7431 = vsel %vm1723, %v7428, %v7430
      %v7432 = vrot.slane %v7378, 2
      %v7433 = vrot.slane %v7379, 2
      %v7434 = vsel %vm1723, %v7432, %v7433
      %v7435 = vrot.slane %v7380, 2
      %v7436 = vsel %vm1723, %v7433, %v7435
      %v7437 = vrot.slane %v7381, 2
      %v7438 = vrot.slane %v7382, 2
      %v7439 = vsel %vm1723, %v7437, %v7438
      %v7440 = vrot.slane %v7383, 2
      %v7441 = vsel %vm1723, %v7438, %v7440
      %v7442 = vrot.slane %v7384, 2
      %v7443 = vrot.slane %v7385, 2
      %v7444 = vsel %vm1723, %v7442, %v7443
      %v7445 = vrot.slane %v7386, 2
      %v7446 = vsel %vm1723, %v7443, %v7445
      %v7447 = vrot.slane %v7387, 2
      %v7448 = vrot.slane %v7388, 2
      %v7449 = vsel %vm1723, %v7447, %v7448
      %v7450 = vrot.slane %v7389, 2
      %v7451 = vsel %vm1723, %v7448, %v7450
      %v7452 = vrot.slane %v7390, 2
      %v7453 = vrot.slane %v7391, 2
      %v7454 = vsel %vm1723, %v7452, %v7453
      %v7455 = vrot.slane %v7392, 2
      %v7456 = vsel %vm1723, %v7453, %v7455
      %v7473 = vadd.f32 %v7334, %v7419
      %v7474 = vadd.f32 %v7335, %v7421
      %v7475 = vadd.f32 %v7336, %v7424
      %v7476 = vadd.f32 %v7337, %v7426
      %v7477 = vadd.f32 %v7338, %v7429
      %v7478 = vadd.f32 %v7339, %v7431
      %v7479 = vadd.f32 %v7340, %v7434
      %v7480 = vadd.f32 %v7341, %v7436
      %v7481 = vadd.f32 %v7342, %v7439
      %v7482 = vadd.f32 %v7343, %v7441
      %v7483 = vadd.f32 %v7344, %v7444
      %v7484 = vadd.f32 %v7345, %v7446
      %v7485 = vadd.f32 %v7346, %v7449
      %v7486 = vadd.f32 %v7347, %v7451
      %v7487 = vadd.f32 %v7348, %v7454
      %v7488 = vadd.f32 %v7349, %v7456
      %v7489 = vunpack.c.l.bf16 %v7187
      %v7490 = vunpack.c.l.bf16 %v7188
      %v7491 = vunpack.c.l.bf16 %v7189
      %v7492 = vunpack.c.l.bf16 %v7190
      %v7493 = vunpack.c.l.bf16 %v7191
      %v7494 = vunpack.c.l.bf16 %v7192
      %v7495 = vunpack.c.l.bf16 %v7193
      %v7496 = vunpack.c.l.bf16 %v7194
      %v7497 = vunpack.c.l.bf16 %v7195
      %v7498 = vunpack.c.l.bf16 %v7196
      %v7499 = vunpack.c.l.bf16 %v7197
      %v7500 = vunpack.c.l.bf16 %v7198
      %v7501 = vunpack.c.l.bf16 %v7199
      %v7502 = vunpack.c.l.bf16 %v7200
      %v7503 = vunpack.c.l.bf16 %v7201
      %v7504 = vlaneseq
      %v7505 = vshrl.u32 %v7504, 7
      %v7506 = vsub.s32 0, %v7505
      %v7507 = vrot.slane %v5413, %v7506
      %v7508 = vmul.f32 %v7356, %v7507
      %v7509 = vmul.f32 %v7357, %v7507
      %v7510 = vmul.f32 %v7358, %v7507
      %v7511 = vmul.f32 %v7359, %v7507
      %v7512 = vmul.f32 %v7360, %v7507
      %v7513 = vmul.f32 %v7361, %v7507
      %v7514 = vmul.f32 %v7362, %v7507
      %v7515 = vmul.f32 %v7363, %v7507
      %v7516 = vmul.f32 %v7364, %v7507
      %v7517 = vmul.f32 %v7489, %v7507
      %v7518 = vmul.f32 %v7490, %v7507
      %v7519 = vmul.f32 %v7491, %v7507
      %v7520 = vmul.f32 %v7492, %v7507
      %v7521 = vmul.f32 %v7493, %v7507
      %v7522 = vmul.f32 %v7494, %v7507
      %v7523 = vmul.f32 %v7495, %v7507
      %v7524 = vmul.f32 %v7496, %v7507
      %v7525 = vmul.f32 %v7497, %v7507
      %v7526 = vmul.f32 %v7498, %v7507
      %v7527 = vmul.f32 %v7499, %v7507
      %v7528 = vmul.f32 %v7500, %v7507
      %v7529 = vmul.f32 %v7501, %v7507
      %v7530 = vmul.f32 %v7502, %v7507
      %v7531 = vmul.f32 %v7503, %v7507
      %v7556 = vrot.slane %v7508, 2
      %v7557 = vrot.slane %v7509, 2
      %v7558 = vsel %vm1723, %v7556, %v7557
      %v7559 = vrot.slane %v7510, 2
      %v7560 = vsel %vm1723, %v7557, %v7559
      %v7561 = vrot.slane %v7511, 2
      %v7562 = vrot.slane %v7512, 2
      %v7563 = vsel %vm1723, %v7561, %v7562
      %v7564 = vrot.slane %v7513, 2
      %v7565 = vsel %vm1723, %v7562, %v7564
      %v7566 = vrot.slane %v7514, 2
      %v7567 = vrot.slane %v7515, 2
      %v7568 = vsel %vm1723, %v7566, %v7567
      %v7569 = vrot.slane %v7516, 2
      %v7570 = vsel %vm1723, %v7567, %v7569
      %v7571 = vrot.slane %v7517, 2
      %v7572 = vrot.slane %v7518, 2
      %v7573 = vsel %vm1723, %v7571, %v7572
      %v7574 = vrot.slane %v7519, 2
      %v7575 = vsel %vm1723, %v7572, %v7574
      %v7576 = vrot.slane %v7520, 2
      %v7577 = vrot.slane %v7521, 2
      %v7578 = vsel %vm1723, %v7576, %v7577
      %v7579 = vrot.slane %v7522, 2
      %v7580 = vsel %vm1723, %v7577, %v7579
      %v7581 = vrot.slane %v7523, 2
      %v7582 = vrot.slane %v7524, 2
      %v7583 = vsel %vm1723, %v7581, %v7582
      %v7584 = vrot.slane %v7525, 2
      %v7585 = vsel %vm1723, %v7582, %v7584
      %v7586 = vrot.slane %v7526, 2
      %v7587 = vrot.slane %v7527, 2
      %v7588 = vsel %vm1723, %v7586, %v7587
      %v7589 = vrot.slane %v7528, 2
      %v7590 = vsel %vm1723, %v7587, %v7589
      %v7591 = vrot.slane %v7529, 2
      %v7592 = vrot.slane %v7530, 2
      %v7593 = vsel %vm1723, %v7591, %v7592
      %v7594 = vrot.slane %v7531, 2
      %v7595 = vsel %vm1723, %v7592, %v7594
      %v7612 = vadd.f32 %v7473, %v7558
      %v7613 = vadd.f32 %v7474, %v7560
      %v7614 = vadd.f32 %v7475, %v7563
      %v7615 = vadd.f32 %v7476, %v7565
      %v7616 = vadd.f32 %v7477, %v7568
      %v7617 = vadd.f32 %v7478, %v7570
      %v7618 = vadd.f32 %v7479, %v7573
      %v7619 = vadd.f32 %v7480, %v7575
      %v7620 = vadd.f32 %v7481, %v7578
      %v7621 = vadd.f32 %v7482, %v7580
      %v7622 = vadd.f32 %v7483, %v7583
      %v7623 = vadd.f32 %v7484, %v7585
      %v7624 = vadd.f32 %v7485, %v7588
      %v7625 = vadd.f32 %v7486, %v7590
      %v7626 = vadd.f32 %v7487, %v7593
      %v7627 = vadd.f32 %v7488, %v7595
      %v7628 = vmax.f32 %v7612, 0.0
      %v7629 = vmax.f32 %v7613, 0.0
      %v7630 = vmax.f32 %v7614, 0.0
      %v7631 = vmax.f32 %v7615, 0.0
      %v7632 = vmax.f32 %v7616, 0.0
      %v7633 = vmax.f32 %v7617, 0.0
      %v7634 = vmax.f32 %v7618, 0.0
      %v7635 = vmax.f32 %v7619, 0.0
      %v7636 = vmax.f32 %v7620, 0.0
      %v7637 = vmax.f32 %v7621, 0.0
      %v7638 = vmax.f32 %v7622, 0.0
      %v7639 = vmax.f32 %v7623, 0.0
      %v7640 = vmax.f32 %v7624, 0.0
      %v7641 = vmax.f32 %v7625, 0.0
      %v7642 = vmax.f32 %v7626, 0.0
      %v7643 = vmax.f32 %v7627, 0.0
      %v7644 = vpack.c.bf16 %v7629, %v7628
      %v7645 = vpack.c.bf16 %v7631, %v7630
      %v7646 = vpack.c.bf16 %v7633, %v7632
      %v7647 = vpack.c.bf16 %v7635, %v7634
      %v7648 = vpack.c.bf16 %v7637, %v7636
      %v7649 = vpack.c.bf16 %v7639, %v7638
      %v7650 = vpack.c.bf16 %v7641, %v7640
      %v7651 = vpack.c.bf16 %v7643, %v7642
      %s7652 = scalar_lea.vmem %s5, 256
      %v7653 = vld [vmem:[%s7652] sm:$0xff]
      %v7654 = vld [vmem:[%s7652 + $0x8] sm:$0xff]
      %v7655 = vld [vmem:[%s7652 + $0x10] sm:$0xff]
      %v7656 = vld [vmem:[%s7652 + $0x18] sm:$0xff]
      %v7657 = vld [vmem:[%s7652 + $0x20] sm:$0xff]
      %v7658 = vld [vmem:[%s7652 + $0x28] sm:$0xff]
      %v7659 = vld [vmem:[%s7652 + $0x30] sm:$0xff]
      %v7660 = vld [vmem:[%s7652 + $0x38] sm:$0xff]
      %v7661 = vld [vmem:[%s7652 + $0x40] sm:$0xff]
      %v7662 = vld [vmem:[%s7652 + $0x48] sm:$0xff]
      %v7663 = vld [vmem:[%s7652 + $0x50] sm:$0xff]
      %v7664 = vld [vmem:[%s7652 + $0x58] sm:$0xff]
      %v7665 = vld [vmem:[%s7652 + $0x60] sm:$0xff]
      %v7666 = vld [vmem:[%s7652 + $0x68] sm:$0xff]
      %v7667 = vld [vmem:[%s7652 + $0x70] sm:$0xff]
      %v7668 = vld [vmem:[%s7652 + $0x78] sm:$0xff]
      %v7685 = vunpack.c.l.b16 %v7653
      %v7686 = vunpack.c.h.b16 %v7653
      %v7687 = vunpack.c.l.b16 %v7654
      %v7688 = vunpack.c.h.b16 %v7654
      %v7689 = vunpack.c.l.b16 %v7655
      %v7690 = vunpack.c.h.b16 %v7655
      %v7691 = vunpack.c.l.b16 %v7656
      %v7692 = vunpack.c.h.b16 %v7656
      %v7693 = vunpack.c.l.b16 %v7657
      %v7694 = vunpack.c.h.b16 %v7657
      %v7695 = vunpack.c.l.b16 %v7658
      %v7696 = vunpack.c.h.b16 %v7658
      %v7697 = vunpack.c.l.b16 %v7659
      %v7698 = vunpack.c.h.b16 %v7659
      %v7699 = vunpack.c.l.b16 %v7660
      %v7700 = vunpack.c.h.b16 %v7660
      %v7701 = vunpack.c.l.b16 %v7661
      %v7702 = vunpack.c.h.b16 %v7661
      %v7703 = vunpack.c.l.b16 %v7662
      %v7704 = vunpack.c.h.b16 %v7662
      %v7705 = vunpack.c.l.b16 %v7663
      %v7706 = vunpack.c.h.b16 %v7663
      %v7707 = vunpack.c.l.b16 %v7664
      %v7708 = vunpack.c.h.b16 %v7664
      %v7709 = vunpack.c.l.b16 %v7665
      %v7710 = vunpack.c.h.b16 %v7665
      %v7711 = vunpack.c.l.b16 %v7666
      %v7712 = vunpack.c.h.b16 %v7666
      %v7713 = vunpack.c.l.b16 %v7667
      %v7714 = vunpack.c.h.b16 %v7667
      %v7715 = vunpack.c.l.b16 %v7668
      %v7716 = vunpack.c.h.b16 %v7668
      %v7717 = vpack.c.b16 %v7687, %v7685
      %v7718 = vpack.c.b16 %v7688, %v7686
      %v7719 = vpack.c.b16 %v7691, %v7689
      %v7720 = vpack.c.b16 %v7692, %v7690
      %v7721 = vpack.c.b16 %v7695, %v7693
      %v7722 = vpack.c.b16 %v7696, %v7694
      %v7723 = vpack.c.b16 %v7699, %v7697
      %v7724 = vpack.c.b16 %v7700, %v7698
      %v7725 = vpack.c.b16 %v7703, %v7701
      %v7726 = vpack.c.b16 %v7704, %v7702
      %v7727 = vpack.c.b16 %v7707, %v7705
      %v7728 = vpack.c.b16 %v7708, %v7706
      %v7729 = vpack.c.b16 %v7711, %v7709
      %v7730 = vpack.c.b16 %v7712, %v7710
      %v7731 = vpack.c.b16 %v7715, %v7713
      %v7732 = vpack.c.b16 %v7716, %v7714
      %7749 = vmatprep.subr.bf16.mxu0 %v7718
      %7750 = vmatpush1.bf16.msra.mxu0 %v7717
      %7751 = vmatprep.subr.bf16.mxu0 %v7720
      %7752 = vmatpush1.bf16.msra.mxu0 %v7719
      %7753 = vmatprep.subr.bf16.mxu0 %v7722
      %7754 = vmatpush1.bf16.msra.mxu0 %v7721
      %7755 = vmatprep.subr.bf16.mxu0 %v7724
      %7756 = vmatpush1.bf16.msra.mxu0 %v7723
      %7757 = vmatprep.subr.bf16.mxu0 %v7726
      %7758 = vmatpush1.bf16.msra.mxu0 %v7725
      %7759 = vmatprep.subr.bf16.mxu0 %v7728
      %7760 = vmatpush1.bf16.msra.mxu0 %v7727
      %7761 = vmatprep.subr.bf16.mxu0 %v7730
      %7762 = vmatpush1.bf16.msra.mxu0 %v7729
      %7763 = vmatprep.subr.bf16.mxu0 %v7732
      %7764 = vmatpush1.bf16.msra.mxu0 %v7731
      %7765 = vmatprep.subr.bf16.mxu0 0
      %7766 = vmatpush1.bf16.msra.mxu0 0
      %7767 = vmatprep.subr.bf16.mxu0 0
      %7768 = vmatpush1.bf16.msra.mxu0 0
      %7769 = vmatprep.subr.bf16.mxu0 0
      %7770 = vmatpush1.bf16.msra.mxu0 0
      %7771 = vmatprep.subr.bf16.mxu0 0
      %7772 = vmatpush1.bf16.msra.mxu0 0
      %7773 = vmatprep.subr.bf16.mxu0 0
      %7774 = vmatpush1.bf16.msra.mxu0 0
      %7775 = vmatprep.subr.bf16.mxu0 0
      %7776 = vmatpush1.bf16.msra.mxu0 0
      %7777 = vmatprep.subr.bf16.mxu0 0
      %7778 = vmatpush1.bf16.msra.mxu0 0
      %7779 = vmatprep.subr.bf16.mxu0 0
      %7780 = vmatpush1.bf16.msra.mxu0 0
      %7781 = vmatprep.mubr.bf16.mxu0 0
      %7782 = vmatmul.mubr.bf16.gmra.mrb[0].mxu0 %v7644
      %v7783 = vpop.f32.mrb[0].mxu0
      %v7784 = vadd.f32 0.0, %v7783
      %v7785 = vpop.f32.mrb[0].mxu0
      %v7786 = vadd.f32 0.0, %v7785
      %v7787 = vpop.f32.mrb[0].mxu0
      %v7788 = vadd.f32 0.0, %v7787
      %v7789 = vpop.f32.mrb[0].mxu0
      %v7790 = vadd.f32 0.0, %v7789
      %7791 = vmatprep.mubr.bf16.mxu0 0
      %7792 = vmatmul.mubr.bf16.gmra.mrb[0].mxu0 %v7645
      %v7793 = vpop.f32.mrb[0].mxu0
      %v7794 = vadd.f32 0.0, %v7793
      %v7795 = vpop.f32.mrb[0].mxu0
      %v7796 = vadd.f32 0.0, %v7795
      %v7797 = vpop.f32.mrb[0].mxu0
      %v7798 = vadd.f32 0.0, %v7797
      %v7799 = vpop.f32.mrb[0].mxu0
      %v7800 = vadd.f32 0.0, %v7799
      %7801 = vmatprep.mubr.bf16.mxu0 0
      %7802 = vmatmul.mubr.bf16.gmra.mrb[0].mxu0 %v7646
      %v7803 = vpop.f32.mrb[0].mxu0
      %v7804 = vadd.f32 0.0, %v7803
      %v7805 = vpop.f32.mrb[0].mxu0
      %v7806 = vadd.f32 0.0, %v7805
      %v7807 = vpop.f32.mrb[0].mxu0
      %v7808 = vadd.f32 0.0, %v7807
      %v7809 = vpop.f32.mrb[0].mxu0
      %v7810 = vadd.f32 0.0, %v7809
      %7811 = vmatprep.mubr.bf16.mxu0 0
      %7812 = vmatmul.mubr.bf16.gmra.mrb[0].mxu0 %v7647
      %v7813 = vpop.f32.mrb[0].mxu0
      %v7814 = vadd.f32 0.0, %v7813
      %v7815 = vpop.f32.mrb[0].mxu0
      %v7816 = vadd.f32 0.0, %v7815
      %v7817 = vpop.f32.mrb[0].mxu0
      %v7818 = vadd.f32 0.0, %v7817
      %v7819 = vpop.f32.mrb[0].mxu0
      %v7820 = vadd.f32 0.0, %v7819
      %7821 = vmatprep.mubr.bf16.mxu0 0
      %7822 = vmatmul.mubr.bf16.gmra.mrb[0].mxu0 %v7648
      %v7823 = vpop.f32.mrb[0].mxu0
      %v7824 = vadd.f32 0.0, %v7823
      %v7825 = vpop.f32.mrb[0].mxu0
      %v7826 = vadd.f32 0.0, %v7825
      %v7827 = vpop.f32.mrb[0].mxu0
      %v7828 = vadd.f32 0.0, %v7827
      %v7829 = vpop.f32.mrb[0].mxu0
      %v7830 = vadd.f32 0.0, %v7829
      %7831 = vmatprep.mubr.bf16.mxu0 0
      %7832 = vmatmul.mubr.bf16.gmra.mrb[0].mxu0 %v7649
      %v7833 = vpop.f32.mrb[0].mxu0
      %v7834 = vadd.f32 0.0, %v7833
      %v7835 = vpop.f32.mrb[0].mxu0
      %v7836 = vadd.f32 0.0, %v7835
      %v7837 = vpop.f32.mrb[0].mxu0
      %v7838 = vadd.f32 0.0, %v7837
      %v7839 = vpop.f32.mrb[0].mxu0
      %v7840 = vadd.f32 0.0, %v7839
      %7841 = vmatprep.mubr.bf16.mxu0 0
      %7842 = vmatmul.mubr.bf16.gmra.mrb[0].mxu0 %v7650
      %v7843 = vpop.f32.mrb[0].mxu0
      %v7844 = vadd.f32 0.0, %v7843
      %v7845 = vpop.f32.mrb[0].mxu0
      %v7846 = vadd.f32 0.0, %v7845
      %v7847 = vpop.f32.mrb[0].mxu0
      %v7848 = vadd.f32 0.0, %v7847
      %v7849 = vpop.f32.mrb[0].mxu0
      %v7850 = vadd.f32 0.0, %v7849
      %7851 = vmatprep.mubr.bf16.mxu0 0
      %7852 = vmatmul.mubr.bf16.gmra.mrb[0].mxu0 %v7651
      %v7853 = vpop.f32.mrb[0].mxu0
      %v7854 = vadd.f32 0.0, %v7853
      %v7855 = vpop.f32.mrb[0].mxu0
      %v7856 = vadd.f32 0.0, %v7855
      %v7857 = vpop.f32.mrb[0].mxu0
      %v7858 = vadd.f32 0.0, %v7857
      %v7859 = vpop.f32.mrb[0].mxu0
      %v7860 = vadd.f32 0.0, %v7859
      %7861 = vdwg.mxu0
      %v7862 = vld [vmem:[#allocation2] sm:$0xff]
      %v7863 = vld [vmem:[#allocation2 + $0x8] sm:$0xff]
      %v7864 = vld [vmem:[#allocation2 + $0x10] sm:$0xff]
      %v7865 = vld [vmem:[#allocation2 + $0x18] sm:$0xff]
      %v7866 = vld [vmem:[#allocation2 + $0x20] sm:$0xff]
      %v7867 = vld [vmem:[#allocation2 + $0x28] sm:$0xff]
      %v7868 = vld [vmem:[#allocation2 + $0x30] sm:$0xff]
      %v7869 = vld [vmem:[#allocation2 + $0x38] sm:$0xff]
      %v7870 = vld [vmem:[#allocation2 + $0x40] sm:$0xff]
      %v7871 = vld [vmem:[#allocation2 + $0x48] sm:$0xff]
      %v7872 = vld [vmem:[#allocation2 + $0x50] sm:$0xff]
      %v7873 = vld [vmem:[#allocation2 + $0x58] sm:$0xff]
      %v7874 = vld [vmem:[#allocation2 + $0x60] sm:$0xff]
      %v7875 = vld [vmem:[#allocation2 + $0x68] sm:$0xff]
      %v7876 = vld [vmem:[#allocation2 + $0x70] sm:$0xff]
      %v7877 = vld [vmem:[#allocation2 + $0x78] sm:$0xff]
      %v7878 = vld [vmem:[#allocation2 + $0x80] sm:$0xff]
      %v7879 = vld [vmem:[#allocation2 + $0x88] sm:$0xff]
      %v7880 = vld [vmem:[#allocation2 + $0x90] sm:$0xff]
      %v7881 = vld [vmem:[#allocation2 + $0x98] sm:$0xff]
      %v7882 = vld [vmem:[#allocation2 + $0xa0] sm:$0xff]
      %v7883 = vld [vmem:[#allocation2 + $0xa8] sm:$0xff]
      %v7884 = vld [vmem:[#allocation2 + $0xb0] sm:$0xff]
      %v7885 = vld [vmem:[#allocation2 + $0xb8] sm:$0xff]
      %v7886 = vld [vmem:[#allocation2 + $0xc0] sm:$0xff]
      %v7887 = vld [vmem:[#allocation2 + $0xc8] sm:$0xff]
      %v7888 = vld [vmem:[#allocation2 + $0xd0] sm:$0xff]
      %v7889 = vld [vmem:[#allocation2 + $0xd8] sm:$0xff]
      %v7890 = vld [vmem:[#allocation2 + $0xe0] sm:$0xff]
      %v7891 = vld [vmem:[#allocation2 + $0xe8] sm:$0xff]
      %v7892 = vld [vmem:[#allocation2 + $0xf0] sm:$0xff]
      %v7893 = vld [vmem:[#allocation2 + $0xf8] sm:$0xff]
      %v7894 = vadd.f32 %v7862, %v7784
      %v7895 = vadd.f32 %v7863, %v7786
      %v7896 = vadd.f32 %v7864, %v7788
      %v7897 = vadd.f32 %v7865, %v7790
      %v7898 = vadd.f32 %v7866, %v7794
      %v7899 = vadd.f32 %v7867, %v7796
      %v7900 = vadd.f32 %v7868, %v7798
      %v7901 = vadd.f32 %v7869, %v7800
      %v7902 = vadd.f32 %v7870, %v7804
      %v7903 = vadd.f32 %v7871, %v7806
      %v7904 = vadd.f32 %v7872, %v7808
      %v7905 = vadd.f32 %v7873, %v7810
      %v7906 = vadd.f32 %v7874, %v7814
      %v7907 = vadd.f32 %v7875, %v7816
      %v7908 = vadd.f32 %v7876, %v7818
      %v7909 = vadd.f32 %v7877, %v7820
      %v7910 = vadd.f32 %v7878, %v7824
      %v7911 = vadd.f32 %v7879, %v7826
      %v7912 = vadd.f32 %v7880, %v7828
      %v7913 = vadd.f32 %v7881, %v7830
      %v7914 = vadd.f32 %v7882, %v7834
      %v7915 = vadd.f32 %v7883, %v7836
      %v7916 = vadd.f32 %v7884, %v7838
      %v7917 = vadd.f32 %v7885, %v7840
      %v7918 = vadd.f32 %v7886, %v7844
      %v7919 = vadd.f32 %v7887, %v7846
      %v7920 = vadd.f32 %v7888, %v7848
      %v7921 = vadd.f32 %v7889, %v7850
      %v7922 = vadd.f32 %v7890, %v7854
      %v7923 = vadd.f32 %v7891, %v7856
      %v7924 = vadd.f32 %v7892, %v7858
      %v7925 = vadd.f32 %v7893, %v7860
      %7926 = vst [vmem:[#allocation2] sm:$0xff] %v7894
      %7927 = vst [vmem:[#allocation2 + $0x8] sm:$0xff] %v7895
      %7928 = vst [vmem:[#allocation2 + $0x10] sm:$0xff] %v7896
      %7929 = vst [vmem:[#allocation2 + $0x18] sm:$0xff] %v7897
      %7930 = vst [vmem:[#allocation2 + $0x20] sm:$0xff] %v7898
      %7931 = vst [vmem:[#allocation2 + $0x28] sm:$0xff] %v7899
      %7932 = vst [vmem:[#allocation2 + $0x30] sm:$0xff] %v7900
      %7933 = vst [vmem:[#allocation2 + $0x38] sm:$0xff] %v7901
      %7934 = vst [vmem:[#allocation2 + $0x40] sm:$0xff] %v7902
      %7935 = vst [vmem:[#allocation2 + $0x48] sm:$0xff] %v7903
      %7936 = vst [vmem:[#allocation2 + $0x50] sm:$0xff] %v7904
      %7937 = vst [vmem:[#allocation2 + $0x58] sm:$0xff] %v7905
      %7938 = vst [vmem:[#allocation2 + $0x60] sm:$0xff] %v7906
      %7939 = vst [vmem:[#allocation2 + $0x68] sm:$0xff] %v7907
      %7940 = vst [vmem:[#allocation2 + $0x70] sm:$0xff] %v7908
      %7941 = vst [vmem:[#allocation2 + $0x78] sm:$0xff] %v7909
      %7942 = vst [vmem:[#allocation2 + $0x80] sm:$0xff] %v7910
      %7943 = vst [vmem:[#allocation2 + $0x88] sm:$0xff] %v7911
      %7944 = vst [vmem:[#allocation2 + $0x90] sm:$0xff] %v7912
      %7945 = vst [vmem:[#allocation2 + $0x98] sm:$0xff] %v7913
      %7946 = vst [vmem:[#allocation2 + $0xa0] sm:$0xff] %v7914
      %7947 = vst [vmem:[#allocation2 + $0xa8] sm:$0xff] %v7915
      %7948 = vst [vmem:[#allocation2 + $0xb0] sm:$0xff] %v7916
      %7949 = vst [vmem:[#allocation2 + $0xb8] sm:$0xff] %v7917
      %7950 = vst [vmem:[#allocation2 + $0xc0] sm:$0xff] %v7918
      %7951 = vst [vmem:[#allocation2 + $0xc8] sm:$0xff] %v7919
      %7952 = vst [vmem:[#allocation2 + $0xd0] sm:$0xff] %v7920
      %7953 = vst [vmem:[#allocation2 + $0xd8] sm:$0xff] %v7921
      %7954 = vst [vmem:[#allocation2 + $0xe0] sm:$0xff] %v7922
      %7955 = vst [vmem:[#allocation2 + $0xe8] sm:$0xff] %v7923
      %7956 = vst [vmem:[#allocation2 + $0xf0] sm:$0xff] %v7924
      %7957 = vst [vmem:[#allocation2 + $0xf8] sm:$0xff] %v7925
      %s7958 = sadd.s32 %s325, 5
      %s7959 = smul.u32 %s7958, 4
      %s7960 = smul.addr %s7959, 4
      %s7961 = scalar_lea.vmem %s307, %s7960
      %v7962 = vld [vmem:[%s7961] sm:$0xc]
      %v7963 = vld [vmem:[%s7961 + $0x4] sm:$0xf]
      %v7964 = vld [vmem:[%s7961 + $0x8] sm:$0x7]
      %v7965 = vld [vmem:[%s7961 + $0x10] sm:$0xc]
      %v7966 = vld [vmem:[%s7961 + $0x14] sm:$0xf]
      %v7967 = vld [vmem:[%s7961 + $0x18] sm:$0x7]
      %v7968 = vld [vmem:[%s7961 + $0x20] sm:$0xc]
      %v7969 = vld [vmem:[%s7961 + $0x24] sm:$0xf]
      %v7970 = vld [vmem:[%s7961 + $0x28] sm:$0x7]
      %v7971 = vld [vmem:[%s7961 + $0x30] sm:$0xc]
      %v7972 = vld [vmem:[%s7961 + $0x34] sm:$0xf]
      %v7973 = vld [vmem:[%s7961 + $0x38] sm:$0x7]
      %v7974 = vld [vmem:[%s7961 + $0x40] sm:$0xc]
      %v7975 = vld [vmem:[%s7961 + $0x44] sm:$0xf]
      %v7976 = vld [vmem:[%s7961 + $0x48] sm:$0x7]
      %v7977 = vld [vmem:[%s7961 + $0x50] sm:$0xc]
      %v7978 = vld [vmem:[%s7961 + $0x54] sm:$0xf]
      %v7979 = vld [vmem:[%s7961 + $0x58] sm:$0x7]
      %v7980 = vld [vmem:[%s7961 + $0x60] sm:$0xc]
      %v7981 = vld [vmem:[%s7961 + $0x64] sm:$0xf]
      %v7982 = vld [vmem:[%s7961 + $0x68] sm:$0x7]
      %v7983 = vld [vmem:[%s7961 + $0x70] sm:$0xc]
      %v7984 = vld [vmem:[%s7961 + $0x74] sm:$0xf]
      %v7985 = vld [vmem:[%s7961 + $0x78] sm:$0x7]
      %vm7986 = vsmask.f32 1280
      %vm7987 = vsmask.f32 5392
      %vm7988 = vmor %vm7986, %vm7987
      %v7990 = vshrl.u32 %v7962, 16
      %v7992 = vrot.slane %v7990, 6
      %v7993 = vshll.u32 %v7962, 16
      %v7995 = vrot.slane %v7993, 7
      %v7996 = vor.u32 %v7992, %v7995
      %v7997 = vrot.slane %v7996, 4
      %v7999 = vshrl.u32 %v7963, 16
      %v8001 = vrot.slane %v7999, 6
      %v8002 = vshll.u32 %v7963, 16
      %v8004 = vrot.slane %v8002, 7
      %v8005 = vor.u32 %v8001, %v8004
      %v8006 = vsel %vm7988, %v7997, %v8005
      %v8007 = vrot.slane %v8005, 4
      %v8009 = vshrl.u32 %v7964, 16
      %v8011 = vrot.slane %v8009, 6
      %v8012 = vshll.u32 %v7964, 16
      %v8014 = vrot.slane %v8012, 7
      %v8015 = vor.u32 %v8011, %v8014
      %v8016 = vsel %vm7988, %v8007, %v8015
      %v8018 = vshrl.u32 %v7965, 16
      %v8020 = vrot.slane %v8018, 6
      %v8021 = vshll.u32 %v7965, 16
      %v8023 = vrot.slane %v8021, 7
      %v8024 = vor.u32 %v8020, %v8023
      %v8025 = vrot.slane %v8024, 4
      %v8027 = vshrl.u32 %v7966, 16
      %v8029 = vrot.slane %v8027, 6
      %v8030 = vshll.u32 %v7966, 16
      %v8032 = vrot.slane %v8030, 7
      %v8033 = vor.u32 %v8029, %v8032
      %v8034 = vsel %vm7988, %v8025, %v8033
      %v8035 = vrot.slane %v8033, 4
      %v8037 = vshrl.u32 %v7967, 16
      %v8039 = vrot.slane %v8037, 6
      %v8040 = vshll.u32 %v7967, 16
      %v8042 = vrot.slane %v8040, 7
      %v8043 = vor.u32 %v8039, %v8042
      %v8044 = vsel %vm7988, %v8035, %v8043
      %v8046 = vshrl.u32 %v7968, 16
      %v8048 = vrot.slane %v8046, 6
      %v8049 = vshll.u32 %v7968, 16
      %v8051 = vrot.slane %v8049, 7
      %v8052 = vor.u32 %v8048, %v8051
      %v8053 = vrot.slane %v8052, 4
      %v8055 = vshrl.u32 %v7969, 16
      %v8057 = vrot.slane %v8055, 6
      %v8058 = vshll.u32 %v7969, 16
      %v8060 = vrot.slane %v8058, 7
      %v8061 = vor.u32 %v8057, %v8060
      %v8062 = vsel %vm7988, %v8053, %v8061
      %v8063 = vrot.slane %v8061, 4
      %v8065 = vshrl.u32 %v7970, 16
      %v8067 = vrot.slane %v8065, 6
      %v8068 = vshll.u32 %v7970, 16
      %v8070 = vrot.slane %v8068, 7
      %v8071 = vor.u32 %v8067, %v8070
      %v8072 = vsel %vm7988, %v8063, %v8071
      %v8074 = vshrl.u32 %v7971, 16
      %v8076 = vrot.slane %v8074, 6
      %v8077 = vshll.u32 %v7971, 16
      %v8079 = vrot.slane %v8077, 7
      %v8080 = vor.u32 %v8076, %v8079
      %v8081 = vrot.slane %v8080, 4
      %v8083 = vshrl.u32 %v7972, 16
      %v8085 = vrot.slane %v8083, 6
      %v8086 = vshll.u32 %v7972, 16
      %v8088 = vrot.slane %v8086, 7
      %v8089 = vor.u32 %v8085, %v8088
      %v8090 = vsel %vm7988, %v8081, %v8089
      %v8091 = vrot.slane %v8089, 4
      %v8093 = vshrl.u32 %v7973, 16
      %v8095 = vrot.slane %v8093, 6
      %v8096 = vshll.u32 %v7973, 16
      %v8098 = vrot.slane %v8096, 7
      %v8099 = vor.u32 %v8095, %v8098
      %v8100 = vsel %vm7988, %v8091, %v8099
      %v8102 = vshrl.u32 %v7974, 16
      %v8104 = vrot.slane %v8102, 6
      %v8105 = vshll.u32 %v7974, 16
      %v8107 = vrot.slane %v8105, 7
      %v8108 = vor.u32 %v8104, %v8107
      %v8109 = vrot.slane %v8108, 4
      %v8111 = vshrl.u32 %v7975, 16
      %v8113 = vrot.slane %v8111, 6
      %v8114 = vshll.u32 %v7975, 16
      %v8116 = vrot.slane %v8114, 7
      %v8117 = vor.u32 %v8113, %v8116
      %v8118 = vsel %vm7988, %v8109, %v8117
      %v8119 = vrot.slane %v8117, 4
      %v8121 = vshrl.u32 %v7976, 16
      %v8123 = vrot.slane %v8121, 6
      %v8124 = vshll.u32 %v7976, 16
      %v8126 = vrot.slane %v8124, 7
      %v8127 = vor.u32 %v8123, %v8126
      %v8128 = vsel %vm7988, %v8119, %v8127
      %v8130 = vshrl.u32 %v7977, 16
      %v8132 = vrot.slane %v8130, 6
      %v8133 = vshll.u32 %v7977, 16
      %v8135 = vrot.slane %v8133, 7
      %v8136 = vor.u32 %v8132, %v8135
      %v8137 = vrot.slane %v8136, 4
      %v8139 = vshrl.u32 %v7978, 16
      %v8141 = vrot.slane %v8139, 6
      %v8142 = vshll.u32 %v7978, 16
      %v8144 = vrot.slane %v8142, 7
      %v8145 = vor.u32 %v8141, %v8144
      %v8146 = vsel %vm7988, %v8137, %v8145
      %v8147 = vrot.slane %v8145, 4
      %v8149 = vshrl.u32 %v7979, 16
      %v8151 = vrot.slane %v8149, 6
      %v8152 = vshll.u32 %v7979, 16
      %v8154 = vrot.slane %v8152, 7
      %v8155 = vor.u32 %v8151, %v8154
      %v8156 = vsel %vm7988, %v8147, %v8155
      %v8158 = vshrl.u32 %v7980, 16
      %v8160 = vrot.slane %v8158, 6
      %v8161 = vshll.u32 %v7980, 16
      %v8163 = vrot.slane %v8161, 7
      %v8164 = vor.u32 %v8160, %v8163
      %v8165 = vrot.slane %v8164, 4
      %v8167 = vshrl.u32 %v7981, 16
      %v8169 = vrot.slane %v8167, 6
      %v8170 = vshll.u32 %v7981, 16
      %v8172 = vrot.slane %v8170, 7
      %v8173 = vor.u32 %v8169, %v8172
      %v8174 = vsel %vm7988, %v8165, %v8173
      %v8175 = vrot.slane %v8173, 4
      %v8177 = vshrl.u32 %v7982, 16
      %v8179 = vrot.slane %v8177, 6
      %v8180 = vshll.u32 %v7982, 16
      %v8182 = vrot.slane %v8180, 7
      %v8183 = vor.u32 %v8179, %v8182
      %v8184 = vsel %vm7988, %v8175, %v8183
      %v8186 = vshrl.u32 %v7983, 16
      %v8188 = vrot.slane %v8186, 6
      %v8189 = vshll.u32 %v7983, 16
      %v8191 = vrot.slane %v8189, 7
      %v8192 = vor.u32 %v8188, %v8191
      %v8193 = vrot.slane %v8192, 4
      %v8195 = vshrl.u32 %v7984, 16
      %v8197 = vrot.slane %v8195, 6
      %v8198 = vshll.u32 %v7984, 16
      %v8200 = vrot.slane %v8198, 7
      %v8201 = vor.u32 %v8197, %v8200
      %v8202 = vsel %vm7988, %v8193, %v8201
      %v8203 = vrot.slane %v8201, 4
      %v8205 = vshrl.u32 %v7985, 16
      %v8207 = vrot.slane %v8205, 6
      %v8208 = vshll.u32 %v7985, 16
      %v8210 = vrot.slane %v8208, 7
      %v8211 = vor.u32 %v8207, %v8210
      %v8212 = vsel %vm7988, %v8203, %v8211
      %s8213 = smul.addr %s7959, 4
      %s8214 = scalar_lea.vmem %s312, %s8213
      %v8215 = vld [vmem:[%s8214] sm:$0xc]
      %v8216 = vld [vmem:[%s8214 + $0x4] sm:$0xf]
      %v8217 = vld [vmem:[%s8214 + $0x8] sm:$0x7]
      %v8218 = vld [vmem:[%s8214 + $0x10] sm:$0xc]
      %v8219 = vld [vmem:[%s8214 + $0x14] sm:$0xf]
      %v8220 = vld [vmem:[%s8214 + $0x18] sm:$0x7]
      %v8221 = vld [vmem:[%s8214 + $0x20] sm:$0xc]
      %v8222 = vld [vmem:[%s8214 + $0x24] sm:$0xf]
      %v8223 = vld [vmem:[%s8214 + $0x28] sm:$0x7]
      %v8224 = vld [vmem:[%s8214 + $0x30] sm:$0xc]
      %v8225 = vld [vmem:[%s8214 + $0x34] sm:$0xf]
      %v8226 = vld [vmem:[%s8214 + $0x38] sm:$0x7]
      %v8227 = vld [vmem:[%s8214 + $0x40] sm:$0xc]
      %v8228 = vld [vmem:[%s8214 + $0x44] sm:$0xf]
      %v8229 = vld [vmem:[%s8214 + $0x48] sm:$0x7]
      %v8230 = vld [vmem:[%s8214 + $0x50] sm:$0xc]
      %v8231 = vld [vmem:[%s8214 + $0x54] sm:$0xf]
      %v8232 = vld [vmem:[%s8214 + $0x58] sm:$0x7]
      %v8233 = vld [vmem:[%s8214 + $0x60] sm:$0xc]
      %v8234 = vld [vmem:[%s8214 + $0x64] sm:$0xf]
      %v8235 = vld [vmem:[%s8214 + $0x68] sm:$0x7]
      %v8236 = vld [vmem:[%s8214 + $0x70] sm:$0xc]
      %v8237 = vld [vmem:[%s8214 + $0x74] sm:$0xf]
      %v8238 = vld [vmem:[%s8214 + $0x78] sm:$0x7]
      %v8240 = vshrl.u32 %v8215, 16
      %v8242 = vrot.slane %v8240, 6
      %v8243 = vshll.u32 %v8215, 16
      %v8245 = vrot.slane %v8243, 7
      %v8246 = vor.u32 %v8242, %v8245
      %v8247 = vrot.slane %v8246, 4
      %v8249 = vshrl.u32 %v8216, 16
      %v8251 = vrot.slane %v8249, 6
      %v8252 = vshll.u32 %v8216, 16
      %v8254 = vrot.slane %v8252, 7
      %v8255 = vor.u32 %v8251, %v8254
      %v8256 = vsel %vm7988, %v8247, %v8255
      %v8257 = vrot.slane %v8255, 4
      %v8259 = vshrl.u32 %v8217, 16
      %v8261 = vrot.slane %v8259, 6
      %v8262 = vshll.u32 %v8217, 16
      %v8264 = vrot.slane %v8262, 7
      %v8265 = vor.u32 %v8261, %v8264
      %v8266 = vsel %vm7988, %v8257, %v8265
      %v8268 = vshrl.u32 %v8218, 16
      %v8270 = vrot.slane %v8268, 6
      %v8271 = vshll.u32 %v8218, 16
      %v8273 = vrot.slane %v8271, 7
      %v8274 = vor.u32 %v8270, %v8273
      %v8275 = vrot.slane %v8274, 4
      %v8277 = vshrl.u32 %v8219, 16
      %v8279 = vrot.slane %v8277, 6
      %v8280 = vshll.u32 %v8219, 16
      %v8282 = vrot.slane %v8280, 7
      %v8283 = vor.u32 %v8279, %v8282
      %v8284 = vsel %vm7988, %v8275, %v8283
      %v8285 = vrot.slane %v8283, 4
      %v8287 = vshrl.u32 %v8220, 16
      %v8289 = vrot.slane %v8287, 6
      %v8290 = vshll.u32 %v8220, 16
      %v8292 = vrot.slane %v8290, 7
      %v8293 = vor.u32 %v8289, %v8292
      %v8294 = vsel %vm7988, %v8285, %v8293
      %v8296 = vshrl.u32 %v8221, 16
      %v8298 = vrot.slane %v8296, 6
      %v8299 = vshll.u32 %v8221, 16
      %v8301 = vrot.slane %v8299, 7
      %v8302 = vor.u32 %v8298, %v8301
      %v8303 = vrot.slane %v8302, 4
      %v8305 = vshrl.u32 %v8222, 16
      %v8307 = vrot.slane %v8305, 6
      %v8308 = vshll.u32 %v8222, 16
      %v8310 = vrot.slane %v8308, 7
      %v8311 = vor.u32 %v8307, %v8310
      %v8312 = vsel %vm7988, %v8303, %v8311
      %v8313 = vrot.slane %v8311, 4
      %v8315 = vshrl.u32 %v8223, 16
      %v8317 = vrot.slane %v8315, 6
      %v8318 = vshll.u32 %v8223, 16
      %v8320 = vrot.slane %v8318, 7
      %v8321 = vor.u32 %v8317, %v8320
      %v8322 = vsel %vm7988, %v8313, %v8321
      %v8324 = vshrl.u32 %v8224, 16
      %v8326 = vrot.slane %v8324, 6
      %v8327 = vshll.u32 %v8224, 16
      %v8329 = vrot.slane %v8327, 7
      %v8330 = vor.u32 %v8326, %v8329
      %v8331 = vrot.slane %v8330, 4
      %v8333 = vshrl.u32 %v8225, 16
      %v8335 = vrot.slane %v8333, 6
      %v8336 = vshll.u32 %v8225, 16
      %v8338 = vrot.slane %v8336, 7
      %v8339 = vor.u32 %v8335, %v8338
      %v8340 = vsel %vm7988, %v8331, %v8339
      %v8341 = vrot.slane %v8339, 4
      %v8343 = vshrl.u32 %v8226, 16
      %v8345 = vrot.slane %v8343, 6
      %v8346 = vshll.u32 %v8226, 16
      %v8348 = vrot.slane %v8346, 7
      %v8349 = vor.u32 %v8345, %v8348
      %v8350 = vsel %vm7988, %v8341, %v8349
      %v8352 = vshrl.u32 %v8227, 16
      %v8354 = vrot.slane %v8352, 6
      %v8355 = vshll.u32 %v8227, 16
      %v8357 = vrot.slane %v8355, 7
      %v8358 = vor.u32 %v8354, %v8357
      %v8359 = vrot.slane %v8358, 4
      %v8361 = vshrl.u32 %v8228, 16
      %v8363 = vrot.slane %v8361, 6
      %v8364 = vshll.u32 %v8228, 16
      %v8366 = vrot.slane %v8364, 7
      %v8367 = vor.u32 %v8363, %v8366
      %v8368 = vsel %vm7988, %v8359, %v8367
      %v8369 = vrot.slane %v8367, 4
      %v8371 = vshrl.u32 %v8229, 16
      %v8373 = vrot.slane %v8371, 6
      %v8374 = vshll.u32 %v8229, 16
      %v8376 = vrot.slane %v8374, 7
      %v8377 = vor.u32 %v8373, %v8376
      %v8378 = vsel %vm7988, %v8369, %v8377
      %v8380 = vshrl.u32 %v8230, 16
      %v8382 = vrot.slane %v8380, 6
      %v8383 = vshll.u32 %v8230, 16
      %v8385 = vrot.slane %v8383, 7
      %v8386 = vor.u32 %v8382, %v8385
      %v8387 = vrot.slane %v8386, 4
      %v8389 = vshrl.u32 %v8231, 16
      %v8391 = vrot.slane %v8389, 6
      %v8392 = vshll.u32 %v8231, 16
      %v8394 = vrot.slane %v8392, 7
      %v8395 = vor.u32 %v8391, %v8394
      %v8396 = vsel %vm7988, %v8387, %v8395
      %v8397 = vrot.slane %v8395, 4
      %v8399 = vshrl.u32 %v8232, 16
      %v8401 = vrot.slane %v8399, 6
      %v8402 = vshll.u32 %v8232, 16
      %v8404 = vrot.slane %v8402, 7
      %v8405 = vor.u32 %v8401, %v8404
      %v8406 = vsel %vm7988, %v8397, %v8405
      %v8408 = vshrl.u32 %v8233, 16
      %v8410 = vrot.slane %v8408, 6
      %v8411 = vshll.u32 %v8233, 16
      %v8413 = vrot.slane %v8411, 7
      %v8414 = vor.u32 %v8410, %v8413
      %v8415 = vrot.slane %v8414, 4
      %v8417 = vshrl.u32 %v8234, 16
      %v8419 = vrot.slane %v8417, 6
      %v8420 = vshll.u32 %v8234, 16
      %v8422 = vrot.slane %v8420, 7
      %v8423 = vor.u32 %v8419, %v8422
      %v8424 = vsel %vm7988, %v8415, %v8423
      %v8425 = vrot.slane %v8423, 4
      %v8427 = vshrl.u32 %v8235, 16
      %v8429 = vrot.slane %v8427, 6
      %v8430 = vshll.u32 %v8235, 16
      %v8432 = vrot.slane %v8430, 7
      %v8433 = vor.u32 %v8429, %v8432
      %v8434 = vsel %vm7988, %v8425, %v8433
      %v8436 = vshrl.u32 %v8236, 16
      %v8438 = vrot.slane %v8436, 6
      %v8439 = vshll.u32 %v8236, 16
      %v8441 = vrot.slane %v8439, 7
      %v8442 = vor.u32 %v8438, %v8441
      %v8443 = vrot.slane %v8442, 4
      %v8445 = vshrl.u32 %v8237, 16
      %v8447 = vrot.slane %v8445, 6
      %v8448 = vshll.u32 %v8237, 16
      %v8450 = vrot.slane %v8448, 7
      %v8451 = vor.u32 %v8447, %v8450
      %v8452 = vsel %vm7988, %v8443, %v8451
      %v8453 = vrot.slane %v8451, 4
      %v8455 = vshrl.u32 %v8238, 16
      %v8457 = vrot.slane %v8455, 6
      %v8458 = vshll.u32 %v8238, 16
      %v8460 = vrot.slane %v8458, 7
      %v8461 = vor.u32 %v8457, %v8460
      %v8462 = vsel %vm7988, %v8453, %v8461
      %v8463 = vunpack.c.l.b16 %v8006
      %v8464 = vunpack.c.l.b16 %v8016
      %v8465 = vunpack.c.l.b16 %v8034
      %v8466 = vunpack.c.l.b16 %v8044
      %v8467 = vunpack.c.l.b16 %v8062
      %v8468 = vunpack.c.l.b16 %v8072
      %v8469 = vunpack.c.l.b16 %v8090
      %v8470 = vunpack.c.l.b16 %v8100
      %v8471 = vunpack.c.l.b16 %v8118
      %v8472 = vunpack.c.l.b16 %v8128
      %v8473 = vunpack.c.l.b16 %v8146
      %v8474 = vunpack.c.l.b16 %v8156
      %v8475 = vunpack.c.l.b16 %v8174
      %v8476 = vunpack.c.l.b16 %v8184
      %v8477 = vunpack.c.l.b16 %v8202
      %v8478 = vunpack.c.l.b16 %v8212
      %v8479 = vpack.c.b16 %v8464, %v8463
      %v8480 = vpack.c.b16 %v8466, %v8465
      %v8481 = vpack.c.b16 %v8468, %v8467
      %v8482 = vpack.c.b16 %v8470, %v8469
      %v8483 = vpack.c.b16 %v8472, %v8471
      %v8484 = vpack.c.b16 %v8474, %v8473
      %v8485 = vpack.c.b16 %v8476, %v8475
      %v8486 = vpack.c.b16 %v8478, %v8477
      %v8495 = vunpack.c.l.b16 %v8256
      %v8496 = vunpack.c.l.b16 %v8266
      %v8497 = vunpack.c.l.b16 %v8284
      %v8498 = vunpack.c.l.b16 %v8294
      %v8499 = vunpack.c.l.b16 %v8312
      %v8500 = vunpack.c.l.b16 %v8322
      %v8501 = vunpack.c.l.b16 %v8340
      %v8502 = vunpack.c.l.b16 %v8350
      %v8503 = vunpack.c.l.b16 %v8368
      %v8504 = vunpack.c.l.b16 %v8378
      %v8505 = vunpack.c.l.b16 %v8396
      %v8506 = vunpack.c.l.b16 %v8406
      %v8507 = vunpack.c.l.b16 %v8424
      %v8508 = vunpack.c.l.b16 %v8434
      %v8509 = vunpack.c.l.b16 %v8452
      %v8510 = vunpack.c.l.b16 %v8462
      %v8511 = vpack.c.b16 %v8496, %v8495
      %v8512 = vpack.c.b16 %v8498, %v8497
      %v8513 = vpack.c.b16 %v8500, %v8499
      %v8514 = vpack.c.b16 %v8502, %v8501
      %v8515 = vpack.c.b16 %v8504, %v8503
      %v8516 = vpack.c.b16 %v8506, %v8505
      %v8517 = vpack.c.b16 %v8508, %v8507
      %v8518 = vpack.c.b16 %v8510, %v8509
      %v8527 = vunpack.c.l.bf16 %v8479
      %v8528 = vunpack.c.l.bf16 %v8511
      %v8529 = vunpack.c.h.bf16 %v8479
      %v8530 = vunpack.c.h.bf16 %v8511
      %v8531 = vunpack.c.l.bf16 %v8480
      %v8532 = vunpack.c.l.bf16 %v8512
      %v8533 = vunpack.c.h.bf16 %v8480
      %v8534 = vunpack.c.h.bf16 %v8512
      %v8535 = vunpack.c.l.bf16 %v8481
      %v8536 = vunpack.c.l.bf16 %v8513
      %v8537 = vunpack.c.h.bf16 %v8481
      %v8538 = vunpack.c.h.bf16 %v8513
      %v8539 = vunpack.c.l.bf16 %v8482
      %v8540 = vunpack.c.l.bf16 %v8514
      %v8541 = vunpack.c.h.bf16 %v8482
      %v8542 = vunpack.c.h.bf16 %v8514
      %v8543 = vunpack.c.l.bf16 %v8483
      %v8544 = vunpack.c.l.bf16 %v8515
      %v8545 = vunpack.c.h.bf16 %v8483
      %v8546 = vunpack.c.h.bf16 %v8515
      %v8547 = vunpack.c.l.bf16 %v8484
      %v8548 = vunpack.c.l.bf16 %v8516
      %v8549 = vunpack.c.h.bf16 %v8484
      %v8550 = vunpack.c.h.bf16 %v8516
      %v8551 = vunpack.c.l.bf16 %v8485
      %v8552 = vunpack.c.l.bf16 %v8517
      %v8553 = vunpack.c.h.bf16 %v8485
      %v8554 = vunpack.c.h.bf16 %v8517
      %v8555 = vunpack.c.l.bf16 %v8486
      %v8556 = vunpack.c.l.bf16 %v8518
      %v8557 = vunpack.c.h.bf16 %v8486
      %v8558 = vunpack.c.h.bf16 %v8518
      %v8559 = vld [vmem:[#allocation2] sm:$0xff]
      %v8560 = vld [vmem:[#allocation2 + $0x8] sm:$0xff]
      %v8561 = vld [vmem:[#allocation2 + $0x10] sm:$0xff]
      %v8562 = vld [vmem:[#allocation2 + $0x18] sm:$0xff]
      %v8563 = vld [vmem:[#allocation2 + $0x20] sm:$0xff]
      %v8564 = vld [vmem:[#allocation2 + $0x28] sm:$0xff]
      %v8565 = vld [vmem:[#allocation2 + $0x30] sm:$0xff]
      %v8566 = vld [vmem:[#allocation2 + $0x38] sm:$0xff]
      %v8567 = vld [vmem:[#allocation2 + $0x40] sm:$0xff]
      %v8568 = vld [vmem:[#allocation2 + $0x48] sm:$0xff]
      %v8569 = vld [vmem:[#allocation2 + $0x50] sm:$0xff]
      %v8570 = vld [vmem:[#allocation2 + $0x58] sm:$0xff]
      %v8571 = vld [vmem:[#allocation2 + $0x60] sm:$0xff]
      %v8572 = vld [vmem:[#allocation2 + $0x68] sm:$0xff]
      %v8573 = vld [vmem:[#allocation2 + $0x70] sm:$0xff]
      %v8574 = vld [vmem:[#allocation2 + $0x78] sm:$0xff]
      %v8575 = vld [vmem:[#allocation2 + $0x80] sm:$0xff]
      %v8576 = vld [vmem:[#allocation2 + $0x88] sm:$0xff]
      %v8577 = vld [vmem:[#allocation2 + $0x90] sm:$0xff]
      %v8578 = vld [vmem:[#allocation2 + $0x98] sm:$0xff]
      %v8579 = vld [vmem:[#allocation2 + $0xa0] sm:$0xff]
      %v8580 = vld [vmem:[#allocation2 + $0xa8] sm:$0xff]
      %v8581 = vld [vmem:[#allocation2 + $0xb0] sm:$0xff]
      %v8582 = vld [vmem:[#allocation2 + $0xb8] sm:$0xff]
      %v8583 = vld [vmem:[#allocation2 + $0xc0] sm:$0xff]
      %v8584 = vld [vmem:[#allocation2 + $0xc8] sm:$0xff]
      %v8585 = vld [vmem:[#allocation2 + $0xd0] sm:$0xff]
      %v8586 = vld [vmem:[#allocation2 + $0xd8] sm:$0xff]
      %v8587 = vld [vmem:[#allocation2 + $0xe0] sm:$0xff]
      %v8588 = vld [vmem:[#allocation2 + $0xe8] sm:$0xff]
      %v8589 = vld [vmem:[#allocation2 + $0xf0] sm:$0xff]
      %v8590 = vld [vmem:[#allocation2 + $0xf8] sm:$0xff]
      %v8591 = vld [vmem:[%s6] sm:$0x3]
      %v8593 = vlaneseq
      %v8594 = vshrl.u32 %v8593, 7
      %v8595 = vsub.s32 0, %v8594
      %v8596 = vrot.slane %v8591, %v8595
      %v8597 = vlaneseq
      %v8598 = vshrl.u32 %v8597, 7
      %v8599 = vsub.s32 1, %v8598
      %v8600 = vrot.slane %v8591, %v8599
      %v8603 = vadd.f32 %v8559, %v8596
      %v8604 = vadd.f32 %v8560, %v8600
      %v8605 = vadd.f32 %v8561, %v8596
      %v8606 = vadd.f32 %v8562, %v8600
      %v8607 = vadd.f32 %v8563, %v8596
      %v8608 = vadd.f32 %v8564, %v8600
      %v8609 = vadd.f32 %v8565, %v8596
      %v8610 = vadd.f32 %v8566, %v8600
      %v8611 = vadd.f32 %v8567, %v8596
      %v8612 = vadd.f32 %v8568, %v8600
      %v8613 = vadd.f32 %v8569, %v8596
      %v8614 = vadd.f32 %v8570, %v8600
      %v8615 = vadd.f32 %v8571, %v8596
      %v8616 = vadd.f32 %v8572, %v8600
      %v8617 = vadd.f32 %v8573, %v8596
      %v8618 = vadd.f32 %v8574, %v8600
      %v8619 = vadd.f32 %v8575, %v8596
      %v8620 = vadd.f32 %v8576, %v8600
      %v8621 = vadd.f32 %v8577, %v8596
      %v8622 = vadd.f32 %v8578, %v8600
      %v8623 = vadd.f32 %v8579, %v8596
      %v8624 = vadd.f32 %v8580, %v8600
      %v8625 = vadd.f32 %v8581, %v8596
      %v8626 = vadd.f32 %v8582, %v8600
      %v8627 = vadd.f32 %v8583, %v8596
      %v8628 = vadd.f32 %v8584, %v8600
      %v8629 = vadd.f32 %v8585, %v8596
      %v8630 = vadd.f32 %v8586, %v8600
      %v8631 = vadd.f32 %v8587, %v8596
      %v8632 = vadd.f32 %v8588, %v8600
      %v8633 = vadd.f32 %v8589, %v8596
      %v8634 = vadd.f32 %v8590, %v8600
      %v8635 = vadd.f32 %v8603, %v8527
      %v8636 = vadd.f32 %v8604, %v8528
      %v8637 = vadd.f32 %v8605, %v8529
      %v8638 = vadd.f32 %v8606, %v8530
      %v8639 = vadd.f32 %v8607, %v8531
      %v8640 = vadd.f32 %v8608, %v8532
      %v8641 = vadd.f32 %v8609, %v8533
      %v8642 = vadd.f32 %v8610, %v8534
      %v8643 = vadd.f32 %v8611, %v8535
      %v8644 = vadd.f32 %v8612, %v8536
      %v8645 = vadd.f32 %v8613, %v8537
      %v8646 = vadd.f32 %v8614, %v8538
      %v8647 = vadd.f32 %v8615, %v8539
      %v8648 = vadd.f32 %v8616, %v8540
      %v8649 = vadd.f32 %v8617, %v8541
      %v8650 = vadd.f32 %v8618, %v8542
      %v8651 = vadd.f32 %v8619, %v8543
      %v8652 = vadd.f32 %v8620, %v8544
      %v8653 = vadd.f32 %v8621, %v8545
      %v8654 = vadd.f32 %v8622, %v8546
      %v8655 = vadd.f32 %v8623, %v8547
      %v8656 = vadd.f32 %v8624, %v8548
      %v8657 = vadd.f32 %v8625, %v8549
      %v8658 = vadd.f32 %v8626, %v8550
      %v8659 = vadd.f32 %v8627, %v8551
      %v8660 = vadd.f32 %v8628, %v8552
      %v8661 = vadd.f32 %v8629, %v8553
      %v8662 = vadd.f32 %v8630, %v8554
      %v8663 = vadd.f32 %v8631, %v8555
      %v8664 = vadd.f32 %v8632, %v8556
      %v8665 = vadd.f32 %v8633, %v8557
      %v8666 = vadd.f32 %v8634, %v8558
      %8667 = vst [vmem:[%s322] sm:$0xff] %v8635
      %8668 = vst [vmem:[%s322 + $0x8] sm:$0xff] %v8636
      %8669 = vst [vmem:[%s322 + $0x10] sm:$0xff] %v8637
      %8670 = vst [vmem:[%s322 + $0x18] sm:$0xff] %v8638
      %8671 = vst [vmem:[%s322 + $0x20] sm:$0xff] %v8639
      %8672 = vst [vmem:[%s322 + $0x28] sm:$0xff] %v8640
      %8673 = vst [vmem:[%s322 + $0x30] sm:$0xff] %v8641
      %8674 = vst [vmem:[%s322 + $0x38] sm:$0xff] %v8642
      %8675 = vst [vmem:[%s322 + $0x40] sm:$0xff] %v8643
      %8676 = vst [vmem:[%s322 + $0x48] sm:$0xff] %v8644
      %8677 = vst [vmem:[%s322 + $0x50] sm:$0xff] %v8645
      %8678 = vst [vmem:[%s322 + $0x58] sm:$0xff] %v8646
      %8679 = vst [vmem:[%s322 + $0x60] sm:$0xff] %v8647
      %8680 = vst [vmem:[%s322 + $0x68] sm:$0xff] %v8648
      %8681 = vst [vmem:[%s322 + $0x70] sm:$0xff] %v8649
      %8682 = vst [vmem:[%s322 + $0x78] sm:$0xff] %v8650
      %8683 = vst [vmem:[%s322 + $0x80] sm:$0xff] %v8651
      %8684 = vst [vmem:[%s322 + $0x88] sm:$0xff] %v8652
      %8685 = vst [vmem:[%s322 + $0x90] sm:$0xff] %v8653
      %8686 = vst [vmem:[%s322 + $0x98] sm:$0xff] %v8654
      %8687 = vst [vmem:[%s322 + $0xa0] sm:$0xff] %v8655
      %8688 = vst [vmem:[%s322 + $0xa8] sm:$0xff] %v8656
      %8689 = vst [vmem:[%s322 + $0xb0] sm:$0xff] %v8657
      %8690 = vst [vmem:[%s322 + $0xb8] sm:$0xff] %v8658
      %8691 = vst [vmem:[%s322 + $0xc0] sm:$0xff] %v8659
      %8692 = vst [vmem:[%s322 + $0xc8] sm:$0xff] %v8660
      %8693 = vst [vmem:[%s322 + $0xd0] sm:$0xff] %v8661
      %8694 = vst [vmem:[%s322 + $0xd8] sm:$0xff] %v8662
      %8695 = vst [vmem:[%s322 + $0xe0] sm:$0xff] %v8663
      %8696 = vst [vmem:[%s322 + $0xe8] sm:$0xff] %v8664
      %8697 = vst [vmem:[%s322 + $0xf0] sm:$0xff] %v8665
      %8698 = vst [vmem:[%s322 + $0xf8] sm:$0xff] %v8666
      %s8699 = smul.u32 8, %s23
      %p8700 = scmp.lt.s32.totalorder %s22, 1
      %s8701 = scalar_select %p8700, %s22, 1
      %p8702 = scmp.lt.s32.totalorder %s8699, 15
      %s8703 = scalar_select %p8702, %s8699, 15
      %s8704 = smul.addr %s8703, 4
      %s8705 = smul.addr %s8701, 64
      %s8706 = sadd.s32 %s8704, %s8705
      %s8707 = smul.addr %s8706, 8
      %s8708 = scalar_lea.vmem %s7, %s8707
      // Predicated region
      $region49: #{sem_forward.1} parent=47 // pred_check
        %p8709 = pneg %p207
      $region50: #{sem_forward.1} parent=47 // pred_check_branch
        %8711 = sbr.rel (%p8709) target = $region52
      $region51: #{sem_forward.1} parent=47 // pred_region
        %s8712 = smul.u32 8, %s23
      $region52: #{sem_forward.1} parent=47 // pred_fallthru
        _
    $region48: #{sem_forward.1} parent=5 // pred_fallthru
      _
    %p8713 = scmp.le.s32.totalorder 2, %s13
    // Predicated region
    $region53: #{sem_forward.1} parent=5 // pred_check
      %p8714 = pneg %p8713
    $region54: #{sem_forward.1} parent=5 // pred_check_branch
      %8716 = sbr.rel (%p8714) target = $region56
    $region55: #{sem_forward.1} parent=5 // pred_region
      %s8717 = ssub.s32 %s13, 2
      // Predicated region
      $region57: #{sem_forward.1} parent=55 // pred_check
        %p8718 = pneg %p213
      $region58: #{sem_forward.1} parent=55 // pred_check_branch
        %8720 = sbr.rel (%p8718) target = $region60
      $region59: #{sem_forward.1} parent=55 // pred_region
        %s8721 = smul.u32 8, %s25
        %p8722 = scmp.lt.s32.totalorder %s24, 1
        %s8723 = scalar_select %p8722, %s24, 1
        %p8724 = scmp.lt.s32.totalorder %s8721, 15
        %s8725 = scalar_select %p8724, %s8721, 15
        %s8726 = smul.addr %s8725, 4
        %s8727 = smul.addr %s8723, 64
        %s8728 = sadd.s32 %s8726, %s8727
        %s8729 = smul.addr %s8728, 8
        %s8730 = scalar_lea.vmem %s7, %s8729
      $region60: #{sem_forward.1} parent=55 // pred_fallthru
        _
    $region56: #{sem_forward.1} parent=5 // pred_fallthru
      _
  $region6: #{sem_forward.1} parent=0 // loop_footer
    %s17 = sadd.s32 1, %s13
  $region7: #{sem_forward.1} parent=0 // loop_footer_branch
    %12 = sbr.rel target = $region3
  $region8: #{sem_forward.1} parent=0 // loop_exit
    _

</llo_original>
